<compile_context>
chip_gen: v7x
topology: tpu7x:2x2x1
jax: 0.10.0
libtpu: 0.0.40
codegen_flags: <defaults>
</compile_context>

<pallas_src>
import jax
import jax.numpy as jnp
from jax.experimental import pallas as pl
from jax.experimental.pallas import tpu as pltpu


def _round_up(x, m):
    return ((x + m - 1) // m) * m


# ---------------------------------------------------------------------------
# Prologue: GTConv weighted edge-type sums (both convs in one pass over A).
# ---------------------------------------------------------------------------
def gtconv_kernel(f1_ref, f2_ref, a_ref, a1_ref, a2_ref):
    # f1_ref, f2_ref : SMEM (out_ch, in_ch)  softmaxed GTConv filters (prefetch)
    # a_ref          : VMEM (in_ch, tr, tc)  f32 adjacency tile stack
    # a1_ref, a2_ref : VMEM (out_ch, tr, tc) bf16 weighted-sum outputs
    out_ch, in_ch = f1_ref.shape
    a = a_ref[...]                                # (in_ch, tr, tc) f32
    for o in range(out_ch):                       # static, fully unrolled
        s1 = f1_ref[o, 0] * a[0]
        s2 = f2_ref[o, 0] * a[0]
        for c in range(1, in_ch):
            s1 = s1 + f1_ref[o, c] * a[c]
            s2 = s2 + f2_ref[o, c] * a[c]
        # One streamed store per output channel, directly as bf16.
        a1_ref[o] = s1.astype(a1_ref.dtype)
        a2_ref[o] = s2.astype(a2_ref.dtype)


# ---------------------------------------------------------------------------
# Main: batched tiled matmul  H[o] = A1[o] @ A2[o]  (spspmm equivalent).
# ---------------------------------------------------------------------------
def gtmatmul_kernel(a1_ref, a2_ref, h_ref, acc_ref):
    # a1_ref : VMEM (1, tm, tk) bf16     a2_ref : VMEM (1, tk, tn) bf16
    # h_ref  : VMEM (1, tm, tn) f32      acc_ref: VMEM (tm, tn)    f32
    k = pl.program_id(3)

    @pl.when(k == 0)
    def _():
        acc_ref[...] = jnp.zeros_like(acc_ref)

    acc_ref[...] += jnp.dot(a1_ref[0], a2_ref[0],
                            preferred_element_type=jnp.float32)

    @pl.when(k == pl.num_programs(3) - 1)
    def _():
        # Keep f32 output for parity with the torch layer; downstream could
        # switch this (and out_shape) to bf16 to halve writeback if tolerated.
        h_ref[0] = acc_ref[...].astype(h_ref.dtype)


def gtlayer_forward(A_dense, weight1, weight2):
    """Dense-equivalent forward of GTLayer(first=True).

    A_dense:   (in_channels, N, N) adjacency stack (one dense matrix per edge type)
    weight1/2: (out_channels, in_channels) GTConv weights
    Returns (H, W): H is (out_channels, N, N) f32; W = [softmax(w1), softmax(w2)].
    """
    f1 = jax.nn.softmax(weight1.astype(jnp.float32), axis=1)
    f2 = jax.nn.softmax(weight2.astype(jnp.float32), axis=1)
    out_ch, in_ch = weight1.shape
    n = A_dense.shape[-1]

    # ---- tile selection: prefer 512; fall back only on excessive padding.
    n128 = _round_up(n, 128)
    if n128 <= 512:
        tile = n128                      # single tile covers the whole matrix
    else:
        tile = 128
        for cand in (512, 256, 128):
            if _round_up(n128, cand) <= int(1.15 * n128):
                tile = cand
                break
    n_pad = _round_up(n128, tile)
    tm = tn = tk = tile

    # Zero padding is inert for the weighted sum and the matmul.
    A_pad = A_dense.astype(jnp.float32)
    if n_pad != n:
        A_pad = jnp.pad(A_pad, ((0, 0), (0, n_pad - n), (0, n_pad - n)))

    # ---- generation-aware VMEM ceiling (75% of physical per-core VMEM).
    try:
        vmem_cap = int(pltpu.get_tpu_info().vmem_capacity_bytes)
    except Exception:
        vmem_cap = 64 << 20              # conservative (v7x-sized) fallback
    vmem_ceiling = (vmem_cap * 3) // 4   # ~48 MiB on v7x, ~96 MiB on v5e/v6e

    # =======================================================================
    # Pass 1: A1 = einsum('oc,cmn->omn', f1, A), A2 likewise, both bf16.
    # =======================================================================
    gr = gc = n_pad // tile
    conv_block_bytes = (2 * in_ch * tile * tile * 4          # f32 A tiles, 2 bufs
                        + 2 * 2 * out_ch * tile * tile * 2)  # bf16 A1/A2, 2 bufs
    conv_vmem = int(min(max(2 * conv_block_bytes, 16 << 20), vmem_ceiling))
    conv_flops = 4 * out_ch * in_ch * n_pad * n_pad
    conv_bytes = (in_ch * n_pad * n_pad * 4                  # read A once (f32)
                  + 2 * out_ch * n_pad * n_pad * 2           # write A1 + A2 (bf16)
                  + 2 * out_ch * in_ch * 4)                  # filters

    A1, A2 = pl.pallas_call(
        gtconv_kernel,
        out_shape=(jax.ShapeDtypeStruct((out_ch, n_pad, n_pad), jnp.bfloat16),
                   jax.ShapeDtypeStruct((out_ch, n_pad, n_pad), jnp.bfloat16)),
        grid_spec=pltpu.PrefetchScalarGridSpec(
            num_scalar_prefetch=2,                           # f1, f2 -> SMEM
            grid=(gr, gc),
            in_specs=[
                pl.BlockSpec((in_ch, tile, tile),
                             lambda r, c, f1r, f2r: (0, r, c)),
            ],
            out_specs=[
                pl.BlockSpec((out_ch, tile, tile),
                             lambda r, c, f1r, f2r: (0, r, c)),
                pl.BlockSpec((out_ch, tile, tile),
                             lambda r, c, f1r, f2r: (0, r, c)),
            ],
        ),
        compiler_params=pltpu.CompilerParams(
            dimension_semantics=("parallel", "parallel"),
            vmem_limit_bytes=conv_vmem,
        ),
        cost_estimate=pl.CostEstimate(flops=conv_flops, transcendentals=0,
                                      bytes_accessed=conv_bytes),
    )(f1, f2, A_pad)

    # =======================================================================
    # Pass 2: H[o] = A1[o] @ A2[o]  (batched tiled matmul, K innermost).
    # =======================================================================
    gm, gn, gk = n_pad // tm, n_pad // tn, n_pad // tk
    mm_block_bytes = (2 * tm * tk * 2                        # A1 tiles, 2 bufs
                      + 2 * tk * tn * 2                      # A2 tiles, 2 bufs
                      + 2 * tm * tn * 4                      # H output, 2 bufs
                      + tm * tn * 4)                         # f32 accumulator
    mm_vmem = int(min(max(4 * mm_block_bytes, 32 << 20), vmem_ceiling))
    mm_flops = 2 * out_ch * n_pad ** 3
    # Actual per-step DMA (no ideal-reuse assumption) + output writeback.
    mm_bytes = (out_ch * gm * gn * gk * (tm * tk + tk * tn) * 2
                + out_ch * n_pad * n_pad * 4)

    H = pl.pallas_call(
        gtmatmul_kernel,
        out_shape=jax.ShapeDtypeStruct((out_ch, n_pad, n_pad), jnp.float32),
        grid_spec=pltpu.PrefetchScalarGridSpec(
            num_scalar_prefetch=0,
            grid=(out_ch, gm, gn, gk),                       # K innermost
            in_specs=[
                pl.BlockSpec((1, tm, tk), lambda i, m, nn_, k: (i, m, k)),
                pl.BlockSpec((1, tk, tn), lambda i, m, nn_, k: (i, k, nn_)),
            ],
            out_specs=pl.BlockSpec((1, tm, tn),
                                   lambda i, m, nn_, k: (i, m, nn_)),
            scratch_shapes=[pltpu.VMEM((tm, tn), jnp.float32)],
        ),
        compiler_params=pltpu.CompilerParams(
            # out_ch * gm * gn independent programs split across TCs on v7x.
            dimension_semantics=("parallel", "parallel", "parallel", "arbitrary"),
            vmem_limit_bytes=mm_vmem,
        ),
        cost_estimate=pl.CostEstimate(flops=mm_flops, transcendentals=0,
                                      bytes_accessed=mm_bytes),
    )(A1, A2)

    if n_pad != n:
        H = H[:, :n, :n]
    return H, [f1, f2]


if __name__ == "__main__":
    key = jax.random.PRNGKey(0)
    in_channels, out_channels, num_nodes = 4, 2, 512
    k_a, k_m, k_w1, k_w2 = jax.random.split(key, 4)

    # Sparse-ish nonnegative adjacency matrices, one per edge type.
    vals = jax.random.uniform(k_a, (in_channels, num_nodes, num_nodes))
    mask = jax.random.uniform(k_m, (in_channels, num_nodes, num_nodes)) < 0.1
    A_dense = jnp.where(mask, vals, 0.0).astype(jnp.float32)

    # GTConv.reset_parameters: nn.init.normal_(weight, 0.01) == N(mean=0.01, std=1)
    w1 = 0.01 + jax.random.normal(k_w1, (out_channels, in_channels), jnp.float32)
    w2 = 0.01 + jax.random.normal(k_w2, (out_channels, in_channels), jnp.float32)

    H, W = gtlayer_forward(A_dense, w1, w2)
    H = jax.block_until_ready(H)

    # Pure-JAX reference mirroring the kernel's quantization points:
    # f32 weighted channel sum -> bf16 A1/A2 -> f32-accumulated matmul.
    f1, f2 = W
    A1_ref = (f1[:, :, None, None] * A_dense[None]).sum(axis=1)
    A2_ref = (f2[:, :, None, None] * A_dense[None]).sum(axis=1)
    A1_ref = A1_ref.astype(jnp.bfloat16).astype(jnp.float32)
    A2_ref = A2_ref.astype(jnp.bfloat16).astype(jnp.float32)
    H_ref = jnp.einsum("omk,okn->omn", A1_ref, A2_ref,
                       precision=jax.lax.Precision.HIGHEST)

    assert H.shape == (out_channels, num_nodes, num_nodes)
    # NOTE: A1/A2 are bf16-quantized before the MXU (torch uses f32 sparse ops),
    # hence the 1e-2 tolerance against the bf16-matched reference.
    assert jnp.allclose(H, H_ref, atol=1e-2, rtol=1e-2), \
        float(jnp.max(jnp.abs(H - H_ref)))

    print("KERNEL_OK")
</pallas_src>

<mosaic_0001>
module attributes {stable_mosaic.version = 11 : i64} {
  func.func @gtconv_kernel(%arg0: i32, %arg1: i32, %arg2: memref<2x4xf32, #tpu.memory_space<smem>>, %arg3: memref<2x4xf32, #tpu.memory_space<smem>>, %arg4: memref<4x512x512xf32, #tpu.memory_space<vmem>>, %arg5: memref<2x512x512xbf16, #tpu.memory_space<vmem>>, %arg6: memref<2x512x512xbf16, #tpu.memory_space<vmem>>) attributes {dimension_semantics = [#tpu.dimension_semantics<parallel>, #tpu.dimension_semantics<parallel>], iteration_bounds = array<i64: 1, 1>, scalar_prefetch = 2 : i64, scratch_operands = 0 : i64, tpu.core_type = #tpu.core_type<tc>, window_params = [{transform_indices = @transform_0, window_bounds = array<i64: 4, 512, 512>}, {transform_indices = @transform_1, window_bounds = array<i64: 2, 512, 512>}, {transform_indices = @transform_2, window_bounds = array<i64: 2, 512, 512>}]} {
    %c0 = arith.constant 0 : index
    %c0_0 = arith.constant 0 : index
    %c0_1 = arith.constant 0 : index
    %0 = vector.load %arg4[%c0, %c0_0, %c0_1] : memref<4x512x512xf32, #tpu.memory_space<vmem>>, vector<4x512x512xf32>
    %c0_2 = arith.constant 0 : index
    %c0_3 = arith.constant 0 : index
    %1 = memref.load %arg2[%c0_2, %c0_3] : memref<2x4xf32, #tpu.memory_space<smem>>
    %2 = vector.extract_strided_slice %0 {offsets = [0, 0, 0], sizes = [1, 512, 512], strides = [1, 1, 1]} : vector<4x512x512xf32> to vector<1x512x512xf32>
    %3 = vector.shape_cast %2 : vector<1x512x512xf32> to vector<512x512xf32>
    %4 = vector.broadcast %1 : f32 to vector<512x512xf32>
    %5 = arith.mulf %4, %3 : vector<512x512xf32>
    %c0_4 = arith.constant 0 : index
    %c0_5 = arith.constant 0 : index
    %6 = memref.load %arg3[%c0_4, %c0_5] : memref<2x4xf32, #tpu.memory_space<smem>>
    %7 = vector.extract_strided_slice %0 {offsets = [0, 0, 0], sizes = [1, 512, 512], strides = [1, 1, 1]} : vector<4x512x512xf32> to vector<1x512x512xf32>
    %8 = vector.shape_cast %7 : vector<1x512x512xf32> to vector<512x512xf32>
    %9 = vector.broadcast %6 : f32 to vector<512x512xf32>
    %10 = arith.mulf %9, %8 : vector<512x512xf32>
    %c0_6 = arith.constant 0 : index
    %c1 = arith.constant 1 : index
    %11 = memref.load %arg2[%c0_6, %c1] : memref<2x4xf32, #tpu.memory_space<smem>>
    %12 = vector.extract_strided_slice %0 {offsets = [1, 0, 0], sizes = [1, 512, 512], strides = [1, 1, 1]} : vector<4x512x512xf32> to vector<1x512x512xf32>
    %13 = vector.shape_cast %12 : vector<1x512x512xf32> to vector<512x512xf32>
    %14 = vector.broadcast %11 : f32 to vector<512x512xf32>
    %15 = arith.mulf %14, %13 : vector<512x512xf32>
    %16 = arith.addf %5, %15 : vector<512x512xf32>
    %c0_7 = arith.constant 0 : index
    %c1_8 = arith.constant 1 : index
    %17 = memref.load %arg3[%c0_7, %c1_8] : memref<2x4xf32, #tpu.memory_space<smem>>
    %18 = vector.extract_strided_slice %0 {offsets = [1, 0, 0], sizes = [1, 512, 512], strides = [1, 1, 1]} : vector<4x512x512xf32> to vector<1x512x512xf32>
    %19 = vector.shape_cast %18 : vector<1x512x512xf32> to vector<512x512xf32>
    %20 = vector.broadcast %17 : f32 to vector<512x512xf32>
    %21 = arith.mulf %20, %19 : vector<512x512xf32>
    %22 = arith.addf %10, %21 : vector<512x512xf32>
    %c0_9 = arith.constant 0 : index
    %c2 = arith.constant 2 : index
    %23 = memref.load %arg2[%c0_9, %c2] : memref<2x4xf32, #tpu.memory_space<smem>>
    %24 = vector.extract_strided_slice %0 {offsets = [2, 0, 0], sizes = [1, 512, 512], strides = [1, 1, 1]} : vector<4x512x512xf32> to vector<1x512x512xf32>
    %25 = vector.shape_cast %24 : vector<1x512x512xf32> to vector<512x512xf32>
    %26 = vector.broadcast %23 : f32 to vector<512x512xf32>
    %27 = arith.mulf %26, %25 : vector<512x512xf32>
    %28 = arith.addf %16, %27 : vector<512x512xf32>
    %c0_10 = arith.constant 0 : index
    %c2_11 = arith.constant 2 : index
    %29 = memref.load %arg3[%c0_10, %c2_11] : memref<2x4xf32, #tpu.memory_space<smem>>
    %30 = vector.extract_strided_slice %0 {offsets = [2, 0, 0], sizes = [1, 512, 512], strides = [1, 1, 1]} : vector<4x512x512xf32> to vector<1x512x512xf32>
    %31 = vector.shape_cast %30 : vector<1x512x512xf32> to vector<512x512xf32>
    %32 = vector.broadcast %29 : f32 to vector<512x512xf32>
    %33 = arith.mulf %32, %31 : vector<512x512xf32>
    %34 = arith.addf %22, %33 : vector<512x512xf32>
    %c0_12 = arith.constant 0 : index
    %c3 = arith.constant 3 : index
    %35 = memref.load %arg2[%c0_12, %c3] : memref<2x4xf32, #tpu.memory_space<smem>>
    %36 = vector.extract_strided_slice %0 {offsets = [3, 0, 0], sizes = [1, 512, 512], strides = [1, 1, 1]} : vector<4x512x512xf32> to vector<1x512x512xf32>
    %37 = vector.shape_cast %36 : vector<1x512x512xf32> to vector<512x512xf32>
    %38 = vector.broadcast %35 : f32 to vector<512x512xf32>
    %39 = arith.mulf %38, %37 : vector<512x512xf32>
    %40 = arith.addf %28, %39 : vector<512x512xf32>
    %c0_13 = arith.constant 0 : index
    %c3_14 = arith.constant 3 : index
    %41 = memref.load %arg3[%c0_13, %c3_14] : memref<2x4xf32, #tpu.memory_space<smem>>
    %42 = vector.extract_strided_slice %0 {offsets = [3, 0, 0], sizes = [1, 512, 512], strides = [1, 1, 1]} : vector<4x512x512xf32> to vector<1x512x512xf32>
    %43 = vector.shape_cast %42 : vector<1x512x512xf32> to vector<512x512xf32>
    %44 = vector.broadcast %41 : f32 to vector<512x512xf32>
    %45 = arith.mulf %44, %43 : vector<512x512xf32>
    %46 = arith.addf %34, %45 : vector<512x512xf32>
    %47 = arith.truncf %40 : vector<512x512xf32> to vector<512x512xbf16>
    %c0_15 = arith.constant 0 : index
    %c0_16 = arith.constant 0 : index
    %c0_17 = arith.constant 0 : index
    %48 = vector.load %arg5[%c0_15, %c0_16, %c0_17] : memref<2x512x512xbf16, #tpu.memory_space<vmem>>, vector<1x512x512xbf16>
    %49 = vector.shape_cast %48 : vector<1x512x512xbf16> to vector<512x512xbf16>
    %50 = vector.shape_cast %47 : vector<512x512xbf16> to vector<1x512x512xbf16>
    tpu.vector_store %arg5[%c0_15, %c0_16, %c0_17], %50 {strides = array<i32>} : memref<2x512x512xbf16, #tpu.memory_space<vmem>>, vector<1x512x512xbf16>,
    %51 = arith.truncf %46 : vector<512x512xf32> to vector<512x512xbf16>
    %c0_18 = arith.constant 0 : index
    %c0_19 = arith.constant 0 : index
    %c0_20 = arith.constant 0 : index
    %52 = vector.load %arg6[%c0_18, %c0_19, %c0_20] : memref<2x512x512xbf16, #tpu.memory_space<vmem>>, vector<1x512x512xbf16>
    %53 = vector.shape_cast %52 : vector<1x512x512xbf16> to vector<512x512xbf16>
    %54 = vector.shape_cast %51 : vector<512x512xbf16> to vector<1x512x512xbf16>
    tpu.vector_store %arg6[%c0_18, %c0_19, %c0_20], %54 {strides = array<i32>} : memref<2x512x512xbf16, #tpu.memory_space<vmem>>, vector<1x512x512xbf16>,
    %c1_21 = arith.constant 1 : index
    %c0_22 = arith.constant 0 : index
    %55 = memref.load %arg2[%c1_21, %c0_22] : memref<2x4xf32, #tpu.memory_space<smem>>
    %56 = vector.extract_strided_slice %0 {offsets = [0, 0, 0], sizes = [1, 512, 512], strides = [1, 1, 1]} : vector<4x512x512xf32> to vector<1x512x512xf32>
    %57 = vector.shape_cast %56 : vector<1x512x512xf32> to vector<512x512xf32>
    %58 = vector.broadcast %55 : f32 to vector<512x512xf32>
    %59 = arith.mulf %58, %57 : vector<512x512xf32>
    %c1_23 = arith.constant 1 : index
    %c0_24 = arith.constant 0 : index
    %60 = memref.load %arg3[%c1_23, %c0_24] : memref<2x4xf32, #tpu.memory_space<smem>>
    %61 = vector.extract_strided_slice %0 {offsets = [0, 0, 0], sizes = [1, 512, 512], strides = [1, 1, 1]} : vector<4x512x512xf32> to vector<1x512x512xf32>
    %62 = vector.shape_cast %61 : vector<1x512x512xf32> to vector<512x512xf32>
    %63 = vector.broadcast %60 : f32 to vector<512x512xf32>
    %64 = arith.mulf %63, %62 : vector<512x512xf32>
    %c1_25 = arith.constant 1 : index
    %c1_26 = arith.constant 1 : index
    %65 = memref.load %arg2[%c1_25, %c1_26] : memref<2x4xf32, #tpu.memory_space<smem>>
    %66 = vector.extract_strided_slice %0 {offsets = [1, 0, 0], sizes = [1, 512, 512], strides = [1, 1, 1]} : vector<4x512x512xf32> to vector<1x512x512xf32>
    %67 = vector.shape_cast %66 : vector<1x512x512xf32> to vector<512x512xf32>
    %68 = vector.broadcast %65 : f32 to vector<512x512xf32>
    %69 = arith.mulf %68, %67 : vector<512x512xf32>
    %70 = arith.addf %59, %69 : vector<512x512xf32>
    %c1_27 = arith.constant 1 : index
    %c1_28 = arith.constant 1 : index
    %71 = memref.load %arg3[%c1_27, %c1_28] : memref<2x4xf32, #tpu.memory_space<smem>>
    %72 = vector.extract_strided_slice %0 {offsets = [1, 0, 0], sizes = [1, 512, 512], strides = [1, 1, 1]} : vector<4x512x512xf32> to vector<1x512x512xf32>
    %73 = vector.shape_cast %72 : vector<1x512x512xf32> to vector<512x512xf32>
    %74 = vector.broadcast %71 : f32 to vector<512x512xf32>
    %75 = arith.mulf %74, %73 : vector<512x512xf32>
    %76 = arith.addf %64, %75 : vector<512x512xf32>
    %c1_29 = arith.constant 1 : index
    %c2_30 = arith.constant 2 : index
    %77 = memref.load %arg2[%c1_29, %c2_30] : memref<2x4xf32, #tpu.memory_space<smem>>
    %78 = vector.extract_strided_slice %0 {offsets = [2, 0, 0], sizes = [1, 512, 512], strides = [1, 1, 1]} : vector<4x512x512xf32> to vector<1x512x512xf32>
    %79 = vector.shape_cast %78 : vector<1x512x512xf32> to vector<512x512xf32>
    %80 = vector.broadcast %77 : f32 to vector<512x512xf32>
    %81 = arith.mulf %80, %79 : vector<512x512xf32>
    %82 = arith.addf %70, %81 : vector<512x512xf32>
    %c1_31 = arith.constant 1 : index
    %c2_32 = arith.constant 2 : index
    %83 = memref.load %arg3[%c1_31, %c2_32] : memref<2x4xf32, #tpu.memory_space<smem>>
    %84 = vector.extract_strided_slice %0 {offsets = [2, 0, 0], sizes = [1, 512, 512], strides = [1, 1, 1]} : vector<4x512x512xf32> to vector<1x512x512xf32>
    %85 = vector.shape_cast %84 : vector<1x512x512xf32> to vector<512x512xf32>
    %86 = vector.broadcast %83 : f32 to vector<512x512xf32>
    %87 = arith.mulf %86, %85 : vector<512x512xf32>
    %88 = arith.addf %76, %87 : vector<512x512xf32>
    %c1_33 = arith.constant 1 : index
    %c3_34 = arith.constant 3 : index
    %89 = memref.load %arg2[%c1_33, %c3_34] : memref<2x4xf32, #tpu.memory_space<smem>>
    %90 = vector.extract_strided_slice %0 {offsets = [3, 0, 0], sizes = [1, 512, 512], strides = [1, 1, 1]} : vector<4x512x512xf32> to vector<1x512x512xf32>
    %91 = vector.shape_cast %90 : vector<1x512x512xf32> to vector<512x512xf32>
    %92 = vector.broadcast %89 : f32 to vector<512x512xf32>
    %93 = arith.mulf %92, %91 : vector<512x512xf32>
    %94 = arith.addf %82, %93 : vector<512x512xf32>
    %c1_35 = arith.constant 1 : index
    %c3_36 = arith.constant 3 : index
    %95 = memref.load %arg3[%c1_35, %c3_36] : memref<2x4xf32, #tpu.memory_space<smem>>
    %96 = vector.extract_strided_slice %0 {offsets = [3, 0, 0], sizes = [1, 512, 512], strides = [1, 1, 1]} : vector<4x512x512xf32> to vector<1x512x512xf32>
    %97 = vector.shape_cast %96 : vector<1x512x512xf32> to vector<512x512xf32>
    %98 = vector.broadcast %95 : f32 to vector<512x512xf32>
    %99 = arith.mulf %98, %97 : vector<512x512xf32>
    %100 = arith.addf %88, %99 : vector<512x512xf32>
    %101 = arith.truncf %94 : vector<512x512xf32> to vector<512x512xbf16>
    %c1_37 = arith.constant 1 : index
    %c0_38 = arith.constant 0 : index
    %c0_39 = arith.constant 0 : index
    %102 = vector.load %arg5[%c1_37, %c0_38, %c0_39] : memref<2x512x512xbf16, #tpu.memory_space<vmem>>, vector<1x512x512xbf16>
    %103 = vector.shape_cast %102 : vector<1x512x512xbf16> to vector<512x512xbf16>
    %104 = vector.shape_cast %101 : vector<512x512xbf16> to vector<1x512x512xbf16>
    tpu.vector_store %arg5[%c1_37, %c0_38, %c0_39], %104 {strides = array<i32>} : memref<2x512x512xbf16, #tpu.memory_space<vmem>>, vector<1x512x512xbf16>,
    %105 = arith.truncf %100 : vector<512x512xf32> to vector<512x512xbf16>
    %c1_40 = arith.constant 1 : index
    %c0_41 = arith.constant 0 : index
    %c0_42 = arith.constant 0 : index
    %106 = vector.load %arg6[%c1_40, %c0_41, %c0_42] : memref<2x512x512xbf16, #tpu.memory_space<vmem>>, vector<1x512x512xbf16>
    %107 = vector.shape_cast %106 : vector<1x512x512xbf16> to vector<512x512xbf16>
    %108 = vector.shape_cast %105 : vector<512x512xbf16> to vector<1x512x512xbf16>
    tpu.vector_store %arg6[%c1_40, %c0_41, %c0_42], %108 {strides = array<i32>} : memref<2x512x512xbf16, #tpu.memory_space<vmem>>, vector<1x512x512xbf16>,
    return
  }
  func.func @transform_0(%arg0: i32, %arg1: i32, %arg2: memref<2x4xf32, #tpu.memory_space<smem>>, %arg3: memref<2x4xf32, #tpu.memory_space<smem>>) -> (i32, i32, i32) {
    %c0_i32 = arith.constant 0 : i32
    %c0_i32_0 = arith.constant 0 : i32
    return %c0_i32, %arg0, %arg1 : i32, i32, i32
  }
  func.func @transform_1(%arg0: i32, %arg1: i32, %arg2: memref<2x4xf32, #tpu.memory_space<smem>>, %arg3: memref<2x4xf32, #tpu.memory_space<smem>>) -> (i32, i32, i32) {
    %c0_i32 = arith.constant 0 : i32
    %c0_i32_0 = arith.constant 0 : i32
    return %c0_i32, %arg0, %arg1 : i32, i32, i32
  }
  func.func @transform_2(%arg0: i32, %arg1: i32, %arg2: memref<2x4xf32, #tpu.memory_space<smem>>, %arg3: memref<2x4xf32, #tpu.memory_space<smem>>) -> (i32, i32, i32) {
    %c0_i32 = arith.constant 0 : i32
    %c0_i32_0 = arith.constant 0 : i32
    return %c0_i32, %arg0, %arg1 : i32, i32, i32
  }
}

</mosaic_0001>

<llo_original>
// kernel: tpu_custom_call.1
$region0: #{tpu_custom_call.1}
  #allocation0 [shape = 'u32[]', space=smem, size = 0x4, offset = 0x4, fixed_abs, tag = 'smem constant byte address 0x4 - core index']
  #allocation1 [shape = 'u32[144,128]{1,0:T(1,128)}', space=vmem, size = 0x12000, scoped, tag = 'internal scratch']
  #allocation2 [shape = 's32[1]{0}', space=sflag, size = 0x4, scoped, tag = 'scoped memory for tpu_custom_call.1']
  #allocation3 [shape = 'u8[1024]{0}', space=smem, size = 0x400, scoped, tag = 'prefetched SMEM operand 0']
  #allocation4 [shape = 'u8[1024]{0}', space=smem, size = 0x400, scoped, tag = 'prefetched SMEM operand 1']
  %s0 = inlined_call_operand.hbm [shape: f32[2,4], index: 0, kind: input, shape index: {}]
  %s1 = inlined_call_operand.hbm [shape: f32[2,4], index: 1, kind: input, shape index: {}]
  %s2 = inlined_call_operand.hbm [shape: f32[4,512,512], index: 2, kind: input, shape index: {}]
  %s3 = inlined_call_operand.hbm [shape: bf16[2,512,512], index: 3, kind: output, shape index: {0}]
  %s4 = inlined_call_operand.hbm [shape: bf16[2,512,512], index: 4, kind: output, shape index: {1}]
  %5 = xla_tuple %s3, %s4
  %s6 = sld [smem:[#allocation0]]
  $region26: #{tpu_custom_call.1} parent=0
    _
  %s8 = ssub.s32 1, %s6
  %s9 = scalar_select 0, %s8, %s6
  %11 = dma.hbm_to_smem %s0, 32, [#allocation3], [#allocation2]
  %13 = dma.hbm_to_smem %s1, 32, [#allocation4], [#allocation2]
  %14 = dma.done [#allocation2], 64
  %15 = sfence
  $region1: #{tpu_custom_call.1} parent=0
    #allocation5 [shape = 'u8[4194304]{0}', space=vmem, size = 0x400000, scoped, tag = 'input window, operand 2, single buffered']
    #allocation6 [shape = 's32[1]{0}', space=sflag, size = 0x4, scoped, tag = 'scoped memory for tpu_custom_call.1']
    #allocation7 [shape = 's32[1]{0}', space=sflag, size = 0x4, scoped, tag = 'scoped memory for tpu_custom_call.1']
    #allocation8 [shape = 'u8[1048576]{0}', space=vmem, size = 0x100000, scoped, tag = 'output window, operand 0, single buffered']
    #allocation9 [shape = 'u8[1048576]{0}', space=vmem, size = 0x100000, scoped, tag = 'output window, operand 1, single buffered']
    #allocation10 [shape = 's32[1]{0}', space=sflag, size = 0x4, scoped, tag = 'scoped memory for tpu_custom_call.1']
    %16 = vsyncpa [#allocation6], 0
    %17 = vsyncpa [#allocation7], 0
    %18 = vsyncpa [#allocation10], 0
    // Predicated region
    $region2: #{tpu_custom_call.1} parent=1 // pred_check
      _
    $region3: #{tpu_custom_call.1} parent=1 // pred_check_branch
      %20 = sbr.rel (0) target = $region5
    $region4: #{tpu_custom_call.1} parent=1 // pred_region
      %s22 = ssub.s32 131072, 131072
      %23 = vsyncadd [#allocation6], %s22
      %s24 = sshll.u32 [#allocation5], 4
      %s25 = int_to_ptr.vmem [resolvable:$true] %s24
      %30 = dma.hbm_to_vmem [thread:$0]  %s2, 131072, %s25, [#allocation6], 512, 512, 32
    $region5: #{tpu_custom_call.1} parent=1 // pred_fallthru
      _
    // Predicated region
    $region6: #{tpu_custom_call.1} parent=1 // pred_check
      _
    $region7: #{tpu_custom_call.1} parent=1 // pred_check_branch
      %32 = sbr.rel (0) target = $region9
    $region8: #{tpu_custom_call.1} parent=1 // pred_region
      %33 = dma.done [#allocation6], 131072
    $region9: #{tpu_custom_call.1} parent=1 // pred_fallthru
      _
    %v34 = vld [vmem:[#allocation5] sm:$0xff]
    %v35 = vld [vmem:[#allocation5 + $0x8] sm:$0xff]
    %v36 = vld [vmem:[#allocation5 + $0x10] sm:$0xff]
    %v37 = vld [vmem:[#allocation5 + $0x18] sm:$0xff]
    %v38 = vld [vmem:[#allocation5 + $0x20] sm:$0xff]
    %v39 = vld [vmem:[#allocation5 + $0x28] sm:$0xff]
    %v40 = vld [vmem:[#allocation5 + $0x30] sm:$0xff]
    %v41 = vld [vmem:[#allocation5 + $0x38] sm:$0xff]
    %v42 = vld [vmem:[#allocation5 + $0x40] sm:$0xff]
    %v43 = vld [vmem:[#allocation5 + $0x48] sm:$0xff]
    %v44 = vld [vmem:[#allocation5 + $0x50] sm:$0xff]
    %v45 = vld [vmem:[#allocation5 + $0x58] sm:$0xff]
    %v46 = vld [vmem:[#allocation5 + $0x60] sm:$0xff]
    %v47 = vld [vmem:[#allocation5 + $0x68] sm:$0xff]
    %v48 = vld [vmem:[#allocation5 + $0x70] sm:$0xff]
    %v49 = vld [vmem:[#allocation5 + $0x78] sm:$0xff]
    %v50 = vld [vmem:[#allocation5 + $0x80] sm:$0xff]
    %v51 = vld [vmem:[#allocation5 + $0x88] sm:$0xff]
    %v52 = vld [vmem:[#allocation5 + $0x90] sm:$0xff]
    %v53 = vld [vmem:[#allocation5 + $0x98] sm:$0xff]
    %v54 = vld [vmem:[#allocation5 + $0xa0] sm:$0xff]
    %v55 = vld [vmem:[#allocation5 + $0xa8] sm:$0xff]
    %v56 = vld [vmem:[#allocation5 + $0xb0] sm:$0xff]
    %v57 = vld [vmem:[#allocation5 + $0xb8] sm:$0xff]
    %v58 = vld [vmem:[#allocation5 + $0xc0] sm:$0xff]
    %v59 = vld [vmem:[#allocation5 + $0xc8] sm:$0xff]
    %v60 = vld [vmem:[#allocation5 + $0xd0] sm:$0xff]
    %v61 = vld [vmem:[#allocation5 + $0xd8] sm:$0xff]
    %v62 = vld [vmem:[#allocation5 + $0xe0] sm:$0xff]
    %v63 = vld [vmem:[#allocation5 + $0xe8] sm:$0xff]
    %v64 = vld [vmem:[#allocation5 + $0xf0] sm:$0xff]
    %v65 = vld [vmem:[#allocation5 + $0xf8] sm:$0xff]
    %v66 = vld [vmem:[#allocation5 + $0x100] sm:$0xff]
    %v67 = vld [vmem:[#allocation5 + $0x108] sm:$0xff]
    %v68 = vld [vmem:[#allocation5 + $0x110] sm:$0xff]
    %v69 = vld [vmem:[#allocation5 + $0x118] sm:$0xff]
    %v70 = vld [vmem:[#allocation5 + $0x120] sm:$0xff]
    %v71 = vld [vmem:[#allocation5 + $0x128] sm:$0xff]
    %v72 = vld [vmem:[#allocation5 + $0x130] sm:$0xff]
    %v73 = vld [vmem:[#allocation5 + $0x138] sm:$0xff]
    %v74 = vld [vmem:[#allocation5 + $0x140] sm:$0xff]
    %v75 = vld [vmem:[#allocation5 + $0x148] sm:$0xff]
    %v76 = vld [vmem:[#allocation5 + $0x150] sm:$0xff]
    %v77 = vld [vmem:[#allocation5 + $0x158] sm:$0xff]
    %v78 = vld [vmem:[#allocation5 + $0x160] sm:$0xff]
    %v79 = vld [vmem:[#allocation5 + $0x168] sm:$0xff]
    %v80 = vld [vmem:[#allocation5 + $0x170] sm:$0xff]
    %v81 = vld [vmem:[#allocation5 + $0x178] sm:$0xff]
    %v82 = vld [vmem:[#allocation5 + $0x180] sm:$0xff]
    %v83 = vld [vmem:[#allocation5 + $0x188] sm:$0xff]
    %v84 = vld [vmem:[#allocation5 + $0x190] sm:$0xff]
    %v85 = vld [vmem:[#allocation5 + $0x198] sm:$0xff]
    %v86 = vld [vmem:[#allocation5 + $0x1a0] sm:$0xff]
    %v87 = vld [vmem:[#allocation5 + $0x1a8] sm:$0xff]
    %v88 = vld [vmem:[#allocation5 + $0x1b0] sm:$0xff]
    %v89 = vld [vmem:[#allocation5 + $0x1b8] sm:$0xff]
    %v90 = vld [vmem:[#allocation5 + $0x1c0] sm:$0xff]
    %v91 = vld [vmem:[#allocation5 + $0x1c8] sm:$0xff]
    %v92 = vld [vmem:[#allocation5 + $0x1d0] sm:$0xff]
    %v93 = vld [vmem:[#allocation5 + $0x1d8] sm:$0xff]
    %v94 = vld [vmem:[#allocation5 + $0x1e0] sm:$0xff]
    %v95 = vld [vmem:[#allocation5 + $0x1e8] sm:$0xff]
    %v96 = vld [vmem:[#allocation5 + $0x1f0] sm:$0xff]
    %v97 = vld [vmem:[#allocation5 + $0x1f8] sm:$0xff]
    %v98 = vld [vmem:[#allocation5 + $0x200] sm:$0xff]
    %v99 = vld [vmem:[#allocation5 + $0x208] sm:$0xff]
    %v100 = vld [vmem:[#allocation5 + $0x210] sm:$0xff]
    %v101 = vld [vmem:[#allocation5 + $0x218] sm:$0xff]
    %v102 = vld [vmem:[#allocation5 + $0x220] sm:$0xff]
    %v103 = vld [vmem:[#allocation5 + $0x228] sm:$0xff]
    %v104 = vld [vmem:[#allocation5 + $0x230] sm:$0xff]
    %v105 = vld [vmem:[#allocation5 + $0x238] sm:$0xff]
    %v106 = vld [vmem:[#allocation5 + $0x240] sm:$0xff]
    %v107 = vld [vmem:[#allocation5 + $0x248] sm:$0xff]
    %v108 = vld [vmem:[#allocation5 + $0x250] sm:$0xff]
    %v109 = vld [vmem:[#allocation5 + $0x258] sm:$0xff]
    %v110 = vld [vmem:[#allocation5 + $0x260] sm:$0xff]
    %v111 = vld [vmem:[#allocation5 + $0x268] sm:$0xff]
    %v112 = vld [vmem:[#allocation5 + $0x270] sm:$0xff]
    %v113 = vld [vmem:[#allocation5 + $0x278] sm:$0xff]
    %v114 = vld [vmem:[#allocation5 + $0x280] sm:$0xff]
    %v115 = vld [vmem:[#allocation5 + $0x288] sm:$0xff]
    %v116 = vld [vmem:[#allocation5 + $0x290] sm:$0xff]
    %v117 = vld [vmem:[#allocation5 + $0x298] sm:$0xff]
    %v118 = vld [vmem:[#allocation5 + $0x2a0] sm:$0xff]
    %v119 = vld [vmem:[#allocation5 + $0x2a8] sm:$0xff]
    %v120 = vld [vmem:[#allocation5 + $0x2b0] sm:$0xff]
    %v121 = vld [vmem:[#allocation5 + $0x2b8] sm:$0xff]
    %v122 = vld [vmem:[#allocation5 + $0x2c0] sm:$0xff]
    %v123 = vld [vmem:[#allocation5 + $0x2c8] sm:$0xff]
    %v124 = vld [vmem:[#allocation5 + $0x2d0] sm:$0xff]
    %v125 = vld [vmem:[#allocation5 + $0x2d8] sm:$0xff]
    %v126 = vld [vmem:[#allocation5 + $0x2e0] sm:$0xff]
    %v127 = vld [vmem:[#allocation5 + $0x2e8] sm:$0xff]
    %v128 = vld [vmem:[#allocation5 + $0x2f0] sm:$0xff]
    %v129 = vld [vmem:[#allocation5 + $0x2f8] sm:$0xff]
    %v130 = vld [vmem:[#allocation5 + $0x300] sm:$0xff]
    %v131 = vld [vmem:[#allocation5 + $0x308] sm:$0xff]
    %v132 = vld [vmem:[#allocation5 + $0x310] sm:$0xff]
    %v133 = vld [vmem:[#allocation5 + $0x318] sm:$0xff]
    %v134 = vld [vmem:[#allocation5 + $0x320] sm:$0xff]
    %v135 = vld [vmem:[#allocation5 + $0x328] sm:$0xff]
    %v136 = vld [vmem:[#allocation5 + $0x330] sm:$0xff]
    %v137 = vld [vmem:[#allocation5 + $0x338] sm:$0xff]
    %v138 = vld [vmem:[#allocation5 + $0x340] sm:$0xff]
    %v139 = vld [vmem:[#allocation5 + $0x348] sm:$0xff]
    %v140 = vld [vmem:[#allocation5 + $0x350] sm:$0xff]
    %v141 = vld [vmem:[#allocation5 + $0x358] sm:$0xff]
    %v142 = vld [vmem:[#allocation5 + $0x360] sm:$0xff]
    %v143 = vld [vmem:[#allocation5 + $0x368] sm:$0xff]
    %v144 = vld [vmem:[#allocation5 + $0x370] sm:$0xff]
    %v145 = vld [vmem:[#allocation5 + $0x378] sm:$0xff]
    %v146 = vld [vmem:[#allocation5 + $0x380] sm:$0xff]
    %v147 = vld [vmem:[#allocation5 + $0x388] sm:$0xff]
    %v148 = vld [vmem:[#allocation5 + $0x390] sm:$0xff]
    %v149 = vld [vmem:[#allocation5 + $0x398] sm:$0xff]
    %v150 = vld [vmem:[#allocation5 + $0x3a0] sm:$0xff]
    %v151 = vld [vmem:[#allocation5 + $0x3a8] sm:$0xff]
    %v152 = vld [vmem:[#allocation5 + $0x3b0] sm:$0xff]
    %v153 = vld [vmem:[#allocation5 + $0x3b8] sm:$0xff]
    %v154 = vld [vmem:[#allocation5 + $0x3c0] sm:$0xff]
    %v155 = vld [vmem:[#allocation5 + $0x3c8] sm:$0xff]
    %v156 = vld [vmem:[#allocation5 + $0x3d0] sm:$0xff]
    %v157 = vld [vmem:[#allocation5 + $0x3d8] sm:$0xff]
    %v158 = vld [vmem:[#allocation5 + $0x3e0] sm:$0xff]
    %v159 = vld [vmem:[#allocation5 + $0x3e8] sm:$0xff]
    %v160 = vld [vmem:[#allocation5 + $0x3f0] sm:$0xff]
    %v161 = vld [vmem:[#allocation5 + $0x3f8] sm:$0xff]
    %v162 = vld [vmem:[#allocation5 + $0x400] sm:$0xff]
    %v163 = vld [vmem:[#allocation5 + $0x408] sm:$0xff]
    %v164 = vld [vmem:[#allocation5 + $0x410] sm:$0xff]
    %v165 = vld [vmem:[#allocation5 + $0x418] sm:$0xff]
    %v166 = vld [vmem:[#allocation5 + $0x420] sm:$0xff]
    %v167 = vld [vmem:[#allocation5 + $0x428] sm:$0xff]
    %v168 = vld [vmem:[#allocation5 + $0x430] sm:$0xff]
    %v169 = vld [vmem:[#allocation5 + $0x438] sm:$0xff]
    %v170 = vld [vmem:[#allocation5 + $0x440] sm:$0xff]
    %v171 = vld [vmem:[#allocation5 + $0x448] sm:$0xff]
    %v172 = vld [vmem:[#allocation5 + $0x450] sm:$0xff]
    %v173 = vld [vmem:[#allocation5 + $0x458] sm:$0xff]
    %v174 = vld [vmem:[#allocation5 + $0x460] sm:$0xff]
    %v175 = vld [vmem:[#allocation5 + $0x468] sm:$0xff]
    %v176 = vld [vmem:[#allocation5 + $0x470] sm:$0xff]
    %v177 = vld [vmem:[#allocation5 + $0x478] sm:$0xff]
    %v178 = vld [vmem:[#allocation5 + $0x480] sm:$0xff]
    %v179 = vld [vmem:[#allocation5 + $0x488] sm:$0xff]
    %v180 = vld [vmem:[#allocation5 + $0x490] sm:$0xff]
    %v181 = vld [vmem:[#allocation5 + $0x498] sm:$0xff]
    %v182 = vld [vmem:[#allocation5 + $0x4a0] sm:$0xff]
    %v183 = vld [vmem:[#allocation5 + $0x4a8] sm:$0xff]
    %v184 = vld [vmem:[#allocation5 + $0x4b0] sm:$0xff]
    %v185 = vld [vmem:[#allocation5 + $0x4b8] sm:$0xff]
    %v186 = vld [vmem:[#allocation5 + $0x4c0] sm:$0xff]
    %v187 = vld [vmem:[#allocation5 + $0x4c8] sm:$0xff]
    %v188 = vld [vmem:[#allocation5 + $0x4d0] sm:$0xff]
    %v189 = vld [vmem:[#allocation5 + $0x4d8] sm:$0xff]
    %v190 = vld [vmem:[#allocation5 + $0x4e0] sm:$0xff]
    %v191 = vld [vmem:[#allocation5 + $0x4e8] sm:$0xff]
    %v192 = vld [vmem:[#allocation5 + $0x4f0] sm:$0xff]
    %v193 = vld [vmem:[#allocation5 + $0x4f8] sm:$0xff]
    %v194 = vld [vmem:[#allocation5 + $0x500] sm:$0xff]
    %v195 = vld [vmem:[#allocation5 + $0x508] sm:$0xff]
    %v196 = vld [vmem:[#allocation5 + $0x510] sm:$0xff]
    %v197 = vld [vmem:[#allocation5 + $0x518] sm:$0xff]
    %v198 = vld [vmem:[#allocation5 + $0x520] sm:$0xff]
    %v199 = vld [vmem:[#allocation5 + $0x528] sm:$0xff]
    %v200 = vld [vmem:[#allocation5 + $0x530] sm:$0xff]
    %v201 = vld [vmem:[#allocation5 + $0x538] sm:$0xff]
    %v202 = vld [vmem:[#allocation5 + $0x540] sm:$0xff]
    %v203 = vld [vmem:[#allocation5 + $0x548] sm:$0xff]
    %v204 = vld [vmem:[#allocation5 + $0x550] sm:$0xff]
    %v205 = vld [vmem:[#allocation5 + $0x558] sm:$0xff]
    %v206 = vld [vmem:[#allocation5 + $0x560] sm:$0xff]
    %v207 = vld [vmem:[#allocation5 + $0x568] sm:$0xff]
    %v208 = vld [vmem:[#allocation5 + $0x570] sm:$0xff]
    %v209 = vld [vmem:[#allocation5 + $0x578] sm:$0xff]
    %v210 = vld [vmem:[#allocation5 + $0x580] sm:$0xff]
    %v211 = vld [vmem:[#allocation5 + $0x588] sm:$0xff]
    %v212 = vld [vmem:[#allocation5 + $0x590] sm:$0xff]
    %v213 = vld [vmem:[#allocation5 + $0x598] sm:$0xff]
    %v214 = vld [vmem:[#allocation5 + $0x5a0] sm:$0xff]
    %v215 = vld [vmem:[#allocation5 + $0x5a8] sm:$0xff]
    %v216 = vld [vmem:[#allocation5 + $0x5b0] sm:$0xff]
    %v217 = vld [vmem:[#allocation5 + $0x5b8] sm:$0xff]
    %v218 = vld [vmem:[#allocation5 + $0x5c0] sm:$0xff]
    %v219 = vld [vmem:[#allocation5 + $0x5c8] sm:$0xff]
    %v220 = vld [vmem:[#allocation5 + $0x5d0] sm:$0xff]
    %v221 = vld [vmem:[#allocation5 + $0x5d8] sm:$0xff]
    %v222 = vld [vmem:[#allocation5 + $0x5e0] sm:$0xff]
    %v223 = vld [vmem:[#allocation5 + $0x5e8] sm:$0xff]
    %v224 = vld [vmem:[#allocation5 + $0x5f0] sm:$0xff]
    %v225 = vld [vmem:[#allocation5 + $0x5f8] sm:$0xff]
    %v226 = vld [vmem:[#allocation5 + $0x600] sm:$0xff]
    %v227 = vld [vmem:[#allocation5 + $0x608] sm:$0xff]
    %v228 = vld [vmem:[#allocation5 + $0x610] sm:$0xff]
    %v229 = vld [vmem:[#allocation5 + $0x618] sm:$0xff]
    %v230 = vld [vmem:[#allocation5 + $0x620] sm:$0xff]
    %v231 = vld [vmem:[#allocation5 + $0x628] sm:$0xff]
    %v232 = vld [vmem:[#allocation5 + $0x630] sm:$0xff]
    %v233 = vld [vmem:[#allocation5 + $0x638] sm:$0xff]
    %v234 = vld [vmem:[#allocation5 + $0x640] sm:$0xff]
    %v235 = vld [vmem:[#allocation5 + $0x648] sm:$0xff]
    %v236 = vld [vmem:[#allocation5 + $0x650] sm:$0xff]
    %v237 = vld [vmem:[#allocation5 + $0x658] sm:$0xff]
    %v238 = vld [vmem:[#allocation5 + $0x660] sm:$0xff]
    %v239 = vld [vmem:[#allocation5 + $0x668] sm:$0xff]
    %v240 = vld [vmem:[#allocation5 + $0x670] sm:$0xff]
    %v241 = vld [vmem:[#allocation5 + $0x678] sm:$0xff]
    %v242 = vld [vmem:[#allocation5 + $0x680] sm:$0xff]
    %v243 = vld [vmem:[#allocation5 + $0x688] sm:$0xff]
    %v244 = vld [vmem:[#allocation5 + $0x690] sm:$0xff]
    %v245 = vld [vmem:[#allocation5 + $0x698] sm:$0xff]
    %v246 = vld [vmem:[#allocation5 + $0x6a0] sm:$0xff]
    %v247 = vld [vmem:[#allocation5 + $0x6a8] sm:$0xff]
    %v248 = vld [vmem:[#allocation5 + $0x6b0] sm:$0xff]
    %v249 = vld [vmem:[#allocation5 + $0x6b8] sm:$0xff]
    %v250 = vld [vmem:[#allocation5 + $0x6c0] sm:$0xff]
    %v251 = vld [vmem:[#allocation5 + $0x6c8] sm:$0xff]
    %v252 = vld [vmem:[#allocation5 + $0x6d0] sm:$0xff]
    %v253 = vld [vmem:[#allocation5 + $0x6d8] sm:$0xff]
    %v254 = vld [vmem:[#allocation5 + $0x6e0] sm:$0xff]
    %v255 = vld [vmem:[#allocation5 + $0x6e8] sm:$0xff]
    %v256 = vld [vmem:[#allocation5 + $0x6f0] sm:$0xff]
    %v257 = vld [vmem:[#allocation5 + $0x6f8] sm:$0xff]
    %v258 = vld [vmem:[#allocation5 + $0x700] sm:$0xff]
    %v259 = vld [vmem:[#allocation5 + $0x708] sm:$0xff]
    %v260 = vld [vmem:[#allocation5 + $0x710] sm:$0xff]
    %v261 = vld [vmem:[#allocation5 + $0x718] sm:$0xff]
    %v262 = vld [vmem:[#allocation5 + $0x720] sm:$0xff]
    %v263 = vld [vmem:[#allocation5 + $0x728] sm:$0xff]
    %v264 = vld [vmem:[#allocation5 + $0x730] sm:$0xff]
    %v265 = vld [vmem:[#allocation5 + $0x738] sm:$0xff]
    %v266 = vld [vmem:[#allocation5 + $0x740] sm:$0xff]
    %v267 = vld [vmem:[#allocation5 + $0x748] sm:$0xff]
    %v268 = vld [vmem:[#allocation5 + $0x750] sm:$0xff]
    %v269 = vld [vmem:[#allocation5 + $0x758] sm:$0xff]
    %v270 = vld [vmem:[#allocation5 + $0x760] sm:$0xff]
    %v271 = vld [vmem:[#allocation5 + $0x768] sm:$0xff]
    %v272 = vld [vmem:[#allocation5 + $0x770] sm:$0xff]
    %v273 = vld [vmem:[#allocation5 + $0x778] sm:$0xff]
    %v274 = vld [vmem:[#allocation5 + $0x780] sm:$0xff]
    %v275 = vld [vmem:[#allocation5 + $0x788] sm:$0xff]
    %v276 = vld [vmem:[#allocation5 + $0x790] sm:$0xff]
    %v277 = vld [vmem:[#allocation5 + $0x798] sm:$0xff]
    %v278 = vld [vmem:[#allocation5 + $0x7a0] sm:$0xff]
    %v279 = vld [vmem:[#allocation5 + $0x7a8] sm:$0xff]
    %v280 = vld [vmem:[#allocation5 + $0x7b0] sm:$0xff]
    %v281 = vld [vmem:[#allocation5 + $0x7b8] sm:$0xff]
    %v282 = vld [vmem:[#allocation5 + $0x7c0] sm:$0xff]
    %v283 = vld [vmem:[#allocation5 + $0x7c8] sm:$0xff]
    %v284 = vld [vmem:[#allocation5 + $0x7d0] sm:$0xff]
    %v285 = vld [vmem:[#allocation5 + $0x7d8] sm:$0xff]
    %v286 = vld [vmem:[#allocation5 + $0x7e0] sm:$0xff]
    %v287 = vld [vmem:[#allocation5 + $0x7e8] sm:$0xff]
    %v288 = vld [vmem:[#allocation5 + $0x7f0] sm:$0xff]
    %v289 = vld [vmem:[#allocation5 + $0x7f8] sm:$0xff]
    %v290 = vld [vmem:[#allocation5 + $0x800] sm:$0xff]
    %v291 = vld [vmem:[#allocation5 + $0x808] sm:$0xff]
    %v292 = vld [vmem:[#allocation5 + $0x810] sm:$0xff]
    %v293 = vld [vmem:[#allocation5 + $0x818] sm:$0xff]
    %v294 = vld [vmem:[#allocation5 + $0x820] sm:$0xff]
    %v295 = vld [vmem:[#allocation5 + $0x828] sm:$0xff]
    %v296 = vld [vmem:[#allocation5 + $0x830] sm:$0xff]
    %v297 = vld [vmem:[#allocation5 + $0x838] sm:$0xff]
    %v298 = vld [vmem:[#allocation5 + $0x840] sm:$0xff]
    %v299 = vld [vmem:[#allocation5 + $0x848] sm:$0xff]
    %v300 = vld [vmem:[#allocation5 + $0x850] sm:$0xff]
    %v301 = vld [vmem:[#allocation5 + $0x858] sm:$0xff]
    %v302 = vld [vmem:[#allocation5 + $0x860] sm:$0xff]
    %v303 = vld [vmem:[#allocation5 + $0x868] sm:$0xff]
    %v304 = vld [vmem:[#allocation5 + $0x870] sm:$0xff]
    %v305 = vld [vmem:[#allocation5 + $0x878] sm:$0xff]
    %v306 = vld [vmem:[#allocation5 + $0x880] sm:$0xff]
    %v307 = vld [vmem:[#allocation5 + $0x888] sm:$0xff]
    %v308 = vld [vmem:[#allocation5 + $0x890] sm:$0xff]
    %v309 = vld [vmem:[#allocation5 + $0x898] sm:$0xff]
    %v310 = vld [vmem:[#allocation5 + $0x8a0] sm:$0xff]
    %v311 = vld [vmem:[#allocation5 + $0x8a8] sm:$0xff]
    %v312 = vld [vmem:[#allocation5 + $0x8b0] sm:$0xff]
    %v313 = vld [vmem:[#allocation5 + $0x8b8] sm:$0xff]
    %v314 = vld [vmem:[#allocation5 + $0x8c0] sm:$0xff]
    %v315 = vld [vmem:[#allocation5 + $0x8c8] sm:$0xff]
    %v316 = vld [vmem:[#allocation5 + $0x8d0] sm:$0xff]
    %v317 = vld [vmem:[#allocation5 + $0x8d8] sm:$0xff]
    %v318 = vld [vmem:[#allocation5 + $0x8e0] sm:$0xff]
    %v319 = vld [vmem:[#allocation5 + $0x8e8] sm:$0xff]
    %v320 = vld [vmem:[#allocation5 + $0x8f0] sm:$0xff]
    %v321 = vld [vmem:[#allocation5 + $0x8f8] sm:$0xff]
    %v322 = vld [vmem:[#allocation5 + $0x900] sm:$0xff]
    %v323 = vld [vmem:[#allocation5 + $0x908] sm:$0xff]
    %v324 = vld [vmem:[#allocation5 + $0x910] sm:$0xff]
    %v325 = vld [vmem:[#allocation5 + $0x918] sm:$0xff]
    %v326 = vld [vmem:[#allocation5 + $0x920] sm:$0xff]
    %v327 = vld [vmem:[#allocation5 + $0x928] sm:$0xff]
    %v328 = vld [vmem:[#allocation5 + $0x930] sm:$0xff]
    %v329 = vld [vmem:[#allocation5 + $0x938] sm:$0xff]
    %v330 = vld [vmem:[#allocation5 + $0x940] sm:$0xff]
    %v331 = vld [vmem:[#allocation5 + $0x948] sm:$0xff]
    %v332 = vld [vmem:[#allocation5 + $0x950] sm:$0xff]
    %v333 = vld [vmem:[#allocation5 + $0x958] sm:$0xff]
    %v334 = vld [vmem:[#allocation5 + $0x960] sm:$0xff]
    %v335 = vld [vmem:[#allocation5 + $0x968] sm:$0xff]
    %v336 = vld [vmem:[#allocation5 + $0x970] sm:$0xff]
    %v337 = vld [vmem:[#allocation5 + $0x978] sm:$0xff]
    %v338 = vld [vmem:[#allocation5 + $0x980] sm:$0xff]
    %v339 = vld [vmem:[#allocation5 + $0x988] sm:$0xff]
    %v340 = vld [vmem:[#allocation5 + $0x990] sm:$0xff]
    %v341 = vld [vmem:[#allocation5 + $0x998] sm:$0xff]
    %v342 = vld [vmem:[#allocation5 + $0x9a0] sm:$0xff]
    %v343 = vld [vmem:[#allocation5 + $0x9a8] sm:$0xff]
    %v344 = vld [vmem:[#allocation5 + $0x9b0] sm:$0xff]
    %v345 = vld [vmem:[#allocation5 + $0x9b8] sm:$0xff]
    %v346 = vld [vmem:[#allocation5 + $0x9c0] sm:$0xff]
    %v347 = vld [vmem:[#allocation5 + $0x9c8] sm:$0xff]
    %v348 = vld [vmem:[#allocation5 + $0x9d0] sm:$0xff]
    %v349 = vld [vmem:[#allocation5 + $0x9d8] sm:$0xff]
    %v350 = vld [vmem:[#allocation5 + $0x9e0] sm:$0xff]
    %v351 = vld [vmem:[#allocation5 + $0x9e8] sm:$0xff]
    %v352 = vld [vmem:[#allocation5 + $0x9f0] sm:$0xff]
    %v353 = vld [vmem:[#allocation5 + $0x9f8] sm:$0xff]
    %v354 = vld [vmem:[#allocation5 + $0xa00] sm:$0xff]
    %v355 = vld [vmem:[#allocation5 + $0xa08] sm:$0xff]
    %v356 = vld [vmem:[#allocation5 + $0xa10] sm:$0xff]
    %v357 = vld [vmem:[#allocation5 + $0xa18] sm:$0xff]
    %v358 = vld [vmem:[#allocation5 + $0xa20] sm:$0xff]
    %v359 = vld [vmem:[#allocation5 + $0xa28] sm:$0xff]
    %v360 = vld [vmem:[#allocation5 + $0xa30] sm:$0xff]
    %v361 = vld [vmem:[#allocation5 + $0xa38] sm:$0xff]
    %v362 = vld [vmem:[#allocation5 + $0xa40] sm:$0xff]
    %v363 = vld [vmem:[#allocation5 + $0xa48] sm:$0xff]
    %v364 = vld [vmem:[#allocation5 + $0xa50] sm:$0xff]
    %v365 = vld [vmem:[#allocation5 + $0xa58] sm:$0xff]
    %v366 = vld [vmem:[#allocation5 + $0xa60] sm:$0xff]
    %v367 = vld [vmem:[#allocation5 + $0xa68] sm:$0xff]
    %v368 = vld [vmem:[#allocation5 + $0xa70] sm:$0xff]
    %v369 = vld [vmem:[#allocation5 + $0xa78] sm:$0xff]
    %v370 = vld [vmem:[#allocation5 + $0xa80] sm:$0xff]
    %v371 = vld [vmem:[#allocation5 + $0xa88] sm:$0xff]
    %v372 = vld [vmem:[#allocation5 + $0xa90] sm:$0xff]
    %v373 = vld [vmem:[#allocation5 + $0xa98] sm:$0xff]
    %v374 = vld [vmem:[#allocation5 + $0xaa0] sm:$0xff]
    %v375 = vld [vmem:[#allocation5 + $0xaa8] sm:$0xff]
    %v376 = vld [vmem:[#allocation5 + $0xab0] sm:$0xff]
    %v377 = vld [vmem:[#allocation5 + $0xab8] sm:$0xff]
    %v378 = vld [vmem:[#allocation5 + $0xac0] sm:$0xff]
    %v379 = vld [vmem:[#allocation5 + $0xac8] sm:$0xff]
    %v380 = vld [vmem:[#allocation5 + $0xad0] sm:$0xff]
    %v381 = vld [vmem:[#allocation5 + $0xad8] sm:$0xff]
    %v382 = vld [vmem:[#allocation5 + $0xae0] sm:$0xff]
    %v383 = vld [vmem:[#allocation5 + $0xae8] sm:$0xff]
    %v384 = vld [vmem:[#allocation5 + $0xaf0] sm:$0xff]
    %v385 = vld [vmem:[#allocation5 + $0xaf8] sm:$0xff]
    %v386 = vld [vmem:[#allocation5 + $0xb00] sm:$0xff]
    %v387 = vld [vmem:[#allocation5 + $0xb08] sm:$0xff]
    %v388 = vld [vmem:[#allocation5 + $0xb10] sm:$0xff]
    %v389 = vld [vmem:[#allocation5 + $0xb18] sm:$0xff]
    %v390 = vld [vmem:[#allocation5 + $0xb20] sm:$0xff]
    %v391 = vld [vmem:[#allocation5 + $0xb28] sm:$0xff]
    %v392 = vld [vmem:[#allocation5 + $0xb30] sm:$0xff]
    %v393 = vld [vmem:[#allocation5 + $0xb38] sm:$0xff]
    %v394 = vld [vmem:[#allocation5 + $0xb40] sm:$0xff]
    %v395 = vld [vmem:[#allocation5 + $0xb48] sm:$0xff]
    %v396 = vld [vmem:[#allocation5 + $0xb50] sm:$0xff]
    %v397 = vld [vmem:[#allocation5 + $0xb58] sm:$0xff]
    %v398 = vld [vmem:[#allocation5 + $0xb60] sm:$0xff]
    %v399 = vld [vmem:[#allocation5 + $0xb68] sm:$0xff]
    %v400 = vld [vmem:[#allocation5 + $0xb70] sm:$0xff]
    %v401 = vld [vmem:[#allocation5 + $0xb78] sm:$0xff]
    %v402 = vld [vmem:[#allocation5 + $0xb80] sm:$0xff]
    %v403 = vld [vmem:[#allocation5 + $0xb88] sm:$0xff]
    %v404 = vld [vmem:[#allocation5 + $0xb90] sm:$0xff]
    %v405 = vld [vmem:[#allocation5 + $0xb98] sm:$0xff]
    %v406 = vld [vmem:[#allocation5 + $0xba0] sm:$0xff]
    %v407 = vld [vmem:[#allocation5 + $0xba8] sm:$0xff]
    %v408 = vld [vmem:[#allocation5 + $0xbb0] sm:$0xff]
    %v409 = vld [vmem:[#allocation5 + $0xbb8] sm:$0xff]
    %v410 = vld [vmem:[#allocation5 + $0xbc0] sm:$0xff]
    %v411 = vld [vmem:[#allocation5 + $0xbc8] sm:$0xff]
    %v412 = vld [vmem:[#allocation5 + $0xbd0] sm:$0xff]
    %v413 = vld [vmem:[#allocation5 + $0xbd8] sm:$0xff]
    %v414 = vld [vmem:[#allocation5 + $0xbe0] sm:$0xff]
    %v415 = vld [vmem:[#allocation5 + $0xbe8] sm:$0xff]
    %v416 = vld [vmem:[#allocation5 + $0xbf0] sm:$0xff]
    %v417 = vld [vmem:[#allocation5 + $0xbf8] sm:$0xff]
    %v418 = vld [vmem:[#allocation5 + $0xc00] sm:$0xff]
    %v419 = vld [vmem:[#allocation5 + $0xc08] sm:$0xff]
    %v420 = vld [vmem:[#allocation5 + $0xc10] sm:$0xff]
    %v421 = vld [vmem:[#allocation5 + $0xc18] sm:$0xff]
    %v422 = vld [vmem:[#allocation5 + $0xc20] sm:$0xff]
    %v423 = vld [vmem:[#allocation5 + $0xc28] sm:$0xff]
    %v424 = vld [vmem:[#allocation5 + $0xc30] sm:$0xff]
    %v425 = vld [vmem:[#allocation5 + $0xc38] sm:$0xff]
    %v426 = vld [vmem:[#allocation5 + $0xc40] sm:$0xff]
    %v427 = vld [vmem:[#allocation5 + $0xc48] sm:$0xff]
    %v428 = vld [vmem:[#allocation5 + $0xc50] sm:$0xff]
    %v429 = vld [vmem:[#allocation5 + $0xc58] sm:$0xff]
    %v430 = vld [vmem:[#allocation5 + $0xc60] sm:$0xff]
    %v431 = vld [vmem:[#allocation5 + $0xc68] sm:$0xff]
    %v432 = vld [vmem:[#allocation5 + $0xc70] sm:$0xff]
    %v433 = vld [vmem:[#allocation5 + $0xc78] sm:$0xff]
    %v434 = vld [vmem:[#allocation5 + $0xc80] sm:$0xff]
    %v435 = vld [vmem:[#allocation5 + $0xc88] sm:$0xff]
    %v436 = vld [vmem:[#allocation5 + $0xc90] sm:$0xff]
    %v437 = vld [vmem:[#allocation5 + $0xc98] sm:$0xff]
    %v438 = vld [vmem:[#allocation5 + $0xca0] sm:$0xff]
    %v439 = vld [vmem:[#allocation5 + $0xca8] sm:$0xff]
    %v440 = vld [vmem:[#allocation5 + $0xcb0] sm:$0xff]
    %v441 = vld [vmem:[#allocation5 + $0xcb8] sm:$0xff]
    %v442 = vld [vmem:[#allocation5 + $0xcc0] sm:$0xff]
    %v443 = vld [vmem:[#allocation5 + $0xcc8] sm:$0xff]
    %v444 = vld [vmem:[#allocation5 + $0xcd0] sm:$0xff]
    %v445 = vld [vmem:[#allocation5 + $0xcd8] sm:$0xff]
    %v446 = vld [vmem:[#allocation5 + $0xce0] sm:$0xff]
    %v447 = vld [vmem:[#allocation5 + $0xce8] sm:$0xff]
    %v448 = vld [vmem:[#allocation5 + $0xcf0] sm:$0xff]
    %v449 = vld [vmem:[#allocation5 + $0xcf8] sm:$0xff]
    %v450 = vld [vmem:[#allocation5 + $0xd00] sm:$0xff]
    %v451 = vld [vmem:[#allocation5 + $0xd08] sm:$0xff]
    %v452 = vld [vmem:[#allocation5 + $0xd10] sm:$0xff]
    %v453 = vld [vmem:[#allocation5 + $0xd18] sm:$0xff]
    %v454 = vld [vmem:[#allocation5 + $0xd20] sm:$0xff]
    %v455 = vld [vmem:[#allocation5 + $0xd28] sm:$0xff]
    %v456 = vld [vmem:[#allocation5 + $0xd30] sm:$0xff]
    %v457 = vld [vmem:[#allocation5 + $0xd38] sm:$0xff]
    %v458 = vld [vmem:[#allocation5 + $0xd40] sm:$0xff]
    %v459 = vld [vmem:[#allocation5 + $0xd48] sm:$0xff]
    %v460 = vld [vmem:[#allocation5 + $0xd50] sm:$0xff]
    %v461 = vld [vmem:[#allocation5 + $0xd58] sm:$0xff]
    %v462 = vld [vmem:[#allocation5 + $0xd60] sm:$0xff]
    %v463 = vld [vmem:[#allocation5 + $0xd68] sm:$0xff]
    %v464 = vld [vmem:[#allocation5 + $0xd70] sm:$0xff]
    %v465 = vld [vmem:[#allocation5 + $0xd78] sm:$0xff]
    %v466 = vld [vmem:[#allocation5 + $0xd80] sm:$0xff]
    %v467 = vld [vmem:[#allocation5 + $0xd88] sm:$0xff]
    %v468 = vld [vmem:[#allocation5 + $0xd90] sm:$0xff]
    %v469 = vld [vmem:[#allocation5 + $0xd98] sm:$0xff]
    %v470 = vld [vmem:[#allocation5 + $0xda0] sm:$0xff]
    %v471 = vld [vmem:[#allocation5 + $0xda8] sm:$0xff]
    %v472 = vld [vmem:[#allocation5 + $0xdb0] sm:$0xff]
    %v473 = vld [vmem:[#allocation5 + $0xdb8] sm:$0xff]
    %v474 = vld [vmem:[#allocation5 + $0xdc0] sm:$0xff]
    %v475 = vld [vmem:[#allocation5 + $0xdc8] sm:$0xff]
    %v476 = vld [vmem:[#allocation5 + $0xdd0] sm:$0xff]
    %v477 = vld [vmem:[#allocation5 + $0xdd8] sm:$0xff]
    %v478 = vld [vmem:[#allocation5 + $0xde0] sm:$0xff]
    %v479 = vld [vmem:[#allocation5 + $0xde8] sm:$0xff]
    %v480 = vld [vmem:[#allocation5 + $0xdf0] sm:$0xff]
    %v481 = vld [vmem:[#allocation5 + $0xdf8] sm:$0xff]
    %v482 = vld [vmem:[#allocation5 + $0xe00] sm:$0xff]
    %v483 = vld [vmem:[#allocation5 + $0xe08] sm:$0xff]
    %v484 = vld [vmem:[#allocation5 + $0xe10] sm:$0xff]
    %v485 = vld [vmem:[#allocation5 + $0xe18] sm:$0xff]
    %v486 = vld [vmem:[#allocation5 + $0xe20] sm:$0xff]
    %v487 = vld [vmem:[#allocation5 + $0xe28] sm:$0xff]
    %v488 = vld [vmem:[#allocation5 + $0xe30] sm:$0xff]
    %v489 = vld [vmem:[#allocation5 + $0xe38] sm:$0xff]
    %v490 = vld [vmem:[#allocation5 + $0xe40] sm:$0xff]
    %v491 = vld [vmem:[#allocation5 + $0xe48] sm:$0xff]
    %v492 = vld [vmem:[#allocation5 + $0xe50] sm:$0xff]
    %v493 = vld [vmem:[#allocation5 + $0xe58] sm:$0xff]
    %v494 = vld [vmem:[#allocation5 + $0xe60] sm:$0xff]
    %v495 = vld [vmem:[#allocation5 + $0xe68] sm:$0xff]
    %v496 = vld [vmem:[#allocation5 + $0xe70] sm:$0xff]
    %v497 = vld [vmem:[#allocation5 + $0xe78] sm:$0xff]
    %v498 = vld [vmem:[#allocation5 + $0xe80] sm:$0xff]
    %v499 = vld [vmem:[#allocation5 + $0xe88] sm:$0xff]
    %v500 = vld [vmem:[#allocation5 + $0xe90] sm:$0xff]
    %v501 = vld [vmem:[#allocation5 + $0xe98] sm:$0xff]
    %v502 = vld [vmem:[#allocation5 + $0xea0] sm:$0xff]
    %v503 = vld [vmem:[#allocation5 + $0xea8] sm:$0xff]
    %v504 = vld [vmem:[#allocation5 + $0xeb0] sm:$0xff]
    %v505 = vld [vmem:[#allocation5 + $0xeb8] sm:$0xff]
    %v506 = vld [vmem:[#allocation5 + $0xec0] sm:$0xff]
    %v507 = vld [vmem:[#allocation5 + $0xec8] sm:$0xff]
    %v508 = vld [vmem:[#allocation5 + $0xed0] sm:$0xff]
    %v509 = vld [vmem:[#allocation5 + $0xed8] sm:$0xff]
    %v510 = vld [vmem:[#allocation5 + $0xee0] sm:$0xff]
    %v511 = vld [vmem:[#allocation5 + $0xee8] sm:$0xff]
    %v512 = vld [vmem:[#allocation5 + $0xef0] sm:$0xff]
    %v513 = vld [vmem:[#allocation5 + $0xef8] sm:$0xff]
    %v514 = vld [vmem:[#allocation5 + $0xf00] sm:$0xff]
    %v515 = vld [vmem:[#allocation5 + $0xf08] sm:$0xff]
    %v516 = vld [vmem:[#allocation5 + $0xf10] sm:$0xff]
    %v517 = vld [vmem:[#allocation5 + $0xf18] sm:$0xff]
    %v518 = vld [vmem:[#allocation5 + $0xf20] sm:$0xff]
    %v519 = vld [vmem:[#allocation5 + $0xf28] sm:$0xff]
    %v520 = vld [vmem:[#allocation5 + $0xf30] sm:$0xff]
    %v521 = vld [vmem:[#allocation5 + $0xf38] sm:$0xff]
    %v522 = vld [vmem:[#allocation5 + $0xf40] sm:$0xff]
    %v523 = vld [vmem:[#allocation5 + $0xf48] sm:$0xff]
    %v524 = vld [vmem:[#allocation5 + $0xf50] sm:$0xff]
    %v525 = vld [vmem:[#allocation5 + $0xf58] sm:$0xff]
    %v526 = vld [vmem:[#allocation5 + $0xf60] sm:$0xff]
    %v527 = vld [vmem:[#allocation5 + $0xf68] sm:$0xff]
    %v528 = vld [vmem:[#allocation5 + $0xf70] sm:$0xff]
    %v529 = vld [vmem:[#allocation5 + $0xf78] sm:$0xff]
    %v530 = vld [vmem:[#allocation5 + $0xf80] sm:$0xff]
    %v531 = vld [vmem:[#allocation5 + $0xf88] sm:$0xff]
    %v532 = vld [vmem:[#allocation5 + $0xf90] sm:$0xff]
    %v533 = vld [vmem:[#allocation5 + $0xf98] sm:$0xff]
    %v534 = vld [vmem:[#allocation5 + $0xfa0] sm:$0xff]
    %v535 = vld [vmem:[#allocation5 + $0xfa8] sm:$0xff]
    %v536 = vld [vmem:[#allocation5 + $0xfb0] sm:$0xff]
    %v537 = vld [vmem:[#allocation5 + $0xfb8] sm:$0xff]
    %v538 = vld [vmem:[#allocation5 + $0xfc0] sm:$0xff]
    %v539 = vld [vmem:[#allocation5 + $0xfc8] sm:$0xff]
    %v540 = vld [vmem:[#allocation5 + $0xfd0] sm:$0xff]
    %v541 = vld [vmem:[#allocation5 + $0xfd8] sm:$0xff]
    %v542 = vld [vmem:[#allocation5 + $0xfe0] sm:$0xff]
    %v543 = vld [vmem:[#allocation5 + $0xfe8] sm:$0xff]
    %v544 = vld [vmem:[#allocation5 + $0xff0] sm:$0xff]
    %v545 = vld [vmem:[#allocation5 + $0xff8] sm:$0xff]
    %v546 = vld [vmem:[#allocation5 + $0x1000] sm:$0xff]
    %v547 = vld [vmem:[#allocation5 + $0x1008] sm:$0xff]
    %v548 = vld [vmem:[#allocation5 + $0x1010] sm:$0xff]
    %v549 = vld [vmem:[#allocation5 + $0x1018] sm:$0xff]
    %v550 = vld [vmem:[#allocation5 + $0x1020] sm:$0xff]
    %v551 = vld [vmem:[#allocation5 + $0x1028] sm:$0xff]
    %v552 = vld [vmem:[#allocation5 + $0x1030] sm:$0xff]
    %v553 = vld [vmem:[#allocation5 + $0x1038] sm:$0xff]
    %v554 = vld [vmem:[#allocation5 + $0x1040] sm:$0xff]
    %v555 = vld [vmem:[#allocation5 + $0x1048] sm:$0xff]
    %v556 = vld [vmem:[#allocation5 + $0x1050] sm:$0xff]
    %v557 = vld [vmem:[#allocation5 + $0x1058] sm:$0xff]
    %v558 = vld [vmem:[#allocation5 + $0x1060] sm:$0xff]
    %v559 = vld [vmem:[#allocation5 + $0x1068] sm:$0xff]
    %v560 = vld [vmem:[#allocation5 + $0x1070] sm:$0xff]
    %v561 = vld [vmem:[#allocation5 + $0x1078] sm:$0xff]
    %v562 = vld [vmem:[#allocation5 + $0x1080] sm:$0xff]
    %v563 = vld [vmem:[#allocation5 + $0x1088] sm:$0xff]
    %v564 = vld [vmem:[#allocation5 + $0x1090] sm:$0xff]
    %v565 = vld [vmem:[#allocation5 + $0x1098] sm:$0xff]
    %v566 = vld [vmem:[#allocation5 + $0x10a0] sm:$0xff]
    %v567 = vld [vmem:[#allocation5 + $0x10a8] sm:$0xff]
    %v568 = vld [vmem:[#allocation5 + $0x10b0] sm:$0xff]
    %v569 = vld [vmem:[#allocation5 + $0x10b8] sm:$0xff]
    %v570 = vld [vmem:[#allocation5 + $0x10c0] sm:$0xff]
    %v571 = vld [vmem:[#allocation5 + $0x10c8] sm:$0xff]
    %v572 = vld [vmem:[#allocation5 + $0x10d0] sm:$0xff]
    %v573 = vld [vmem:[#allocation5 + $0x10d8] sm:$0xff]
    %v574 = vld [vmem:[#allocation5 + $0x10e0] sm:$0xff]
    %v575 = vld [vmem:[#allocation5 + $0x10e8] sm:$0xff]
    %v576 = vld [vmem:[#allocation5 + $0x10f0] sm:$0xff]
    %v577 = vld [vmem:[#allocation5 + $0x10f8] sm:$0xff]
    %v578 = vld [vmem:[#allocation5 + $0x1100] sm:$0xff]
    %v579 = vld [vmem:[#allocation5 + $0x1108] sm:$0xff]
    %v580 = vld [vmem:[#allocation5 + $0x1110] sm:$0xff]
    %v581 = vld [vmem:[#allocation5 + $0x1118] sm:$0xff]
    %v582 = vld [vmem:[#allocation5 + $0x1120] sm:$0xff]
    %v583 = vld [vmem:[#allocation5 + $0x1128] sm:$0xff]
    %v584 = vld [vmem:[#allocation5 + $0x1130] sm:$0xff]
    %v585 = vld [vmem:[#allocation5 + $0x1138] sm:$0xff]
    %v586 = vld [vmem:[#allocation5 + $0x1140] sm:$0xff]
    %v587 = vld [vmem:[#allocation5 + $0x1148] sm:$0xff]
    %v588 = vld [vmem:[#allocation5 + $0x1150] sm:$0xff]
    %v589 = vld [vmem:[#allocation5 + $0x1158] sm:$0xff]
    %v590 = vld [vmem:[#allocation5 + $0x1160] sm:$0xff]
    %v591 = vld [vmem:[#allocation5 + $0x1168] sm:$0xff]
    %v592 = vld [vmem:[#allocation5 + $0x1170] sm:$0xff]
    %v593 = vld [vmem:[#allocation5 + $0x1178] sm:$0xff]
    %v594 = vld [vmem:[#allocation5 + $0x1180] sm:$0xff]
    %v595 = vld [vmem:[#allocation5 + $0x1188] sm:$0xff]
    %v596 = vld [vmem:[#allocation5 + $0x1190] sm:$0xff]
    %v597 = vld [vmem:[#allocation5 + $0x1198] sm:$0xff]
    %v598 = vld [vmem:[#allocation5 + $0x11a0] sm:$0xff]
    %v599 = vld [vmem:[#allocation5 + $0x11a8] sm:$0xff]
    %v600 = vld [vmem:[#allocation5 + $0x11b0] sm:$0xff]
    %v601 = vld [vmem:[#allocation5 + $0x11b8] sm:$0xff]
    %v602 = vld [vmem:[#allocation5 + $0x11c0] sm:$0xff]
    %v603 = vld [vmem:[#allocation5 + $0x11c8] sm:$0xff]
    %v604 = vld [vmem:[#allocation5 + $0x11d0] sm:$0xff]
    %v605 = vld [vmem:[#allocation5 + $0x11d8] sm:$0xff]
    %v606 = vld [vmem:[#allocation5 + $0x11e0] sm:$0xff]
    %v607 = vld [vmem:[#allocation5 + $0x11e8] sm:$0xff]
    %v608 = vld [vmem:[#allocation5 + $0x11f0] sm:$0xff]
    %v609 = vld [vmem:[#allocation5 + $0x11f8] sm:$0xff]
    %v610 = vld [vmem:[#allocation5 + $0x1200] sm:$0xff]
    %v611 = vld [vmem:[#allocation5 + $0x1208] sm:$0xff]
    %v612 = vld [vmem:[#allocation5 + $0x1210] sm:$0xff]
    %v613 = vld [vmem:[#allocation5 + $0x1218] sm:$0xff]
    %v614 = vld [vmem:[#allocation5 + $0x1220] sm:$0xff]
    %v615 = vld [vmem:[#allocation5 + $0x1228] sm:$0xff]
    %v616 = vld [vmem:[#allocation5 + $0x1230] sm:$0xff]
    %v617 = vld [vmem:[#allocation5 + $0x1238] sm:$0xff]
    %v618 = vld [vmem:[#allocation5 + $0x1240] sm:$0xff]
    %v619 = vld [vmem:[#allocation5 + $0x1248] sm:$0xff]
    %v620 = vld [vmem:[#allocation5 + $0x1250] sm:$0xff]
    %v621 = vld [vmem:[#allocation5 + $0x1258] sm:$0xff]
    %v622 = vld [vmem:[#allocation5 + $0x1260] sm:$0xff]
    %v623 = vld [vmem:[#allocation5 + $0x1268] sm:$0xff]
    %v624 = vld [vmem:[#allocation5 + $0x1270] sm:$0xff]
    %v625 = vld [vmem:[#allocation5 + $0x1278] sm:$0xff]
    %v626 = vld [vmem:[#allocation5 + $0x1280] sm:$0xff]
    %v627 = vld [vmem:[#allocation5 + $0x1288] sm:$0xff]
    %v628 = vld [vmem:[#allocation5 + $0x1290] sm:$0xff]
    %v629 = vld [vmem:[#allocation5 + $0x1298] sm:$0xff]
    %v630 = vld [vmem:[#allocation5 + $0x12a0] sm:$0xff]
    %v631 = vld [vmem:[#allocation5 + $0x12a8] sm:$0xff]
    %v632 = vld [vmem:[#allocation5 + $0x12b0] sm:$0xff]
    %v633 = vld [vmem:[#allocation5 + $0x12b8] sm:$0xff]
    %v634 = vld [vmem:[#allocation5 + $0x12c0] sm:$0xff]
    %v635 = vld [vmem:[#allocation5 + $0x12c8] sm:$0xff]
    %v636 = vld [vmem:[#allocation5 + $0x12d0] sm:$0xff]
    %v637 = vld [vmem:[#allocation5 + $0x12d8] sm:$0xff]
    %v638 = vld [vmem:[#allocation5 + $0x12e0] sm:$0xff]
    %v639 = vld [vmem:[#allocation5 + $0x12e8] sm:$0xff]
    %v640 = vld [vmem:[#allocation5 + $0x12f0] sm:$0xff]
    %v641 = vld [vmem:[#allocation5 + $0x12f8] sm:$0xff]
    %v642 = vld [vmem:[#allocation5 + $0x1300] sm:$0xff]
    %v643 = vld [vmem:[#allocation5 + $0x1308] sm:$0xff]
    %v644 = vld [vmem:[#allocation5 + $0x1310] sm:$0xff]
    %v645 = vld [vmem:[#allocation5 + $0x1318] sm:$0xff]
    %v646 = vld [vmem:[#allocation5 + $0x1320] sm:$0xff]
    %v647 = vld [vmem:[#allocation5 + $0x1328] sm:$0xff]
    %v648 = vld [vmem:[#allocation5 + $0x1330] sm:$0xff]
    %v649 = vld [vmem:[#allocation5 + $0x1338] sm:$0xff]
    %v650 = vld [vmem:[#allocation5 + $0x1340] sm:$0xff]
    %v651 = vld [vmem:[#allocation5 + $0x1348] sm:$0xff]
    %v652 = vld [vmem:[#allocation5 + $0x1350] sm:$0xff]
    %v653 = vld [vmem:[#allocation5 + $0x1358] sm:$0xff]
    %v654 = vld [vmem:[#allocation5 + $0x1360] sm:$0xff]
    %v655 = vld [vmem:[#allocation5 + $0x1368] sm:$0xff]
    %v656 = vld [vmem:[#allocation5 + $0x1370] sm:$0xff]
    %v657 = vld [vmem:[#allocation5 + $0x1378] sm:$0xff]
    %v658 = vld [vmem:[#allocation5 + $0x1380] sm:$0xff]
    %v659 = vld [vmem:[#allocation5 + $0x1388] sm:$0xff]
    %v660 = vld [vmem:[#allocation5 + $0x1390] sm:$0xff]
    %v661 = vld [vmem:[#allocation5 + $0x1398] sm:$0xff]
    %v662 = vld [vmem:[#allocation5 + $0x13a0] sm:$0xff]
    %v663 = vld [vmem:[#allocation5 + $0x13a8] sm:$0xff]
    %v664 = vld [vmem:[#allocation5 + $0x13b0] sm:$0xff]
    %v665 = vld [vmem:[#allocation5 + $0x13b8] sm:$0xff]
    %v666 = vld [vmem:[#allocation5 + $0x13c0] sm:$0xff]
    %v667 = vld [vmem:[#allocation5 + $0x13c8] sm:$0xff]
    %v668 = vld [vmem:[#allocation5 + $0x13d0] sm:$0xff]
    %v669 = vld [vmem:[#allocation5 + $0x13d8] sm:$0xff]
    %v670 = vld [vmem:[#allocation5 + $0x13e0] sm:$0xff]
    %v671 = vld [vmem:[#allocation5 + $0x13e8] sm:$0xff]
    %v672 = vld [vmem:[#allocation5 + $0x13f0] sm:$0xff]
    %v673 = vld [vmem:[#allocation5 + $0x13f8] sm:$0xff]
    %v674 = vld [vmem:[#allocation5 + $0x1400] sm:$0xff]
    %v675 = vld [vmem:[#allocation5 + $0x1408] sm:$0xff]
    %v676 = vld [vmem:[#allocation5 + $0x1410] sm:$0xff]
    %v677 = vld [vmem:[#allocation5 + $0x1418] sm:$0xff]
    %v678 = vld [vmem:[#allocation5 + $0x1420] sm:$0xff]
    %v679 = vld [vmem:[#allocation5 + $0x1428] sm:$0xff]
    %v680 = vld [vmem:[#allocation5 + $0x1430] sm:$0xff]
    %v681 = vld [vmem:[#allocation5 + $0x1438] sm:$0xff]
    %v682 = vld [vmem:[#allocation5 + $0x1440] sm:$0xff]
    %v683 = vld [vmem:[#allocation5 + $0x1448] sm:$0xff]
    %v684 = vld [vmem:[#allocation5 + $0x1450] sm:$0xff]
    %v685 = vld [vmem:[#allocation5 + $0x1458] sm:$0xff]
    %v686 = vld [vmem:[#allocation5 + $0x1460] sm:$0xff]
    %v687 = vld [vmem:[#allocation5 + $0x1468] sm:$0xff]
    %v688 = vld [vmem:[#allocation5 + $0x1470] sm:$0xff]
    %v689 = vld [vmem:[#allocation5 + $0x1478] sm:$0xff]
    %v690 = vld [vmem:[#allocation5 + $0x1480] sm:$0xff]
    %v691 = vld [vmem:[#allocation5 + $0x1488] sm:$0xff]
    %v692 = vld [vmem:[#allocation5 + $0x1490] sm:$0xff]
    %v693 = vld [vmem:[#allocation5 + $0x1498] sm:$0xff]
    %v694 = vld [vmem:[#allocation5 + $0x14a0] sm:$0xff]
    %v695 = vld [vmem:[#allocation5 + $0x14a8] sm:$0xff]
    %v696 = vld [vmem:[#allocation5 + $0x14b0] sm:$0xff]
    %v697 = vld [vmem:[#allocation5 + $0x14b8] sm:$0xff]
    %v698 = vld [vmem:[#allocation5 + $0x14c0] sm:$0xff]
    %v699 = vld [vmem:[#allocation5 + $0x14c8] sm:$0xff]
    %v700 = vld [vmem:[#allocation5 + $0x14d0] sm:$0xff]
    %v701 = vld [vmem:[#allocation5 + $0x14d8] sm:$0xff]
    %v702 = vld [vmem:[#allocation5 + $0x14e0] sm:$0xff]
    %v703 = vld [vmem:[#allocation5 + $0x14e8] sm:$0xff]
    %v704 = vld [vmem:[#allocation5 + $0x14f0] sm:$0xff]
    %v705 = vld [vmem:[#allocation5 + $0x14f8] sm:$0xff]
    %v706 = vld [vmem:[#allocation5 + $0x1500] sm:$0xff]
    %v707 = vld [vmem:[#allocation5 + $0x1508] sm:$0xff]
    %v708 = vld [vmem:[#allocation5 + $0x1510] sm:$0xff]
    %v709 = vld [vmem:[#allocation5 + $0x1518] sm:$0xff]
    %v710 = vld [vmem:[#allocation5 + $0x1520] sm:$0xff]
    %v711 = vld [vmem:[#allocation5 + $0x1528] sm:$0xff]
    %v712 = vld [vmem:[#allocation5 + $0x1530] sm:$0xff]
    %v713 = vld [vmem:[#allocation5 + $0x1538] sm:$0xff]
    %v714 = vld [vmem:[#allocation5 + $0x1540] sm:$0xff]
    %v715 = vld [vmem:[#allocation5 + $0x1548] sm:$0xff]
    %v716 = vld [vmem:[#allocation5 + $0x1550] sm:$0xff]
    %v717 = vld [vmem:[#allocation5 + $0x1558] sm:$0xff]
    %v718 = vld [vmem:[#allocation5 + $0x1560] sm:$0xff]
    %v719 = vld [vmem:[#allocation5 + $0x1568] sm:$0xff]
    %v720 = vld [vmem:[#allocation5 + $0x1570] sm:$0xff]
    %v721 = vld [vmem:[#allocation5 + $0x1578] sm:$0xff]
    %v722 = vld [vmem:[#allocation5 + $0x1580] sm:$0xff]
    %v723 = vld [vmem:[#allocation5 + $0x1588] sm:$0xff]
    %v724 = vld [vmem:[#allocation5 + $0x1590] sm:$0xff]
    %v725 = vld [vmem:[#allocation5 + $0x1598] sm:$0xff]
    %v726 = vld [vmem:[#allocation5 + $0x15a0] sm:$0xff]
    %v727 = vld [vmem:[#allocation5 + $0x15a8] sm:$0xff]
    %v728 = vld [vmem:[#allocation5 + $0x15b0] sm:$0xff]
    %v729 = vld [vmem:[#allocation5 + $0x15b8] sm:$0xff]
    %v730 = vld [vmem:[#allocation5 + $0x15c0] sm:$0xff]
    %v731 = vld [vmem:[#allocation5 + $0x15c8] sm:$0xff]
    %v732 = vld [vmem:[#allocation5 + $0x15d0] sm:$0xff]
    %v733 = vld [vmem:[#allocation5 + $0x15d8] sm:$0xff]
    %v734 = vld [vmem:[#allocation5 + $0x15e0] sm:$0xff]
    %v735 = vld [vmem:[#allocation5 + $0x15e8] sm:$0xff]
    %v736 = vld [vmem:[#allocation5 + $0x15f0] sm:$0xff]
    %v737 = vld [vmem:[#allocation5 + $0x15f8] sm:$0xff]
    %v738 = vld [vmem:[#allocation5 + $0x1600] sm:$0xff]
    %v739 = vld [vmem:[#allocation5 + $0x1608] sm:$0xff]
    %v740 = vld [vmem:[#allocation5 + $0x1610] sm:$0xff]
    %v741 = vld [vmem:[#allocation5 + $0x1618] sm:$0xff]
    %v742 = vld [vmem:[#allocation5 + $0x1620] sm:$0xff]
    %v743 = vld [vmem:[#allocation5 + $0x1628] sm:$0xff]
    %v744 = vld [vmem:[#allocation5 + $0x1630] sm:$0xff]
    %v745 = vld [vmem:[#allocation5 + $0x1638] sm:$0xff]
    %v746 = vld [vmem:[#allocation5 + $0x1640] sm:$0xff]
    %v747 = vld [vmem:[#allocation5 + $0x1648] sm:$0xff]
    %v748 = vld [vmem:[#allocation5 + $0x1650] sm:$0xff]
    %v749 = vld [vmem:[#allocation5 + $0x1658] sm:$0xff]
    %v750 = vld [vmem:[#allocation5 + $0x1660] sm:$0xff]
    %v751 = vld [vmem:[#allocation5 + $0x1668] sm:$0xff]
    %v752 = vld [vmem:[#allocation5 + $0x1670] sm:$0xff]
    %v753 = vld [vmem:[#allocation5 + $0x1678] sm:$0xff]
    %v754 = vld [vmem:[#allocation5 + $0x1680] sm:$0xff]
    %v755 = vld [vmem:[#allocation5 + $0x1688] sm:$0xff]
    %v756 = vld [vmem:[#allocation5 + $0x1690] sm:$0xff]
    %v757 = vld [vmem:[#allocation5 + $0x1698] sm:$0xff]
    %v758 = vld [vmem:[#allocation5 + $0x16a0] sm:$0xff]
    %v759 = vld [vmem:[#allocation5 + $0x16a8] sm:$0xff]
    %v760 = vld [vmem:[#allocation5 + $0x16b0] sm:$0xff]
    %v761 = vld [vmem:[#allocation5 + $0x16b8] sm:$0xff]
    %v762 = vld [vmem:[#allocation5 + $0x16c0] sm:$0xff]
    %v763 = vld [vmem:[#allocation5 + $0x16c8] sm:$0xff]
    %v764 = vld [vmem:[#allocation5 + $0x16d0] sm:$0xff]
    %v765 = vld [vmem:[#allocation5 + $0x16d8] sm:$0xff]
    %v766 = vld [vmem:[#allocation5 + $0x16e0] sm:$0xff]
    %v767 = vld [vmem:[#allocation5 + $0x16e8] sm:$0xff]
    %v768 = vld [vmem:[#allocation5 + $0x16f0] sm:$0xff]
    %v769 = vld [vmem:[#allocation5 + $0x16f8] sm:$0xff]
    %v770 = vld [vmem:[#allocation5 + $0x1700] sm:$0xff]
    %v771 = vld [vmem:[#allocation5 + $0x1708] sm:$0xff]
    %v772 = vld [vmem:[#allocation5 + $0x1710] sm:$0xff]
    %v773 = vld [vmem:[#allocation5 + $0x1718] sm:$0xff]
    %v774 = vld [vmem:[#allocation5 + $0x1720] sm:$0xff]
    %v775 = vld [vmem:[#allocation5 + $0x1728] sm:$0xff]
    %v776 = vld [vmem:[#allocation5 + $0x1730] sm:$0xff]
    %v777 = vld [vmem:[#allocation5 + $0x1738] sm:$0xff]
    %v778 = vld [vmem:[#allocation5 + $0x1740] sm:$0xff]
    %v779 = vld [vmem:[#allocation5 + $0x1748] sm:$0xff]
    %v780 = vld [vmem:[#allocation5 + $0x1750] sm:$0xff]
    %v781 = vld [vmem:[#allocation5 + $0x1758] sm:$0xff]
    %v782 = vld [vmem:[#allocation5 + $0x1760] sm:$0xff]
    %v783 = vld [vmem:[#allocation5 + $0x1768] sm:$0xff]
    %v784 = vld [vmem:[#allocation5 + $0x1770] sm:$0xff]
    %v785 = vld [vmem:[#allocation5 + $0x1778] sm:$0xff]
    %v786 = vld [vmem:[#allocation5 + $0x1780] sm:$0xff]
    %v787 = vld [vmem:[#allocation5 + $0x1788] sm:$0xff]
    %v788 = vld [vmem:[#allocation5 + $0x1790] sm:$0xff]
    %v789 = vld [vmem:[#allocation5 + $0x1798] sm:$0xff]
    %v790 = vld [vmem:[#allocation5 + $0x17a0] sm:$0xff]
    %v791 = vld [vmem:[#allocation5 + $0x17a8] sm:$0xff]
    %v792 = vld [vmem:[#allocation5 + $0x17b0] sm:$0xff]
    %v793 = vld [vmem:[#allocation5 + $0x17b8] sm:$0xff]
    %v794 = vld [vmem:[#allocation5 + $0x17c0] sm:$0xff]
    %v795 = vld [vmem:[#allocation5 + $0x17c8] sm:$0xff]
    %v796 = vld [vmem:[#allocation5 + $0x17d0] sm:$0xff]
    %v797 = vld [vmem:[#allocation5 + $0x17d8] sm:$0xff]
    %v798 = vld [vmem:[#allocation5 + $0x17e0] sm:$0xff]
    %v799 = vld [vmem:[#allocation5 + $0x17e8] sm:$0xff]
    %v800 = vld [vmem:[#allocation5 + $0x17f0] sm:$0xff]
    %v801 = vld [vmem:[#allocation5 + $0x17f8] sm:$0xff]
    %v802 = vld [vmem:[#allocation5 + $0x1800] sm:$0xff]
    %v803 = vld [vmem:[#allocation5 + $0x1808] sm:$0xff]
    %v804 = vld [vmem:[#allocation5 + $0x1810] sm:$0xff]
    %v805 = vld [vmem:[#allocation5 + $0x1818] sm:$0xff]
    %v806 = vld [vmem:[#allocation5 + $0x1820] sm:$0xff]
    %v807 = vld [vmem:[#allocation5 + $0x1828] sm:$0xff]
    %v808 = vld [vmem:[#allocation5 + $0x1830] sm:$0xff]
    %v809 = vld [vmem:[#allocation5 + $0x1838] sm:$0xff]
    %v810 = vld [vmem:[#allocation5 + $0x1840] sm:$0xff]
    %v811 = vld [vmem:[#allocation5 + $0x1848] sm:$0xff]
    %v812 = vld [vmem:[#allocation5 + $0x1850] sm:$0xff]
    %v813 = vld [vmem:[#allocation5 + $0x1858] sm:$0xff]
    %v814 = vld [vmem:[#allocation5 + $0x1860] sm:$0xff]
    %v815 = vld [vmem:[#allocation5 + $0x1868] sm:$0xff]
    %v816 = vld [vmem:[#allocation5 + $0x1870] sm:$0xff]
    %v817 = vld [vmem:[#allocation5 + $0x1878] sm:$0xff]
    %v818 = vld [vmem:[#allocation5 + $0x1880] sm:$0xff]
    %v819 = vld [vmem:[#allocation5 + $0x1888] sm:$0xff]
    %v820 = vld [vmem:[#allocation5 + $0x1890] sm:$0xff]
    %v821 = vld [vmem:[#allocation5 + $0x1898] sm:$0xff]
    %v822 = vld [vmem:[#allocation5 + $0x18a0] sm:$0xff]
    %v823 = vld [vmem:[#allocation5 + $0x18a8] sm:$0xff]
    %v824 = vld [vmem:[#allocation5 + $0x18b0] sm:$0xff]
    %v825 = vld [vmem:[#allocation5 + $0x18b8] sm:$0xff]
    %v826 = vld [vmem:[#allocation5 + $0x18c0] sm:$0xff]
    %v827 = vld [vmem:[#allocation5 + $0x18c8] sm:$0xff]
    %v828 = vld [vmem:[#allocation5 + $0x18d0] sm:$0xff]
    %v829 = vld [vmem:[#allocation5 + $0x18d8] sm:$0xff]
    %v830 = vld [vmem:[#allocation5 + $0x18e0] sm:$0xff]
    %v831 = vld [vmem:[#allocation5 + $0x18e8] sm:$0xff]
    %v832 = vld [vmem:[#allocation5 + $0x18f0] sm:$0xff]
    %v833 = vld [vmem:[#allocation5 + $0x18f8] sm:$0xff]
    %v834 = vld [vmem:[#allocation5 + $0x1900] sm:$0xff]
    %v835 = vld [vmem:[#allocation5 + $0x1908] sm:$0xff]
    %v836 = vld [vmem:[#allocation5 + $0x1910] sm:$0xff]
    %v837 = vld [vmem:[#allocation5 + $0x1918] sm:$0xff]
    %v838 = vld [vmem:[#allocation5 + $0x1920] sm:$0xff]
    %v839 = vld [vmem:[#allocation5 + $0x1928] sm:$0xff]
    %v840 = vld [vmem:[#allocation5 + $0x1930] sm:$0xff]
    %v841 = vld [vmem:[#allocation5 + $0x1938] sm:$0xff]
    %v842 = vld [vmem:[#allocation5 + $0x1940] sm:$0xff]
    %v843 = vld [vmem:[#allocation5 + $0x1948] sm:$0xff]
    %v844 = vld [vmem:[#allocation5 + $0x1950] sm:$0xff]
    %v845 = vld [vmem:[#allocation5 + $0x1958] sm:$0xff]
    %v846 = vld [vmem:[#allocation5 + $0x1960] sm:$0xff]
    %v847 = vld [vmem:[#allocation5 + $0x1968] sm:$0xff]
    %v848 = vld [vmem:[#allocation5 + $0x1970] sm:$0xff]
    %v849 = vld [vmem:[#allocation5 + $0x1978] sm:$0xff]
    %v850 = vld [vmem:[#allocation5 + $0x1980] sm:$0xff]
    %v851 = vld [vmem:[#allocation5 + $0x1988] sm:$0xff]
    %v852 = vld [vmem:[#allocation5 + $0x1990] sm:$0xff]
    %v853 = vld [vmem:[#allocation5 + $0x1998] sm:$0xff]
    %v854 = vld [vmem:[#allocation5 + $0x19a0] sm:$0xff]
    %v855 = vld [vmem:[#allocation5 + $0x19a8] sm:$0xff]
    %v856 = vld [vmem:[#allocation5 + $0x19b0] sm:$0xff]
    %v857 = vld [vmem:[#allocation5 + $0x19b8] sm:$0xff]
    %v858 = vld [vmem:[#allocation5 + $0x19c0] sm:$0xff]
    %v859 = vld [vmem:[#allocation5 + $0x19c8] sm:$0xff]
    %v860 = vld [vmem:[#allocation5 + $0x19d0] sm:$0xff]
    %v861 = vld [vmem:[#allocation5 + $0x19d8] sm:$0xff]
    %v862 = vld [vmem:[#allocation5 + $0x19e0] sm:$0xff]
    %v863 = vld [vmem:[#allocation5 + $0x19e8] sm:$0xff]
    %v864 = vld [vmem:[#allocation5 + $0x19f0] sm:$0xff]
    %v865 = vld [vmem:[#allocation5 + $0x19f8] sm:$0xff]
    %v866 = vld [vmem:[#allocation5 + $0x1a00] sm:$0xff]
    %v867 = vld [vmem:[#allocation5 + $0x1a08] sm:$0xff]
    %v868 = vld [vmem:[#allocation5 + $0x1a10] sm:$0xff]
    %v869 = vld [vmem:[#allocation5 + $0x1a18] sm:$0xff]
    %v870 = vld [vmem:[#allocation5 + $0x1a20] sm:$0xff]
    %v871 = vld [vmem:[#allocation5 + $0x1a28] sm:$0xff]
    %v872 = vld [vmem:[#allocation5 + $0x1a30] sm:$0xff]
    %v873 = vld [vmem:[#allocation5 + $0x1a38] sm:$0xff]
    %v874 = vld [vmem:[#allocation5 + $0x1a40] sm:$0xff]
    %v875 = vld [vmem:[#allocation5 + $0x1a48] sm:$0xff]
    %v876 = vld [vmem:[#allocation5 + $0x1a50] sm:$0xff]
    %v877 = vld [vmem:[#allocation5 + $0x1a58] sm:$0xff]
    %v878 = vld [vmem:[#allocation5 + $0x1a60] sm:$0xff]
    %v879 = vld [vmem:[#allocation5 + $0x1a68] sm:$0xff]
    %v880 = vld [vmem:[#allocation5 + $0x1a70] sm:$0xff]
    %v881 = vld [vmem:[#allocation5 + $0x1a78] sm:$0xff]
    %v882 = vld [vmem:[#allocation5 + $0x1a80] sm:$0xff]
    %v883 = vld [vmem:[#allocation5 + $0x1a88] sm:$0xff]
    %v884 = vld [vmem:[#allocation5 + $0x1a90] sm:$0xff]
    %v885 = vld [vmem:[#allocation5 + $0x1a98] sm:$0xff]
    %v886 = vld [vmem:[#allocation5 + $0x1aa0] sm:$0xff]
    %v887 = vld [vmem:[#allocation5 + $0x1aa8] sm:$0xff]
    %v888 = vld [vmem:[#allocation5 + $0x1ab0] sm:$0xff]
    %v889 = vld [vmem:[#allocation5 + $0x1ab8] sm:$0xff]
    %v890 = vld [vmem:[#allocation5 + $0x1ac0] sm:$0xff]
    %v891 = vld [vmem:[#allocation5 + $0x1ac8] sm:$0xff]
    %v892 = vld [vmem:[#allocation5 + $0x1ad0] sm:$0xff]
    %v893 = vld [vmem:[#allocation5 + $0x1ad8] sm:$0xff]
    %v894 = vld [vmem:[#allocation5 + $0x1ae0] sm:$0xff]
    %v895 = vld [vmem:[#allocation5 + $0x1ae8] sm:$0xff]
    %v896 = vld [vmem:[#allocation5 + $0x1af0] sm:$0xff]
    %v897 = vld [vmem:[#allocation5 + $0x1af8] sm:$0xff]
    %v898 = vld [vmem:[#allocation5 + $0x1b00] sm:$0xff]
    %v899 = vld [vmem:[#allocation5 + $0x1b08] sm:$0xff]
    %v900 = vld [vmem:[#allocation5 + $0x1b10] sm:$0xff]
    %v901 = vld [vmem:[#allocation5 + $0x1b18] sm:$0xff]
    %v902 = vld [vmem:[#allocation5 + $0x1b20] sm:$0xff]
    %v903 = vld [vmem:[#allocation5 + $0x1b28] sm:$0xff]
    %v904 = vld [vmem:[#allocation5 + $0x1b30] sm:$0xff]
    %v905 = vld [vmem:[#allocation5 + $0x1b38] sm:$0xff]
    %v906 = vld [vmem:[#allocation5 + $0x1b40] sm:$0xff]
    %v907 = vld [vmem:[#allocation5 + $0x1b48] sm:$0xff]
    %v908 = vld [vmem:[#allocation5 + $0x1b50] sm:$0xff]
    %v909 = vld [vmem:[#allocation5 + $0x1b58] sm:$0xff]
    %v910 = vld [vmem:[#allocation5 + $0x1b60] sm:$0xff]
    %v911 = vld [vmem:[#allocation5 + $0x1b68] sm:$0xff]
    %v912 = vld [vmem:[#allocation5 + $0x1b70] sm:$0xff]
    %v913 = vld [vmem:[#allocation5 + $0x1b78] sm:$0xff]
    %v914 = vld [vmem:[#allocation5 + $0x1b80] sm:$0xff]
    %v915 = vld [vmem:[#allocation5 + $0x1b88] sm:$0xff]
    %v916 = vld [vmem:[#allocation5 + $0x1b90] sm:$0xff]
    %v917 = vld [vmem:[#allocation5 + $0x1b98] sm:$0xff]
    %v918 = vld [vmem:[#allocation5 + $0x1ba0] sm:$0xff]
    %v919 = vld [vmem:[#allocation5 + $0x1ba8] sm:$0xff]
    %v920 = vld [vmem:[#allocation5 + $0x1bb0] sm:$0xff]
    %v921 = vld [vmem:[#allocation5 + $0x1bb8] sm:$0xff]
    %v922 = vld [vmem:[#allocation5 + $0x1bc0] sm:$0xff]
    %v923 = vld [vmem:[#allocation5 + $0x1bc8] sm:$0xff]
    %v924 = vld [vmem:[#allocation5 + $0x1bd0] sm:$0xff]
    %v925 = vld [vmem:[#allocation5 + $0x1bd8] sm:$0xff]
    %v926 = vld [vmem:[#allocation5 + $0x1be0] sm:$0xff]
    %v927 = vld [vmem:[#allocation5 + $0x1be8] sm:$0xff]
    %v928 = vld [vmem:[#allocation5 + $0x1bf0] sm:$0xff]
    %v929 = vld [vmem:[#allocation5 + $0x1bf8] sm:$0xff]
    %v930 = vld [vmem:[#allocation5 + $0x1c00] sm:$0xff]
    %v931 = vld [vmem:[#allocation5 + $0x1c08] sm:$0xff]
    %v932 = vld [vmem:[#allocation5 + $0x1c10] sm:$0xff]
    %v933 = vld [vmem:[#allocation5 + $0x1c18] sm:$0xff]
    %v934 = vld [vmem:[#allocation5 + $0x1c20] sm:$0xff]
    %v935 = vld [vmem:[#allocation5 + $0x1c28] sm:$0xff]
    %v936 = vld [vmem:[#allocation5 + $0x1c30] sm:$0xff]
    %v937 = vld [vmem:[#allocation5 + $0x1c38] sm:$0xff]
    %v938 = vld [vmem:[#allocation5 + $0x1c40] sm:$0xff]
    %v939 = vld [vmem:[#allocation5 + $0x1c48] sm:$0xff]
    %v940 = vld [vmem:[#allocation5 + $0x1c50] sm:$0xff]
    %v941 = vld [vmem:[#allocation5 + $0x1c58] sm:$0xff]
    %v942 = vld [vmem:[#allocation5 + $0x1c60] sm:$0xff]
    %v943 = vld [vmem:[#allocation5 + $0x1c68] sm:$0xff]
    %v944 = vld [vmem:[#allocation5 + $0x1c70] sm:$0xff]
    %v945 = vld [vmem:[#allocation5 + $0x1c78] sm:$0xff]
    %v946 = vld [vmem:[#allocation5 + $0x1c80] sm:$0xff]
    %v947 = vld [vmem:[#allocation5 + $0x1c88] sm:$0xff]
    %v948 = vld [vmem:[#allocation5 + $0x1c90] sm:$0xff]
    %v949 = vld [vmem:[#allocation5 + $0x1c98] sm:$0xff]
    %v950 = vld [vmem:[#allocation5 + $0x1ca0] sm:$0xff]
    %v951 = vld [vmem:[#allocation5 + $0x1ca8] sm:$0xff]
    %v952 = vld [vmem:[#allocation5 + $0x1cb0] sm:$0xff]
    %v953 = vld [vmem:[#allocation5 + $0x1cb8] sm:$0xff]
    %v954 = vld [vmem:[#allocation5 + $0x1cc0] sm:$0xff]
    %v955 = vld [vmem:[#allocation5 + $0x1cc8] sm:$0xff]
    %v956 = vld [vmem:[#allocation5 + $0x1cd0] sm:$0xff]
    %v957 = vld [vmem:[#allocation5 + $0x1cd8] sm:$0xff]
    %v958 = vld [vmem:[#allocation5 + $0x1ce0] sm:$0xff]
    %v959 = vld [vmem:[#allocation5 + $0x1ce8] sm:$0xff]
    %v960 = vld [vmem:[#allocation5 + $0x1cf0] sm:$0xff]
    %v961 = vld [vmem:[#allocation5 + $0x1cf8] sm:$0xff]
    %v962 = vld [vmem:[#allocation5 + $0x1d00] sm:$0xff]
    %v963 = vld [vmem:[#allocation5 + $0x1d08] sm:$0xff]
    %v964 = vld [vmem:[#allocation5 + $0x1d10] sm:$0xff]
    %v965 = vld [vmem:[#allocation5 + $0x1d18] sm:$0xff]
    %v966 = vld [vmem:[#allocation5 + $0x1d20] sm:$0xff]
    %v967 = vld [vmem:[#allocation5 + $0x1d28] sm:$0xff]
    %v968 = vld [vmem:[#allocation5 + $0x1d30] sm:$0xff]
    %v969 = vld [vmem:[#allocation5 + $0x1d38] sm:$0xff]
    %v970 = vld [vmem:[#allocation5 + $0x1d40] sm:$0xff]
    %v971 = vld [vmem:[#allocation5 + $0x1d48] sm:$0xff]
    %v972 = vld [vmem:[#allocation5 + $0x1d50] sm:$0xff]
    %v973 = vld [vmem:[#allocation5 + $0x1d58] sm:$0xff]
    %v974 = vld [vmem:[#allocation5 + $0x1d60] sm:$0xff]
    %v975 = vld [vmem:[#allocation5 + $0x1d68] sm:$0xff]
    %v976 = vld [vmem:[#allocation5 + $0x1d70] sm:$0xff]
    %v977 = vld [vmem:[#allocation5 + $0x1d78] sm:$0xff]
    %v978 = vld [vmem:[#allocation5 + $0x1d80] sm:$0xff]
    %v979 = vld [vmem:[#allocation5 + $0x1d88] sm:$0xff]
    %v980 = vld [vmem:[#allocation5 + $0x1d90] sm:$0xff]
    %v981 = vld [vmem:[#allocation5 + $0x1d98] sm:$0xff]
    %v982 = vld [vmem:[#allocation5 + $0x1da0] sm:$0xff]
    %v983 = vld [vmem:[#allocation5 + $0x1da8] sm:$0xff]
    %v984 = vld [vmem:[#allocation5 + $0x1db0] sm:$0xff]
    %v985 = vld [vmem:[#allocation5 + $0x1db8] sm:$0xff]
    %v986 = vld [vmem:[#allocation5 + $0x1dc0] sm:$0xff]
    %v987 = vld [vmem:[#allocation5 + $0x1dc8] sm:$0xff]
    %v988 = vld [vmem:[#allocation5 + $0x1dd0] sm:$0xff]
    %v989 = vld [vmem:[#allocation5 + $0x1dd8] sm:$0xff]
    %v990 = vld [vmem:[#allocation5 + $0x1de0] sm:$0xff]
    %v991 = vld [vmem:[#allocation5 + $0x1de8] sm:$0xff]
    %v992 = vld [vmem:[#allocation5 + $0x1df0] sm:$0xff]
    %v993 = vld [vmem:[#allocation5 + $0x1df8] sm:$0xff]
    %v994 = vld [vmem:[#allocation5 + $0x1e00] sm:$0xff]
    %v995 = vld [vmem:[#allocation5 + $0x1e08] sm:$0xff]
    %v996 = vld [vmem:[#allocation5 + $0x1e10] sm:$0xff]
    %v997 = vld [vmem:[#allocation5 + $0x1e18] sm:$0xff]
    %v998 = vld [vmem:[#allocation5 + $0x1e20] sm:$0xff]
    %v999 = vld [vmem:[#allocation5 + $0x1e28] sm:$0xff]
    %v1000 = vld [vmem:[#allocation5 + $0x1e30] sm:$0xff]
    %v1001 = vld [vmem:[#allocation5 + $0x1e38] sm:$0xff]
    %v1002 = vld [vmem:[#allocation5 + $0x1e40] sm:$0xff]
    %v1003 = vld [vmem:[#allocation5 + $0x1e48] sm:$0xff]
    %v1004 = vld [vmem:[#allocation5 + $0x1e50] sm:$0xff]
    %v1005 = vld [vmem:[#allocation5 + $0x1e58] sm:$0xff]
    %v1006 = vld [vmem:[#allocation5 + $0x1e60] sm:$0xff]
    %v1007 = vld [vmem:[#allocation5 + $0x1e68] sm:$0xff]
    %v1008 = vld [vmem:[#allocation5 + $0x1e70] sm:$0xff]
    %v1009 = vld [vmem:[#allocation5 + $0x1e78] sm:$0xff]
    %v1010 = vld [vmem:[#allocation5 + $0x1e80] sm:$0xff]
    %v1011 = vld [vmem:[#allocation5 + $0x1e88] sm:$0xff]
    %v1012 = vld [vmem:[#allocation5 + $0x1e90] sm:$0xff]
    %v1013 = vld [vmem:[#allocation5 + $0x1e98] sm:$0xff]
    %v1014 = vld [vmem:[#allocation5 + $0x1ea0] sm:$0xff]
    %v1015 = vld [vmem:[#allocation5 + $0x1ea8] sm:$0xff]
    %v1016 = vld [vmem:[#allocation5 + $0x1eb0] sm:$0xff]
    %v1017 = vld [vmem:[#allocation5 + $0x1eb8] sm:$0xff]
    %v1018 = vld [vmem:[#allocation5 + $0x1ec0] sm:$0xff]
    %v1019 = vld [vmem:[#allocation5 + $0x1ec8] sm:$0xff]
    %v1020 = vld [vmem:[#allocation5 + $0x1ed0] sm:$0xff]
    %v1021 = vld [vmem:[#allocation5 + $0x1ed8] sm:$0xff]
    %v1022 = vld [vmem:[#allocation5 + $0x1ee0] sm:$0xff]
    %v1023 = vld [vmem:[#allocation5 + $0x1ee8] sm:$0xff]
    %v1024 = vld [vmem:[#allocation5 + $0x1ef0] sm:$0xff]
    %v1025 = vld [vmem:[#allocation5 + $0x1ef8] sm:$0xff]
    %v1026 = vld [vmem:[#allocation5 + $0x1f00] sm:$0xff]
    %v1027 = vld [vmem:[#allocation5 + $0x1f08] sm:$0xff]
    %v1028 = vld [vmem:[#allocation5 + $0x1f10] sm:$0xff]
    %v1029 = vld [vmem:[#allocation5 + $0x1f18] sm:$0xff]
    %v1030 = vld [vmem:[#allocation5 + $0x1f20] sm:$0xff]
    %v1031 = vld [vmem:[#allocation5 + $0x1f28] sm:$0xff]
    %v1032 = vld [vmem:[#allocation5 + $0x1f30] sm:$0xff]
    %v1033 = vld [vmem:[#allocation5 + $0x1f38] sm:$0xff]
    %v1034 = vld [vmem:[#allocation5 + $0x1f40] sm:$0xff]
    %v1035 = vld [vmem:[#allocation5 + $0x1f48] sm:$0xff]
    %v1036 = vld [vmem:[#allocation5 + $0x1f50] sm:$0xff]
    %v1037 = vld [vmem:[#allocation5 + $0x1f58] sm:$0xff]
    %v1038 = vld [vmem:[#allocation5 + $0x1f60] sm:$0xff]
    %v1039 = vld [vmem:[#allocation5 + $0x1f68] sm:$0xff]
    %v1040 = vld [vmem:[#allocation5 + $0x1f70] sm:$0xff]
    %v1041 = vld [vmem:[#allocation5 + $0x1f78] sm:$0xff]
    %v1042 = vld [vmem:[#allocation5 + $0x1f80] sm:$0xff]
    %v1043 = vld [vmem:[#allocation5 + $0x1f88] sm:$0xff]
    %v1044 = vld [vmem:[#allocation5 + $0x1f90] sm:$0xff]
    %v1045 = vld [vmem:[#allocation5 + $0x1f98] sm:$0xff]
    %v1046 = vld [vmem:[#allocation5 + $0x1fa0] sm:$0xff]
    %v1047 = vld [vmem:[#allocation5 + $0x1fa8] sm:$0xff]
    %v1048 = vld [vmem:[#allocation5 + $0x1fb0] sm:$0xff]
    %v1049 = vld [vmem:[#allocation5 + $0x1fb8] sm:$0xff]
    %v1050 = vld [vmem:[#allocation5 + $0x1fc0] sm:$0xff]
    %v1051 = vld [vmem:[#allocation5 + $0x1fc8] sm:$0xff]
    %v1052 = vld [vmem:[#allocation5 + $0x1fd0] sm:$0xff]
    %v1053 = vld [vmem:[#allocation5 + $0x1fd8] sm:$0xff]
    %v1054 = vld [vmem:[#allocation5 + $0x1fe0] sm:$0xff]
    %v1055 = vld [vmem:[#allocation5 + $0x1fe8] sm:$0xff]
    %v1056 = vld [vmem:[#allocation5 + $0x1ff0] sm:$0xff]
    %v1057 = vld [vmem:[#allocation5 + $0x1ff8] sm:$0xff]
    %s1058 = sld [smem:[#allocation3]]
    %v1059 = vstv %s1058
    %v1060 = vmul.f32 %v1059, %v34
    %v1061 = vmul.f32 %v1059, %v35
    %v1062 = vmul.f32 %v1059, %v36
    %v1063 = vmul.f32 %v1059, %v37
    %v1064 = vmul.f32 %v1059, %v38
    %v1065 = vmul.f32 %v1059, %v39
    %v1066 = vmul.f32 %v1059, %v40
    %v1067 = vmul.f32 %v1059, %v41
    %v1068 = vmul.f32 %v1059, %v42
    %v1069 = vmul.f32 %v1059, %v43
    %v1070 = vmul.f32 %v1059, %v44
    %v1071 = vmul.f32 %v1059, %v45
    %v1072 = vmul.f32 %v1059, %v46
    %v1073 = vmul.f32 %v1059, %v47
    %v1074 = vmul.f32 %v1059, %v48
    %v1075 = vmul.f32 %v1059, %v49
    %v1076 = vmul.f32 %v1059, %v50
    %v1077 = vmul.f32 %v1059, %v51
    %v1078 = vmul.f32 %v1059, %v52
    %v1079 = vmul.f32 %v1059, %v53
    %v1080 = vmul.f32 %v1059, %v54
    %v1081 = vmul.f32 %v1059, %v55
    %v1082 = vmul.f32 %v1059, %v56
    %v1083 = vmul.f32 %v1059, %v57
    %v1084 = vmul.f32 %v1059, %v58
    %v1085 = vmul.f32 %v1059, %v59
    %v1086 = vmul.f32 %v1059, %v60
    %v1087 = vmul.f32 %v1059, %v61
    %v1088 = vmul.f32 %v1059, %v62
    %v1089 = vmul.f32 %v1059, %v63
    %v1090 = vmul.f32 %v1059, %v64
    %v1091 = vmul.f32 %v1059, %v65
    %v1092 = vmul.f32 %v1059, %v66
    %v1093 = vmul.f32 %v1059, %v67
    %v1094 = vmul.f32 %v1059, %v68
    %v1095 = vmul.f32 %v1059, %v69
    %v1096 = vmul.f32 %v1059, %v70
    %v1097 = vmul.f32 %v1059, %v71
    %v1098 = vmul.f32 %v1059, %v72
    %v1099 = vmul.f32 %v1059, %v73
    %v1100 = vmul.f32 %v1059, %v74
    %v1101 = vmul.f32 %v1059, %v75
    %v1102 = vmul.f32 %v1059, %v76
    %v1103 = vmul.f32 %v1059, %v77
    %v1104 = vmul.f32 %v1059, %v78
    %v1105 = vmul.f32 %v1059, %v79
    %v1106 = vmul.f32 %v1059, %v80
    %v1107 = vmul.f32 %v1059, %v81
    %v1108 = vmul.f32 %v1059, %v82
    %v1109 = vmul.f32 %v1059, %v83
    %v1110 = vmul.f32 %v1059, %v84
    %v1111 = vmul.f32 %v1059, %v85
    %v1112 = vmul.f32 %v1059, %v86
    %v1113 = vmul.f32 %v1059, %v87
    %v1114 = vmul.f32 %v1059, %v88
    %v1115 = vmul.f32 %v1059, %v89
    %v1116 = vmul.f32 %v1059, %v90
    %v1117 = vmul.f32 %v1059, %v91
    %v1118 = vmul.f32 %v1059, %v92
    %v1119 = vmul.f32 %v1059, %v93
    %v1120 = vmul.f32 %v1059, %v94
    %v1121 = vmul.f32 %v1059, %v95
    %v1122 = vmul.f32 %v1059, %v96
    %v1123 = vmul.f32 %v1059, %v97
    %v1124 = vmul.f32 %v1059, %v98
    %v1125 = vmul.f32 %v1059, %v99
    %v1126 = vmul.f32 %v1059, %v100
    %v1127 = vmul.f32 %v1059, %v101
    %v1128 = vmul.f32 %v1059, %v102
    %v1129 = vmul.f32 %v1059, %v103
    %v1130 = vmul.f32 %v1059, %v104
    %v1131 = vmul.f32 %v1059, %v105
    %v1132 = vmul.f32 %v1059, %v106
    %v1133 = vmul.f32 %v1059, %v107
    %v1134 = vmul.f32 %v1059, %v108
    %v1135 = vmul.f32 %v1059, %v109
    %v1136 = vmul.f32 %v1059, %v110
    %v1137 = vmul.f32 %v1059, %v111
    %v1138 = vmul.f32 %v1059, %v112
    %v1139 = vmul.f32 %v1059, %v113
    %v1140 = vmul.f32 %v1059, %v114
    %v1141 = vmul.f32 %v1059, %v115
    %v1142 = vmul.f32 %v1059, %v116
    %v1143 = vmul.f32 %v1059, %v117
    %v1144 = vmul.f32 %v1059, %v118
    %v1145 = vmul.f32 %v1059, %v119
    %v1146 = vmul.f32 %v1059, %v120
    %v1147 = vmul.f32 %v1059, %v121
    %v1148 = vmul.f32 %v1059, %v122
    %v1149 = vmul.f32 %v1059, %v123
    %v1150 = vmul.f32 %v1059, %v124
    %v1151 = vmul.f32 %v1059, %v125
    %v1152 = vmul.f32 %v1059, %v126
    %v1153 = vmul.f32 %v1059, %v127
    %v1154 = vmul.f32 %v1059, %v128
    %v1155 = vmul.f32 %v1059, %v129
    %v1156 = vmul.f32 %v1059, %v130
    %v1157 = vmul.f32 %v1059, %v131
    %v1158 = vmul.f32 %v1059, %v132
    %v1159 = vmul.f32 %v1059, %v133
    %v1160 = vmul.f32 %v1059, %v134
    %v1161 = vmul.f32 %v1059, %v135
    %v1162 = vmul.f32 %v1059, %v136
    %v1163 = vmul.f32 %v1059, %v137
    %v1164 = vmul.f32 %v1059, %v138
    %v1165 = vmul.f32 %v1059, %v139
    %v1166 = vmul.f32 %v1059, %v140
    %v1167 = vmul.f32 %v1059, %v141
    %v1168 = vmul.f32 %v1059, %v142
    %v1169 = vmul.f32 %v1059, %v143
    %v1170 = vmul.f32 %v1059, %v144
    %v1171 = vmul.f32 %v1059, %v145
    %v1172 = vmul.f32 %v1059, %v146
    %v1173 = vmul.f32 %v1059, %v147
    %v1174 = vmul.f32 %v1059, %v148
    %v1175 = vmul.f32 %v1059, %v149
    %v1176 = vmul.f32 %v1059, %v150
    %v1177 = vmul.f32 %v1059, %v151
    %v1178 = vmul.f32 %v1059, %v152
    %v1179 = vmul.f32 %v1059, %v153
    %v1180 = vmul.f32 %v1059, %v154
    %v1181 = vmul.f32 %v1059, %v155
    %v1182 = vmul.f32 %v1059, %v156
    %v1183 = vmul.f32 %v1059, %v157
    %v1184 = vmul.f32 %v1059, %v158
    %v1185 = vmul.f32 %v1059, %v159
    %v1186 = vmul.f32 %v1059, %v160
    %v1187 = vmul.f32 %v1059, %v161
    %v1188 = vmul.f32 %v1059, %v162
    %v1189 = vmul.f32 %v1059, %v163
    %v1190 = vmul.f32 %v1059, %v164
    %v1191 = vmul.f32 %v1059, %v165
    %v1192 = vmul.f32 %v1059, %v166
    %v1193 = vmul.f32 %v1059, %v167
    %v1194 = vmul.f32 %v1059, %v168
    %v1195 = vmul.f32 %v1059, %v169
    %v1196 = vmul.f32 %v1059, %v170
    %v1197 = vmul.f32 %v1059, %v171
    %v1198 = vmul.f32 %v1059, %v172
    %v1199 = vmul.f32 %v1059, %v173
    %v1200 = vmul.f32 %v1059, %v174
    %v1201 = vmul.f32 %v1059, %v175
    %v1202 = vmul.f32 %v1059, %v176
    %v1203 = vmul.f32 %v1059, %v177
    %v1204 = vmul.f32 %v1059, %v178
    %v1205 = vmul.f32 %v1059, %v179
    %v1206 = vmul.f32 %v1059, %v180
    %v1207 = vmul.f32 %v1059, %v181
    %v1208 = vmul.f32 %v1059, %v182
    %v1209 = vmul.f32 %v1059, %v183
    %v1210 = vmul.f32 %v1059, %v184
    %v1211 = vmul.f32 %v1059, %v185
    %v1212 = vmul.f32 %v1059, %v186
    %v1213 = vmul.f32 %v1059, %v187
    %v1214 = vmul.f32 %v1059, %v188
    %v1215 = vmul.f32 %v1059, %v189
    %v1216 = vmul.f32 %v1059, %v190
    %v1217 = vmul.f32 %v1059, %v191
    %v1218 = vmul.f32 %v1059, %v192
    %v1219 = vmul.f32 %v1059, %v193
    %v1220 = vmul.f32 %v1059, %v194
    %v1221 = vmul.f32 %v1059, %v195
    %v1222 = vmul.f32 %v1059, %v196
    %v1223 = vmul.f32 %v1059, %v197
    %v1224 = vmul.f32 %v1059, %v198
    %v1225 = vmul.f32 %v1059, %v199
    %v1226 = vmul.f32 %v1059, %v200
    %v1227 = vmul.f32 %v1059, %v201
    %v1228 = vmul.f32 %v1059, %v202
    %v1229 = vmul.f32 %v1059, %v203
    %v1230 = vmul.f32 %v1059, %v204
    %v1231 = vmul.f32 %v1059, %v205
    %v1232 = vmul.f32 %v1059, %v206
    %v1233 = vmul.f32 %v1059, %v207
    %v1234 = vmul.f32 %v1059, %v208
    %v1235 = vmul.f32 %v1059, %v209
    %v1236 = vmul.f32 %v1059, %v210
    %v1237 = vmul.f32 %v1059, %v211
    %v1238 = vmul.f32 %v1059, %v212
    %v1239 = vmul.f32 %v1059, %v213
    %v1240 = vmul.f32 %v1059, %v214
    %v1241 = vmul.f32 %v1059, %v215
    %v1242 = vmul.f32 %v1059, %v216
    %v1243 = vmul.f32 %v1059, %v217
    %v1244 = vmul.f32 %v1059, %v218
    %v1245 = vmul.f32 %v1059, %v219
    %v1246 = vmul.f32 %v1059, %v220
    %v1247 = vmul.f32 %v1059, %v221
    %v1248 = vmul.f32 %v1059, %v222
    %v1249 = vmul.f32 %v1059, %v223
    %v1250 = vmul.f32 %v1059, %v224
    %v1251 = vmul.f32 %v1059, %v225
    %v1252 = vmul.f32 %v1059, %v226
    %v1253 = vmul.f32 %v1059, %v227
    %v1254 = vmul.f32 %v1059, %v228
    %v1255 = vmul.f32 %v1059, %v229
    %v1256 = vmul.f32 %v1059, %v230
    %v1257 = vmul.f32 %v1059, %v231
    %v1258 = vmul.f32 %v1059, %v232
    %v1259 = vmul.f32 %v1059, %v233
    %v1260 = vmul.f32 %v1059, %v234
    %v1261 = vmul.f32 %v1059, %v235
    %v1262 = vmul.f32 %v1059, %v236
    %v1263 = vmul.f32 %v1059, %v237
    %v1264 = vmul.f32 %v1059, %v238
    %v1265 = vmul.f32 %v1059, %v239
    %v1266 = vmul.f32 %v1059, %v240
    %v1267 = vmul.f32 %v1059, %v241
    %v1268 = vmul.f32 %v1059, %v242
    %v1269 = vmul.f32 %v1059, %v243
    %v1270 = vmul.f32 %v1059, %v244
    %v1271 = vmul.f32 %v1059, %v245
    %v1272 = vmul.f32 %v1059, %v246
    %v1273 = vmul.f32 %v1059, %v247
    %v1274 = vmul.f32 %v1059, %v248
    %v1275 = vmul.f32 %v1059, %v249
    %v1276 = vmul.f32 %v1059, %v250
    %v1277 = vmul.f32 %v1059, %v251
    %v1278 = vmul.f32 %v1059, %v252
    %v1279 = vmul.f32 %v1059, %v253
    %v1280 = vmul.f32 %v1059, %v254
    %v1281 = vmul.f32 %v1059, %v255
    %v1282 = vmul.f32 %v1059, %v256
    %v1283 = vmul.f32 %v1059, %v257
    %v1284 = vmul.f32 %v1059, %v258
    %v1285 = vmul.f32 %v1059, %v259
    %v1286 = vmul.f32 %v1059, %v260
    %v1287 = vmul.f32 %v1059, %v261
    %v1288 = vmul.f32 %v1059, %v262
    %v1289 = vmul.f32 %v1059, %v263
    %v1290 = vmul.f32 %v1059, %v264
    %v1291 = vmul.f32 %v1059, %v265
    %v1292 = vmul.f32 %v1059, %v266
    %v1293 = vmul.f32 %v1059, %v267
    %v1294 = vmul.f32 %v1059, %v268
    %v1295 = vmul.f32 %v1059, %v269
    %v1296 = vmul.f32 %v1059, %v270
    %v1297 = vmul.f32 %v1059, %v271
    %v1298 = vmul.f32 %v1059, %v272
    %v1299 = vmul.f32 %v1059, %v273
    %v1300 = vmul.f32 %v1059, %v274
    %v1301 = vmul.f32 %v1059, %v275
    %v1302 = vmul.f32 %v1059, %v276
    %v1303 = vmul.f32 %v1059, %v277
    %v1304 = vmul.f32 %v1059, %v278
    %v1305 = vmul.f32 %v1059, %v279
    %v1306 = vmul.f32 %v1059, %v280
    %v1307 = vmul.f32 %v1059, %v281
    %v1308 = vmul.f32 %v1059, %v282
    %v1309 = vmul.f32 %v1059, %v283
    %v1310 = vmul.f32 %v1059, %v284
    %v1311 = vmul.f32 %v1059, %v285
    %v1312 = vmul.f32 %v1059, %v286
    %v1313 = vmul.f32 %v1059, %v287
    %v1314 = vmul.f32 %v1059, %v288
    %v1315 = vmul.f32 %v1059, %v289
    %s1316 = sld [smem:[#allocation4]]
    %v1317 = vstv %s1316
    %v1318 = vmul.f32 %v1317, %v34
    %v1319 = vmul.f32 %v1317, %v35
    %v1320 = vmul.f32 %v1317, %v36
    %v1321 = vmul.f32 %v1317, %v37
    %v1322 = vmul.f32 %v1317, %v38
    %v1323 = vmul.f32 %v1317, %v39
    %v1324 = vmul.f32 %v1317, %v40
    %v1325 = vmul.f32 %v1317, %v41
    %v1326 = vmul.f32 %v1317, %v42
    %v1327 = vmul.f32 %v1317, %v43
    %v1328 = vmul.f32 %v1317, %v44
    %v1329 = vmul.f32 %v1317, %v45
    %v1330 = vmul.f32 %v1317, %v46
    %v1331 = vmul.f32 %v1317, %v47
    %v1332 = vmul.f32 %v1317, %v48
    %v1333 = vmul.f32 %v1317, %v49
    %v1334 = vmul.f32 %v1317, %v50
    %v1335 = vmul.f32 %v1317, %v51
    %v1336 = vmul.f32 %v1317, %v52
    %v1337 = vmul.f32 %v1317, %v53
    %v1338 = vmul.f32 %v1317, %v54
    %v1339 = vmul.f32 %v1317, %v55
    %v1340 = vmul.f32 %v1317, %v56
    %v1341 = vmul.f32 %v1317, %v57
    %v1342 = vmul.f32 %v1317, %v58
    %v1343 = vmul.f32 %v1317, %v59
    %v1344 = vmul.f32 %v1317, %v60
    %v1345 = vmul.f32 %v1317, %v61
    %v1346 = vmul.f32 %v1317, %v62
    %v1347 = vmul.f32 %v1317, %v63
    %v1348 = vmul.f32 %v1317, %v64
    %v1349 = vmul.f32 %v1317, %v65
    %v1350 = vmul.f32 %v1317, %v66
    %v1351 = vmul.f32 %v1317, %v67
    %v1352 = vmul.f32 %v1317, %v68
    %v1353 = vmul.f32 %v1317, %v69
    %v1354 = vmul.f32 %v1317, %v70
    %v1355 = vmul.f32 %v1317, %v71
    %v1356 = vmul.f32 %v1317, %v72
    %v1357 = vmul.f32 %v1317, %v73
    %v1358 = vmul.f32 %v1317, %v74
    %v1359 = vmul.f32 %v1317, %v75
    %v1360 = vmul.f32 %v1317, %v76
    %v1361 = vmul.f32 %v1317, %v77
    %v1362 = vmul.f32 %v1317, %v78
    %v1363 = vmul.f32 %v1317, %v79
    %v1364 = vmul.f32 %v1317, %v80
    %v1365 = vmul.f32 %v1317, %v81
    %v1366 = vmul.f32 %v1317, %v82
    %v1367 = vmul.f32 %v1317, %v83
    %v1368 = vmul.f32 %v1317, %v84
    %v1369 = vmul.f32 %v1317, %v85
    %v1370 = vmul.f32 %v1317, %v86
    %v1371 = vmul.f32 %v1317, %v87
    %v1372 = vmul.f32 %v1317, %v88
    %v1373 = vmul.f32 %v1317, %v89
    %v1374 = vmul.f32 %v1317, %v90
    %v1375 = vmul.f32 %v1317, %v91
    %v1376 = vmul.f32 %v1317, %v92
    %v1377 = vmul.f32 %v1317, %v93
    %v1378 = vmul.f32 %v1317, %v94
    %v1379 = vmul.f32 %v1317, %v95
    %v1380 = vmul.f32 %v1317, %v96
    %v1381 = vmul.f32 %v1317, %v97
    %v1382 = vmul.f32 %v1317, %v98
    %v1383 = vmul.f32 %v1317, %v99
    %v1384 = vmul.f32 %v1317, %v100
    %v1385 = vmul.f32 %v1317, %v101
    %v1386 = vmul.f32 %v1317, %v102
    %v1387 = vmul.f32 %v1317, %v103
    %v1388 = vmul.f32 %v1317, %v104
    %v1389 = vmul.f32 %v1317, %v105
    %v1390 = vmul.f32 %v1317, %v106
    %v1391 = vmul.f32 %v1317, %v107
    %v1392 = vmul.f32 %v1317, %v108
    %v1393 = vmul.f32 %v1317, %v109
    %v1394 = vmul.f32 %v1317, %v110
    %v1395 = vmul.f32 %v1317, %v111
    %v1396 = vmul.f32 %v1317, %v112
    %v1397 = vmul.f32 %v1317, %v113
    %v1398 = vmul.f32 %v1317, %v114
    %v1399 = vmul.f32 %v1317, %v115
    %v1400 = vmul.f32 %v1317, %v116
    %v1401 = vmul.f32 %v1317, %v117
    %v1402 = vmul.f32 %v1317, %v118
    %v1403 = vmul.f32 %v1317, %v119
    %v1404 = vmul.f32 %v1317, %v120
    %v1405 = vmul.f32 %v1317, %v121
    %v1406 = vmul.f32 %v1317, %v122
    %v1407 = vmul.f32 %v1317, %v123
    %v1408 = vmul.f32 %v1317, %v124
    %v1409 = vmul.f32 %v1317, %v125
    %v1410 = vmul.f32 %v1317, %v126
    %v1411 = vmul.f32 %v1317, %v127
    %v1412 = vmul.f32 %v1317, %v128
    %v1413 = vmul.f32 %v1317, %v129
    %v1414 = vmul.f32 %v1317, %v130
    %v1415 = vmul.f32 %v1317, %v131
    %v1416 = vmul.f32 %v1317, %v132
    %v1417 = vmul.f32 %v1317, %v133
    %v1418 = vmul.f32 %v1317, %v134
    %v1419 = vmul.f32 %v1317, %v135
    %v1420 = vmul.f32 %v1317, %v136
    %v1421 = vmul.f32 %v1317, %v137
    %v1422 = vmul.f32 %v1317, %v138
    %v1423 = vmul.f32 %v1317, %v139
    %v1424 = vmul.f32 %v1317, %v140
    %v1425 = vmul.f32 %v1317, %v141
    %v1426 = vmul.f32 %v1317, %v142
    %v1427 = vmul.f32 %v1317, %v143
    %v1428 = vmul.f32 %v1317, %v144
    %v1429 = vmul.f32 %v1317, %v145
    %v1430 = vmul.f32 %v1317, %v146
    %v1431 = vmul.f32 %v1317, %v147
    %v1432 = vmul.f32 %v1317, %v148
    %v1433 = vmul.f32 %v1317, %v149
    %v1434 = vmul.f32 %v1317, %v150
    %v1435 = vmul.f32 %v1317, %v151
    %v1436 = vmul.f32 %v1317, %v152
    %v1437 = vmul.f32 %v1317, %v153
    %v1438 = vmul.f32 %v1317, %v154
    %v1439 = vmul.f32 %v1317, %v155
    %v1440 = vmul.f32 %v1317, %v156
    %v1441 = vmul.f32 %v1317, %v157
    %v1442 = vmul.f32 %v1317, %v158
    %v1443 = vmul.f32 %v1317, %v159
    %v1444 = vmul.f32 %v1317, %v160
    %v1445 = vmul.f32 %v1317, %v161
    %v1446 = vmul.f32 %v1317, %v162
    %v1447 = vmul.f32 %v1317, %v163
    %v1448 = vmul.f32 %v1317, %v164
    %v1449 = vmul.f32 %v1317, %v165
    %v1450 = vmul.f32 %v1317, %v166
    %v1451 = vmul.f32 %v1317, %v167
    %v1452 = vmul.f32 %v1317, %v168
    %v1453 = vmul.f32 %v1317, %v169
    %v1454 = vmul.f32 %v1317, %v170
    %v1455 = vmul.f32 %v1317, %v171
    %v1456 = vmul.f32 %v1317, %v172
    %v1457 = vmul.f32 %v1317, %v173
    %v1458 = vmul.f32 %v1317, %v174
    %v1459 = vmul.f32 %v1317, %v175
    %v1460 = vmul.f32 %v1317, %v176
    %v1461 = vmul.f32 %v1317, %v177
    %v1462 = vmul.f32 %v1317, %v178
    %v1463 = vmul.f32 %v1317, %v179
    %v1464 = vmul.f32 %v1317, %v180
    %v1465 = vmul.f32 %v1317, %v181
    %v1466 = vmul.f32 %v1317, %v182
    %v1467 = vmul.f32 %v1317, %v183
    %v1468 = vmul.f32 %v1317, %v184
    %v1469 = vmul.f32 %v1317, %v185
    %v1470 = vmul.f32 %v1317, %v186
    %v1471 = vmul.f32 %v1317, %v187
    %v1472 = vmul.f32 %v1317, %v188
    %v1473 = vmul.f32 %v1317, %v189
    %v1474 = vmul.f32 %v1317, %v190
    %v1475 = vmul.f32 %v1317, %v191
    %v1476 = vmul.f32 %v1317, %v192
    %v1477 = vmul.f32 %v1317, %v193
    %v1478 = vmul.f32 %v1317, %v194
    %v1479 = vmul.f32 %v1317, %v195
    %v1480 = vmul.f32 %v1317, %v196
    %v1481 = vmul.f32 %v1317, %v197
    %v1482 = vmul.f32 %v1317, %v198
    %v1483 = vmul.f32 %v1317, %v199
    %v1484 = vmul.f32 %v1317, %v200
    %v1485 = vmul.f32 %v1317, %v201
    %v1486 = vmul.f32 %v1317, %v202
    %v1487 = vmul.f32 %v1317, %v203
    %v1488 = vmul.f32 %v1317, %v204
    %v1489 = vmul.f32 %v1317, %v205
    %v1490 = vmul.f32 %v1317, %v206
    %v1491 = vmul.f32 %v1317, %v207
    %v1492 = vmul.f32 %v1317, %v208
    %v1493 = vmul.f32 %v1317, %v209
    %v1494 = vmul.f32 %v1317, %v210
    %v1495 = vmul.f32 %v1317, %v211
    %v1496 = vmul.f32 %v1317, %v212
    %v1497 = vmul.f32 %v1317, %v213
    %v1498 = vmul.f32 %v1317, %v214
    %v1499 = vmul.f32 %v1317, %v215
    %v1500 = vmul.f32 %v1317, %v216
    %v1501 = vmul.f32 %v1317, %v217
    %v1502 = vmul.f32 %v1317, %v218
    %v1503 = vmul.f32 %v1317, %v219
    %v1504 = vmul.f32 %v1317, %v220
    %v1505 = vmul.f32 %v1317, %v221
    %v1506 = vmul.f32 %v1317, %v222
    %v1507 = vmul.f32 %v1317, %v223
    %v1508 = vmul.f32 %v1317, %v224
    %v1509 = vmul.f32 %v1317, %v225
    %v1510 = vmul.f32 %v1317, %v226
    %v1511 = vmul.f32 %v1317, %v227
    %v1512 = vmul.f32 %v1317, %v228
    %v1513 = vmul.f32 %v1317, %v229
    %v1514 = vmul.f32 %v1317, %v230
    %v1515 = vmul.f32 %v1317, %v231
    %v1516 = vmul.f32 %v1317, %v232
    %v1517 = vmul.f32 %v1317, %v233
    %v1518 = vmul.f32 %v1317, %v234
    %v1519 = vmul.f32 %v1317, %v235
    %v1520 = vmul.f32 %v1317, %v236
    %v1521 = vmul.f32 %v1317, %v237
    %v1522 = vmul.f32 %v1317, %v238
    %v1523 = vmul.f32 %v1317, %v239
    %v1524 = vmul.f32 %v1317, %v240
    %v1525 = vmul.f32 %v1317, %v241
    %v1526 = vmul.f32 %v1317, %v242
    %v1527 = vmul.f32 %v1317, %v243
    %v1528 = vmul.f32 %v1317, %v244
    %v1529 = vmul.f32 %v1317, %v245
    %v1530 = vmul.f32 %v1317, %v246
    %v1531 = vmul.f32 %v1317, %v247
    %v1532 = vmul.f32 %v1317, %v248
    %v1533 = vmul.f32 %v1317, %v249
    %v1534 = vmul.f32 %v1317, %v250
    %v1535 = vmul.f32 %v1317, %v251
    %v1536 = vmul.f32 %v1317, %v252
    %v1537 = vmul.f32 %v1317, %v253
    %v1538 = vmul.f32 %v1317, %v254
    %v1539 = vmul.f32 %v1317, %v255
    %v1540 = vmul.f32 %v1317, %v256
    %v1541 = vmul.f32 %v1317, %v257
    %v1542 = vmul.f32 %v1317, %v258
    %v1543 = vmul.f32 %v1317, %v259
    %v1544 = vmul.f32 %v1317, %v260
    %v1545 = vmul.f32 %v1317, %v261
    %v1546 = vmul.f32 %v1317, %v262
    %v1547 = vmul.f32 %v1317, %v263
    %v1548 = vmul.f32 %v1317, %v264
    %v1549 = vmul.f32 %v1317, %v265
    %v1550 = vmul.f32 %v1317, %v266
    %v1551 = vmul.f32 %v1317, %v267
    %v1552 = vmul.f32 %v1317, %v268
    %v1553 = vmul.f32 %v1317, %v269
    %v1554 = vmul.f32 %v1317, %v270
    %v1555 = vmul.f32 %v1317, %v271
    %v1556 = vmul.f32 %v1317, %v272
    %v1557 = vmul.f32 %v1317, %v273
    %v1558 = vmul.f32 %v1317, %v274
    %v1559 = vmul.f32 %v1317, %v275
    %v1560 = vmul.f32 %v1317, %v276
    %v1561 = vmul.f32 %v1317, %v277
    %v1562 = vmul.f32 %v1317, %v278
    %v1563 = vmul.f32 %v1317, %v279
    %v1564 = vmul.f32 %v1317, %v280
    %v1565 = vmul.f32 %v1317, %v281
    %v1566 = vmul.f32 %v1317, %v282
    %v1567 = vmul.f32 %v1317, %v283
    %v1568 = vmul.f32 %v1317, %v284
    %v1569 = vmul.f32 %v1317, %v285
    %v1570 = vmul.f32 %v1317, %v286
    %v1571 = vmul.f32 %v1317, %v287
    %v1572 = vmul.f32 %v1317, %v288
    %v1573 = vmul.f32 %v1317, %v289
    %s1574 = sld [smem:[#allocation3 + $0x1]]
    %v1575 = vstv %s1574
    %v1576 = vmul.f32 %v1575, %v290
    %v1577 = vmul.f32 %v1575, %v291
    %v1578 = vmul.f32 %v1575, %v292
    %v1579 = vmul.f32 %v1575, %v293
    %v1580 = vmul.f32 %v1575, %v294
    %v1581 = vmul.f32 %v1575, %v295
    %v1582 = vmul.f32 %v1575, %v296
    %v1583 = vmul.f32 %v1575, %v297
    %v1584 = vmul.f32 %v1575, %v298
    %v1585 = vmul.f32 %v1575, %v299
    %v1586 = vmul.f32 %v1575, %v300
    %v1587 = vmul.f32 %v1575, %v301
    %v1588 = vmul.f32 %v1575, %v302
    %v1589 = vmul.f32 %v1575, %v303
    %v1590 = vmul.f32 %v1575, %v304
    %v1591 = vmul.f32 %v1575, %v305
    %v1592 = vmul.f32 %v1575, %v306
    %v1593 = vmul.f32 %v1575, %v307
    %v1594 = vmul.f32 %v1575, %v308
    %v1595 = vmul.f32 %v1575, %v309
    %v1596 = vmul.f32 %v1575, %v310
    %v1597 = vmul.f32 %v1575, %v311
    %v1598 = vmul.f32 %v1575, %v312
    %v1599 = vmul.f32 %v1575, %v313
    %v1600 = vmul.f32 %v1575, %v314
    %v1601 = vmul.f32 %v1575, %v315
    %v1602 = vmul.f32 %v1575, %v316
    %v1603 = vmul.f32 %v1575, %v317
    %v1604 = vmul.f32 %v1575, %v318
    %v1605 = vmul.f32 %v1575, %v319
    %v1606 = vmul.f32 %v1575, %v320
    %v1607 = vmul.f32 %v1575, %v321
    %v1608 = vmul.f32 %v1575, %v322
    %v1609 = vmul.f32 %v1575, %v323
    %v1610 = vmul.f32 %v1575, %v324
    %v1611 = vmul.f32 %v1575, %v325
    %v1612 = vmul.f32 %v1575, %v326
    %v1613 = vmul.f32 %v1575, %v327
    %v1614 = vmul.f32 %v1575, %v328
    %v1615 = vmul.f32 %v1575, %v329
    %v1616 = vmul.f32 %v1575, %v330
    %v1617 = vmul.f32 %v1575, %v331
    %v1618 = vmul.f32 %v1575, %v332
    %v1619 = vmul.f32 %v1575, %v333
    %v1620 = vmul.f32 %v1575, %v334
    %v1621 = vmul.f32 %v1575, %v335
    %v1622 = vmul.f32 %v1575, %v336
    %v1623 = vmul.f32 %v1575, %v337
    %v1624 = vmul.f32 %v1575, %v338
    %v1625 = vmul.f32 %v1575, %v339
    %v1626 = vmul.f32 %v1575, %v340
    %v1627 = vmul.f32 %v1575, %v341
    %v1628 = vmul.f32 %v1575, %v342
    %v1629 = vmul.f32 %v1575, %v343
    %v1630 = vmul.f32 %v1575, %v344
    %v1631 = vmul.f32 %v1575, %v345
    %v1632 = vmul.f32 %v1575, %v346
    %v1633 = vmul.f32 %v1575, %v347
    %v1634 = vmul.f32 %v1575, %v348
    %v1635 = vmul.f32 %v1575, %v349
    %v1636 = vmul.f32 %v1575, %v350
    %v1637 = vmul.f32 %v1575, %v351
    %v1638 = vmul.f32 %v1575, %v352
    %v1639 = vmul.f32 %v1575, %v353
    %v1640 = vmul.f32 %v1575, %v354
    %v1641 = vmul.f32 %v1575, %v355
    %v1642 = vmul.f32 %v1575, %v356
    %v1643 = vmul.f32 %v1575, %v357
    %v1644 = vmul.f32 %v1575, %v358
    %v1645 = vmul.f32 %v1575, %v359
    %v1646 = vmul.f32 %v1575, %v360
    %v1647 = vmul.f32 %v1575, %v361
    %v1648 = vmul.f32 %v1575, %v362
    %v1649 = vmul.f32 %v1575, %v363
    %v1650 = vmul.f32 %v1575, %v364
    %v1651 = vmul.f32 %v1575, %v365
    %v1652 = vmul.f32 %v1575, %v366
    %v1653 = vmul.f32 %v1575, %v367
    %v1654 = vmul.f32 %v1575, %v368
    %v1655 = vmul.f32 %v1575, %v369
    %v1656 = vmul.f32 %v1575, %v370
    %v1657 = vmul.f32 %v1575, %v371
    %v1658 = vmul.f32 %v1575, %v372
    %v1659 = vmul.f32 %v1575, %v373
    %v1660 = vmul.f32 %v1575, %v374
    %v1661 = vmul.f32 %v1575, %v375
    %v1662 = vmul.f32 %v1575, %v376
    %v1663 = vmul.f32 %v1575, %v377
    %v1664 = vmul.f32 %v1575, %v378
    %v1665 = vmul.f32 %v1575, %v379
    %v1666 = vmul.f32 %v1575, %v380
    %v1667 = vmul.f32 %v1575, %v381
    %v1668 = vmul.f32 %v1575, %v382
    %v1669 = vmul.f32 %v1575, %v383
    %v1670 = vmul.f32 %v1575, %v384
    %v1671 = vmul.f32 %v1575, %v385
    %v1672 = vmul.f32 %v1575, %v386
    %v1673 = vmul.f32 %v1575, %v387
    %v1674 = vmul.f32 %v1575, %v388
    %v1675 = vmul.f32 %v1575, %v389
    %v1676 = vmul.f32 %v1575, %v390
    %v1677 = vmul.f32 %v1575, %v391
    %v1678 = vmul.f32 %v1575, %v392
    %v1679 = vmul.f32 %v1575, %v393
    %v1680 = vmul.f32 %v1575, %v394
    %v1681 = vmul.f32 %v1575, %v395
    %v1682 = vmul.f32 %v1575, %v396
    %v1683 = vmul.f32 %v1575, %v397
    %v1684 = vmul.f32 %v1575, %v398
    %v1685 = vmul.f32 %v1575, %v399
    %v1686 = vmul.f32 %v1575, %v400
    %v1687 = vmul.f32 %v1575, %v401
    %v1688 = vmul.f32 %v1575, %v402
    %v1689 = vmul.f32 %v1575, %v403
    %v1690 = vmul.f32 %v1575, %v404
    %v1691 = vmul.f32 %v1575, %v405
    %v1692 = vmul.f32 %v1575, %v406
    %v1693 = vmul.f32 %v1575, %v407
    %v1694 = vmul.f32 %v1575, %v408
    %v1695 = vmul.f32 %v1575, %v409
    %v1696 = vmul.f32 %v1575, %v410
    %v1697 = vmul.f32 %v1575, %v411
    %v1698 = vmul.f32 %v1575, %v412
    %v1699 = vmul.f32 %v1575, %v413
    %v1700 = vmul.f32 %v1575, %v414
    %v1701 = vmul.f32 %v1575, %v415
    %v1702 = vmul.f32 %v1575, %v416
    %v1703 = vmul.f32 %v1575, %v417
    %v1704 = vmul.f32 %v1575, %v418
    %v1705 = vmul.f32 %v1575, %v419
    %v1706 = vmul.f32 %v1575, %v420
    %v1707 = vmul.f32 %v1575, %v421
    %v1708 = vmul.f32 %v1575, %v422
    %v1709 = vmul.f32 %v1575, %v423
    %v1710 = vmul.f32 %v1575, %v424
    %v1711 = vmul.f32 %v1575, %v425
    %v1712 = vmul.f32 %v1575, %v426
    %v1713 = vmul.f32 %v1575, %v427
    %v1714 = vmul.f32 %v1575, %v428
    %v1715 = vmul.f32 %v1575, %v429
    %v1716 = vmul.f32 %v1575, %v430
    %v1717 = vmul.f32 %v1575, %v431
    %v1718 = vmul.f32 %v1575, %v432
    %v1719 = vmul.f32 %v1575, %v433
    %v1720 = vmul.f32 %v1575, %v434
    %v1721 = vmul.f32 %v1575, %v435
    %v1722 = vmul.f32 %v1575, %v436
    %v1723 = vmul.f32 %v1575, %v437
    %v1724 = vmul.f32 %v1575, %v438
    %v1725 = vmul.f32 %v1575, %v439
    %v1726 = vmul.f32 %v1575, %v440
    %v1727 = vmul.f32 %v1575, %v441
    %v1728 = vmul.f32 %v1575, %v442
    %v1729 = vmul.f32 %v1575, %v443
    %v1730 = vmul.f32 %v1575, %v444
    %v1731 = vmul.f32 %v1575, %v445
    %v1732 = vmul.f32 %v1575, %v446
    %v1733 = vmul.f32 %v1575, %v447
    %v1734 = vmul.f32 %v1575, %v448
    %v1735 = vmul.f32 %v1575, %v449
    %v1736 = vmul.f32 %v1575, %v450
    %v1737 = vmul.f32 %v1575, %v451
    %v1738 = vmul.f32 %v1575, %v452
    %v1739 = vmul.f32 %v1575, %v453
    %v1740 = vmul.f32 %v1575, %v454
    %v1741 = vmul.f32 %v1575, %v455
    %v1742 = vmul.f32 %v1575, %v456
    %v1743 = vmul.f32 %v1575, %v457
    %v1744 = vmul.f32 %v1575, %v458
    %v1745 = vmul.f32 %v1575, %v459
    %v1746 = vmul.f32 %v1575, %v460
    %v1747 = vmul.f32 %v1575, %v461
    %v1748 = vmul.f32 %v1575, %v462
    %v1749 = vmul.f32 %v1575, %v463
    %v1750 = vmul.f32 %v1575, %v464
    %v1751 = vmul.f32 %v1575, %v465
    %v1752 = vmul.f32 %v1575, %v466
    %v1753 = vmul.f32 %v1575, %v467
    %v1754 = vmul.f32 %v1575, %v468
    %v1755 = vmul.f32 %v1575, %v469
    %v1756 = vmul.f32 %v1575, %v470
    %v1757 = vmul.f32 %v1575, %v471
    %v1758 = vmul.f32 %v1575, %v472
    %v1759 = vmul.f32 %v1575, %v473
    %v1760 = vmul.f32 %v1575, %v474
    %v1761 = vmul.f32 %v1575, %v475
    %v1762 = vmul.f32 %v1575, %v476
    %v1763 = vmul.f32 %v1575, %v477
    %v1764 = vmul.f32 %v1575, %v478
    %v1765 = vmul.f32 %v1575, %v479
    %v1766 = vmul.f32 %v1575, %v480
    %v1767 = vmul.f32 %v1575, %v481
    %v1768 = vmul.f32 %v1575, %v482
    %v1769 = vmul.f32 %v1575, %v483
    %v1770 = vmul.f32 %v1575, %v484
    %v1771 = vmul.f32 %v1575, %v485
    %v1772 = vmul.f32 %v1575, %v486
    %v1773 = vmul.f32 %v1575, %v487
    %v1774 = vmul.f32 %v1575, %v488
    %v1775 = vmul.f32 %v1575, %v489
    %v1776 = vmul.f32 %v1575, %v490
    %v1777 = vmul.f32 %v1575, %v491
    %v1778 = vmul.f32 %v1575, %v492
    %v1779 = vmul.f32 %v1575, %v493
    %v1780 = vmul.f32 %v1575, %v494
    %v1781 = vmul.f32 %v1575, %v495
    %v1782 = vmul.f32 %v1575, %v496
    %v1783 = vmul.f32 %v1575, %v497
    %v1784 = vmul.f32 %v1575, %v498
    %v1785 = vmul.f32 %v1575, %v499
    %v1786 = vmul.f32 %v1575, %v500
    %v1787 = vmul.f32 %v1575, %v501
    %v1788 = vmul.f32 %v1575, %v502
    %v1789 = vmul.f32 %v1575, %v503
    %v1790 = vmul.f32 %v1575, %v504
    %v1791 = vmul.f32 %v1575, %v505
    %v1792 = vmul.f32 %v1575, %v506
    %v1793 = vmul.f32 %v1575, %v507
    %v1794 = vmul.f32 %v1575, %v508
    %v1795 = vmul.f32 %v1575, %v509
    %v1796 = vmul.f32 %v1575, %v510
    %v1797 = vmul.f32 %v1575, %v511
    %v1798 = vmul.f32 %v1575, %v512
    %v1799 = vmul.f32 %v1575, %v513
    %v1800 = vmul.f32 %v1575, %v514
    %v1801 = vmul.f32 %v1575, %v515
    %v1802 = vmul.f32 %v1575, %v516
    %v1803 = vmul.f32 %v1575, %v517
    %v1804 = vmul.f32 %v1575, %v518
    %v1805 = vmul.f32 %v1575, %v519
    %v1806 = vmul.f32 %v1575, %v520
    %v1807 = vmul.f32 %v1575, %v521
    %v1808 = vmul.f32 %v1575, %v522
    %v1809 = vmul.f32 %v1575, %v523
    %v1810 = vmul.f32 %v1575, %v524
    %v1811 = vmul.f32 %v1575, %v525
    %v1812 = vmul.f32 %v1575, %v526
    %v1813 = vmul.f32 %v1575, %v527
    %v1814 = vmul.f32 %v1575, %v528
    %v1815 = vmul.f32 %v1575, %v529
    %v1816 = vmul.f32 %v1575, %v530
    %v1817 = vmul.f32 %v1575, %v531
    %v1818 = vmul.f32 %v1575, %v532
    %v1819 = vmul.f32 %v1575, %v533
    %v1820 = vmul.f32 %v1575, %v534
    %v1821 = vmul.f32 %v1575, %v535
    %v1822 = vmul.f32 %v1575, %v536
    %v1823 = vmul.f32 %v1575, %v537
    %v1824 = vmul.f32 %v1575, %v538
    %v1825 = vmul.f32 %v1575, %v539
    %v1826 = vmul.f32 %v1575, %v540
    %v1827 = vmul.f32 %v1575, %v541
    %v1828 = vmul.f32 %v1575, %v542
    %v1829 = vmul.f32 %v1575, %v543
    %v1830 = vmul.f32 %v1575, %v544
    %v1831 = vmul.f32 %v1575, %v545
    %v1832 = vadd.f32 %v1060, %v1576
    %v1833 = vadd.f32 %v1061, %v1577
    %v1834 = vadd.f32 %v1062, %v1578
    %v1835 = vadd.f32 %v1063, %v1579
    %v1836 = vadd.f32 %v1064, %v1580
    %v1837 = vadd.f32 %v1065, %v1581
    %v1838 = vadd.f32 %v1066, %v1582
    %v1839 = vadd.f32 %v1067, %v1583
    %v1840 = vadd.f32 %v1068, %v1584
    %v1841 = vadd.f32 %v1069, %v1585
    %v1842 = vadd.f32 %v1070, %v1586
    %v1843 = vadd.f32 %v1071, %v1587
    %v1844 = vadd.f32 %v1072, %v1588
    %v1845 = vadd.f32 %v1073, %v1589
    %v1846 = vadd.f32 %v1074, %v1590
    %v1847 = vadd.f32 %v1075, %v1591
    %v1848 = vadd.f32 %v1076, %v1592
    %v1849 = vadd.f32 %v1077, %v1593
    %v1850 = vadd.f32 %v1078, %v1594
    %v1851 = vadd.f32 %v1079, %v1595
    %v1852 = vadd.f32 %v1080, %v1596
    %v1853 = vadd.f32 %v1081, %v1597
    %v1854 = vadd.f32 %v1082, %v1598
    %v1855 = vadd.f32 %v1083, %v1599
    %v1856 = vadd.f32 %v1084, %v1600
    %v1857 = vadd.f32 %v1085, %v1601
    %v1858 = vadd.f32 %v1086, %v1602
    %v1859 = vadd.f32 %v1087, %v1603
    %v1860 = vadd.f32 %v1088, %v1604
    %v1861 = vadd.f32 %v1089, %v1605
    %v1862 = vadd.f32 %v1090, %v1606
    %v1863 = vadd.f32 %v1091, %v1607
    %v1864 = vadd.f32 %v1092, %v1608
    %v1865 = vadd.f32 %v1093, %v1609
    %v1866 = vadd.f32 %v1094, %v1610
    %v1867 = vadd.f32 %v1095, %v1611
    %v1868 = vadd.f32 %v1096, %v1612
    %v1869 = vadd.f32 %v1097, %v1613
    %v1870 = vadd.f32 %v1098, %v1614
    %v1871 = vadd.f32 %v1099, %v1615
    %v1872 = vadd.f32 %v1100, %v1616
    %v1873 = vadd.f32 %v1101, %v1617
    %v1874 = vadd.f32 %v1102, %v1618
    %v1875 = vadd.f32 %v1103, %v1619
    %v1876 = vadd.f32 %v1104, %v1620
    %v1877 = vadd.f32 %v1105, %v1621
    %v1878 = vadd.f32 %v1106, %v1622
    %v1879 = vadd.f32 %v1107, %v1623
    %v1880 = vadd.f32 %v1108, %v1624
    %v1881 = vadd.f32 %v1109, %v1625
    %v1882 = vadd.f32 %v1110, %v1626
    %v1883 = vadd.f32 %v1111, %v1627
    %v1884 = vadd.f32 %v1112, %v1628
    %v1885 = vadd.f32 %v1113, %v1629
    %v1886 = vadd.f32 %v1114, %v1630
    %v1887 = vadd.f32 %v1115, %v1631
    %v1888 = vadd.f32 %v1116, %v1632
    %v1889 = vadd.f32 %v1117, %v1633
    %v1890 = vadd.f32 %v1118, %v1634
    %v1891 = vadd.f32 %v1119, %v1635
    %v1892 = vadd.f32 %v1120, %v1636
    %v1893 = vadd.f32 %v1121, %v1637
    %v1894 = vadd.f32 %v1122, %v1638
    %v1895 = vadd.f32 %v1123, %v1639
    %v1896 = vadd.f32 %v1124, %v1640
    %v1897 = vadd.f32 %v1125, %v1641
    %v1898 = vadd.f32 %v1126, %v1642
    %v1899 = vadd.f32 %v1127, %v1643
    %v1900 = vadd.f32 %v1128, %v1644
    %v1901 = vadd.f32 %v1129, %v1645
    %v1902 = vadd.f32 %v1130, %v1646
    %v1903 = vadd.f32 %v1131, %v1647
    %v1904 = vadd.f32 %v1132, %v1648
    %v1905 = vadd.f32 %v1133, %v1649
    %v1906 = vadd.f32 %v1134, %v1650
    %v1907 = vadd.f32 %v1135, %v1651
    %v1908 = vadd.f32 %v1136, %v1652
    %v1909 = vadd.f32 %v1137, %v1653
    %v1910 = vadd.f32 %v1138, %v1654
    %v1911 = vadd.f32 %v1139, %v1655
    %v1912 = vadd.f32 %v1140, %v1656
    %v1913 = vadd.f32 %v1141, %v1657
    %v1914 = vadd.f32 %v1142, %v1658
    %v1915 = vadd.f32 %v1143, %v1659
    %v1916 = vadd.f32 %v1144, %v1660
    %v1917 = vadd.f32 %v1145, %v1661
    %v1918 = vadd.f32 %v1146, %v1662
    %v1919 = vadd.f32 %v1147, %v1663
    %v1920 = vadd.f32 %v1148, %v1664
    %v1921 = vadd.f32 %v1149, %v1665
    %v1922 = vadd.f32 %v1150, %v1666
    %v1923 = vadd.f32 %v1151, %v1667
    %v1924 = vadd.f32 %v1152, %v1668
    %v1925 = vadd.f32 %v1153, %v1669
    %v1926 = vadd.f32 %v1154, %v1670
    %v1927 = vadd.f32 %v1155, %v1671
    %v1928 = vadd.f32 %v1156, %v1672
    %v1929 = vadd.f32 %v1157, %v1673
    %v1930 = vadd.f32 %v1158, %v1674
    %v1931 = vadd.f32 %v1159, %v1675
    %v1932 = vadd.f32 %v1160, %v1676
    %v1933 = vadd.f32 %v1161, %v1677
    %v1934 = vadd.f32 %v1162, %v1678
    %v1935 = vadd.f32 %v1163, %v1679
    %v1936 = vadd.f32 %v1164, %v1680
    %v1937 = vadd.f32 %v1165, %v1681
    %v1938 = vadd.f32 %v1166, %v1682
    %v1939 = vadd.f32 %v1167, %v1683
    %v1940 = vadd.f32 %v1168, %v1684
    %v1941 = vadd.f32 %v1169, %v1685
    %v1942 = vadd.f32 %v1170, %v1686
    %v1943 = vadd.f32 %v1171, %v1687
    %v1944 = vadd.f32 %v1172, %v1688
    %v1945 = vadd.f32 %v1173, %v1689
    %v1946 = vadd.f32 %v1174, %v1690
    %v1947 = vadd.f32 %v1175, %v1691
    %v1948 = vadd.f32 %v1176, %v1692
    %v1949 = vadd.f32 %v1177, %v1693
    %v1950 = vadd.f32 %v1178, %v1694
    %v1951 = vadd.f32 %v1179, %v1695
    %v1952 = vadd.f32 %v1180, %v1696
    %v1953 = vadd.f32 %v1181, %v1697
    %v1954 = vadd.f32 %v1182, %v1698
    %v1955 = vadd.f32 %v1183, %v1699
    %v1956 = vadd.f32 %v1184, %v1700
    %v1957 = vadd.f32 %v1185, %v1701
    %v1958 = vadd.f32 %v1186, %v1702
    %v1959 = vadd.f32 %v1187, %v1703
    %v1960 = vadd.f32 %v1188, %v1704
    %v1961 = vadd.f32 %v1189, %v1705
    %v1962 = vadd.f32 %v1190, %v1706
    %v1963 = vadd.f32 %v1191, %v1707
    %v1964 = vadd.f32 %v1192, %v1708
    %v1965 = vadd.f32 %v1193, %v1709
    %v1966 = vadd.f32 %v1194, %v1710
    %v1967 = vadd.f32 %v1195, %v1711
    %v1968 = vadd.f32 %v1196, %v1712
    %v1969 = vadd.f32 %v1197, %v1713
    %v1970 = vadd.f32 %v1198, %v1714
    %v1971 = vadd.f32 %v1199, %v1715
    %v1972 = vadd.f32 %v1200, %v1716
    %v1973 = vadd.f32 %v1201, %v1717
    %v1974 = vadd.f32 %v1202, %v1718
    %v1975 = vadd.f32 %v1203, %v1719
    %v1976 = vadd.f32 %v1204, %v1720
    %v1977 = vadd.f32 %v1205, %v1721
    %v1978 = vadd.f32 %v1206, %v1722
    %v1979 = vadd.f32 %v1207, %v1723
    %v1980 = vadd.f32 %v1208, %v1724
    %v1981 = vadd.f32 %v1209, %v1725
    %v1982 = vadd.f32 %v1210, %v1726
    %v1983 = vadd.f32 %v1211, %v1727
    %v1984 = vadd.f32 %v1212, %v1728
    %v1985 = vadd.f32 %v1213, %v1729
    %v1986 = vadd.f32 %v1214, %v1730
    %v1987 = vadd.f32 %v1215, %v1731
    %v1988 = vadd.f32 %v1216, %v1732
    %v1989 = vadd.f32 %v1217, %v1733
    %v1990 = vadd.f32 %v1218, %v1734
    %v1991 = vadd.f32 %v1219, %v1735
    %v1992 = vadd.f32 %v1220, %v1736
    %v1993 = vadd.f32 %v1221, %v1737
    %v1994 = vadd.f32 %v1222, %v1738
    %v1995 = vadd.f32 %v1223, %v1739
    %v1996 = vadd.f32 %v1224, %v1740
    %v1997 = vadd.f32 %v1225, %v1741
    %v1998 = vadd.f32 %v1226, %v1742
    %v1999 = vadd.f32 %v1227, %v1743
    %v2000 = vadd.f32 %v1228, %v1744
    %v2001 = vadd.f32 %v1229, %v1745
    %v2002 = vadd.f32 %v1230, %v1746
    %v2003 = vadd.f32 %v1231, %v1747
    %v2004 = vadd.f32 %v1232, %v1748
    %v2005 = vadd.f32 %v1233, %v1749
    %v2006 = vadd.f32 %v1234, %v1750
    %v2007 = vadd.f32 %v1235, %v1751
    %v2008 = vadd.f32 %v1236, %v1752
    %v2009 = vadd.f32 %v1237, %v1753
    %v2010 = vadd.f32 %v1238, %v1754
    %v2011 = vadd.f32 %v1239, %v1755
    %v2012 = vadd.f32 %v1240, %v1756
    %v2013 = vadd.f32 %v1241, %v1757
    %v2014 = vadd.f32 %v1242, %v1758
    %v2015 = vadd.f32 %v1243, %v1759
    %v2016 = vadd.f32 %v1244, %v1760
    %v2017 = vadd.f32 %v1245, %v1761
    %v2018 = vadd.f32 %v1246, %v1762
    %v2019 = vadd.f32 %v1247, %v1763
    %v2020 = vadd.f32 %v1248, %v1764
    %v2021 = vadd.f32 %v1249, %v1765
    %v2022 = vadd.f32 %v1250, %v1766
    %v2023 = vadd.f32 %v1251, %v1767
    %v2024 = vadd.f32 %v1252, %v1768
    %v2025 = vadd.f32 %v1253, %v1769
    %v2026 = vadd.f32 %v1254, %v1770
    %v2027 = vadd.f32 %v1255, %v1771
    %v2028 = vadd.f32 %v1256, %v1772
    %v2029 = vadd.f32 %v1257, %v1773
    %v2030 = vadd.f32 %v1258, %v1774
    %v2031 = vadd.f32 %v1259, %v1775
    %v2032 = vadd.f32 %v1260, %v1776
    %v2033 = vadd.f32 %v1261, %v1777
    %v2034 = vadd.f32 %v1262, %v1778
    %v2035 = vadd.f32 %v1263, %v1779
    %v2036 = vadd.f32 %v1264, %v1780
    %v2037 = vadd.f32 %v1265, %v1781
    %v2038 = vadd.f32 %v1266, %v1782
    %v2039 = vadd.f32 %v1267, %v1783
    %v2040 = vadd.f32 %v1268, %v1784
    %v2041 = vadd.f32 %v1269, %v1785
    %v2042 = vadd.f32 %v1270, %v1786
    %v2043 = vadd.f32 %v1271, %v1787
    %v2044 = vadd.f32 %v1272, %v1788
    %v2045 = vadd.f32 %v1273, %v1789
    %v2046 = vadd.f32 %v1274, %v1790
    %v2047 = vadd.f32 %v1275, %v1791
    %v2048 = vadd.f32 %v1276, %v1792
    %v2049 = vadd.f32 %v1277, %v1793
    %v2050 = vadd.f32 %v1278, %v1794
    %v2051 = vadd.f32 %v1279, %v1795
    %v2052 = vadd.f32 %v1280, %v1796
    %v2053 = vadd.f32 %v1281, %v1797
    %v2054 = vadd.f32 %v1282, %v1798
    %v2055 = vadd.f32 %v1283, %v1799
    %v2056 = vadd.f32 %v1284, %v1800
    %v2057 = vadd.f32 %v1285, %v1801
    %v2058 = vadd.f32 %v1286, %v1802
    %v2059 = vadd.f32 %v1287, %v1803
    %v2060 = vadd.f32 %v1288, %v1804
    %v2061 = vadd.f32 %v1289, %v1805
    %v2062 = vadd.f32 %v1290, %v1806
    %v2063 = vadd.f32 %v1291, %v1807
    %v2064 = vadd.f32 %v1292, %v1808
    %v2065 = vadd.f32 %v1293, %v1809
    %v2066 = vadd.f32 %v1294, %v1810
    %v2067 = vadd.f32 %v1295, %v1811
    %v2068 = vadd.f32 %v1296, %v1812
    %v2069 = vadd.f32 %v1297, %v1813
    %v2070 = vadd.f32 %v1298, %v1814
    %v2071 = vadd.f32 %v1299, %v1815
    %v2072 = vadd.f32 %v1300, %v1816
    %v2073 = vadd.f32 %v1301, %v1817
    %v2074 = vadd.f32 %v1302, %v1818
    %v2075 = vadd.f32 %v1303, %v1819
    %v2076 = vadd.f32 %v1304, %v1820
    %v2077 = vadd.f32 %v1305, %v1821
    %v2078 = vadd.f32 %v1306, %v1822
    %v2079 = vadd.f32 %v1307, %v1823
    %v2080 = vadd.f32 %v1308, %v1824
    %v2081 = vadd.f32 %v1309, %v1825
    %v2082 = vadd.f32 %v1310, %v1826
    %v2083 = vadd.f32 %v1311, %v1827
    %v2084 = vadd.f32 %v1312, %v1828
    %v2085 = vadd.f32 %v1313, %v1829
    %v2086 = vadd.f32 %v1314, %v1830
    %v2087 = vadd.f32 %v1315, %v1831
    %s2088 = sld [smem:[#allocation4 + $0x1]]
    %v2089 = vstv %s2088
    %v2090 = vmul.f32 %v2089, %v290
    %v2091 = vmul.f32 %v2089, %v291
    %v2092 = vmul.f32 %v2089, %v292
    %v2093 = vmul.f32 %v2089, %v293
    %v2094 = vmul.f32 %v2089, %v294
    %v2095 = vmul.f32 %v2089, %v295
    %v2096 = vmul.f32 %v2089, %v296
    %v2097 = vmul.f32 %v2089, %v297
    %v2098 = vmul.f32 %v2089, %v298
    %v2099 = vmul.f32 %v2089, %v299
    %v2100 = vmul.f32 %v2089, %v300
    %v2101 = vmul.f32 %v2089, %v301
    %v2102 = vmul.f32 %v2089, %v302
    %v2103 = vmul.f32 %v2089, %v303
    %v2104 = vmul.f32 %v2089, %v304
    %v2105 = vmul.f32 %v2089, %v305
    %v2106 = vmul.f32 %v2089, %v306
    %v2107 = vmul.f32 %v2089, %v307
    %v2108 = vmul.f32 %v2089, %v308
    %v2109 = vmul.f32 %v2089, %v309
    %v2110 = vmul.f32 %v2089, %v310
    %v2111 = vmul.f32 %v2089, %v311
    %v2112 = vmul.f32 %v2089, %v312
    %v2113 = vmul.f32 %v2089, %v313
    %v2114 = vmul.f32 %v2089, %v314
    %v2115 = vmul.f32 %v2089, %v315
    %v2116 = vmul.f32 %v2089, %v316
    %v2117 = vmul.f32 %v2089, %v317
    %v2118 = vmul.f32 %v2089, %v318
    %v2119 = vmul.f32 %v2089, %v319
    %v2120 = vmul.f32 %v2089, %v320
    %v2121 = vmul.f32 %v2089, %v321
    %v2122 = vmul.f32 %v2089, %v322
    %v2123 = vmul.f32 %v2089, %v323
    %v2124 = vmul.f32 %v2089, %v324
    %v2125 = vmul.f32 %v2089, %v325
    %v2126 = vmul.f32 %v2089, %v326
    %v2127 = vmul.f32 %v2089, %v327
    %v2128 = vmul.f32 %v2089, %v328
    %v2129 = vmul.f32 %v2089, %v329
    %v2130 = vmul.f32 %v2089, %v330
    %v2131 = vmul.f32 %v2089, %v331
    %v2132 = vmul.f32 %v2089, %v332
    %v2133 = vmul.f32 %v2089, %v333
    %v2134 = vmul.f32 %v2089, %v334
    %v2135 = vmul.f32 %v2089, %v335
    %v2136 = vmul.f32 %v2089, %v336
    %v2137 = vmul.f32 %v2089, %v337
    %v2138 = vmul.f32 %v2089, %v338
    %v2139 = vmul.f32 %v2089, %v339
    %v2140 = vmul.f32 %v2089, %v340
    %v2141 = vmul.f32 %v2089, %v341
    %v2142 = vmul.f32 %v2089, %v342
    %v2143 = vmul.f32 %v2089, %v343
    %v2144 = vmul.f32 %v2089, %v344
    %v2145 = vmul.f32 %v2089, %v345
    %v2146 = vmul.f32 %v2089, %v346
    %v2147 = vmul.f32 %v2089, %v347
    %v2148 = vmul.f32 %v2089, %v348
    %v2149 = vmul.f32 %v2089, %v349
    %v2150 = vmul.f32 %v2089, %v350
    %v2151 = vmul.f32 %v2089, %v351
    %v2152 = vmul.f32 %v2089, %v352
    %v2153 = vmul.f32 %v2089, %v353
    %v2154 = vmul.f32 %v2089, %v354
    %v2155 = vmul.f32 %v2089, %v355
    %v2156 = vmul.f32 %v2089, %v356
    %v2157 = vmul.f32 %v2089, %v357
    %v2158 = vmul.f32 %v2089, %v358
    %v2159 = vmul.f32 %v2089, %v359
    %v2160 = vmul.f32 %v2089, %v360
    %v2161 = vmul.f32 %v2089, %v361
    %v2162 = vmul.f32 %v2089, %v362
    %v2163 = vmul.f32 %v2089, %v363
    %v2164 = vmul.f32 %v2089, %v364
    %v2165 = vmul.f32 %v2089, %v365
    %v2166 = vmul.f32 %v2089, %v366
    %v2167 = vmul.f32 %v2089, %v367
    %v2168 = vmul.f32 %v2089, %v368
    %v2169 = vmul.f32 %v2089, %v369
    %v2170 = vmul.f32 %v2089, %v370
    %v2171 = vmul.f32 %v2089, %v371
    %v2172 = vmul.f32 %v2089, %v372
    %v2173 = vmul.f32 %v2089, %v373
    %v2174 = vmul.f32 %v2089, %v374
    %v2175 = vmul.f32 %v2089, %v375
    %v2176 = vmul.f32 %v2089, %v376
    %v2177 = vmul.f32 %v2089, %v377
    %v2178 = vmul.f32 %v2089, %v378
    %v2179 = vmul.f32 %v2089, %v379
    %v2180 = vmul.f32 %v2089, %v380
    %v2181 = vmul.f32 %v2089, %v381
    %v2182 = vmul.f32 %v2089, %v382
    %v2183 = vmul.f32 %v2089, %v383
    %v2184 = vmul.f32 %v2089, %v384
    %v2185 = vmul.f32 %v2089, %v385
    %v2186 = vmul.f32 %v2089, %v386
    %v2187 = vmul.f32 %v2089, %v387
    %v2188 = vmul.f32 %v2089, %v388
    %v2189 = vmul.f32 %v2089, %v389
    %v2190 = vmul.f32 %v2089, %v390
    %v2191 = vmul.f32 %v2089, %v391
    %v2192 = vmul.f32 %v2089, %v392
    %v2193 = vmul.f32 %v2089, %v393
    %v2194 = vmul.f32 %v2089, %v394
    %v2195 = vmul.f32 %v2089, %v395
    %v2196 = vmul.f32 %v2089, %v396
    %v2197 = vmul.f32 %v2089, %v397
    %v2198 = vmul.f32 %v2089, %v398
    %v2199 = vmul.f32 %v2089, %v399
    %v2200 = vmul.f32 %v2089, %v400
    %v2201 = vmul.f32 %v2089, %v401
    %v2202 = vmul.f32 %v2089, %v402
    %v2203 = vmul.f32 %v2089, %v403
    %v2204 = vmul.f32 %v2089, %v404
    %v2205 = vmul.f32 %v2089, %v405
    %v2206 = vmul.f32 %v2089, %v406
    %v2207 = vmul.f32 %v2089, %v407
    %v2208 = vmul.f32 %v2089, %v408
    %v2209 = vmul.f32 %v2089, %v409
    %v2210 = vmul.f32 %v2089, %v410
    %v2211 = vmul.f32 %v2089, %v411
    %v2212 = vmul.f32 %v2089, %v412
    %v2213 = vmul.f32 %v2089, %v413
    %v2214 = vmul.f32 %v2089, %v414
    %v2215 = vmul.f32 %v2089, %v415
    %v2216 = vmul.f32 %v2089, %v416
    %v2217 = vmul.f32 %v2089, %v417
    %v2218 = vmul.f32 %v2089, %v418
    %v2219 = vmul.f32 %v2089, %v419
    %v2220 = vmul.f32 %v2089, %v420
    %v2221 = vmul.f32 %v2089, %v421
    %v2222 = vmul.f32 %v2089, %v422
    %v2223 = vmul.f32 %v2089, %v423
    %v2224 = vmul.f32 %v2089, %v424
    %v2225 = vmul.f32 %v2089, %v425
    %v2226 = vmul.f32 %v2089, %v426
    %v2227 = vmul.f32 %v2089, %v427
    %v2228 = vmul.f32 %v2089, %v428
    %v2229 = vmul.f32 %v2089, %v429
    %v2230 = vmul.f32 %v2089, %v430
    %v2231 = vmul.f32 %v2089, %v431
    %v2232 = vmul.f32 %v2089, %v432
    %v2233 = vmul.f32 %v2089, %v433
    %v2234 = vmul.f32 %v2089, %v434
    %v2235 = vmul.f32 %v2089, %v435
    %v2236 = vmul.f32 %v2089, %v436
    %v2237 = vmul.f32 %v2089, %v437
    %v2238 = vmul.f32 %v2089, %v438
    %v2239 = vmul.f32 %v2089, %v439
    %v2240 = vmul.f32 %v2089, %v440
    %v2241 = vmul.f32 %v2089, %v441
    %v2242 = vmul.f32 %v2089, %v442
    %v2243 = vmul.f32 %v2089, %v443
    %v2244 = vmul.f32 %v2089, %v444
    %v2245 = vmul.f32 %v2089, %v445
    %v2246 = vmul.f32 %v2089, %v446
    %v2247 = vmul.f32 %v2089, %v447
    %v2248 = vmul.f32 %v2089, %v448
    %v2249 = vmul.f32 %v2089, %v449
    %v2250 = vmul.f32 %v2089, %v450
    %v2251 = vmul.f32 %v2089, %v451
    %v2252 = vmul.f32 %v2089, %v452
    %v2253 = vmul.f32 %v2089, %v453
    %v2254 = vmul.f32 %v2089, %v454
    %v2255 = vmul.f32 %v2089, %v455
    %v2256 = vmul.f32 %v2089, %v456
    %v2257 = vmul.f32 %v2089, %v457
    %v2258 = vmul.f32 %v2089, %v458
    %v2259 = vmul.f32 %v2089, %v459
    %v2260 = vmul.f32 %v2089, %v460
    %v2261 = vmul.f32 %v2089, %v461
    %v2262 = vmul.f32 %v2089, %v462
    %v2263 = vmul.f32 %v2089, %v463
    %v2264 = vmul.f32 %v2089, %v464
    %v2265 = vmul.f32 %v2089, %v465
    %v2266 = vmul.f32 %v2089, %v466
    %v2267 = vmul.f32 %v2089, %v467
    %v2268 = vmul.f32 %v2089, %v468
    %v2269 = vmul.f32 %v2089, %v469
    %v2270 = vmul.f32 %v2089, %v470
    %v2271 = vmul.f32 %v2089, %v471
    %v2272 = vmul.f32 %v2089, %v472
    %v2273 = vmul.f32 %v2089, %v473
    %v2274 = vmul.f32 %v2089, %v474
    %v2275 = vmul.f32 %v2089, %v475
    %v2276 = vmul.f32 %v2089, %v476
    %v2277 = vmul.f32 %v2089, %v477
    %v2278 = vmul.f32 %v2089, %v478
    %v2279 = vmul.f32 %v2089, %v479
    %v2280 = vmul.f32 %v2089, %v480
    %v2281 = vmul.f32 %v2089, %v481
    %v2282 = vmul.f32 %v2089, %v482
    %v2283 = vmul.f32 %v2089, %v483
    %v2284 = vmul.f32 %v2089, %v484
    %v2285 = vmul.f32 %v2089, %v485
    %v2286 = vmul.f32 %v2089, %v486
    %v2287 = vmul.f32 %v2089, %v487
    %v2288 = vmul.f32 %v2089, %v488
    %v2289 = vmul.f32 %v2089, %v489
    %v2290 = vmul.f32 %v2089, %v490
    %v2291 = vmul.f32 %v2089, %v491
    %v2292 = vmul.f32 %v2089, %v492
    %v2293 = vmul.f32 %v2089, %v493
    %v2294 = vmul.f32 %v2089, %v494
    %v2295 = vmul.f32 %v2089, %v495
    %v2296 = vmul.f32 %v2089, %v496
    %v2297 = vmul.f32 %v2089, %v497
    %v2298 = vmul.f32 %v2089, %v498
    %v2299 = vmul.f32 %v2089, %v499
    %v2300 = vmul.f32 %v2089, %v500
    %v2301 = vmul.f32 %v2089, %v501
    %v2302 = vmul.f32 %v2089, %v502
    %v2303 = vmul.f32 %v2089, %v503
    %v2304 = vmul.f32 %v2089, %v504
    %v2305 = vmul.f32 %v2089, %v505
    %v2306 = vmul.f32 %v2089, %v506
    %v2307 = vmul.f32 %v2089, %v507
    %v2308 = vmul.f32 %v2089, %v508
    %v2309 = vmul.f32 %v2089, %v509
    %v2310 = vmul.f32 %v2089, %v510
    %v2311 = vmul.f32 %v2089, %v511
    %v2312 = vmul.f32 %v2089, %v512
    %v2313 = vmul.f32 %v2089, %v513
    %v2314 = vmul.f32 %v2089, %v514
    %v2315 = vmul.f32 %v2089, %v515
    %v2316 = vmul.f32 %v2089, %v516
    %v2317 = vmul.f32 %v2089, %v517
    %v2318 = vmul.f32 %v2089, %v518
    %v2319 = vmul.f32 %v2089, %v519
    %v2320 = vmul.f32 %v2089, %v520
    %v2321 = vmul.f32 %v2089, %v521
    %v2322 = vmul.f32 %v2089, %v522
    %v2323 = vmul.f32 %v2089, %v523
    %v2324 = vmul.f32 %v2089, %v524
    %v2325 = vmul.f32 %v2089, %v525
    %v2326 = vmul.f32 %v2089, %v526
    %v2327 = vmul.f32 %v2089, %v527
    %v2328 = vmul.f32 %v2089, %v528
    %v2329 = vmul.f32 %v2089, %v529
    %v2330 = vmul.f32 %v2089, %v530
    %v2331 = vmul.f32 %v2089, %v531
    %v2332 = vmul.f32 %v2089, %v532
    %v2333 = vmul.f32 %v2089, %v533
    %v2334 = vmul.f32 %v2089, %v534
    %v2335 = vmul.f32 %v2089, %v535
    %v2336 = vmul.f32 %v2089, %v536
    %v2337 = vmul.f32 %v2089, %v537
    %v2338 = vmul.f32 %v2089, %v538
    %v2339 = vmul.f32 %v2089, %v539
    %v2340 = vmul.f32 %v2089, %v540
    %v2341 = vmul.f32 %v2089, %v541
    %v2342 = vmul.f32 %v2089, %v542
    %v2343 = vmul.f32 %v2089, %v543
    %v2344 = vmul.f32 %v2089, %v544
    %v2345 = vmul.f32 %v2089, %v545
    %v2346 = vadd.f32 %v1318, %v2090
    %v2347 = vadd.f32 %v1319, %v2091
    %v2348 = vadd.f32 %v1320, %v2092
    %v2349 = vadd.f32 %v1321, %v2093
    %v2350 = vadd.f32 %v1322, %v2094
    %v2351 = vadd.f32 %v1323, %v2095
    %v2352 = vadd.f32 %v1324, %v2096
    %v2353 = vadd.f32 %v1325, %v2097
    %v2354 = vadd.f32 %v1326, %v2098
    %v2355 = vadd.f32 %v1327, %v2099
    %v2356 = vadd.f32 %v1328, %v2100
    %v2357 = vadd.f32 %v1329, %v2101
    %v2358 = vadd.f32 %v1330, %v2102
    %v2359 = vadd.f32 %v1331, %v2103
    %v2360 = vadd.f32 %v1332, %v2104
    %v2361 = vadd.f32 %v1333, %v2105
    %v2362 = vadd.f32 %v1334, %v2106
    %v2363 = vadd.f32 %v1335, %v2107
    %v2364 = vadd.f32 %v1336, %v2108
    %v2365 = vadd.f32 %v1337, %v2109
    %v2366 = vadd.f32 %v1338, %v2110
    %v2367 = vadd.f32 %v1339, %v2111
    %v2368 = vadd.f32 %v1340, %v2112
    %v2369 = vadd.f32 %v1341, %v2113
    %v2370 = vadd.f32 %v1342, %v2114
    %v2371 = vadd.f32 %v1343, %v2115
    %v2372 = vadd.f32 %v1344, %v2116
    %v2373 = vadd.f32 %v1345, %v2117
    %v2374 = vadd.f32 %v1346, %v2118
    %v2375 = vadd.f32 %v1347, %v2119
    %v2376 = vadd.f32 %v1348, %v2120
    %v2377 = vadd.f32 %v1349, %v2121
    %v2378 = vadd.f32 %v1350, %v2122
    %v2379 = vadd.f32 %v1351, %v2123
    %v2380 = vadd.f32 %v1352, %v2124
    %v2381 = vadd.f32 %v1353, %v2125
    %v2382 = vadd.f32 %v1354, %v2126
    %v2383 = vadd.f32 %v1355, %v2127
    %v2384 = vadd.f32 %v1356, %v2128
    %v2385 = vadd.f32 %v1357, %v2129
    %v2386 = vadd.f32 %v1358, %v2130
    %v2387 = vadd.f32 %v1359, %v2131
    %v2388 = vadd.f32 %v1360, %v2132
    %v2389 = vadd.f32 %v1361, %v2133
    %v2390 = vadd.f32 %v1362, %v2134
    %v2391 = vadd.f32 %v1363, %v2135
    %v2392 = vadd.f32 %v1364, %v2136
    %v2393 = vadd.f32 %v1365, %v2137
    %v2394 = vadd.f32 %v1366, %v2138
    %v2395 = vadd.f32 %v1367, %v2139
    %v2396 = vadd.f32 %v1368, %v2140
    %v2397 = vadd.f32 %v1369, %v2141
    %v2398 = vadd.f32 %v1370, %v2142
    %v2399 = vadd.f32 %v1371, %v2143
    %v2400 = vadd.f32 %v1372, %v2144
    %v2401 = vadd.f32 %v1373, %v2145
    %v2402 = vadd.f32 %v1374, %v2146
    %v2403 = vadd.f32 %v1375, %v2147
    %v2404 = vadd.f32 %v1376, %v2148
    %v2405 = vadd.f32 %v1377, %v2149
    %v2406 = vadd.f32 %v1378, %v2150
    %v2407 = vadd.f32 %v1379, %v2151
    %v2408 = vadd.f32 %v1380, %v2152
    %v2409 = vadd.f32 %v1381, %v2153
    %v2410 = vadd.f32 %v1382, %v2154
    %v2411 = vadd.f32 %v1383, %v2155
    %v2412 = vadd.f32 %v1384, %v2156
    %v2413 = vadd.f32 %v1385, %v2157
    %v2414 = vadd.f32 %v1386, %v2158
    %v2415 = vadd.f32 %v1387, %v2159
    %v2416 = vadd.f32 %v1388, %v2160
    %v2417 = vadd.f32 %v1389, %v2161
    %v2418 = vadd.f32 %v1390, %v2162
    %v2419 = vadd.f32 %v1391, %v2163
    %v2420 = vadd.f32 %v1392, %v2164
    %v2421 = vadd.f32 %v1393, %v2165
    %v2422 = vadd.f32 %v1394, %v2166
    %v2423 = vadd.f32 %v1395, %v2167
    %v2424 = vadd.f32 %v1396, %v2168
    %v2425 = vadd.f32 %v1397, %v2169
    %v2426 = vadd.f32 %v1398, %v2170
    %v2427 = vadd.f32 %v1399, %v2171
    %v2428 = vadd.f32 %v1400, %v2172
    %v2429 = vadd.f32 %v1401, %v2173
    %v2430 = vadd.f32 %v1402, %v2174
    %v2431 = vadd.f32 %v1403, %v2175
    %v2432 = vadd.f32 %v1404, %v2176
    %v2433 = vadd.f32 %v1405, %v2177
    %v2434 = vadd.f32 %v1406, %v2178
    %v2435 = vadd.f32 %v1407, %v2179
    %v2436 = vadd.f32 %v1408, %v2180
    %v2437 = vadd.f32 %v1409, %v2181
    %v2438 = vadd.f32 %v1410, %v2182
    %v2439 = vadd.f32 %v1411, %v2183
    %v2440 = vadd.f32 %v1412, %v2184
    %v2441 = vadd.f32 %v1413, %v2185
    %v2442 = vadd.f32 %v1414, %v2186
    %v2443 = vadd.f32 %v1415, %v2187
    %v2444 = vadd.f32 %v1416, %v2188
    %v2445 = vadd.f32 %v1417, %v2189
    %v2446 = vadd.f32 %v1418, %v2190
    %v2447 = vadd.f32 %v1419, %v2191
    %v2448 = vadd.f32 %v1420, %v2192
    %v2449 = vadd.f32 %v1421, %v2193
    %v2450 = vadd.f32 %v1422, %v2194
    %v2451 = vadd.f32 %v1423, %v2195
    %v2452 = vadd.f32 %v1424, %v2196
    %v2453 = vadd.f32 %v1425, %v2197
    %v2454 = vadd.f32 %v1426, %v2198
    %v2455 = vadd.f32 %v1427, %v2199
    %v2456 = vadd.f32 %v1428, %v2200
    %v2457 = vadd.f32 %v1429, %v2201
    %v2458 = vadd.f32 %v1430, %v2202
    %v2459 = vadd.f32 %v1431, %v2203
    %v2460 = vadd.f32 %v1432, %v2204
    %v2461 = vadd.f32 %v1433, %v2205
    %v2462 = vadd.f32 %v1434, %v2206
    %v2463 = vadd.f32 %v1435, %v2207
    %v2464 = vadd.f32 %v1436, %v2208
    %v2465 = vadd.f32 %v1437, %v2209
    %v2466 = vadd.f32 %v1438, %v2210
    %v2467 = vadd.f32 %v1439, %v2211
    %v2468 = vadd.f32 %v1440, %v2212
    %v2469 = vadd.f32 %v1441, %v2213
    %v2470 = vadd.f32 %v1442, %v2214
    %v2471 = vadd.f32 %v1443, %v2215
    %v2472 = vadd.f32 %v1444, %v2216
    %v2473 = vadd.f32 %v1445, %v2217
    %v2474 = vadd.f32 %v1446, %v2218
    %v2475 = vadd.f32 %v1447, %v2219
    %v2476 = vadd.f32 %v1448, %v2220
    %v2477 = vadd.f32 %v1449, %v2221
    %v2478 = vadd.f32 %v1450, %v2222
    %v2479 = vadd.f32 %v1451, %v2223
    %v2480 = vadd.f32 %v1452, %v2224
    %v2481 = vadd.f32 %v1453, %v2225
    %v2482 = vadd.f32 %v1454, %v2226
    %v2483 = vadd.f32 %v1455, %v2227
    %v2484 = vadd.f32 %v1456, %v2228
    %v2485 = vadd.f32 %v1457, %v2229
    %v2486 = vadd.f32 %v1458, %v2230
    %v2487 = vadd.f32 %v1459, %v2231
    %v2488 = vadd.f32 %v1460, %v2232
    %v2489 = vadd.f32 %v1461, %v2233
    %v2490 = vadd.f32 %v1462, %v2234
    %v2491 = vadd.f32 %v1463, %v2235
    %v2492 = vadd.f32 %v1464, %v2236
    %v2493 = vadd.f32 %v1465, %v2237
    %v2494 = vadd.f32 %v1466, %v2238
    %v2495 = vadd.f32 %v1467, %v2239
    %v2496 = vadd.f32 %v1468, %v2240
    %v2497 = vadd.f32 %v1469, %v2241
    %v2498 = vadd.f32 %v1470, %v2242
    %v2499 = vadd.f32 %v1471, %v2243
    %v2500 = vadd.f32 %v1472, %v2244
    %v2501 = vadd.f32 %v1473, %v2245
    %v2502 = vadd.f32 %v1474, %v2246
    %v2503 = vadd.f32 %v1475, %v2247
    %v2504 = vadd.f32 %v1476, %v2248
    %v2505 = vadd.f32 %v1477, %v2249
    %v2506 = vadd.f32 %v1478, %v2250
    %v2507 = vadd.f32 %v1479, %v2251
    %v2508 = vadd.f32 %v1480, %v2252
    %v2509 = vadd.f32 %v1481, %v2253
    %v2510 = vadd.f32 %v1482, %v2254
    %v2511 = vadd.f32 %v1483, %v2255
    %v2512 = vadd.f32 %v1484, %v2256
    %v2513 = vadd.f32 %v1485, %v2257
    %v2514 = vadd.f32 %v1486, %v2258
    %v2515 = vadd.f32 %v1487, %v2259
    %v2516 = vadd.f32 %v1488, %v2260
    %v2517 = vadd.f32 %v1489, %v2261
    %v2518 = vadd.f32 %v1490, %v2262
    %v2519 = vadd.f32 %v1491, %v2263
    %v2520 = vadd.f32 %v1492, %v2264
    %v2521 = vadd.f32 %v1493, %v2265
    %v2522 = vadd.f32 %v1494, %v2266
    %v2523 = vadd.f32 %v1495, %v2267
    %v2524 = vadd.f32 %v1496, %v2268
    %v2525 = vadd.f32 %v1497, %v2269
    %v2526 = vadd.f32 %v1498, %v2270
    %v2527 = vadd.f32 %v1499, %v2271
    %v2528 = vadd.f32 %v1500, %v2272
    %v2529 = vadd.f32 %v1501, %v2273
    %v2530 = vadd.f32 %v1502, %v2274
    %v2531 = vadd.f32 %v1503, %v2275
    %v2532 = vadd.f32 %v1504, %v2276
    %v2533 = vadd.f32 %v1505, %v2277
    %v2534 = vadd.f32 %v1506, %v2278
    %v2535 = vadd.f32 %v1507, %v2279
    %v2536 = vadd.f32 %v1508, %v2280
    %v2537 = vadd.f32 %v1509, %v2281
    %v2538 = vadd.f32 %v1510, %v2282
    %v2539 = vadd.f32 %v1511, %v2283
    %v2540 = vadd.f32 %v1512, %v2284
    %v2541 = vadd.f32 %v1513, %v2285
    %v2542 = vadd.f32 %v1514, %v2286
    %v2543 = vadd.f32 %v1515, %v2287
    %v2544 = vadd.f32 %v1516, %v2288
    %v2545 = vadd.f32 %v1517, %v2289
    %v2546 = vadd.f32 %v1518, %v2290
    %v2547 = vadd.f32 %v1519, %v2291
    %v2548 = vadd.f32 %v1520, %v2292
    %v2549 = vadd.f32 %v1521, %v2293
    %v2550 = vadd.f32 %v1522, %v2294
    %v2551 = vadd.f32 %v1523, %v2295
    %v2552 = vadd.f32 %v1524, %v2296
    %v2553 = vadd.f32 %v1525, %v2297
    %v2554 = vadd.f32 %v1526, %v2298
    %v2555 = vadd.f32 %v1527, %v2299
    %v2556 = vadd.f32 %v1528, %v2300
    %v2557 = vadd.f32 %v1529, %v2301
    %v2558 = vadd.f32 %v1530, %v2302
    %v2559 = vadd.f32 %v1531, %v2303
    %v2560 = vadd.f32 %v1532, %v2304
    %v2561 = vadd.f32 %v1533, %v2305
    %v2562 = vadd.f32 %v1534, %v2306
    %v2563 = vadd.f32 %v1535, %v2307
    %v2564 = vadd.f32 %v1536, %v2308
    %v2565 = vadd.f32 %v1537, %v2309
    %v2566 = vadd.f32 %v1538, %v2310
    %v2567 = vadd.f32 %v1539, %v2311
    %v2568 = vadd.f32 %v1540, %v2312
    %v2569 = vadd.f32 %v1541, %v2313
    %v2570 = vadd.f32 %v1542, %v2314
    %v2571 = vadd.f32 %v1543, %v2315
    %v2572 = vadd.f32 %v1544, %v2316
    %v2573 = vadd.f32 %v1545, %v2317
    %v2574 = vadd.f32 %v1546, %v2318
    %v2575 = vadd.f32 %v1547, %v2319
    %v2576 = vadd.f32 %v1548, %v2320
    %v2577 = vadd.f32 %v1549, %v2321
    %v2578 = vadd.f32 %v1550, %v2322
    %v2579 = vadd.f32 %v1551, %v2323
    %v2580 = vadd.f32 %v1552, %v2324
    %v2581 = vadd.f32 %v1553, %v2325
    %v2582 = vadd.f32 %v1554, %v2326
    %v2583 = vadd.f32 %v1555, %v2327
    %v2584 = vadd.f32 %v1556, %v2328
    %v2585 = vadd.f32 %v1557, %v2329
    %v2586 = vadd.f32 %v1558, %v2330
    %v2587 = vadd.f32 %v1559, %v2331
    %v2588 = vadd.f32 %v1560, %v2332
    %v2589 = vadd.f32 %v1561, %v2333
    %v2590 = vadd.f32 %v1562, %v2334
    %v2591 = vadd.f32 %v1563, %v2335
    %v2592 = vadd.f32 %v1564, %v2336
    %v2593 = vadd.f32 %v1565, %v2337
    %v2594 = vadd.f32 %v1566, %v2338
    %v2595 = vadd.f32 %v1567, %v2339
    %v2596 = vadd.f32 %v1568, %v2340
    %v2597 = vadd.f32 %v1569, %v2341
    %v2598 = vadd.f32 %v1570, %v2342
    %v2599 = vadd.f32 %v1571, %v2343
    %v2600 = vadd.f32 %v1572, %v2344
    %v2601 = vadd.f32 %v1573, %v2345
    %s2602 = sld [smem:[#allocation3 + $0x2]]
    %v2603 = vstv %s2602
    %v2604 = vmul.f32 %v2603, %v546
    %v2605 = vmul.f32 %v2603, %v547
    %v2606 = vmul.f32 %v2603, %v548
    %v2607 = vmul.f32 %v2603, %v549
    %v2608 = vmul.f32 %v2603, %v550
    %v2609 = vmul.f32 %v2603, %v551
    %v2610 = vmul.f32 %v2603, %v552
    %v2611 = vmul.f32 %v2603, %v553
    %v2612 = vmul.f32 %v2603, %v554
    %v2613 = vmul.f32 %v2603, %v555
    %v2614 = vmul.f32 %v2603, %v556
    %v2615 = vmul.f32 %v2603, %v557
    %v2616 = vmul.f32 %v2603, %v558
    %v2617 = vmul.f32 %v2603, %v559
    %v2618 = vmul.f32 %v2603, %v560
    %v2619 = vmul.f32 %v2603, %v561
    %v2620 = vmul.f32 %v2603, %v562
    %v2621 = vmul.f32 %v2603, %v563
    %v2622 = vmul.f32 %v2603, %v564
    %v2623 = vmul.f32 %v2603, %v565
    %v2624 = vmul.f32 %v2603, %v566
    %v2625 = vmul.f32 %v2603, %v567
    %v2626 = vmul.f32 %v2603, %v568
    %v2627 = vmul.f32 %v2603, %v569
    %v2628 = vmul.f32 %v2603, %v570
    %v2629 = vmul.f32 %v2603, %v571
    %v2630 = vmul.f32 %v2603, %v572
    %v2631 = vmul.f32 %v2603, %v573
    %v2632 = vmul.f32 %v2603, %v574
    %v2633 = vmul.f32 %v2603, %v575
    %v2634 = vmul.f32 %v2603, %v576
    %v2635 = vmul.f32 %v2603, %v577
    %v2636 = vmul.f32 %v2603, %v578
    %v2637 = vmul.f32 %v2603, %v579
    %v2638 = vmul.f32 %v2603, %v580
    %v2639 = vmul.f32 %v2603, %v581
    %v2640 = vmul.f32 %v2603, %v582
    %v2641 = vmul.f32 %v2603, %v583
    %v2642 = vmul.f32 %v2603, %v584
    %v2643 = vmul.f32 %v2603, %v585
    %v2644 = vmul.f32 %v2603, %v586
    %v2645 = vmul.f32 %v2603, %v587
    %v2646 = vmul.f32 %v2603, %v588
    %v2647 = vmul.f32 %v2603, %v589
    %v2648 = vmul.f32 %v2603, %v590
    %v2649 = vmul.f32 %v2603, %v591
    %v2650 = vmul.f32 %v2603, %v592
    %v2651 = vmul.f32 %v2603, %v593
    %v2652 = vmul.f32 %v2603, %v594
    %v2653 = vmul.f32 %v2603, %v595
    %v2654 = vmul.f32 %v2603, %v596
    %v2655 = vmul.f32 %v2603, %v597
    %v2656 = vmul.f32 %v2603, %v598
    %v2657 = vmul.f32 %v2603, %v599
    %v2658 = vmul.f32 %v2603, %v600
    %v2659 = vmul.f32 %v2603, %v601
    %v2660 = vmul.f32 %v2603, %v602
    %v2661 = vmul.f32 %v2603, %v603
    %v2662 = vmul.f32 %v2603, %v604
    %v2663 = vmul.f32 %v2603, %v605
    %v2664 = vmul.f32 %v2603, %v606
    %v2665 = vmul.f32 %v2603, %v607
    %v2666 = vmul.f32 %v2603, %v608
    %v2667 = vmul.f32 %v2603, %v609
    %v2668 = vmul.f32 %v2603, %v610
    %v2669 = vmul.f32 %v2603, %v611
    %v2670 = vmul.f32 %v2603, %v612
    %v2671 = vmul.f32 %v2603, %v613
    %v2672 = vmul.f32 %v2603, %v614
    %v2673 = vmul.f32 %v2603, %v615
    %v2674 = vmul.f32 %v2603, %v616
    %v2675 = vmul.f32 %v2603, %v617
    %v2676 = vmul.f32 %v2603, %v618
    %v2677 = vmul.f32 %v2603, %v619
    %v2678 = vmul.f32 %v2603, %v620
    %v2679 = vmul.f32 %v2603, %v621
    %v2680 = vmul.f32 %v2603, %v622
    %v2681 = vmul.f32 %v2603, %v623
    %v2682 = vmul.f32 %v2603, %v624
    %v2683 = vmul.f32 %v2603, %v625
    %v2684 = vmul.f32 %v2603, %v626
    %v2685 = vmul.f32 %v2603, %v627
    %v2686 = vmul.f32 %v2603, %v628
    %v2687 = vmul.f32 %v2603, %v629
    %v2688 = vmul.f32 %v2603, %v630
    %v2689 = vmul.f32 %v2603, %v631
    %v2690 = vmul.f32 %v2603, %v632
    %v2691 = vmul.f32 %v2603, %v633
    %v2692 = vmul.f32 %v2603, %v634
    %v2693 = vmul.f32 %v2603, %v635
    %v2694 = vmul.f32 %v2603, %v636
    %v2695 = vmul.f32 %v2603, %v637
    %v2696 = vmul.f32 %v2603, %v638
    %v2697 = vmul.f32 %v2603, %v639
    %v2698 = vmul.f32 %v2603, %v640
    %v2699 = vmul.f32 %v2603, %v641
    %v2700 = vmul.f32 %v2603, %v642
    %v2701 = vmul.f32 %v2603, %v643
    %v2702 = vmul.f32 %v2603, %v644
    %v2703 = vmul.f32 %v2603, %v645
    %v2704 = vmul.f32 %v2603, %v646
    %v2705 = vmul.f32 %v2603, %v647
    %v2706 = vmul.f32 %v2603, %v648
    %v2707 = vmul.f32 %v2603, %v649
    %v2708 = vmul.f32 %v2603, %v650
    %v2709 = vmul.f32 %v2603, %v651
    %v2710 = vmul.f32 %v2603, %v652
    %v2711 = vmul.f32 %v2603, %v653
    %v2712 = vmul.f32 %v2603, %v654
    %v2713 = vmul.f32 %v2603, %v655
    %v2714 = vmul.f32 %v2603, %v656
    %v2715 = vmul.f32 %v2603, %v657
    %v2716 = vmul.f32 %v2603, %v658
    %v2717 = vmul.f32 %v2603, %v659
    %v2718 = vmul.f32 %v2603, %v660
    %v2719 = vmul.f32 %v2603, %v661
    %v2720 = vmul.f32 %v2603, %v662
    %v2721 = vmul.f32 %v2603, %v663
    %v2722 = vmul.f32 %v2603, %v664
    %v2723 = vmul.f32 %v2603, %v665
    %v2724 = vmul.f32 %v2603, %v666
    %v2725 = vmul.f32 %v2603, %v667
    %v2726 = vmul.f32 %v2603, %v668
    %v2727 = vmul.f32 %v2603, %v669
    %v2728 = vmul.f32 %v2603, %v670
    %v2729 = vmul.f32 %v2603, %v671
    %v2730 = vmul.f32 %v2603, %v672
    %v2731 = vmul.f32 %v2603, %v673
    %v2732 = vmul.f32 %v2603, %v674
    %v2733 = vmul.f32 %v2603, %v675
    %v2734 = vmul.f32 %v2603, %v676
    %v2735 = vmul.f32 %v2603, %v677
    %v2736 = vmul.f32 %v2603, %v678
    %v2737 = vmul.f32 %v2603, %v679
    %v2738 = vmul.f32 %v2603, %v680
    %v2739 = vmul.f32 %v2603, %v681
    %v2740 = vmul.f32 %v2603, %v682
    %v2741 = vmul.f32 %v2603, %v683
    %v2742 = vmul.f32 %v2603, %v684
    %v2743 = vmul.f32 %v2603, %v685
    %v2744 = vmul.f32 %v2603, %v686
    %v2745 = vmul.f32 %v2603, %v687
    %v2746 = vmul.f32 %v2603, %v688
    %v2747 = vmul.f32 %v2603, %v689
    %v2748 = vmul.f32 %v2603, %v690
    %v2749 = vmul.f32 %v2603, %v691
    %v2750 = vmul.f32 %v2603, %v692
    %v2751 = vmul.f32 %v2603, %v693
    %v2752 = vmul.f32 %v2603, %v694
    %v2753 = vmul.f32 %v2603, %v695
    %v2754 = vmul.f32 %v2603, %v696
    %v2755 = vmul.f32 %v2603, %v697
    %v2756 = vmul.f32 %v2603, %v698
    %v2757 = vmul.f32 %v2603, %v699
    %v2758 = vmul.f32 %v2603, %v700
    %v2759 = vmul.f32 %v2603, %v701
    %v2760 = vmul.f32 %v2603, %v702
    %v2761 = vmul.f32 %v2603, %v703
    %v2762 = vmul.f32 %v2603, %v704
    %v2763 = vmul.f32 %v2603, %v705
    %v2764 = vmul.f32 %v2603, %v706
    %v2765 = vmul.f32 %v2603, %v707
    %v2766 = vmul.f32 %v2603, %v708
    %v2767 = vmul.f32 %v2603, %v709
    %v2768 = vmul.f32 %v2603, %v710
    %v2769 = vmul.f32 %v2603, %v711
    %v2770 = vmul.f32 %v2603, %v712
    %v2771 = vmul.f32 %v2603, %v713
    %v2772 = vmul.f32 %v2603, %v714
    %v2773 = vmul.f32 %v2603, %v715
    %v2774 = vmul.f32 %v2603, %v716
    %v2775 = vmul.f32 %v2603, %v717
    %v2776 = vmul.f32 %v2603, %v718
    %v2777 = vmul.f32 %v2603, %v719
    %v2778 = vmul.f32 %v2603, %v720
    %v2779 = vmul.f32 %v2603, %v721
    %v2780 = vmul.f32 %v2603, %v722
    %v2781 = vmul.f32 %v2603, %v723
    %v2782 = vmul.f32 %v2603, %v724
    %v2783 = vmul.f32 %v2603, %v725
    %v2784 = vmul.f32 %v2603, %v726
    %v2785 = vmul.f32 %v2603, %v727
    %v2786 = vmul.f32 %v2603, %v728
    %v2787 = vmul.f32 %v2603, %v729
    %v2788 = vmul.f32 %v2603, %v730
    %v2789 = vmul.f32 %v2603, %v731
    %v2790 = vmul.f32 %v2603, %v732
    %v2791 = vmul.f32 %v2603, %v733
    %v2792 = vmul.f32 %v2603, %v734
    %v2793 = vmul.f32 %v2603, %v735
    %v2794 = vmul.f32 %v2603, %v736
    %v2795 = vmul.f32 %v2603, %v737
    %v2796 = vmul.f32 %v2603, %v738
    %v2797 = vmul.f32 %v2603, %v739
    %v2798 = vmul.f32 %v2603, %v740
    %v2799 = vmul.f32 %v2603, %v741
    %v2800 = vmul.f32 %v2603, %v742
    %v2801 = vmul.f32 %v2603, %v743
    %v2802 = vmul.f32 %v2603, %v744
    %v2803 = vmul.f32 %v2603, %v745
    %v2804 = vmul.f32 %v2603, %v746
    %v2805 = vmul.f32 %v2603, %v747
    %v2806 = vmul.f32 %v2603, %v748
    %v2807 = vmul.f32 %v2603, %v749
    %v2808 = vmul.f32 %v2603, %v750
    %v2809 = vmul.f32 %v2603, %v751
    %v2810 = vmul.f32 %v2603, %v752
    %v2811 = vmul.f32 %v2603, %v753
    %v2812 = vmul.f32 %v2603, %v754
    %v2813 = vmul.f32 %v2603, %v755
    %v2814 = vmul.f32 %v2603, %v756
    %v2815 = vmul.f32 %v2603, %v757
    %v2816 = vmul.f32 %v2603, %v758
    %v2817 = vmul.f32 %v2603, %v759
    %v2818 = vmul.f32 %v2603, %v760
    %v2819 = vmul.f32 %v2603, %v761
    %v2820 = vmul.f32 %v2603, %v762
    %v2821 = vmul.f32 %v2603, %v763
    %v2822 = vmul.f32 %v2603, %v764
    %v2823 = vmul.f32 %v2603, %v765
    %v2824 = vmul.f32 %v2603, %v766
    %v2825 = vmul.f32 %v2603, %v767
    %v2826 = vmul.f32 %v2603, %v768
    %v2827 = vmul.f32 %v2603, %v769
    %v2828 = vmul.f32 %v2603, %v770
    %v2829 = vmul.f32 %v2603, %v771
    %v2830 = vmul.f32 %v2603, %v772
    %v2831 = vmul.f32 %v2603, %v773
    %v2832 = vmul.f32 %v2603, %v774
    %v2833 = vmul.f32 %v2603, %v775
    %v2834 = vmul.f32 %v2603, %v776
    %v2835 = vmul.f32 %v2603, %v777
    %v2836 = vmul.f32 %v2603, %v778
    %v2837 = vmul.f32 %v2603, %v779
    %v2838 = vmul.f32 %v2603, %v780
    %v2839 = vmul.f32 %v2603, %v781
    %v2840 = vmul.f32 %v2603, %v782
    %v2841 = vmul.f32 %v2603, %v783
    %v2842 = vmul.f32 %v2603, %v784
    %v2843 = vmul.f32 %v2603, %v785
    %v2844 = vmul.f32 %v2603, %v786
    %v2845 = vmul.f32 %v2603, %v787
    %v2846 = vmul.f32 %v2603, %v788
    %v2847 = vmul.f32 %v2603, %v789
    %v2848 = vmul.f32 %v2603, %v790
    %v2849 = vmul.f32 %v2603, %v791
    %v2850 = vmul.f32 %v2603, %v792
    %v2851 = vmul.f32 %v2603, %v793
    %v2852 = vmul.f32 %v2603, %v794
    %v2853 = vmul.f32 %v2603, %v795
    %v2854 = vmul.f32 %v2603, %v796
    %v2855 = vmul.f32 %v2603, %v797
    %v2856 = vmul.f32 %v2603, %v798
    %v2857 = vmul.f32 %v2603, %v799
    %v2858 = vmul.f32 %v2603, %v800
    %v2859 = vmul.f32 %v2603, %v801
    %v2860 = vadd.f32 %v1832, %v2604
    %v2861 = vadd.f32 %v1833, %v2605
    %v2862 = vadd.f32 %v1834, %v2606
    %v2863 = vadd.f32 %v1835, %v2607
    %v2864 = vadd.f32 %v1836, %v2608
    %v2865 = vadd.f32 %v1837, %v2609
    %v2866 = vadd.f32 %v1838, %v2610
    %v2867 = vadd.f32 %v1839, %v2611
    %v2868 = vadd.f32 %v1840, %v2612
    %v2869 = vadd.f32 %v1841, %v2613
    %v2870 = vadd.f32 %v1842, %v2614
    %v2871 = vadd.f32 %v1843, %v2615
    %v2872 = vadd.f32 %v1844, %v2616
    %v2873 = vadd.f32 %v1845, %v2617
    %v2874 = vadd.f32 %v1846, %v2618
    %v2875 = vadd.f32 %v1847, %v2619
    %v2876 = vadd.f32 %v1848, %v2620
    %v2877 = vadd.f32 %v1849, %v2621
    %v2878 = vadd.f32 %v1850, %v2622
    %v2879 = vadd.f32 %v1851, %v2623
    %v2880 = vadd.f32 %v1852, %v2624
    %v2881 = vadd.f32 %v1853, %v2625
    %v2882 = vadd.f32 %v1854, %v2626
    %v2883 = vadd.f32 %v1855, %v2627
    %v2884 = vadd.f32 %v1856, %v2628
    %v2885 = vadd.f32 %v1857, %v2629
    %v2886 = vadd.f32 %v1858, %v2630
    %v2887 = vadd.f32 %v1859, %v2631
    %v2888 = vadd.f32 %v1860, %v2632
    %v2889 = vadd.f32 %v1861, %v2633
    %v2890 = vadd.f32 %v1862, %v2634
    %v2891 = vadd.f32 %v1863, %v2635
    %v2892 = vadd.f32 %v1864, %v2636
    %v2893 = vadd.f32 %v1865, %v2637
    %v2894 = vadd.f32 %v1866, %v2638
    %v2895 = vadd.f32 %v1867, %v2639
    %v2896 = vadd.f32 %v1868, %v2640
    %v2897 = vadd.f32 %v1869, %v2641
    %v2898 = vadd.f32 %v1870, %v2642
    %v2899 = vadd.f32 %v1871, %v2643
    %v2900 = vadd.f32 %v1872, %v2644
    %v2901 = vadd.f32 %v1873, %v2645
    %v2902 = vadd.f32 %v1874, %v2646
    %v2903 = vadd.f32 %v1875, %v2647
    %v2904 = vadd.f32 %v1876, %v2648
    %v2905 = vadd.f32 %v1877, %v2649
    %v2906 = vadd.f32 %v1878, %v2650
    %v2907 = vadd.f32 %v1879, %v2651
    %v2908 = vadd.f32 %v1880, %v2652
    %v2909 = vadd.f32 %v1881, %v2653
    %v2910 = vadd.f32 %v1882, %v2654
    %v2911 = vadd.f32 %v1883, %v2655
    %v2912 = vadd.f32 %v1884, %v2656
    %v2913 = vadd.f32 %v1885, %v2657
    %v2914 = vadd.f32 %v1886, %v2658
    %v2915 = vadd.f32 %v1887, %v2659
    %v2916 = vadd.f32 %v1888, %v2660
    %v2917 = vadd.f32 %v1889, %v2661
    %v2918 = vadd.f32 %v1890, %v2662
    %v2919 = vadd.f32 %v1891, %v2663
    %v2920 = vadd.f32 %v1892, %v2664
    %v2921 = vadd.f32 %v1893, %v2665
    %v2922 = vadd.f32 %v1894, %v2666
    %v2923 = vadd.f32 %v1895, %v2667
    %v2924 = vadd.f32 %v1896, %v2668
    %v2925 = vadd.f32 %v1897, %v2669
    %v2926 = vadd.f32 %v1898, %v2670
    %v2927 = vadd.f32 %v1899, %v2671
    %v2928 = vadd.f32 %v1900, %v2672
    %v2929 = vadd.f32 %v1901, %v2673
    %v2930 = vadd.f32 %v1902, %v2674
    %v2931 = vadd.f32 %v1903, %v2675
    %v2932 = vadd.f32 %v1904, %v2676
    %v2933 = vadd.f32 %v1905, %v2677
    %v2934 = vadd.f32 %v1906, %v2678
    %v2935 = vadd.f32 %v1907, %v2679
    %v2936 = vadd.f32 %v1908, %v2680
    %v2937 = vadd.f32 %v1909, %v2681
    %v2938 = vadd.f32 %v1910, %v2682
    %v2939 = vadd.f32 %v1911, %v2683
    %v2940 = vadd.f32 %v1912, %v2684
    %v2941 = vadd.f32 %v1913, %v2685
    %v2942 = vadd.f32 %v1914, %v2686
    %v2943 = vadd.f32 %v1915, %v2687
    %v2944 = vadd.f32 %v1916, %v2688
    %v2945 = vadd.f32 %v1917, %v2689
    %v2946 = vadd.f32 %v1918, %v2690
    %v2947 = vadd.f32 %v1919, %v2691
    %v2948 = vadd.f32 %v1920, %v2692
    %v2949 = vadd.f32 %v1921, %v2693
    %v2950 = vadd.f32 %v1922, %v2694
    %v2951 = vadd.f32 %v1923, %v2695
    %v2952 = vadd.f32 %v1924, %v2696
    %v2953 = vadd.f32 %v1925, %v2697
    %v2954 = vadd.f32 %v1926, %v2698
    %v2955 = vadd.f32 %v1927, %v2699
    %v2956 = vadd.f32 %v1928, %v2700
    %v2957 = vadd.f32 %v1929, %v2701
    %v2958 = vadd.f32 %v1930, %v2702
    %v2959 = vadd.f32 %v1931, %v2703
    %v2960 = vadd.f32 %v1932, %v2704
    %v2961 = vadd.f32 %v1933, %v2705
    %v2962 = vadd.f32 %v1934, %v2706
    %v2963 = vadd.f32 %v1935, %v2707
    %v2964 = vadd.f32 %v1936, %v2708
    %v2965 = vadd.f32 %v1937, %v2709
    %v2966 = vadd.f32 %v1938, %v2710
    %v2967 = vadd.f32 %v1939, %v2711
    %v2968 = vadd.f32 %v1940, %v2712
    %v2969 = vadd.f32 %v1941, %v2713
    %v2970 = vadd.f32 %v1942, %v2714
    %v2971 = vadd.f32 %v1943, %v2715
    %v2972 = vadd.f32 %v1944, %v2716
    %v2973 = vadd.f32 %v1945, %v2717
    %v2974 = vadd.f32 %v1946, %v2718
    %v2975 = vadd.f32 %v1947, %v2719
    %v2976 = vadd.f32 %v1948, %v2720
    %v2977 = vadd.f32 %v1949, %v2721
    %v2978 = vadd.f32 %v1950, %v2722
    %v2979 = vadd.f32 %v1951, %v2723
    %v2980 = vadd.f32 %v1952, %v2724
    %v2981 = vadd.f32 %v1953, %v2725
    %v2982 = vadd.f32 %v1954, %v2726
    %v2983 = vadd.f32 %v1955, %v2727
    %v2984 = vadd.f32 %v1956, %v2728
    %v2985 = vadd.f32 %v1957, %v2729
    %v2986 = vadd.f32 %v1958, %v2730
    %v2987 = vadd.f32 %v1959, %v2731
    %v2988 = vadd.f32 %v1960, %v2732
    %v2989 = vadd.f32 %v1961, %v2733
    %v2990 = vadd.f32 %v1962, %v2734
    %v2991 = vadd.f32 %v1963, %v2735
    %v2992 = vadd.f32 %v1964, %v2736
    %v2993 = vadd.f32 %v1965, %v2737
    %v2994 = vadd.f32 %v1966, %v2738
    %v2995 = vadd.f32 %v1967, %v2739
    %v2996 = vadd.f32 %v1968, %v2740
    %v2997 = vadd.f32 %v1969, %v2741
    %v2998 = vadd.f32 %v1970, %v2742
    %v2999 = vadd.f32 %v1971, %v2743
    %v3000 = vadd.f32 %v1972, %v2744
    %v3001 = vadd.f32 %v1973, %v2745
    %v3002 = vadd.f32 %v1974, %v2746
    %v3003 = vadd.f32 %v1975, %v2747
    %v3004 = vadd.f32 %v1976, %v2748
    %v3005 = vadd.f32 %v1977, %v2749
    %v3006 = vadd.f32 %v1978, %v2750
    %v3007 = vadd.f32 %v1979, %v2751
    %v3008 = vadd.f32 %v1980, %v2752
    %v3009 = vadd.f32 %v1981, %v2753
    %v3010 = vadd.f32 %v1982, %v2754
    %v3011 = vadd.f32 %v1983, %v2755
    %v3012 = vadd.f32 %v1984, %v2756
    %v3013 = vadd.f32 %v1985, %v2757
    %v3014 = vadd.f32 %v1986, %v2758
    %v3015 = vadd.f32 %v1987, %v2759
    %v3016 = vadd.f32 %v1988, %v2760
    %v3017 = vadd.f32 %v1989, %v2761
    %v3018 = vadd.f32 %v1990, %v2762
    %v3019 = vadd.f32 %v1991, %v2763
    %v3020 = vadd.f32 %v1992, %v2764
    %v3021 = vadd.f32 %v1993, %v2765
    %v3022 = vadd.f32 %v1994, %v2766
    %v3023 = vadd.f32 %v1995, %v2767
    %v3024 = vadd.f32 %v1996, %v2768
    %v3025 = vadd.f32 %v1997, %v2769
    %v3026 = vadd.f32 %v1998, %v2770
    %v3027 = vadd.f32 %v1999, %v2771
    %v3028 = vadd.f32 %v2000, %v2772
    %v3029 = vadd.f32 %v2001, %v2773
    %v3030 = vadd.f32 %v2002, %v2774
    %v3031 = vadd.f32 %v2003, %v2775
    %v3032 = vadd.f32 %v2004, %v2776
    %v3033 = vadd.f32 %v2005, %v2777
    %v3034 = vadd.f32 %v2006, %v2778
    %v3035 = vadd.f32 %v2007, %v2779
    %v3036 = vadd.f32 %v2008, %v2780
    %v3037 = vadd.f32 %v2009, %v2781
    %v3038 = vadd.f32 %v2010, %v2782
    %v3039 = vadd.f32 %v2011, %v2783
    %v3040 = vadd.f32 %v2012, %v2784
    %v3041 = vadd.f32 %v2013, %v2785
    %v3042 = vadd.f32 %v2014, %v2786
    %v3043 = vadd.f32 %v2015, %v2787
    %v3044 = vadd.f32 %v2016, %v2788
    %v3045 = vadd.f32 %v2017, %v2789
    %v3046 = vadd.f32 %v2018, %v2790
    %v3047 = vadd.f32 %v2019, %v2791
    %v3048 = vadd.f32 %v2020, %v2792
    %v3049 = vadd.f32 %v2021, %v2793
    %v3050 = vadd.f32 %v2022, %v2794
    %v3051 = vadd.f32 %v2023, %v2795
    %v3052 = vadd.f32 %v2024, %v2796
    %v3053 = vadd.f32 %v2025, %v2797
    %v3054 = vadd.f32 %v2026, %v2798
    %v3055 = vadd.f32 %v2027, %v2799
    %v3056 = vadd.f32 %v2028, %v2800
    %v3057 = vadd.f32 %v2029, %v2801
    %v3058 = vadd.f32 %v2030, %v2802
    %v3059 = vadd.f32 %v2031, %v2803
    %v3060 = vadd.f32 %v2032, %v2804
    %v3061 = vadd.f32 %v2033, %v2805
    %v3062 = vadd.f32 %v2034, %v2806
    %v3063 = vadd.f32 %v2035, %v2807
    %v3064 = vadd.f32 %v2036, %v2808
    %v3065 = vadd.f32 %v2037, %v2809
    %v3066 = vadd.f32 %v2038, %v2810
    %v3067 = vadd.f32 %v2039, %v2811
    %v3068 = vadd.f32 %v2040, %v2812
    %v3069 = vadd.f32 %v2041, %v2813
    %v3070 = vadd.f32 %v2042, %v2814
    %v3071 = vadd.f32 %v2043, %v2815
    %v3072 = vadd.f32 %v2044, %v2816
    %v3073 = vadd.f32 %v2045, %v2817
    %v3074 = vadd.f32 %v2046, %v2818
    %v3075 = vadd.f32 %v2047, %v2819
    %v3076 = vadd.f32 %v2048, %v2820
    %v3077 = vadd.f32 %v2049, %v2821
    %v3078 = vadd.f32 %v2050, %v2822
    %v3079 = vadd.f32 %v2051, %v2823
    %v3080 = vadd.f32 %v2052, %v2824
    %v3081 = vadd.f32 %v2053, %v2825
    %v3082 = vadd.f32 %v2054, %v2826
    %v3083 = vadd.f32 %v2055, %v2827
    %v3084 = vadd.f32 %v2056, %v2828
    %v3085 = vadd.f32 %v2057, %v2829
    %v3086 = vadd.f32 %v2058, %v2830
    %v3087 = vadd.f32 %v2059, %v2831
    %v3088 = vadd.f32 %v2060, %v2832
    %v3089 = vadd.f32 %v2061, %v2833
    %v3090 = vadd.f32 %v2062, %v2834
    %v3091 = vadd.f32 %v2063, %v2835
    %v3092 = vadd.f32 %v2064, %v2836
    %v3093 = vadd.f32 %v2065, %v2837
    %v3094 = vadd.f32 %v2066, %v2838
    %v3095 = vadd.f32 %v2067, %v2839
    %v3096 = vadd.f32 %v2068, %v2840
    %v3097 = vadd.f32 %v2069, %v2841
    %v3098 = vadd.f32 %v2070, %v2842
    %v3099 = vadd.f32 %v2071, %v2843
    %v3100 = vadd.f32 %v2072, %v2844
    %v3101 = vadd.f32 %v2073, %v2845
    %v3102 = vadd.f32 %v2074, %v2846
    %v3103 = vadd.f32 %v2075, %v2847
    %v3104 = vadd.f32 %v2076, %v2848
    %v3105 = vadd.f32 %v2077, %v2849
    %v3106 = vadd.f32 %v2078, %v2850
    %v3107 = vadd.f32 %v2079, %v2851
    %v3108 = vadd.f32 %v2080, %v2852
    %v3109 = vadd.f32 %v2081, %v2853
    %v3110 = vadd.f32 %v2082, %v2854
    %v3111 = vadd.f32 %v2083, %v2855
    %v3112 = vadd.f32 %v2084, %v2856
    %v3113 = vadd.f32 %v2085, %v2857
    %v3114 = vadd.f32 %v2086, %v2858
    %v3115 = vadd.f32 %v2087, %v2859
    %s3116 = sld [smem:[#allocation4 + $0x2]]
    %v3117 = vstv %s3116
    %v3118 = vmul.f32 %v3117, %v546
    %v3119 = vmul.f32 %v3117, %v547
    %v3120 = vmul.f32 %v3117, %v548
    %v3121 = vmul.f32 %v3117, %v549
    %v3122 = vmul.f32 %v3117, %v550
    %v3123 = vmul.f32 %v3117, %v551
    %v3124 = vmul.f32 %v3117, %v552
    %v3125 = vmul.f32 %v3117, %v553
    %v3126 = vmul.f32 %v3117, %v554
    %v3127 = vmul.f32 %v3117, %v555
    %v3128 = vmul.f32 %v3117, %v556
    %v3129 = vmul.f32 %v3117, %v557
    %v3130 = vmul.f32 %v3117, %v558
    %v3131 = vmul.f32 %v3117, %v559
    %v3132 = vmul.f32 %v3117, %v560
    %v3133 = vmul.f32 %v3117, %v561
    %v3134 = vmul.f32 %v3117, %v562
    %v3135 = vmul.f32 %v3117, %v563
    %v3136 = vmul.f32 %v3117, %v564
    %v3137 = vmul.f32 %v3117, %v565
    %v3138 = vmul.f32 %v3117, %v566
    %v3139 = vmul.f32 %v3117, %v567
    %v3140 = vmul.f32 %v3117, %v568
    %v3141 = vmul.f32 %v3117, %v569
    %v3142 = vmul.f32 %v3117, %v570
    %v3143 = vmul.f32 %v3117, %v571
    %v3144 = vmul.f32 %v3117, %v572
    %v3145 = vmul.f32 %v3117, %v573
    %v3146 = vmul.f32 %v3117, %v574
    %v3147 = vmul.f32 %v3117, %v575
    %v3148 = vmul.f32 %v3117, %v576
    %v3149 = vmul.f32 %v3117, %v577
    %v3150 = vmul.f32 %v3117, %v578
    %v3151 = vmul.f32 %v3117, %v579
    %v3152 = vmul.f32 %v3117, %v580
    %v3153 = vmul.f32 %v3117, %v581
    %v3154 = vmul.f32 %v3117, %v582
    %v3155 = vmul.f32 %v3117, %v583
    %v3156 = vmul.f32 %v3117, %v584
    %v3157 = vmul.f32 %v3117, %v585
    %v3158 = vmul.f32 %v3117, %v586
    %v3159 = vmul.f32 %v3117, %v587
    %v3160 = vmul.f32 %v3117, %v588
    %v3161 = vmul.f32 %v3117, %v589
    %v3162 = vmul.f32 %v3117, %v590
    %v3163 = vmul.f32 %v3117, %v591
    %v3164 = vmul.f32 %v3117, %v592
    %v3165 = vmul.f32 %v3117, %v593
    %v3166 = vmul.f32 %v3117, %v594
    %v3167 = vmul.f32 %v3117, %v595
    %v3168 = vmul.f32 %v3117, %v596
    %v3169 = vmul.f32 %v3117, %v597
    %v3170 = vmul.f32 %v3117, %v598
    %v3171 = vmul.f32 %v3117, %v599
    %v3172 = vmul.f32 %v3117, %v600
    %v3173 = vmul.f32 %v3117, %v601
    %v3174 = vmul.f32 %v3117, %v602
    %v3175 = vmul.f32 %v3117, %v603
    %v3176 = vmul.f32 %v3117, %v604
    %v3177 = vmul.f32 %v3117, %v605
    %v3178 = vmul.f32 %v3117, %v606
    %v3179 = vmul.f32 %v3117, %v607
    %v3180 = vmul.f32 %v3117, %v608
    %v3181 = vmul.f32 %v3117, %v609
    %v3182 = vmul.f32 %v3117, %v610
    %v3183 = vmul.f32 %v3117, %v611
    %v3184 = vmul.f32 %v3117, %v612
    %v3185 = vmul.f32 %v3117, %v613
    %v3186 = vmul.f32 %v3117, %v614
    %v3187 = vmul.f32 %v3117, %v615
    %v3188 = vmul.f32 %v3117, %v616
    %v3189 = vmul.f32 %v3117, %v617
    %v3190 = vmul.f32 %v3117, %v618
    %v3191 = vmul.f32 %v3117, %v619
    %v3192 = vmul.f32 %v3117, %v620
    %v3193 = vmul.f32 %v3117, %v621
    %v3194 = vmul.f32 %v3117, %v622
    %v3195 = vmul.f32 %v3117, %v623
    %v3196 = vmul.f32 %v3117, %v624
    %v3197 = vmul.f32 %v3117, %v625
    %v3198 = vmul.f32 %v3117, %v626
    %v3199 = vmul.f32 %v3117, %v627
    %v3200 = vmul.f32 %v3117, %v628
    %v3201 = vmul.f32 %v3117, %v629
    %v3202 = vmul.f32 %v3117, %v630
    %v3203 = vmul.f32 %v3117, %v631
    %v3204 = vmul.f32 %v3117, %v632
    %v3205 = vmul.f32 %v3117, %v633
    %v3206 = vmul.f32 %v3117, %v634
    %v3207 = vmul.f32 %v3117, %v635
    %v3208 = vmul.f32 %v3117, %v636
    %v3209 = vmul.f32 %v3117, %v637
    %v3210 = vmul.f32 %v3117, %v638
    %v3211 = vmul.f32 %v3117, %v639
    %v3212 = vmul.f32 %v3117, %v640
    %v3213 = vmul.f32 %v3117, %v641
    %v3214 = vmul.f32 %v3117, %v642
    %v3215 = vmul.f32 %v3117, %v643
    %v3216 = vmul.f32 %v3117, %v644
    %v3217 = vmul.f32 %v3117, %v645
    %v3218 = vmul.f32 %v3117, %v646
    %v3219 = vmul.f32 %v3117, %v647
    %v3220 = vmul.f32 %v3117, %v648
    %v3221 = vmul.f32 %v3117, %v649
    %v3222 = vmul.f32 %v3117, %v650
    %v3223 = vmul.f32 %v3117, %v651
    %v3224 = vmul.f32 %v3117, %v652
    %v3225 = vmul.f32 %v3117, %v653
    %v3226 = vmul.f32 %v3117, %v654
    %v3227 = vmul.f32 %v3117, %v655
    %v3228 = vmul.f32 %v3117, %v656
    %v3229 = vmul.f32 %v3117, %v657
    %v3230 = vmul.f32 %v3117, %v658
    %v3231 = vmul.f32 %v3117, %v659
    %v3232 = vmul.f32 %v3117, %v660
    %v3233 = vmul.f32 %v3117, %v661
    %v3234 = vmul.f32 %v3117, %v662
    %v3235 = vmul.f32 %v3117, %v663
    %v3236 = vmul.f32 %v3117, %v664
    %v3237 = vmul.f32 %v3117, %v665
    %v3238 = vmul.f32 %v3117, %v666
    %v3239 = vmul.f32 %v3117, %v667
    %v3240 = vmul.f32 %v3117, %v668
    %v3241 = vmul.f32 %v3117, %v669
    %v3242 = vmul.f32 %v3117, %v670
    %v3243 = vmul.f32 %v3117, %v671
    %v3244 = vmul.f32 %v3117, %v672
    %v3245 = vmul.f32 %v3117, %v673
    %v3246 = vmul.f32 %v3117, %v674
    %v3247 = vmul.f32 %v3117, %v675
    %v3248 = vmul.f32 %v3117, %v676
    %v3249 = vmul.f32 %v3117, %v677
    %v3250 = vmul.f32 %v3117, %v678
    %v3251 = vmul.f32 %v3117, %v679
    %v3252 = vmul.f32 %v3117, %v680
    %v3253 = vmul.f32 %v3117, %v681
    %v3254 = vmul.f32 %v3117, %v682
    %v3255 = vmul.f32 %v3117, %v683
    %v3256 = vmul.f32 %v3117, %v684
    %v3257 = vmul.f32 %v3117, %v685
    %v3258 = vmul.f32 %v3117, %v686
    %v3259 = vmul.f32 %v3117, %v687
    %v3260 = vmul.f32 %v3117, %v688
    %v3261 = vmul.f32 %v3117, %v689
    %v3262 = vmul.f32 %v3117, %v690
    %v3263 = vmul.f32 %v3117, %v691
    %v3264 = vmul.f32 %v3117, %v692
    %v3265 = vmul.f32 %v3117, %v693
    %v3266 = vmul.f32 %v3117, %v694
    %v3267 = vmul.f32 %v3117, %v695
    %v3268 = vmul.f32 %v3117, %v696
    %v3269 = vmul.f32 %v3117, %v697
    %v3270 = vmul.f32 %v3117, %v698
    %v3271 = vmul.f32 %v3117, %v699
    %v3272 = vmul.f32 %v3117, %v700
    %v3273 = vmul.f32 %v3117, %v701
    %v3274 = vmul.f32 %v3117, %v702
    %v3275 = vmul.f32 %v3117, %v703
    %v3276 = vmul.f32 %v3117, %v704
    %v3277 = vmul.f32 %v3117, %v705
    %v3278 = vmul.f32 %v3117, %v706
    %v3279 = vmul.f32 %v3117, %v707
    %v3280 = vmul.f32 %v3117, %v708
    %v3281 = vmul.f32 %v3117, %v709
    %v3282 = vmul.f32 %v3117, %v710
    %v3283 = vmul.f32 %v3117, %v711
    %v3284 = vmul.f32 %v3117, %v712
    %v3285 = vmul.f32 %v3117, %v713
    %v3286 = vmul.f32 %v3117, %v714
    %v3287 = vmul.f32 %v3117, %v715
    %v3288 = vmul.f32 %v3117, %v716
    %v3289 = vmul.f32 %v3117, %v717
    %v3290 = vmul.f32 %v3117, %v718
    %v3291 = vmul.f32 %v3117, %v719
    %v3292 = vmul.f32 %v3117, %v720
    %v3293 = vmul.f32 %v3117, %v721
    %v3294 = vmul.f32 %v3117, %v722
    %v3295 = vmul.f32 %v3117, %v723
    %v3296 = vmul.f32 %v3117, %v724
    %v3297 = vmul.f32 %v3117, %v725
    %v3298 = vmul.f32 %v3117, %v726
    %v3299 = vmul.f32 %v3117, %v727
    %v3300 = vmul.f32 %v3117, %v728
    %v3301 = vmul.f32 %v3117, %v729
    %v3302 = vmul.f32 %v3117, %v730
    %v3303 = vmul.f32 %v3117, %v731
    %v3304 = vmul.f32 %v3117, %v732
    %v3305 = vmul.f32 %v3117, %v733
    %v3306 = vmul.f32 %v3117, %v734
    %v3307 = vmul.f32 %v3117, %v735
    %v3308 = vmul.f32 %v3117, %v736
    %v3309 = vmul.f32 %v3117, %v737
    %v3310 = vmul.f32 %v3117, %v738
    %v3311 = vmul.f32 %v3117, %v739
    %v3312 = vmul.f32 %v3117, %v740
    %v3313 = vmul.f32 %v3117, %v741
    %v3314 = vmul.f32 %v3117, %v742
    %v3315 = vmul.f32 %v3117, %v743
    %v3316 = vmul.f32 %v3117, %v744
    %v3317 = vmul.f32 %v3117, %v745
    %v3318 = vmul.f32 %v3117, %v746
    %v3319 = vmul.f32 %v3117, %v747
    %v3320 = vmul.f32 %v3117, %v748
    %v3321 = vmul.f32 %v3117, %v749
    %v3322 = vmul.f32 %v3117, %v750
    %v3323 = vmul.f32 %v3117, %v751
    %v3324 = vmul.f32 %v3117, %v752
    %v3325 = vmul.f32 %v3117, %v753
    %v3326 = vmul.f32 %v3117, %v754
    %v3327 = vmul.f32 %v3117, %v755
    %v3328 = vmul.f32 %v3117, %v756
    %v3329 = vmul.f32 %v3117, %v757
    %v3330 = vmul.f32 %v3117, %v758
    %v3331 = vmul.f32 %v3117, %v759
    %v3332 = vmul.f32 %v3117, %v760
    %v3333 = vmul.f32 %v3117, %v761
    %v3334 = vmul.f32 %v3117, %v762
    %v3335 = vmul.f32 %v3117, %v763
    %v3336 = vmul.f32 %v3117, %v764
    %v3337 = vmul.f32 %v3117, %v765
    %v3338 = vmul.f32 %v3117, %v766
    %v3339 = vmul.f32 %v3117, %v767
    %v3340 = vmul.f32 %v3117, %v768
    %v3341 = vmul.f32 %v3117, %v769
    %v3342 = vmul.f32 %v3117, %v770
    %v3343 = vmul.f32 %v3117, %v771
    %v3344 = vmul.f32 %v3117, %v772
    %v3345 = vmul.f32 %v3117, %v773
    %v3346 = vmul.f32 %v3117, %v774
    %v3347 = vmul.f32 %v3117, %v775
    %v3348 = vmul.f32 %v3117, %v776
    %v3349 = vmul.f32 %v3117, %v777
    %v3350 = vmul.f32 %v3117, %v778
    %v3351 = vmul.f32 %v3117, %v779
    %v3352 = vmul.f32 %v3117, %v780
    %v3353 = vmul.f32 %v3117, %v781
    %v3354 = vmul.f32 %v3117, %v782
    %v3355 = vmul.f32 %v3117, %v783
    %v3356 = vmul.f32 %v3117, %v784
    %v3357 = vmul.f32 %v3117, %v785
    %v3358 = vmul.f32 %v3117, %v786
    %v3359 = vmul.f32 %v3117, %v787
    %v3360 = vmul.f32 %v3117, %v788
    %v3361 = vmul.f32 %v3117, %v789
    %v3362 = vmul.f32 %v3117, %v790
    %v3363 = vmul.f32 %v3117, %v791
    %v3364 = vmul.f32 %v3117, %v792
    %v3365 = vmul.f32 %v3117, %v793
    %v3366 = vmul.f32 %v3117, %v794
    %v3367 = vmul.f32 %v3117, %v795
    %v3368 = vmul.f32 %v3117, %v796
    %v3369 = vmul.f32 %v3117, %v797
    %v3370 = vmul.f32 %v3117, %v798
    %v3371 = vmul.f32 %v3117, %v799
    %v3372 = vmul.f32 %v3117, %v800
    %v3373 = vmul.f32 %v3117, %v801
    %v3374 = vadd.f32 %v2346, %v3118
    %v3375 = vadd.f32 %v2347, %v3119
    %v3376 = vadd.f32 %v2348, %v3120
    %v3377 = vadd.f32 %v2349, %v3121
    %v3378 = vadd.f32 %v2350, %v3122
    %v3379 = vadd.f32 %v2351, %v3123
    %v3380 = vadd.f32 %v2352, %v3124
    %v3381 = vadd.f32 %v2353, %v3125
    %v3382 = vadd.f32 %v2354, %v3126
    %v3383 = vadd.f32 %v2355, %v3127
    %v3384 = vadd.f32 %v2356, %v3128
    %v3385 = vadd.f32 %v2357, %v3129
    %v3386 = vadd.f32 %v2358, %v3130
    %v3387 = vadd.f32 %v2359, %v3131
    %v3388 = vadd.f32 %v2360, %v3132
    %v3389 = vadd.f32 %v2361, %v3133
    %v3390 = vadd.f32 %v2362, %v3134
    %v3391 = vadd.f32 %v2363, %v3135
    %v3392 = vadd.f32 %v2364, %v3136
    %v3393 = vadd.f32 %v2365, %v3137
    %v3394 = vadd.f32 %v2366, %v3138
    %v3395 = vadd.f32 %v2367, %v3139
    %v3396 = vadd.f32 %v2368, %v3140
    %v3397 = vadd.f32 %v2369, %v3141
    %v3398 = vadd.f32 %v2370, %v3142
    %v3399 = vadd.f32 %v2371, %v3143
    %v3400 = vadd.f32 %v2372, %v3144
    %v3401 = vadd.f32 %v2373, %v3145
    %v3402 = vadd.f32 %v2374, %v3146
    %v3403 = vadd.f32 %v2375, %v3147
    %v3404 = vadd.f32 %v2376, %v3148
    %v3405 = vadd.f32 %v2377, %v3149
    %v3406 = vadd.f32 %v2378, %v3150
    %v3407 = vadd.f32 %v2379, %v3151
    %v3408 = vadd.f32 %v2380, %v3152
    %v3409 = vadd.f32 %v2381, %v3153
    %v3410 = vadd.f32 %v2382, %v3154
    %v3411 = vadd.f32 %v2383, %v3155
    %v3412 = vadd.f32 %v2384, %v3156
    %v3413 = vadd.f32 %v2385, %v3157
    %v3414 = vadd.f32 %v2386, %v3158
    %v3415 = vadd.f32 %v2387, %v3159
    %v3416 = vadd.f32 %v2388, %v3160
    %v3417 = vadd.f32 %v2389, %v3161
    %v3418 = vadd.f32 %v2390, %v3162
    %v3419 = vadd.f32 %v2391, %v3163
    %v3420 = vadd.f32 %v2392, %v3164
    %v3421 = vadd.f32 %v2393, %v3165
    %v3422 = vadd.f32 %v2394, %v3166
    %v3423 = vadd.f32 %v2395, %v3167
    %v3424 = vadd.f32 %v2396, %v3168
    %v3425 = vadd.f32 %v2397, %v3169
    %v3426 = vadd.f32 %v2398, %v3170
    %v3427 = vadd.f32 %v2399, %v3171
    %v3428 = vadd.f32 %v2400, %v3172
    %v3429 = vadd.f32 %v2401, %v3173
    %v3430 = vadd.f32 %v2402, %v3174
    %v3431 = vadd.f32 %v2403, %v3175
    %v3432 = vadd.f32 %v2404, %v3176
    %v3433 = vadd.f32 %v2405, %v3177
    %v3434 = vadd.f32 %v2406, %v3178
    %v3435 = vadd.f32 %v2407, %v3179
    %v3436 = vadd.f32 %v2408, %v3180
    %v3437 = vadd.f32 %v2409, %v3181
    %v3438 = vadd.f32 %v2410, %v3182
    %v3439 = vadd.f32 %v2411, %v3183
    %v3440 = vadd.f32 %v2412, %v3184
    %v3441 = vadd.f32 %v2413, %v3185
    %v3442 = vadd.f32 %v2414, %v3186
    %v3443 = vadd.f32 %v2415, %v3187
    %v3444 = vadd.f32 %v2416, %v3188
    %v3445 = vadd.f32 %v2417, %v3189
    %v3446 = vadd.f32 %v2418, %v3190
    %v3447 = vadd.f32 %v2419, %v3191
    %v3448 = vadd.f32 %v2420, %v3192
    %v3449 = vadd.f32 %v2421, %v3193
    %v3450 = vadd.f32 %v2422, %v3194
    %v3451 = vadd.f32 %v2423, %v3195
    %v3452 = vadd.f32 %v2424, %v3196
    %v3453 = vadd.f32 %v2425, %v3197
    %v3454 = vadd.f32 %v2426, %v3198
    %v3455 = vadd.f32 %v2427, %v3199
    %v3456 = vadd.f32 %v2428, %v3200
    %v3457 = vadd.f32 %v2429, %v3201
    %v3458 = vadd.f32 %v2430, %v3202
    %v3459 = vadd.f32 %v2431, %v3203
    %v3460 = vadd.f32 %v2432, %v3204
    %v3461 = vadd.f32 %v2433, %v3205
    %v3462 = vadd.f32 %v2434, %v3206
    %v3463 = vadd.f32 %v2435, %v3207
    %v3464 = vadd.f32 %v2436, %v3208
    %v3465 = vadd.f32 %v2437, %v3209
    %v3466 = vadd.f32 %v2438, %v3210
    %v3467 = vadd.f32 %v2439, %v3211
    %v3468 = vadd.f32 %v2440, %v3212
    %v3469 = vadd.f32 %v2441, %v3213
    %v3470 = vadd.f32 %v2442, %v3214
    %v3471 = vadd.f32 %v2443, %v3215
    %v3472 = vadd.f32 %v2444, %v3216
    %v3473 = vadd.f32 %v2445, %v3217
    %v3474 = vadd.f32 %v2446, %v3218
    %v3475 = vadd.f32 %v2447, %v3219
    %v3476 = vadd.f32 %v2448, %v3220
    %v3477 = vadd.f32 %v2449, %v3221
    %v3478 = vadd.f32 %v2450, %v3222
    %v3479 = vadd.f32 %v2451, %v3223
    %v3480 = vadd.f32 %v2452, %v3224
    %v3481 = vadd.f32 %v2453, %v3225
    %v3482 = vadd.f32 %v2454, %v3226
    %v3483 = vadd.f32 %v2455, %v3227
    %v3484 = vadd.f32 %v2456, %v3228
    %v3485 = vadd.f32 %v2457, %v3229
    %v3486 = vadd.f32 %v2458, %v3230
    %v3487 = vadd.f32 %v2459, %v3231
    %v3488 = vadd.f32 %v2460, %v3232
    %v3489 = vadd.f32 %v2461, %v3233
    %v3490 = vadd.f32 %v2462, %v3234
    %v3491 = vadd.f32 %v2463, %v3235
    %v3492 = vadd.f32 %v2464, %v3236
    %v3493 = vadd.f32 %v2465, %v3237
    %v3494 = vadd.f32 %v2466, %v3238
    %v3495 = vadd.f32 %v2467, %v3239
    %v3496 = vadd.f32 %v2468, %v3240
    %v3497 = vadd.f32 %v2469, %v3241
    %v3498 = vadd.f32 %v2470, %v3242
    %v3499 = vadd.f32 %v2471, %v3243
    %v3500 = vadd.f32 %v2472, %v3244
    %v3501 = vadd.f32 %v2473, %v3245
    %v3502 = vadd.f32 %v2474, %v3246
    %v3503 = vadd.f32 %v2475, %v3247
    %v3504 = vadd.f32 %v2476, %v3248
    %v3505 = vadd.f32 %v2477, %v3249
    %v3506 = vadd.f32 %v2478, %v3250
    %v3507 = vadd.f32 %v2479, %v3251
    %v3508 = vadd.f32 %v2480, %v3252
    %v3509 = vadd.f32 %v2481, %v3253
    %v3510 = vadd.f32 %v2482, %v3254
    %v3511 = vadd.f32 %v2483, %v3255
    %v3512 = vadd.f32 %v2484, %v3256
    %v3513 = vadd.f32 %v2485, %v3257
    %v3514 = vadd.f32 %v2486, %v3258
    %v3515 = vadd.f32 %v2487, %v3259
    %v3516 = vadd.f32 %v2488, %v3260
    %v3517 = vadd.f32 %v2489, %v3261
    %v3518 = vadd.f32 %v2490, %v3262
    %v3519 = vadd.f32 %v2491, %v3263
    %v3520 = vadd.f32 %v2492, %v3264
    %v3521 = vadd.f32 %v2493, %v3265
    %v3522 = vadd.f32 %v2494, %v3266
    %v3523 = vadd.f32 %v2495, %v3267
    %v3524 = vadd.f32 %v2496, %v3268
    %v3525 = vadd.f32 %v2497, %v3269
    %v3526 = vadd.f32 %v2498, %v3270
    %v3527 = vadd.f32 %v2499, %v3271
    %v3528 = vadd.f32 %v2500, %v3272
    %v3529 = vadd.f32 %v2501, %v3273
    %v3530 = vadd.f32 %v2502, %v3274
    %v3531 = vadd.f32 %v2503, %v3275
    %v3532 = vadd.f32 %v2504, %v3276
    %v3533 = vadd.f32 %v2505, %v3277
    %v3534 = vadd.f32 %v2506, %v3278
    %v3535 = vadd.f32 %v2507, %v3279
    %v3536 = vadd.f32 %v2508, %v3280
    %v3537 = vadd.f32 %v2509, %v3281
    %v3538 = vadd.f32 %v2510, %v3282
    %v3539 = vadd.f32 %v2511, %v3283
    %v3540 = vadd.f32 %v2512, %v3284
    %v3541 = vadd.f32 %v2513, %v3285
    %v3542 = vadd.f32 %v2514, %v3286
    %v3543 = vadd.f32 %v2515, %v3287
    %v3544 = vadd.f32 %v2516, %v3288
    %v3545 = vadd.f32 %v2517, %v3289
    %v3546 = vadd.f32 %v2518, %v3290
    %v3547 = vadd.f32 %v2519, %v3291
    %v3548 = vadd.f32 %v2520, %v3292
    %v3549 = vadd.f32 %v2521, %v3293
    %v3550 = vadd.f32 %v2522, %v3294
    %v3551 = vadd.f32 %v2523, %v3295
    %v3552 = vadd.f32 %v2524, %v3296
    %v3553 = vadd.f32 %v2525, %v3297
    %v3554 = vadd.f32 %v2526, %v3298
    %v3555 = vadd.f32 %v2527, %v3299
    %v3556 = vadd.f32 %v2528, %v3300
    %v3557 = vadd.f32 %v2529, %v3301
    %v3558 = vadd.f32 %v2530, %v3302
    %v3559 = vadd.f32 %v2531, %v3303
    %v3560 = vadd.f32 %v2532, %v3304
    %v3561 = vadd.f32 %v2533, %v3305
    %v3562 = vadd.f32 %v2534, %v3306
    %v3563 = vadd.f32 %v2535, %v3307
    %v3564 = vadd.f32 %v2536, %v3308
    %v3565 = vadd.f32 %v2537, %v3309
    %v3566 = vadd.f32 %v2538, %v3310
    %v3567 = vadd.f32 %v2539, %v3311
    %v3568 = vadd.f32 %v2540, %v3312
    %v3569 = vadd.f32 %v2541, %v3313
    %v3570 = vadd.f32 %v2542, %v3314
    %v3571 = vadd.f32 %v2543, %v3315
    %v3572 = vadd.f32 %v2544, %v3316
    %v3573 = vadd.f32 %v2545, %v3317
    %v3574 = vadd.f32 %v2546, %v3318
    %v3575 = vadd.f32 %v2547, %v3319
    %v3576 = vadd.f32 %v2548, %v3320
    %v3577 = vadd.f32 %v2549, %v3321
    %v3578 = vadd.f32 %v2550, %v3322
    %v3579 = vadd.f32 %v2551, %v3323
    %v3580 = vadd.f32 %v2552, %v3324
    %v3581 = vadd.f32 %v2553, %v3325
    %v3582 = vadd.f32 %v2554, %v3326
    %v3583 = vadd.f32 %v2555, %v3327
    %v3584 = vadd.f32 %v2556, %v3328
    %v3585 = vadd.f32 %v2557, %v3329
    %v3586 = vadd.f32 %v2558, %v3330
    %v3587 = vadd.f32 %v2559, %v3331
    %v3588 = vadd.f32 %v2560, %v3332
    %v3589 = vadd.f32 %v2561, %v3333
    %v3590 = vadd.f32 %v2562, %v3334
    %v3591 = vadd.f32 %v2563, %v3335
    %v3592 = vadd.f32 %v2564, %v3336
    %v3593 = vadd.f32 %v2565, %v3337
    %v3594 = vadd.f32 %v2566, %v3338
    %v3595 = vadd.f32 %v2567, %v3339
    %v3596 = vadd.f32 %v2568, %v3340
    %v3597 = vadd.f32 %v2569, %v3341
    %v3598 = vadd.f32 %v2570, %v3342
    %v3599 = vadd.f32 %v2571, %v3343
    %v3600 = vadd.f32 %v2572, %v3344
    %v3601 = vadd.f32 %v2573, %v3345
    %v3602 = vadd.f32 %v2574, %v3346
    %v3603 = vadd.f32 %v2575, %v3347
    %v3604 = vadd.f32 %v2576, %v3348
    %v3605 = vadd.f32 %v2577, %v3349
    %v3606 = vadd.f32 %v2578, %v3350
    %v3607 = vadd.f32 %v2579, %v3351
    %v3608 = vadd.f32 %v2580, %v3352
    %v3609 = vadd.f32 %v2581, %v3353
    %v3610 = vadd.f32 %v2582, %v3354
    %v3611 = vadd.f32 %v2583, %v3355
    %v3612 = vadd.f32 %v2584, %v3356
    %v3613 = vadd.f32 %v2585, %v3357
    %v3614 = vadd.f32 %v2586, %v3358
    %v3615 = vadd.f32 %v2587, %v3359
    %v3616 = vadd.f32 %v2588, %v3360
    %v3617 = vadd.f32 %v2589, %v3361
    %v3618 = vadd.f32 %v2590, %v3362
    %v3619 = vadd.f32 %v2591, %v3363
    %v3620 = vadd.f32 %v2592, %v3364
    %v3621 = vadd.f32 %v2593, %v3365
    %v3622 = vadd.f32 %v2594, %v3366
    %v3623 = vadd.f32 %v2595, %v3367
    %v3624 = vadd.f32 %v2596, %v3368
    %v3625 = vadd.f32 %v2597, %v3369
    %v3626 = vadd.f32 %v2598, %v3370
    %v3627 = vadd.f32 %v2599, %v3371
    %v3628 = vadd.f32 %v2600, %v3372
    %v3629 = vadd.f32 %v2601, %v3373
    %s3630 = sld [smem:[#allocation3 + $0x3]]
    %v3631 = vstv %s3630
    %v3632 = vmul.f32 %v3631, %v802
    %v3633 = vmul.f32 %v3631, %v803
    %v3634 = vmul.f32 %v3631, %v804
    %v3635 = vmul.f32 %v3631, %v805
    %v3636 = vmul.f32 %v3631, %v806
    %v3637 = vmul.f32 %v3631, %v807
    %v3638 = vmul.f32 %v3631, %v808
    %v3639 = vmul.f32 %v3631, %v809
    %v3640 = vmul.f32 %v3631, %v810
    %v3641 = vmul.f32 %v3631, %v811
    %v3642 = vmul.f32 %v3631, %v812
    %v3643 = vmul.f32 %v3631, %v813
    %v3644 = vmul.f32 %v3631, %v814
    %v3645 = vmul.f32 %v3631, %v815
    %v3646 = vmul.f32 %v3631, %v816
    %v3647 = vmul.f32 %v3631, %v817
    %v3648 = vmul.f32 %v3631, %v818
    %v3649 = vmul.f32 %v3631, %v819
    %v3650 = vmul.f32 %v3631, %v820
    %v3651 = vmul.f32 %v3631, %v821
    %v3652 = vmul.f32 %v3631, %v822
    %v3653 = vmul.f32 %v3631, %v823
    %v3654 = vmul.f32 %v3631, %v824
    %v3655 = vmul.f32 %v3631, %v825
    %v3656 = vmul.f32 %v3631, %v826
    %v3657 = vmul.f32 %v3631, %v827
    %v3658 = vmul.f32 %v3631, %v828
    %v3659 = vmul.f32 %v3631, %v829
    %v3660 = vmul.f32 %v3631, %v830
    %v3661 = vmul.f32 %v3631, %v831
    %v3662 = vmul.f32 %v3631, %v832
    %v3663 = vmul.f32 %v3631, %v833
    %v3664 = vmul.f32 %v3631, %v834
    %v3665 = vmul.f32 %v3631, %v835
    %v3666 = vmul.f32 %v3631, %v836
    %v3667 = vmul.f32 %v3631, %v837
    %v3668 = vmul.f32 %v3631, %v838
    %v3669 = vmul.f32 %v3631, %v839
    %v3670 = vmul.f32 %v3631, %v840
    %v3671 = vmul.f32 %v3631, %v841
    %v3672 = vmul.f32 %v3631, %v842
    %v3673 = vmul.f32 %v3631, %v843
    %v3674 = vmul.f32 %v3631, %v844
    %v3675 = vmul.f32 %v3631, %v845
    %v3676 = vmul.f32 %v3631, %v846
    %v3677 = vmul.f32 %v3631, %v847
    %v3678 = vmul.f32 %v3631, %v848
    %v3679 = vmul.f32 %v3631, %v849
    %v3680 = vmul.f32 %v3631, %v850
    %v3681 = vmul.f32 %v3631, %v851
    %v3682 = vmul.f32 %v3631, %v852
    %v3683 = vmul.f32 %v3631, %v853
    %v3684 = vmul.f32 %v3631, %v854
    %v3685 = vmul.f32 %v3631, %v855
    %v3686 = vmul.f32 %v3631, %v856
    %v3687 = vmul.f32 %v3631, %v857
    %v3688 = vmul.f32 %v3631, %v858
    %v3689 = vmul.f32 %v3631, %v859
    %v3690 = vmul.f32 %v3631, %v860
    %v3691 = vmul.f32 %v3631, %v861
    %v3692 = vmul.f32 %v3631, %v862
    %v3693 = vmul.f32 %v3631, %v863
    %v3694 = vmul.f32 %v3631, %v864
    %v3695 = vmul.f32 %v3631, %v865
    %v3696 = vmul.f32 %v3631, %v866
    %v3697 = vmul.f32 %v3631, %v867
    %v3698 = vmul.f32 %v3631, %v868
    %v3699 = vmul.f32 %v3631, %v869
    %v3700 = vmul.f32 %v3631, %v870
    %v3701 = vmul.f32 %v3631, %v871
    %v3702 = vmul.f32 %v3631, %v872
    %v3703 = vmul.f32 %v3631, %v873
    %v3704 = vmul.f32 %v3631, %v874
    %v3705 = vmul.f32 %v3631, %v875
    %v3706 = vmul.f32 %v3631, %v876
    %v3707 = vmul.f32 %v3631, %v877
    %v3708 = vmul.f32 %v3631, %v878
    %v3709 = vmul.f32 %v3631, %v879
    %v3710 = vmul.f32 %v3631, %v880
    %v3711 = vmul.f32 %v3631, %v881
    %v3712 = vmul.f32 %v3631, %v882
    %v3713 = vmul.f32 %v3631, %v883
    %v3714 = vmul.f32 %v3631, %v884
    %v3715 = vmul.f32 %v3631, %v885
    %v3716 = vmul.f32 %v3631, %v886
    %v3717 = vmul.f32 %v3631, %v887
    %v3718 = vmul.f32 %v3631, %v888
    %v3719 = vmul.f32 %v3631, %v889
    %v3720 = vmul.f32 %v3631, %v890
    %v3721 = vmul.f32 %v3631, %v891
    %v3722 = vmul.f32 %v3631, %v892
    %v3723 = vmul.f32 %v3631, %v893
    %v3724 = vmul.f32 %v3631, %v894
    %v3725 = vmul.f32 %v3631, %v895
    %v3726 = vmul.f32 %v3631, %v896
    %v3727 = vmul.f32 %v3631, %v897
    %v3728 = vmul.f32 %v3631, %v898
    %v3729 = vmul.f32 %v3631, %v899
    %v3730 = vmul.f32 %v3631, %v900
    %v3731 = vmul.f32 %v3631, %v901
    %v3732 = vmul.f32 %v3631, %v902
    %v3733 = vmul.f32 %v3631, %v903
    %v3734 = vmul.f32 %v3631, %v904
    %v3735 = vmul.f32 %v3631, %v905
    %v3736 = vmul.f32 %v3631, %v906
    %v3737 = vmul.f32 %v3631, %v907
    %v3738 = vmul.f32 %v3631, %v908
    %v3739 = vmul.f32 %v3631, %v909
    %v3740 = vmul.f32 %v3631, %v910
    %v3741 = vmul.f32 %v3631, %v911
    %v3742 = vmul.f32 %v3631, %v912
    %v3743 = vmul.f32 %v3631, %v913
    %v3744 = vmul.f32 %v3631, %v914
    %v3745 = vmul.f32 %v3631, %v915
    %v3746 = vmul.f32 %v3631, %v916
    %v3747 = vmul.f32 %v3631, %v917
    %v3748 = vmul.f32 %v3631, %v918
    %v3749 = vmul.f32 %v3631, %v919
    %v3750 = vmul.f32 %v3631, %v920
    %v3751 = vmul.f32 %v3631, %v921
    %v3752 = vmul.f32 %v3631, %v922
    %v3753 = vmul.f32 %v3631, %v923
    %v3754 = vmul.f32 %v3631, %v924
    %v3755 = vmul.f32 %v3631, %v925
    %v3756 = vmul.f32 %v3631, %v926
    %v3757 = vmul.f32 %v3631, %v927
    %v3758 = vmul.f32 %v3631, %v928
    %v3759 = vmul.f32 %v3631, %v929
    %v3760 = vmul.f32 %v3631, %v930
    %v3761 = vmul.f32 %v3631, %v931
    %v3762 = vmul.f32 %v3631, %v932
    %v3763 = vmul.f32 %v3631, %v933
    %v3764 = vmul.f32 %v3631, %v934
    %v3765 = vmul.f32 %v3631, %v935
    %v3766 = vmul.f32 %v3631, %v936
    %v3767 = vmul.f32 %v3631, %v937
    %v3768 = vmul.f32 %v3631, %v938
    %v3769 = vmul.f32 %v3631, %v939
    %v3770 = vmul.f32 %v3631, %v940
    %v3771 = vmul.f32 %v3631, %v941
    %v3772 = vmul.f32 %v3631, %v942
    %v3773 = vmul.f32 %v3631, %v943
    %v3774 = vmul.f32 %v3631, %v944
    %v3775 = vmul.f32 %v3631, %v945
    %v3776 = vmul.f32 %v3631, %v946
    %v3777 = vmul.f32 %v3631, %v947
    %v3778 = vmul.f32 %v3631, %v948
    %v3779 = vmul.f32 %v3631, %v949
    %v3780 = vmul.f32 %v3631, %v950
    %v3781 = vmul.f32 %v3631, %v951
    %v3782 = vmul.f32 %v3631, %v952
    %v3783 = vmul.f32 %v3631, %v953
    %v3784 = vmul.f32 %v3631, %v954
    %v3785 = vmul.f32 %v3631, %v955
    %v3786 = vmul.f32 %v3631, %v956
    %v3787 = vmul.f32 %v3631, %v957
    %v3788 = vmul.f32 %v3631, %v958
    %v3789 = vmul.f32 %v3631, %v959
    %v3790 = vmul.f32 %v3631, %v960
    %v3791 = vmul.f32 %v3631, %v961
    %v3792 = vmul.f32 %v3631, %v962
    %v3793 = vmul.f32 %v3631, %v963
    %v3794 = vmul.f32 %v3631, %v964
    %v3795 = vmul.f32 %v3631, %v965
    %v3796 = vmul.f32 %v3631, %v966
    %v3797 = vmul.f32 %v3631, %v967
    %v3798 = vmul.f32 %v3631, %v968
    %v3799 = vmul.f32 %v3631, %v969
    %v3800 = vmul.f32 %v3631, %v970
    %v3801 = vmul.f32 %v3631, %v971
    %v3802 = vmul.f32 %v3631, %v972
    %v3803 = vmul.f32 %v3631, %v973
    %v3804 = vmul.f32 %v3631, %v974
    %v3805 = vmul.f32 %v3631, %v975
    %v3806 = vmul.f32 %v3631, %v976
    %v3807 = vmul.f32 %v3631, %v977
    %v3808 = vmul.f32 %v3631, %v978
    %v3809 = vmul.f32 %v3631, %v979
    %v3810 = vmul.f32 %v3631, %v980
    %v3811 = vmul.f32 %v3631, %v981
    %v3812 = vmul.f32 %v3631, %v982
    %v3813 = vmul.f32 %v3631, %v983
    %v3814 = vmul.f32 %v3631, %v984
    %v3815 = vmul.f32 %v3631, %v985
    %v3816 = vmul.f32 %v3631, %v986
    %v3817 = vmul.f32 %v3631, %v987
    %v3818 = vmul.f32 %v3631, %v988
    %v3819 = vmul.f32 %v3631, %v989
    %v3820 = vmul.f32 %v3631, %v990
    %v3821 = vmul.f32 %v3631, %v991
    %v3822 = vmul.f32 %v3631, %v992
    %v3823 = vmul.f32 %v3631, %v993
    %v3824 = vmul.f32 %v3631, %v994
    %v3825 = vmul.f32 %v3631, %v995
    %v3826 = vmul.f32 %v3631, %v996
    %v3827 = vmul.f32 %v3631, %v997
    %v3828 = vmul.f32 %v3631, %v998
    %v3829 = vmul.f32 %v3631, %v999
    %v3830 = vmul.f32 %v3631, %v1000
    %v3831 = vmul.f32 %v3631, %v1001
    %v3832 = vmul.f32 %v3631, %v1002
    %v3833 = vmul.f32 %v3631, %v1003
    %v3834 = vmul.f32 %v3631, %v1004
    %v3835 = vmul.f32 %v3631, %v1005
    %v3836 = vmul.f32 %v3631, %v1006
    %v3837 = vmul.f32 %v3631, %v1007
    %v3838 = vmul.f32 %v3631, %v1008
    %v3839 = vmul.f32 %v3631, %v1009
    %v3840 = vmul.f32 %v3631, %v1010
    %v3841 = vmul.f32 %v3631, %v1011
    %v3842 = vmul.f32 %v3631, %v1012
    %v3843 = vmul.f32 %v3631, %v1013
    %v3844 = vmul.f32 %v3631, %v1014
    %v3845 = vmul.f32 %v3631, %v1015
    %v3846 = vmul.f32 %v3631, %v1016
    %v3847 = vmul.f32 %v3631, %v1017
    %v3848 = vmul.f32 %v3631, %v1018
    %v3849 = vmul.f32 %v3631, %v1019
    %v3850 = vmul.f32 %v3631, %v1020
    %v3851 = vmul.f32 %v3631, %v1021
    %v3852 = vmul.f32 %v3631, %v1022
    %v3853 = vmul.f32 %v3631, %v1023
    %v3854 = vmul.f32 %v3631, %v1024
    %v3855 = vmul.f32 %v3631, %v1025
    %v3856 = vmul.f32 %v3631, %v1026
    %v3857 = vmul.f32 %v3631, %v1027
    %v3858 = vmul.f32 %v3631, %v1028
    %v3859 = vmul.f32 %v3631, %v1029
    %v3860 = vmul.f32 %v3631, %v1030
    %v3861 = vmul.f32 %v3631, %v1031
    %v3862 = vmul.f32 %v3631, %v1032
    %v3863 = vmul.f32 %v3631, %v1033
    %v3864 = vmul.f32 %v3631, %v1034
    %v3865 = vmul.f32 %v3631, %v1035
    %v3866 = vmul.f32 %v3631, %v1036
    %v3867 = vmul.f32 %v3631, %v1037
    %v3868 = vmul.f32 %v3631, %v1038
    %v3869 = vmul.f32 %v3631, %v1039
    %v3870 = vmul.f32 %v3631, %v1040
    %v3871 = vmul.f32 %v3631, %v1041
    %v3872 = vmul.f32 %v3631, %v1042
    %v3873 = vmul.f32 %v3631, %v1043
    %v3874 = vmul.f32 %v3631, %v1044
    %v3875 = vmul.f32 %v3631, %v1045
    %v3876 = vmul.f32 %v3631, %v1046
    %v3877 = vmul.f32 %v3631, %v1047
    %v3878 = vmul.f32 %v3631, %v1048
    %v3879 = vmul.f32 %v3631, %v1049
    %v3880 = vmul.f32 %v3631, %v1050
    %v3881 = vmul.f32 %v3631, %v1051
    %v3882 = vmul.f32 %v3631, %v1052
    %v3883 = vmul.f32 %v3631, %v1053
    %v3884 = vmul.f32 %v3631, %v1054
    %v3885 = vmul.f32 %v3631, %v1055
    %v3886 = vmul.f32 %v3631, %v1056
    %v3887 = vmul.f32 %v3631, %v1057
    %v3888 = vadd.f32 %v2860, %v3632
    %v3889 = vadd.f32 %v2861, %v3633
    %v3890 = vadd.f32 %v2862, %v3634
    %v3891 = vadd.f32 %v2863, %v3635
    %v3892 = vadd.f32 %v2864, %v3636
    %v3893 = vadd.f32 %v2865, %v3637
    %v3894 = vadd.f32 %v2866, %v3638
    %v3895 = vadd.f32 %v2867, %v3639
    %v3896 = vadd.f32 %v2868, %v3640
    %v3897 = vadd.f32 %v2869, %v3641
    %v3898 = vadd.f32 %v2870, %v3642
    %v3899 = vadd.f32 %v2871, %v3643
    %v3900 = vadd.f32 %v2872, %v3644
    %v3901 = vadd.f32 %v2873, %v3645
    %v3902 = vadd.f32 %v2874, %v3646
    %v3903 = vadd.f32 %v2875, %v3647
    %v3904 = vadd.f32 %v2876, %v3648
    %v3905 = vadd.f32 %v2877, %v3649
    %v3906 = vadd.f32 %v2878, %v3650
    %v3907 = vadd.f32 %v2879, %v3651
    %v3908 = vadd.f32 %v2880, %v3652
    %v3909 = vadd.f32 %v2881, %v3653
    %v3910 = vadd.f32 %v2882, %v3654
    %v3911 = vadd.f32 %v2883, %v3655
    %v3912 = vadd.f32 %v2884, %v3656
    %v3913 = vadd.f32 %v2885, %v3657
    %v3914 = vadd.f32 %v2886, %v3658
    %v3915 = vadd.f32 %v2887, %v3659
    %v3916 = vadd.f32 %v2888, %v3660
    %v3917 = vadd.f32 %v2889, %v3661
    %v3918 = vadd.f32 %v2890, %v3662
    %v3919 = vadd.f32 %v2891, %v3663
    %v3920 = vadd.f32 %v2892, %v3664
    %v3921 = vadd.f32 %v2893, %v3665
    %v3922 = vadd.f32 %v2894, %v3666
    %v3923 = vadd.f32 %v2895, %v3667
    %v3924 = vadd.f32 %v2896, %v3668
    %v3925 = vadd.f32 %v2897, %v3669
    %v3926 = vadd.f32 %v2898, %v3670
    %v3927 = vadd.f32 %v2899, %v3671
    %v3928 = vadd.f32 %v2900, %v3672
    %v3929 = vadd.f32 %v2901, %v3673
    %v3930 = vadd.f32 %v2902, %v3674
    %v3931 = vadd.f32 %v2903, %v3675
    %v3932 = vadd.f32 %v2904, %v3676
    %v3933 = vadd.f32 %v2905, %v3677
    %v3934 = vadd.f32 %v2906, %v3678
    %v3935 = vadd.f32 %v2907, %v3679
    %v3936 = vadd.f32 %v2908, %v3680
    %v3937 = vadd.f32 %v2909, %v3681
    %v3938 = vadd.f32 %v2910, %v3682
    %v3939 = vadd.f32 %v2911, %v3683
    %v3940 = vadd.f32 %v2912, %v3684
    %v3941 = vadd.f32 %v2913, %v3685
    %v3942 = vadd.f32 %v2914, %v3686
    %v3943 = vadd.f32 %v2915, %v3687
    %v3944 = vadd.f32 %v2916, %v3688
    %v3945 = vadd.f32 %v2917, %v3689
    %v3946 = vadd.f32 %v2918, %v3690
    %v3947 = vadd.f32 %v2919, %v3691
    %v3948 = vadd.f32 %v2920, %v3692
    %v3949 = vadd.f32 %v2921, %v3693
    %v3950 = vadd.f32 %v2922, %v3694
    %v3951 = vadd.f32 %v2923, %v3695
    %v3952 = vadd.f32 %v2924, %v3696
    %v3953 = vadd.f32 %v2925, %v3697
    %v3954 = vadd.f32 %v2926, %v3698
    %v3955 = vadd.f32 %v2927, %v3699
    %v3956 = vadd.f32 %v2928, %v3700
    %v3957 = vadd.f32 %v2929, %v3701
    %v3958 = vadd.f32 %v2930, %v3702
    %v3959 = vadd.f32 %v2931, %v3703
    %v3960 = vadd.f32 %v2932, %v3704
    %v3961 = vadd.f32 %v2933, %v3705
    %v3962 = vadd.f32 %v2934, %v3706
    %v3963 = vadd.f32 %v2935, %v3707
    %v3964 = vadd.f32 %v2936, %v3708
    %v3965 = vadd.f32 %v2937, %v3709
    %v3966 = vadd.f32 %v2938, %v3710
    %v3967 = vadd.f32 %v2939, %v3711
    %v3968 = vadd.f32 %v2940, %v3712
    %v3969 = vadd.f32 %v2941, %v3713
    %v3970 = vadd.f32 %v2942, %v3714
    %v3971 = vadd.f32 %v2943, %v3715
    %v3972 = vadd.f32 %v2944, %v3716
    %v3973 = vadd.f32 %v2945, %v3717
    %v3974 = vadd.f32 %v2946, %v3718
    %v3975 = vadd.f32 %v2947, %v3719
    %v3976 = vadd.f32 %v2948, %v3720
    %v3977 = vadd.f32 %v2949, %v3721
    %v3978 = vadd.f32 %v2950, %v3722
    %v3979 = vadd.f32 %v2951, %v3723
    %v3980 = vadd.f32 %v2952, %v3724
    %v3981 = vadd.f32 %v2953, %v3725
    %v3982 = vadd.f32 %v2954, %v3726
    %v3983 = vadd.f32 %v2955, %v3727
    %v3984 = vadd.f32 %v2956, %v3728
    %v3985 = vadd.f32 %v2957, %v3729
    %v3986 = vadd.f32 %v2958, %v3730
    %v3987 = vadd.f32 %v2959, %v3731
    %v3988 = vadd.f32 %v2960, %v3732
    %v3989 = vadd.f32 %v2961, %v3733
    %v3990 = vadd.f32 %v2962, %v3734
    %v3991 = vadd.f32 %v2963, %v3735
    %v3992 = vadd.f32 %v2964, %v3736
    %v3993 = vadd.f32 %v2965, %v3737
    %v3994 = vadd.f32 %v2966, %v3738
    %v3995 = vadd.f32 %v2967, %v3739
    %v3996 = vadd.f32 %v2968, %v3740
    %v3997 = vadd.f32 %v2969, %v3741
    %v3998 = vadd.f32 %v2970, %v3742
    %v3999 = vadd.f32 %v2971, %v3743
    %v4000 = vadd.f32 %v2972, %v3744
    %v4001 = vadd.f32 %v2973, %v3745
    %v4002 = vadd.f32 %v2974, %v3746
    %v4003 = vadd.f32 %v2975, %v3747
    %v4004 = vadd.f32 %v2976, %v3748
    %v4005 = vadd.f32 %v2977, %v3749
    %v4006 = vadd.f32 %v2978, %v3750
    %v4007 = vadd.f32 %v2979, %v3751
    %v4008 = vadd.f32 %v2980, %v3752
    %v4009 = vadd.f32 %v2981, %v3753
    %v4010 = vadd.f32 %v2982, %v3754
    %v4011 = vadd.f32 %v2983, %v3755
    %v4012 = vadd.f32 %v2984, %v3756
    %v4013 = vadd.f32 %v2985, %v3757
    %v4014 = vadd.f32 %v2986, %v3758
    %v4015 = vadd.f32 %v2987, %v3759
    %v4016 = vadd.f32 %v2988, %v3760
    %v4017 = vadd.f32 %v2989, %v3761
    %v4018 = vadd.f32 %v2990, %v3762
    %v4019 = vadd.f32 %v2991, %v3763
    %v4020 = vadd.f32 %v2992, %v3764
    %v4021 = vadd.f32 %v2993, %v3765
    %v4022 = vadd.f32 %v2994, %v3766
    %v4023 = vadd.f32 %v2995, %v3767
    %v4024 = vadd.f32 %v2996, %v3768
    %v4025 = vadd.f32 %v2997, %v3769
    %v4026 = vadd.f32 %v2998, %v3770
    %v4027 = vadd.f32 %v2999, %v3771
    %v4028 = vadd.f32 %v3000, %v3772
    %v4029 = vadd.f32 %v3001, %v3773
    %v4030 = vadd.f32 %v3002, %v3774
    %v4031 = vadd.f32 %v3003, %v3775
    %v4032 = vadd.f32 %v3004, %v3776
    %v4033 = vadd.f32 %v3005, %v3777
    %v4034 = vadd.f32 %v3006, %v3778
    %v4035 = vadd.f32 %v3007, %v3779
    %v4036 = vadd.f32 %v3008, %v3780
    %v4037 = vadd.f32 %v3009, %v3781
    %v4038 = vadd.f32 %v3010, %v3782
    %v4039 = vadd.f32 %v3011, %v3783
    %v4040 = vadd.f32 %v3012, %v3784
    %v4041 = vadd.f32 %v3013, %v3785
    %v4042 = vadd.f32 %v3014, %v3786
    %v4043 = vadd.f32 %v3015, %v3787
    %v4044 = vadd.f32 %v3016, %v3788
    %v4045 = vadd.f32 %v3017, %v3789
    %v4046 = vadd.f32 %v3018, %v3790
    %v4047 = vadd.f32 %v3019, %v3791
    %v4048 = vadd.f32 %v3020, %v3792
    %v4049 = vadd.f32 %v3021, %v3793
    %v4050 = vadd.f32 %v3022, %v3794
    %v4051 = vadd.f32 %v3023, %v3795
    %v4052 = vadd.f32 %v3024, %v3796
    %v4053 = vadd.f32 %v3025, %v3797
    %v4054 = vadd.f32 %v3026, %v3798
    %v4055 = vadd.f32 %v3027, %v3799
    %v4056 = vadd.f32 %v3028, %v3800
    %v4057 = vadd.f32 %v3029, %v3801
    %v4058 = vadd.f32 %v3030, %v3802
    %v4059 = vadd.f32 %v3031, %v3803
    %v4060 = vadd.f32 %v3032, %v3804
    %v4061 = vadd.f32 %v3033, %v3805
    %v4062 = vadd.f32 %v3034, %v3806
    %v4063 = vadd.f32 %v3035, %v3807
    %v4064 = vadd.f32 %v3036, %v3808
    %v4065 = vadd.f32 %v3037, %v3809
    %v4066 = vadd.f32 %v3038, %v3810
    %v4067 = vadd.f32 %v3039, %v3811
    %v4068 = vadd.f32 %v3040, %v3812
    %v4069 = vadd.f32 %v3041, %v3813
    %v4070 = vadd.f32 %v3042, %v3814
    %v4071 = vadd.f32 %v3043, %v3815
    %v4072 = vadd.f32 %v3044, %v3816
    %v4073 = vadd.f32 %v3045, %v3817
    %v4074 = vadd.f32 %v3046, %v3818
    %v4075 = vadd.f32 %v3047, %v3819
    %v4076 = vadd.f32 %v3048, %v3820
    %v4077 = vadd.f32 %v3049, %v3821
    %v4078 = vadd.f32 %v3050, %v3822
    %v4079 = vadd.f32 %v3051, %v3823
    %v4080 = vadd.f32 %v3052, %v3824
    %v4081 = vadd.f32 %v3053, %v3825
    %v4082 = vadd.f32 %v3054, %v3826
    %v4083 = vadd.f32 %v3055, %v3827
    %v4084 = vadd.f32 %v3056, %v3828
    %v4085 = vadd.f32 %v3057, %v3829
    %v4086 = vadd.f32 %v3058, %v3830
    %v4087 = vadd.f32 %v3059, %v3831
    %v4088 = vadd.f32 %v3060, %v3832
    %v4089 = vadd.f32 %v3061, %v3833
    %v4090 = vadd.f32 %v3062, %v3834
    %v4091 = vadd.f32 %v3063, %v3835
    %v4092 = vadd.f32 %v3064, %v3836
    %v4093 = vadd.f32 %v3065, %v3837
    %v4094 = vadd.f32 %v3066, %v3838
    %v4095 = vadd.f32 %v3067, %v3839
    %v4096 = vadd.f32 %v3068, %v3840
    %v4097 = vadd.f32 %v3069, %v3841
    %v4098 = vadd.f32 %v3070, %v3842
    %v4099 = vadd.f32 %v3071, %v3843
    %v4100 = vadd.f32 %v3072, %v3844
    %v4101 = vadd.f32 %v3073, %v3845
    %v4102 = vadd.f32 %v3074, %v3846
    %v4103 = vadd.f32 %v3075, %v3847
    %v4104 = vadd.f32 %v3076, %v3848
    %v4105 = vadd.f32 %v3077, %v3849
    %v4106 = vadd.f32 %v3078, %v3850
    %v4107 = vadd.f32 %v3079, %v3851
    %v4108 = vadd.f32 %v3080, %v3852
    %v4109 = vadd.f32 %v3081, %v3853
    %v4110 = vadd.f32 %v3082, %v3854
    %v4111 = vadd.f32 %v3083, %v3855
    %v4112 = vadd.f32 %v3084, %v3856
    %v4113 = vadd.f32 %v3085, %v3857
    %v4114 = vadd.f32 %v3086, %v3858
    %v4115 = vadd.f32 %v3087, %v3859
    %v4116 = vadd.f32 %v3088, %v3860
    %v4117 = vadd.f32 %v3089, %v3861
    %v4118 = vadd.f32 %v3090, %v3862
    %v4119 = vadd.f32 %v3091, %v3863
    %v4120 = vadd.f32 %v3092, %v3864
    %v4121 = vadd.f32 %v3093, %v3865
    %v4122 = vadd.f32 %v3094, %v3866
    %v4123 = vadd.f32 %v3095, %v3867
    %v4124 = vadd.f32 %v3096, %v3868
    %v4125 = vadd.f32 %v3097, %v3869
    %v4126 = vadd.f32 %v3098, %v3870
    %v4127 = vadd.f32 %v3099, %v3871
    %v4128 = vadd.f32 %v3100, %v3872
    %v4129 = vadd.f32 %v3101, %v3873
    %v4130 = vadd.f32 %v3102, %v3874
    %v4131 = vadd.f32 %v3103, %v3875
    %v4132 = vadd.f32 %v3104, %v3876
    %v4133 = vadd.f32 %v3105, %v3877
    %v4134 = vadd.f32 %v3106, %v3878
    %v4135 = vadd.f32 %v3107, %v3879
    %v4136 = vadd.f32 %v3108, %v3880
    %v4137 = vadd.f32 %v3109, %v3881
    %v4138 = vadd.f32 %v3110, %v3882
    %v4139 = vadd.f32 %v3111, %v3883
    %v4140 = vadd.f32 %v3112, %v3884
    %v4141 = vadd.f32 %v3113, %v3885
    %v4142 = vadd.f32 %v3114, %v3886
    %v4143 = vadd.f32 %v3115, %v3887
    %s4144 = sld [smem:[#allocation4 + $0x3]]
    %v4145 = vstv %s4144
    %v4146 = vmul.f32 %v4145, %v802
    %v4147 = vmul.f32 %v4145, %v803
    %v4148 = vmul.f32 %v4145, %v804
    %v4149 = vmul.f32 %v4145, %v805
    %v4150 = vmul.f32 %v4145, %v806
    %v4151 = vmul.f32 %v4145, %v807
    %v4152 = vmul.f32 %v4145, %v808
    %v4153 = vmul.f32 %v4145, %v809
    %v4154 = vmul.f32 %v4145, %v810
    %v4155 = vmul.f32 %v4145, %v811
    %v4156 = vmul.f32 %v4145, %v812
    %v4157 = vmul.f32 %v4145, %v813
    %v4158 = vmul.f32 %v4145, %v814
    %v4159 = vmul.f32 %v4145, %v815
    %v4160 = vmul.f32 %v4145, %v816
    %v4161 = vmul.f32 %v4145, %v817
    %v4162 = vmul.f32 %v4145, %v818
    %v4163 = vmul.f32 %v4145, %v819
    %v4164 = vmul.f32 %v4145, %v820
    %v4165 = vmul.f32 %v4145, %v821
    %v4166 = vmul.f32 %v4145, %v822
    %v4167 = vmul.f32 %v4145, %v823
    %v4168 = vmul.f32 %v4145, %v824
    %v4169 = vmul.f32 %v4145, %v825
    %v4170 = vmul.f32 %v4145, %v826
    %v4171 = vmul.f32 %v4145, %v827
    %v4172 = vmul.f32 %v4145, %v828
    %v4173 = vmul.f32 %v4145, %v829
    %v4174 = vmul.f32 %v4145, %v830
    %v4175 = vmul.f32 %v4145, %v831
    %v4176 = vmul.f32 %v4145, %v832
    %v4177 = vmul.f32 %v4145, %v833
    %v4178 = vmul.f32 %v4145, %v834
    %v4179 = vmul.f32 %v4145, %v835
    %v4180 = vmul.f32 %v4145, %v836
    %v4181 = vmul.f32 %v4145, %v837
    %v4182 = vmul.f32 %v4145, %v838
    %v4183 = vmul.f32 %v4145, %v839
    %v4184 = vmul.f32 %v4145, %v840
    %v4185 = vmul.f32 %v4145, %v841
    %v4186 = vmul.f32 %v4145, %v842
    %v4187 = vmul.f32 %v4145, %v843
    %v4188 = vmul.f32 %v4145, %v844
    %v4189 = vmul.f32 %v4145, %v845
    %v4190 = vmul.f32 %v4145, %v846
    %v4191 = vmul.f32 %v4145, %v847
    %v4192 = vmul.f32 %v4145, %v848
    %v4193 = vmul.f32 %v4145, %v849
    %v4194 = vmul.f32 %v4145, %v850
    %v4195 = vmul.f32 %v4145, %v851
    %v4196 = vmul.f32 %v4145, %v852
    %v4197 = vmul.f32 %v4145, %v853
    %v4198 = vmul.f32 %v4145, %v854
    %v4199 = vmul.f32 %v4145, %v855
    %v4200 = vmul.f32 %v4145, %v856
    %v4201 = vmul.f32 %v4145, %v857
    %v4202 = vmul.f32 %v4145, %v858
    %v4203 = vmul.f32 %v4145, %v859
    %v4204 = vmul.f32 %v4145, %v860
    %v4205 = vmul.f32 %v4145, %v861
    %v4206 = vmul.f32 %v4145, %v862
    %v4207 = vmul.f32 %v4145, %v863
    %v4208 = vmul.f32 %v4145, %v864
    %v4209 = vmul.f32 %v4145, %v865
    %v4210 = vmul.f32 %v4145, %v866
    %v4211 = vmul.f32 %v4145, %v867
    %v4212 = vmul.f32 %v4145, %v868
    %v4213 = vmul.f32 %v4145, %v869
    %v4214 = vmul.f32 %v4145, %v870
    %v4215 = vmul.f32 %v4145, %v871
    %v4216 = vmul.f32 %v4145, %v872
    %v4217 = vmul.f32 %v4145, %v873
    %v4218 = vmul.f32 %v4145, %v874
    %v4219 = vmul.f32 %v4145, %v875
    %v4220 = vmul.f32 %v4145, %v876
    %v4221 = vmul.f32 %v4145, %v877
    %v4222 = vmul.f32 %v4145, %v878
    %v4223 = vmul.f32 %v4145, %v879
    %v4224 = vmul.f32 %v4145, %v880
    %v4225 = vmul.f32 %v4145, %v881
    %v4226 = vmul.f32 %v4145, %v882
    %v4227 = vmul.f32 %v4145, %v883
    %v4228 = vmul.f32 %v4145, %v884
    %v4229 = vmul.f32 %v4145, %v885
    %v4230 = vmul.f32 %v4145, %v886
    %v4231 = vmul.f32 %v4145, %v887
    %v4232 = vmul.f32 %v4145, %v888
    %v4233 = vmul.f32 %v4145, %v889
    %v4234 = vmul.f32 %v4145, %v890
    %v4235 = vmul.f32 %v4145, %v891
    %v4236 = vmul.f32 %v4145, %v892
    %v4237 = vmul.f32 %v4145, %v893
    %v4238 = vmul.f32 %v4145, %v894
    %v4239 = vmul.f32 %v4145, %v895
    %v4240 = vmul.f32 %v4145, %v896
    %v4241 = vmul.f32 %v4145, %v897
    %v4242 = vmul.f32 %v4145, %v898
    %v4243 = vmul.f32 %v4145, %v899
    %v4244 = vmul.f32 %v4145, %v900
    %v4245 = vmul.f32 %v4145, %v901
    %v4246 = vmul.f32 %v4145, %v902
    %v4247 = vmul.f32 %v4145, %v903
    %v4248 = vmul.f32 %v4145, %v904
    %v4249 = vmul.f32 %v4145, %v905
    %v4250 = vmul.f32 %v4145, %v906
    %v4251 = vmul.f32 %v4145, %v907
    %v4252 = vmul.f32 %v4145, %v908
    %v4253 = vmul.f32 %v4145, %v909
    %v4254 = vmul.f32 %v4145, %v910
    %v4255 = vmul.f32 %v4145, %v911
    %v4256 = vmul.f32 %v4145, %v912
    %v4257 = vmul.f32 %v4145, %v913
    %v4258 = vmul.f32 %v4145, %v914
    %v4259 = vmul.f32 %v4145, %v915
    %v4260 = vmul.f32 %v4145, %v916
    %v4261 = vmul.f32 %v4145, %v917
    %v4262 = vmul.f32 %v4145, %v918
    %v4263 = vmul.f32 %v4145, %v919
    %v4264 = vmul.f32 %v4145, %v920
    %v4265 = vmul.f32 %v4145, %v921
    %v4266 = vmul.f32 %v4145, %v922
    %v4267 = vmul.f32 %v4145, %v923
    %v4268 = vmul.f32 %v4145, %v924
    %v4269 = vmul.f32 %v4145, %v925
    %v4270 = vmul.f32 %v4145, %v926
    %v4271 = vmul.f32 %v4145, %v927
    %v4272 = vmul.f32 %v4145, %v928
    %v4273 = vmul.f32 %v4145, %v929
    %v4274 = vmul.f32 %v4145, %v930
    %v4275 = vmul.f32 %v4145, %v931
    %v4276 = vmul.f32 %v4145, %v932
    %v4277 = vmul.f32 %v4145, %v933
    %v4278 = vmul.f32 %v4145, %v934
    %v4279 = vmul.f32 %v4145, %v935
    %v4280 = vmul.f32 %v4145, %v936
    %v4281 = vmul.f32 %v4145, %v937
    %v4282 = vmul.f32 %v4145, %v938
    %v4283 = vmul.f32 %v4145, %v939
    %v4284 = vmul.f32 %v4145, %v940
    %v4285 = vmul.f32 %v4145, %v941
    %v4286 = vmul.f32 %v4145, %v942
    %v4287 = vmul.f32 %v4145, %v943
    %v4288 = vmul.f32 %v4145, %v944
    %v4289 = vmul.f32 %v4145, %v945
    %v4290 = vmul.f32 %v4145, %v946
    %v4291 = vmul.f32 %v4145, %v947
    %v4292 = vmul.f32 %v4145, %v948
    %v4293 = vmul.f32 %v4145, %v949
    %v4294 = vmul.f32 %v4145, %v950
    %v4295 = vmul.f32 %v4145, %v951
    %v4296 = vmul.f32 %v4145, %v952
    %v4297 = vmul.f32 %v4145, %v953
    %v4298 = vmul.f32 %v4145, %v954
    %v4299 = vmul.f32 %v4145, %v955
    %v4300 = vmul.f32 %v4145, %v956
    %v4301 = vmul.f32 %v4145, %v957
    %v4302 = vmul.f32 %v4145, %v958
    %v4303 = vmul.f32 %v4145, %v959
    %v4304 = vmul.f32 %v4145, %v960
    %v4305 = vmul.f32 %v4145, %v961
    %v4306 = vmul.f32 %v4145, %v962
    %v4307 = vmul.f32 %v4145, %v963
    %v4308 = vmul.f32 %v4145, %v964
    %v4309 = vmul.f32 %v4145, %v965
    %v4310 = vmul.f32 %v4145, %v966
    %v4311 = vmul.f32 %v4145, %v967
    %v4312 = vmul.f32 %v4145, %v968
    %v4313 = vmul.f32 %v4145, %v969
    %v4314 = vmul.f32 %v4145, %v970
    %v4315 = vmul.f32 %v4145, %v971
    %v4316 = vmul.f32 %v4145, %v972
    %v4317 = vmul.f32 %v4145, %v973
    %v4318 = vmul.f32 %v4145, %v974
    %v4319 = vmul.f32 %v4145, %v975
    %v4320 = vmul.f32 %v4145, %v976
    %v4321 = vmul.f32 %v4145, %v977
    %v4322 = vmul.f32 %v4145, %v978
    %v4323 = vmul.f32 %v4145, %v979
    %v4324 = vmul.f32 %v4145, %v980
    %v4325 = vmul.f32 %v4145, %v981
    %v4326 = vmul.f32 %v4145, %v982
    %v4327 = vmul.f32 %v4145, %v983
    %v4328 = vmul.f32 %v4145, %v984
    %v4329 = vmul.f32 %v4145, %v985
    %v4330 = vmul.f32 %v4145, %v986
    %v4331 = vmul.f32 %v4145, %v987
    %v4332 = vmul.f32 %v4145, %v988
    %v4333 = vmul.f32 %v4145, %v989
    %v4334 = vmul.f32 %v4145, %v990
    %v4335 = vmul.f32 %v4145, %v991
    %v4336 = vmul.f32 %v4145, %v992
    %v4337 = vmul.f32 %v4145, %v993
    %v4338 = vmul.f32 %v4145, %v994
    %v4339 = vmul.f32 %v4145, %v995
    %v4340 = vmul.f32 %v4145, %v996
    %v4341 = vmul.f32 %v4145, %v997
    %v4342 = vmul.f32 %v4145, %v998
    %v4343 = vmul.f32 %v4145, %v999
    %v4344 = vmul.f32 %v4145, %v1000
    %v4345 = vmul.f32 %v4145, %v1001
    %v4346 = vmul.f32 %v4145, %v1002
    %v4347 = vmul.f32 %v4145, %v1003
    %v4348 = vmul.f32 %v4145, %v1004
    %v4349 = vmul.f32 %v4145, %v1005
    %v4350 = vmul.f32 %v4145, %v1006
    %v4351 = vmul.f32 %v4145, %v1007
    %v4352 = vmul.f32 %v4145, %v1008
    %v4353 = vmul.f32 %v4145, %v1009
    %v4354 = vmul.f32 %v4145, %v1010
    %v4355 = vmul.f32 %v4145, %v1011
    %v4356 = vmul.f32 %v4145, %v1012
    %v4357 = vmul.f32 %v4145, %v1013
    %v4358 = vmul.f32 %v4145, %v1014
    %v4359 = vmul.f32 %v4145, %v1015
    %v4360 = vmul.f32 %v4145, %v1016
    %v4361 = vmul.f32 %v4145, %v1017
    %v4362 = vmul.f32 %v4145, %v1018
    %v4363 = vmul.f32 %v4145, %v1019
    %v4364 = vmul.f32 %v4145, %v1020
    %v4365 = vmul.f32 %v4145, %v1021
    %v4366 = vmul.f32 %v4145, %v1022
    %v4367 = vmul.f32 %v4145, %v1023
    %v4368 = vmul.f32 %v4145, %v1024
    %v4369 = vmul.f32 %v4145, %v1025
    %v4370 = vmul.f32 %v4145, %v1026
    %v4371 = vmul.f32 %v4145, %v1027
    %v4372 = vmul.f32 %v4145, %v1028
    %v4373 = vmul.f32 %v4145, %v1029
    %v4374 = vmul.f32 %v4145, %v1030
    %v4375 = vmul.f32 %v4145, %v1031
    %v4376 = vmul.f32 %v4145, %v1032
    %v4377 = vmul.f32 %v4145, %v1033
    %v4378 = vmul.f32 %v4145, %v1034
    %v4379 = vmul.f32 %v4145, %v1035
    %v4380 = vmul.f32 %v4145, %v1036
    %v4381 = vmul.f32 %v4145, %v1037
    %v4382 = vmul.f32 %v4145, %v1038
    %v4383 = vmul.f32 %v4145, %v1039
    %v4384 = vmul.f32 %v4145, %v1040
    %v4385 = vmul.f32 %v4145, %v1041
    %v4386 = vmul.f32 %v4145, %v1042
    %v4387 = vmul.f32 %v4145, %v1043
    %v4388 = vmul.f32 %v4145, %v1044
    %v4389 = vmul.f32 %v4145, %v1045
    %v4390 = vmul.f32 %v4145, %v1046
    %v4391 = vmul.f32 %v4145, %v1047
    %v4392 = vmul.f32 %v4145, %v1048
    %v4393 = vmul.f32 %v4145, %v1049
    %v4394 = vmul.f32 %v4145, %v1050
    %v4395 = vmul.f32 %v4145, %v1051
    %v4396 = vmul.f32 %v4145, %v1052
    %v4397 = vmul.f32 %v4145, %v1053
    %v4398 = vmul.f32 %v4145, %v1054
    %v4399 = vmul.f32 %v4145, %v1055
    %v4400 = vmul.f32 %v4145, %v1056
    %v4401 = vmul.f32 %v4145, %v1057
    %v4402 = vadd.f32 %v3374, %v4146
    %v4403 = vadd.f32 %v3375, %v4147
    %v4404 = vadd.f32 %v3376, %v4148
    %v4405 = vadd.f32 %v3377, %v4149
    %v4406 = vadd.f32 %v3378, %v4150
    %v4407 = vadd.f32 %v3379, %v4151
    %v4408 = vadd.f32 %v3380, %v4152
    %v4409 = vadd.f32 %v3381, %v4153
    %v4410 = vadd.f32 %v3382, %v4154
    %v4411 = vadd.f32 %v3383, %v4155
    %v4412 = vadd.f32 %v3384, %v4156
    %v4413 = vadd.f32 %v3385, %v4157
    %v4414 = vadd.f32 %v3386, %v4158
    %v4415 = vadd.f32 %v3387, %v4159
    %v4416 = vadd.f32 %v3388, %v4160
    %v4417 = vadd.f32 %v3389, %v4161
    %v4418 = vadd.f32 %v3390, %v4162
    %v4419 = vadd.f32 %v3391, %v4163
    %v4420 = vadd.f32 %v3392, %v4164
    %v4421 = vadd.f32 %v3393, %v4165
    %v4422 = vadd.f32 %v3394, %v4166
    %v4423 = vadd.f32 %v3395, %v4167
    %v4424 = vadd.f32 %v3396, %v4168
    %v4425 = vadd.f32 %v3397, %v4169
    %v4426 = vadd.f32 %v3398, %v4170
    %v4427 = vadd.f32 %v3399, %v4171
    %v4428 = vadd.f32 %v3400, %v4172
    %v4429 = vadd.f32 %v3401, %v4173
    %v4430 = vadd.f32 %v3402, %v4174
    %v4431 = vadd.f32 %v3403, %v4175
    %v4432 = vadd.f32 %v3404, %v4176
    %v4433 = vadd.f32 %v3405, %v4177
    %v4434 = vadd.f32 %v3406, %v4178
    %v4435 = vadd.f32 %v3407, %v4179
    %v4436 = vadd.f32 %v3408, %v4180
    %v4437 = vadd.f32 %v3409, %v4181
    %v4438 = vadd.f32 %v3410, %v4182
    %v4439 = vadd.f32 %v3411, %v4183
    %v4440 = vadd.f32 %v3412, %v4184
    %v4441 = vadd.f32 %v3413, %v4185
    %v4442 = vadd.f32 %v3414, %v4186
    %v4443 = vadd.f32 %v3415, %v4187
    %v4444 = vadd.f32 %v3416, %v4188
    %v4445 = vadd.f32 %v3417, %v4189
    %v4446 = vadd.f32 %v3418, %v4190
    %v4447 = vadd.f32 %v3419, %v4191
    %v4448 = vadd.f32 %v3420, %v4192
    %v4449 = vadd.f32 %v3421, %v4193
    %v4450 = vadd.f32 %v3422, %v4194
    %v4451 = vadd.f32 %v3423, %v4195
    %v4452 = vadd.f32 %v3424, %v4196
    %v4453 = vadd.f32 %v3425, %v4197
    %v4454 = vadd.f32 %v3426, %v4198
    %v4455 = vadd.f32 %v3427, %v4199
    %v4456 = vadd.f32 %v3428, %v4200
    %v4457 = vadd.f32 %v3429, %v4201
    %v4458 = vadd.f32 %v3430, %v4202
    %v4459 = vadd.f32 %v3431, %v4203
    %v4460 = vadd.f32 %v3432, %v4204
    %v4461 = vadd.f32 %v3433, %v4205
    %v4462 = vadd.f32 %v3434, %v4206
    %v4463 = vadd.f32 %v3435, %v4207
    %v4464 = vadd.f32 %v3436, %v4208
    %v4465 = vadd.f32 %v3437, %v4209
    %v4466 = vadd.f32 %v3438, %v4210
    %v4467 = vadd.f32 %v3439, %v4211
    %v4468 = vadd.f32 %v3440, %v4212
    %v4469 = vadd.f32 %v3441, %v4213
    %v4470 = vadd.f32 %v3442, %v4214
    %v4471 = vadd.f32 %v3443, %v4215
    %v4472 = vadd.f32 %v3444, %v4216
    %v4473 = vadd.f32 %v3445, %v4217
    %v4474 = vadd.f32 %v3446, %v4218
    %v4475 = vadd.f32 %v3447, %v4219
    %v4476 = vadd.f32 %v3448, %v4220
    %v4477 = vadd.f32 %v3449, %v4221
    %v4478 = vadd.f32 %v3450, %v4222
    %v4479 = vadd.f32 %v3451, %v4223
    %v4480 = vadd.f32 %v3452, %v4224
    %v4481 = vadd.f32 %v3453, %v4225
    %v4482 = vadd.f32 %v3454, %v4226
    %v4483 = vadd.f32 %v3455, %v4227
    %v4484 = vadd.f32 %v3456, %v4228
    %v4485 = vadd.f32 %v3457, %v4229
    %v4486 = vadd.f32 %v3458, %v4230
    %v4487 = vadd.f32 %v3459, %v4231
    %v4488 = vadd.f32 %v3460, %v4232
    %v4489 = vadd.f32 %v3461, %v4233
    %v4490 = vadd.f32 %v3462, %v4234
    %v4491 = vadd.f32 %v3463, %v4235
    %v4492 = vadd.f32 %v3464, %v4236
    %v4493 = vadd.f32 %v3465, %v4237
    %v4494 = vadd.f32 %v3466, %v4238
    %v4495 = vadd.f32 %v3467, %v4239
    %v4496 = vadd.f32 %v3468, %v4240
    %v4497 = vadd.f32 %v3469, %v4241
    %v4498 = vadd.f32 %v3470, %v4242
    %v4499 = vadd.f32 %v3471, %v4243
    %v4500 = vadd.f32 %v3472, %v4244
    %v4501 = vadd.f32 %v3473, %v4245
    %v4502 = vadd.f32 %v3474, %v4246
    %v4503 = vadd.f32 %v3475, %v4247
    %v4504 = vadd.f32 %v3476, %v4248
    %v4505 = vadd.f32 %v3477, %v4249
    %v4506 = vadd.f32 %v3478, %v4250
    %v4507 = vadd.f32 %v3479, %v4251
    %v4508 = vadd.f32 %v3480, %v4252
    %v4509 = vadd.f32 %v3481, %v4253
    %v4510 = vadd.f32 %v3482, %v4254
    %v4511 = vadd.f32 %v3483, %v4255
    %v4512 = vadd.f32 %v3484, %v4256
    %v4513 = vadd.f32 %v3485, %v4257
    %v4514 = vadd.f32 %v3486, %v4258
    %v4515 = vadd.f32 %v3487, %v4259
    %v4516 = vadd.f32 %v3488, %v4260
    %v4517 = vadd.f32 %v3489, %v4261
    %v4518 = vadd.f32 %v3490, %v4262
    %v4519 = vadd.f32 %v3491, %v4263
    %v4520 = vadd.f32 %v3492, %v4264
    %v4521 = vadd.f32 %v3493, %v4265
    %v4522 = vadd.f32 %v3494, %v4266
    %v4523 = vadd.f32 %v3495, %v4267
    %v4524 = vadd.f32 %v3496, %v4268
    %v4525 = vadd.f32 %v3497, %v4269
    %v4526 = vadd.f32 %v3498, %v4270
    %v4527 = vadd.f32 %v3499, %v4271
    %v4528 = vadd.f32 %v3500, %v4272
    %v4529 = vadd.f32 %v3501, %v4273
    %v4530 = vadd.f32 %v3502, %v4274
    %v4531 = vadd.f32 %v3503, %v4275
    %v4532 = vadd.f32 %v3504, %v4276
    %v4533 = vadd.f32 %v3505, %v4277
    %v4534 = vadd.f32 %v3506, %v4278
    %v4535 = vadd.f32 %v3507, %v4279
    %v4536 = vadd.f32 %v3508, %v4280
    %v4537 = vadd.f32 %v3509, %v4281
    %v4538 = vadd.f32 %v3510, %v4282
    %v4539 = vadd.f32 %v3511, %v4283
    %v4540 = vadd.f32 %v3512, %v4284
    %v4541 = vadd.f32 %v3513, %v4285
    %v4542 = vadd.f32 %v3514, %v4286
    %v4543 = vadd.f32 %v3515, %v4287
    %v4544 = vadd.f32 %v3516, %v4288
    %v4545 = vadd.f32 %v3517, %v4289
    %v4546 = vadd.f32 %v3518, %v4290
    %v4547 = vadd.f32 %v3519, %v4291
    %v4548 = vadd.f32 %v3520, %v4292
    %v4549 = vadd.f32 %v3521, %v4293
    %v4550 = vadd.f32 %v3522, %v4294
    %v4551 = vadd.f32 %v3523, %v4295
    %v4552 = vadd.f32 %v3524, %v4296
    %v4553 = vadd.f32 %v3525, %v4297
    %v4554 = vadd.f32 %v3526, %v4298
    %v4555 = vadd.f32 %v3527, %v4299
    %v4556 = vadd.f32 %v3528, %v4300
    %v4557 = vadd.f32 %v3529, %v4301
    %v4558 = vadd.f32 %v3530, %v4302
    %v4559 = vadd.f32 %v3531, %v4303
    %v4560 = vadd.f32 %v3532, %v4304
    %v4561 = vadd.f32 %v3533, %v4305
    %v4562 = vadd.f32 %v3534, %v4306
    %v4563 = vadd.f32 %v3535, %v4307
    %v4564 = vadd.f32 %v3536, %v4308
    %v4565 = vadd.f32 %v3537, %v4309
    %v4566 = vadd.f32 %v3538, %v4310
    %v4567 = vadd.f32 %v3539, %v4311
    %v4568 = vadd.f32 %v3540, %v4312
    %v4569 = vadd.f32 %v3541, %v4313
    %v4570 = vadd.f32 %v3542, %v4314
    %v4571 = vadd.f32 %v3543, %v4315
    %v4572 = vadd.f32 %v3544, %v4316
    %v4573 = vadd.f32 %v3545, %v4317
    %v4574 = vadd.f32 %v3546, %v4318
    %v4575 = vadd.f32 %v3547, %v4319
    %v4576 = vadd.f32 %v3548, %v4320
    %v4577 = vadd.f32 %v3549, %v4321
    %v4578 = vadd.f32 %v3550, %v4322
    %v4579 = vadd.f32 %v3551, %v4323
    %v4580 = vadd.f32 %v3552, %v4324
    %v4581 = vadd.f32 %v3553, %v4325
    %v4582 = vadd.f32 %v3554, %v4326
    %v4583 = vadd.f32 %v3555, %v4327
    %v4584 = vadd.f32 %v3556, %v4328
    %v4585 = vadd.f32 %v3557, %v4329
    %v4586 = vadd.f32 %v3558, %v4330
    %v4587 = vadd.f32 %v3559, %v4331
    %v4588 = vadd.f32 %v3560, %v4332
    %v4589 = vadd.f32 %v3561, %v4333
    %v4590 = vadd.f32 %v3562, %v4334
    %v4591 = vadd.f32 %v3563, %v4335
    %v4592 = vadd.f32 %v3564, %v4336
    %v4593 = vadd.f32 %v3565, %v4337
    %v4594 = vadd.f32 %v3566, %v4338
    %v4595 = vadd.f32 %v3567, %v4339
    %v4596 = vadd.f32 %v3568, %v4340
    %v4597 = vadd.f32 %v3569, %v4341
    %v4598 = vadd.f32 %v3570, %v4342
    %v4599 = vadd.f32 %v3571, %v4343
    %v4600 = vadd.f32 %v3572, %v4344
    %v4601 = vadd.f32 %v3573, %v4345
    %v4602 = vadd.f32 %v3574, %v4346
    %v4603 = vadd.f32 %v3575, %v4347
    %v4604 = vadd.f32 %v3576, %v4348
    %v4605 = vadd.f32 %v3577, %v4349
    %v4606 = vadd.f32 %v3578, %v4350
    %v4607 = vadd.f32 %v3579, %v4351
    %v4608 = vadd.f32 %v3580, %v4352
    %v4609 = vadd.f32 %v3581, %v4353
    %v4610 = vadd.f32 %v3582, %v4354
    %v4611 = vadd.f32 %v3583, %v4355
    %v4612 = vadd.f32 %v3584, %v4356
    %v4613 = vadd.f32 %v3585, %v4357
    %v4614 = vadd.f32 %v3586, %v4358
    %v4615 = vadd.f32 %v3587, %v4359
    %v4616 = vadd.f32 %v3588, %v4360
    %v4617 = vadd.f32 %v3589, %v4361
    %v4618 = vadd.f32 %v3590, %v4362
    %v4619 = vadd.f32 %v3591, %v4363
    %v4620 = vadd.f32 %v3592, %v4364
    %v4621 = vadd.f32 %v3593, %v4365
    %v4622 = vadd.f32 %v3594, %v4366
    %v4623 = vadd.f32 %v3595, %v4367
    %v4624 = vadd.f32 %v3596, %v4368
    %v4625 = vadd.f32 %v3597, %v4369
    %v4626 = vadd.f32 %v3598, %v4370
    %v4627 = vadd.f32 %v3599, %v4371
    %v4628 = vadd.f32 %v3600, %v4372
    %v4629 = vadd.f32 %v3601, %v4373
    %v4630 = vadd.f32 %v3602, %v4374
    %v4631 = vadd.f32 %v3603, %v4375
    %v4632 = vadd.f32 %v3604, %v4376
    %v4633 = vadd.f32 %v3605, %v4377
    %v4634 = vadd.f32 %v3606, %v4378
    %v4635 = vadd.f32 %v3607, %v4379
    %v4636 = vadd.f32 %v3608, %v4380
    %v4637 = vadd.f32 %v3609, %v4381
    %v4638 = vadd.f32 %v3610, %v4382
    %v4639 = vadd.f32 %v3611, %v4383
    %v4640 = vadd.f32 %v3612, %v4384
    %v4641 = vadd.f32 %v3613, %v4385
    %v4642 = vadd.f32 %v3614, %v4386
    %v4643 = vadd.f32 %v3615, %v4387
    %v4644 = vadd.f32 %v3616, %v4388
    %v4645 = vadd.f32 %v3617, %v4389
    %v4646 = vadd.f32 %v3618, %v4390
    %v4647 = vadd.f32 %v3619, %v4391
    %v4648 = vadd.f32 %v3620, %v4392
    %v4649 = vadd.f32 %v3621, %v4393
    %v4650 = vadd.f32 %v3622, %v4394
    %v4651 = vadd.f32 %v3623, %v4395
    %v4652 = vadd.f32 %v3624, %v4396
    %v4653 = vadd.f32 %v3625, %v4397
    %v4654 = vadd.f32 %v3626, %v4398
    %v4655 = vadd.f32 %v3627, %v4399
    %v4656 = vadd.f32 %v3628, %v4400
    %v4657 = vadd.f32 %v3629, %v4401
    %v4658 = vpack.c.bf16 %v3892, %v3888
    %v4659 = vpack.c.bf16 %v3893, %v3889
    %v4660 = vpack.c.bf16 %v3894, %v3890
    %v4661 = vpack.c.bf16 %v3895, %v3891
    %v4662 = vpack.c.bf16 %v3900, %v3896
    %v4663 = vpack.c.bf16 %v3901, %v3897
    %v4664 = vpack.c.bf16 %v3902, %v3898
    %v4665 = vpack.c.bf16 %v3903, %v3899
    %v4666 = vpack.c.bf16 %v3908, %v3904
    %v4667 = vpack.c.bf16 %v3909, %v3905
    %v4668 = vpack.c.bf16 %v3910, %v3906
    %v4669 = vpack.c.bf16 %v3911, %v3907
    %v4670 = vpack.c.bf16 %v3916, %v3912
    %v4671 = vpack.c.bf16 %v3917, %v3913
    %v4672 = vpack.c.bf16 %v3918, %v3914
    %v4673 = vpack.c.bf16 %v3919, %v3915
    %v4674 = vpack.c.bf16 %v3924, %v3920
    %v4675 = vpack.c.bf16 %v3925, %v3921
    %v4676 = vpack.c.bf16 %v3926, %v3922
    %v4677 = vpack.c.bf16 %v3927, %v3923
    %v4678 = vpack.c.bf16 %v3932, %v3928
    %v4679 = vpack.c.bf16 %v3933, %v3929
    %v4680 = vpack.c.bf16 %v3934, %v3930
    %v4681 = vpack.c.bf16 %v3935, %v3931
    %v4682 = vpack.c.bf16 %v3940, %v3936
    %v4683 = vpack.c.bf16 %v3941, %v3937
    %v4684 = vpack.c.bf16 %v3942, %v3938
    %v4685 = vpack.c.bf16 %v3943, %v3939
    %v4686 = vpack.c.bf16 %v3948, %v3944
    %v4687 = vpack.c.bf16 %v3949, %v3945
    %v4688 = vpack.c.bf16 %v3950, %v3946
    %v4689 = vpack.c.bf16 %v3951, %v3947
    %v4690 = vpack.c.bf16 %v3956, %v3952
    %v4691 = vpack.c.bf16 %v3957, %v3953
    %v4692 = vpack.c.bf16 %v3958, %v3954
    %v4693 = vpack.c.bf16 %v3959, %v3955
    %v4694 = vpack.c.bf16 %v3964, %v3960
    %v4695 = vpack.c.bf16 %v3965, %v3961
    %v4696 = vpack.c.bf16 %v3966, %v3962
    %v4697 = vpack.c.bf16 %v3967, %v3963
    %v4698 = vpack.c.bf16 %v3972, %v3968
    %v4699 = vpack.c.bf16 %v3973, %v3969
    %v4700 = vpack.c.bf16 %v3974, %v3970
    %v4701 = vpack.c.bf16 %v3975, %v3971
    %v4702 = vpack.c.bf16 %v3980, %v3976
    %v4703 = vpack.c.bf16 %v3981, %v3977
    %v4704 = vpack.c.bf16 %v3982, %v3978
    %v4705 = vpack.c.bf16 %v3983, %v3979
    %v4706 = vpack.c.bf16 %v3988, %v3984
    %v4707 = vpack.c.bf16 %v3989, %v3985
    %v4708 = vpack.c.bf16 %v3990, %v3986
    %v4709 = vpack.c.bf16 %v3991, %v3987
    %v4710 = vpack.c.bf16 %v3996, %v3992
    %v4711 = vpack.c.bf16 %v3997, %v3993
    %v4712 = vpack.c.bf16 %v3998, %v3994
    %v4713 = vpack.c.bf16 %v3999, %v3995
    %v4714 = vpack.c.bf16 %v4004, %v4000
    %v4715 = vpack.c.bf16 %v4005, %v4001
    %v4716 = vpack.c.bf16 %v4006, %v4002
    %v4717 = vpack.c.bf16 %v4007, %v4003
    %v4718 = vpack.c.bf16 %v4012, %v4008
    %v4719 = vpack.c.bf16 %v4013, %v4009
    %v4720 = vpack.c.bf16 %v4014, %v4010
    %v4721 = vpack.c.bf16 %v4015, %v4011
    %v4722 = vpack.c.bf16 %v4020, %v4016
    %v4723 = vpack.c.bf16 %v4021, %v4017
    %v4724 = vpack.c.bf16 %v4022, %v4018
    %v4725 = vpack.c.bf16 %v4023, %v4019
    %v4726 = vpack.c.bf16 %v4028, %v4024
    %v4727 = vpack.c.bf16 %v4029, %v4025
    %v4728 = vpack.c.bf16 %v4030, %v4026
    %v4729 = vpack.c.bf16 %v4031, %v4027
    %v4730 = vpack.c.bf16 %v4036, %v4032
    %v4731 = vpack.c.bf16 %v4037, %v4033
    %v4732 = vpack.c.bf16 %v4038, %v4034
    %v4733 = vpack.c.bf16 %v4039, %v4035
    %v4734 = vpack.c.bf16 %v4044, %v4040
    %v4735 = vpack.c.bf16 %v4045, %v4041
    %v4736 = vpack.c.bf16 %v4046, %v4042
    %v4737 = vpack.c.bf16 %v4047, %v4043
    %v4738 = vpack.c.bf16 %v4052, %v4048
    %v4739 = vpack.c.bf16 %v4053, %v4049
    %v4740 = vpack.c.bf16 %v4054, %v4050
    %v4741 = vpack.c.bf16 %v4055, %v4051
    %v4742 = vpack.c.bf16 %v4060, %v4056
    %v4743 = vpack.c.bf16 %v4061, %v4057
    %v4744 = vpack.c.bf16 %v4062, %v4058
    %v4745 = vpack.c.bf16 %v4063, %v4059
    %v4746 = vpack.c.bf16 %v4068, %v4064
    %v4747 = vpack.c.bf16 %v4069, %v4065
    %v4748 = vpack.c.bf16 %v4070, %v4066
    %v4749 = vpack.c.bf16 %v4071, %v4067
    %v4750 = vpack.c.bf16 %v4076, %v4072
    %v4751 = vpack.c.bf16 %v4077, %v4073
    %v4752 = vpack.c.bf16 %v4078, %v4074
    %v4753 = vpack.c.bf16 %v4079, %v4075
    %v4754 = vpack.c.bf16 %v4084, %v4080
    %v4755 = vpack.c.bf16 %v4085, %v4081
    %v4756 = vpack.c.bf16 %v4086, %v4082
    %v4757 = vpack.c.bf16 %v4087, %v4083
    %v4758 = vpack.c.bf16 %v4092, %v4088
    %v4759 = vpack.c.bf16 %v4093, %v4089
    %v4760 = vpack.c.bf16 %v4094, %v4090
    %v4761 = vpack.c.bf16 %v4095, %v4091
    %v4762 = vpack.c.bf16 %v4100, %v4096
    %v4763 = vpack.c.bf16 %v4101, %v4097
    %v4764 = vpack.c.bf16 %v4102, %v4098
    %v4765 = vpack.c.bf16 %v4103, %v4099
    %v4766 = vpack.c.bf16 %v4108, %v4104
    %v4767 = vpack.c.bf16 %v4109, %v4105
    %v4768 = vpack.c.bf16 %v4110, %v4106
    %v4769 = vpack.c.bf16 %v4111, %v4107
    %v4770 = vpack.c.bf16 %v4116, %v4112
    %v4771 = vpack.c.bf16 %v4117, %v4113
    %v4772 = vpack.c.bf16 %v4118, %v4114
    %v4773 = vpack.c.bf16 %v4119, %v4115
    %v4774 = vpack.c.bf16 %v4124, %v4120
    %v4775 = vpack.c.bf16 %v4125, %v4121
    %v4776 = vpack.c.bf16 %v4126, %v4122
    %v4777 = vpack.c.bf16 %v4127, %v4123
    %v4778 = vpack.c.bf16 %v4132, %v4128
    %v4779 = vpack.c.bf16 %v4133, %v4129
    %v4780 = vpack.c.bf16 %v4134, %v4130
    %v4781 = vpack.c.bf16 %v4135, %v4131
    %v4782 = vpack.c.bf16 %v4140, %v4136
    %v4783 = vpack.c.bf16 %v4141, %v4137
    %v4784 = vpack.c.bf16 %v4142, %v4138
    %v4785 = vpack.c.bf16 %v4143, %v4139
    %v4914 = vunpack.c.l.b16 %v4658
    %v4915 = vunpack.c.l.b16 %v4659
    %v4916 = vunpack.c.l.b16 %v4660
    %v4917 = vunpack.c.l.b16 %v4661
    %v4918 = vunpack.c.h.b16 %v4658
    %v4919 = vunpack.c.h.b16 %v4659
    %v4920 = vunpack.c.h.b16 %v4660
    %v4921 = vunpack.c.h.b16 %v4661
    %v4922 = vunpack.c.l.b16 %v4662
    %v4923 = vunpack.c.l.b16 %v4663
    %v4924 = vunpack.c.l.b16 %v4664
    %v4925 = vunpack.c.l.b16 %v4665
    %v4926 = vunpack.c.h.b16 %v4662
    %v4927 = vunpack.c.h.b16 %v4663
    %v4928 = vunpack.c.h.b16 %v4664
    %v4929 = vunpack.c.h.b16 %v4665
    %v4930 = vunpack.c.l.b16 %v4666
    %v4931 = vunpack.c.l.b16 %v4667
    %v4932 = vunpack.c.l.b16 %v4668
    %v4933 = vunpack.c.l.b16 %v4669
    %v4934 = vunpack.c.h.b16 %v4666
    %v4935 = vunpack.c.h.b16 %v4667
    %v4936 = vunpack.c.h.b16 %v4668
    %v4937 = vunpack.c.h.b16 %v4669
    %v4938 = vunpack.c.l.b16 %v4670
    %v4939 = vunpack.c.l.b16 %v4671
    %v4940 = vunpack.c.l.b16 %v4672
    %v4941 = vunpack.c.l.b16 %v4673
    %v4942 = vunpack.c.h.b16 %v4670
    %v4943 = vunpack.c.h.b16 %v4671
    %v4944 = vunpack.c.h.b16 %v4672
    %v4945 = vunpack.c.h.b16 %v4673
    %v4946 = vunpack.c.l.b16 %v4674
    %v4947 = vunpack.c.l.b16 %v4675
    %v4948 = vunpack.c.l.b16 %v4676
    %v4949 = vunpack.c.l.b16 %v4677
    %v4950 = vunpack.c.h.b16 %v4674
    %v4951 = vunpack.c.h.b16 %v4675
    %v4952 = vunpack.c.h.b16 %v4676
    %v4953 = vunpack.c.h.b16 %v4677
    %v4954 = vunpack.c.l.b16 %v4678
    %v4955 = vunpack.c.l.b16 %v4679
    %v4956 = vunpack.c.l.b16 %v4680
    %v4957 = vunpack.c.l.b16 %v4681
    %v4958 = vunpack.c.h.b16 %v4678
    %v4959 = vunpack.c.h.b16 %v4679
    %v4960 = vunpack.c.h.b16 %v4680
    %v4961 = vunpack.c.h.b16 %v4681
    %v4962 = vunpack.c.l.b16 %v4682
    %v4963 = vunpack.c.l.b16 %v4683
    %v4964 = vunpack.c.l.b16 %v4684
    %v4965 = vunpack.c.l.b16 %v4685
    %v4966 = vunpack.c.h.b16 %v4682
    %v4967 = vunpack.c.h.b16 %v4683
    %v4968 = vunpack.c.h.b16 %v4684
    %v4969 = vunpack.c.h.b16 %v4685
    %v4970 = vunpack.c.l.b16 %v4686
    %v4971 = vunpack.c.l.b16 %v4687
    %v4972 = vunpack.c.l.b16 %v4688
    %v4973 = vunpack.c.l.b16 %v4689
    %v4974 = vunpack.c.h.b16 %v4686
    %v4975 = vunpack.c.h.b16 %v4687
    %v4976 = vunpack.c.h.b16 %v4688
    %v4977 = vunpack.c.h.b16 %v4689
    %v4978 = vunpack.c.l.b16 %v4690
    %v4979 = vunpack.c.l.b16 %v4691
    %v4980 = vunpack.c.l.b16 %v4692
    %v4981 = vunpack.c.l.b16 %v4693
    %v4982 = vunpack.c.h.b16 %v4690
    %v4983 = vunpack.c.h.b16 %v4691
    %v4984 = vunpack.c.h.b16 %v4692
    %v4985 = vunpack.c.h.b16 %v4693
    %v4986 = vunpack.c.l.b16 %v4694
    %v4987 = vunpack.c.l.b16 %v4695
    %v4988 = vunpack.c.l.b16 %v4696
    %v4989 = vunpack.c.l.b16 %v4697
    %v4990 = vunpack.c.h.b16 %v4694
    %v4991 = vunpack.c.h.b16 %v4695
    %v4992 = vunpack.c.h.b16 %v4696
    %v4993 = vunpack.c.h.b16 %v4697
    %v4994 = vunpack.c.l.b16 %v4698
    %v4995 = vunpack.c.l.b16 %v4699
    %v4996 = vunpack.c.l.b16 %v4700
    %v4997 = vunpack.c.l.b16 %v4701
    %v4998 = vunpack.c.h.b16 %v4698
    %v4999 = vunpack.c.h.b16 %v4699
    %v5000 = vunpack.c.h.b16 %v4700
    %v5001 = vunpack.c.h.b16 %v4701
    %v5002 = vunpack.c.l.b16 %v4702
    %v5003 = vunpack.c.l.b16 %v4703
    %v5004 = vunpack.c.l.b16 %v4704
    %v5005 = vunpack.c.l.b16 %v4705
    %v5006 = vunpack.c.h.b16 %v4702
    %v5007 = vunpack.c.h.b16 %v4703
    %v5008 = vunpack.c.h.b16 %v4704
    %v5009 = vunpack.c.h.b16 %v4705
    %v5010 = vunpack.c.l.b16 %v4706
    %v5011 = vunpack.c.l.b16 %v4707
    %v5012 = vunpack.c.l.b16 %v4708
    %v5013 = vunpack.c.l.b16 %v4709
    %v5014 = vunpack.c.h.b16 %v4706
    %v5015 = vunpack.c.h.b16 %v4707
    %v5016 = vunpack.c.h.b16 %v4708
    %v5017 = vunpack.c.h.b16 %v4709
    %v5018 = vunpack.c.l.b16 %v4710
    %v5019 = vunpack.c.l.b16 %v4711
    %v5020 = vunpack.c.l.b16 %v4712
    %v5021 = vunpack.c.l.b16 %v4713
    %v5022 = vunpack.c.h.b16 %v4710
    %v5023 = vunpack.c.h.b16 %v4711
    %v5024 = vunpack.c.h.b16 %v4712
    %v5025 = vunpack.c.h.b16 %v4713
    %v5026 = vunpack.c.l.b16 %v4714
    %v5027 = vunpack.c.l.b16 %v4715
    %v5028 = vunpack.c.l.b16 %v4716
    %v5029 = vunpack.c.l.b16 %v4717
    %v5030 = vunpack.c.h.b16 %v4714
    %v5031 = vunpack.c.h.b16 %v4715
    %v5032 = vunpack.c.h.b16 %v4716
    %v5033 = vunpack.c.h.b16 %v4717
    %v5034 = vunpack.c.l.b16 %v4718
    %v5035 = vunpack.c.l.b16 %v4719
    %v5036 = vunpack.c.l.b16 %v4720
    %v5037 = vunpack.c.l.b16 %v4721
    %v5038 = vunpack.c.h.b16 %v4718
    %v5039 = vunpack.c.h.b16 %v4719
    %v5040 = vunpack.c.h.b16 %v4720
    %v5041 = vunpack.c.h.b16 %v4721
    %v5042 = vunpack.c.l.b16 %v4722
    %v5043 = vunpack.c.l.b16 %v4723
    %v5044 = vunpack.c.l.b16 %v4724
    %v5045 = vunpack.c.l.b16 %v4725
    %v5046 = vunpack.c.h.b16 %v4722
    %v5047 = vunpack.c.h.b16 %v4723
    %v5048 = vunpack.c.h.b16 %v4724
    %v5049 = vunpack.c.h.b16 %v4725
    %v5050 = vunpack.c.l.b16 %v4726
    %v5051 = vunpack.c.l.b16 %v4727
    %v5052 = vunpack.c.l.b16 %v4728
    %v5053 = vunpack.c.l.b16 %v4729
    %v5054 = vunpack.c.h.b16 %v4726
    %v5055 = vunpack.c.h.b16 %v4727
    %v5056 = vunpack.c.h.b16 %v4728
    %v5057 = vunpack.c.h.b16 %v4729
    %v5058 = vunpack.c.l.b16 %v4730
    %v5059 = vunpack.c.l.b16 %v4731
    %v5060 = vunpack.c.l.b16 %v4732
    %v5061 = vunpack.c.l.b16 %v4733
    %v5062 = vunpack.c.h.b16 %v4730
    %v5063 = vunpack.c.h.b16 %v4731
    %v5064 = vunpack.c.h.b16 %v4732
    %v5065 = vunpack.c.h.b16 %v4733
    %v5066 = vunpack.c.l.b16 %v4734
    %v5067 = vunpack.c.l.b16 %v4735
    %v5068 = vunpack.c.l.b16 %v4736
    %v5069 = vunpack.c.l.b16 %v4737
    %v5070 = vunpack.c.h.b16 %v4734
    %v5071 = vunpack.c.h.b16 %v4735
    %v5072 = vunpack.c.h.b16 %v4736
    %v5073 = vunpack.c.h.b16 %v4737
    %v5074 = vunpack.c.l.b16 %v4738
    %v5075 = vunpack.c.l.b16 %v4739
    %v5076 = vunpack.c.l.b16 %v4740
    %v5077 = vunpack.c.l.b16 %v4741
    %v5078 = vunpack.c.h.b16 %v4738
    %v5079 = vunpack.c.h.b16 %v4739
    %v5080 = vunpack.c.h.b16 %v4740
    %v5081 = vunpack.c.h.b16 %v4741
    %v5082 = vunpack.c.l.b16 %v4742
    %v5083 = vunpack.c.l.b16 %v4743
    %v5084 = vunpack.c.l.b16 %v4744
    %v5085 = vunpack.c.l.b16 %v4745
    %v5086 = vunpack.c.h.b16 %v4742
    %v5087 = vunpack.c.h.b16 %v4743
    %v5088 = vunpack.c.h.b16 %v4744
    %v5089 = vunpack.c.h.b16 %v4745
    %v5090 = vunpack.c.l.b16 %v4746
    %v5091 = vunpack.c.l.b16 %v4747
    %v5092 = vunpack.c.l.b16 %v4748
    %v5093 = vunpack.c.l.b16 %v4749
    %v5094 = vunpack.c.h.b16 %v4746
    %v5095 = vunpack.c.h.b16 %v4747
    %v5096 = vunpack.c.h.b16 %v4748
    %v5097 = vunpack.c.h.b16 %v4749
    %v5098 = vunpack.c.l.b16 %v4750
    %v5099 = vunpack.c.l.b16 %v4751
    %v5100 = vunpack.c.l.b16 %v4752
    %v5101 = vunpack.c.l.b16 %v4753
    %v5102 = vunpack.c.h.b16 %v4750
    %v5103 = vunpack.c.h.b16 %v4751
    %v5104 = vunpack.c.h.b16 %v4752
    %v5105 = vunpack.c.h.b16 %v4753
    %v5106 = vunpack.c.l.b16 %v4754
    %v5107 = vunpack.c.l.b16 %v4755
    %v5108 = vunpack.c.l.b16 %v4756
    %v5109 = vunpack.c.l.b16 %v4757
    %v5110 = vunpack.c.h.b16 %v4754
    %v5111 = vunpack.c.h.b16 %v4755
    %v5112 = vunpack.c.h.b16 %v4756
    %v5113 = vunpack.c.h.b16 %v4757
    %v5114 = vunpack.c.l.b16 %v4758
    %v5115 = vunpack.c.l.b16 %v4759
    %v5116 = vunpack.c.l.b16 %v4760
    %v5117 = vunpack.c.l.b16 %v4761
    %v5118 = vunpack.c.h.b16 %v4758
    %v5119 = vunpack.c.h.b16 %v4759
    %v5120 = vunpack.c.h.b16 %v4760
    %v5121 = vunpack.c.h.b16 %v4761
    %v5122 = vunpack.c.l.b16 %v4762
    %v5123 = vunpack.c.l.b16 %v4763
    %v5124 = vunpack.c.l.b16 %v4764
    %v5125 = vunpack.c.l.b16 %v4765
    %v5126 = vunpack.c.h.b16 %v4762
    %v5127 = vunpack.c.h.b16 %v4763
    %v5128 = vunpack.c.h.b16 %v4764
    %v5129 = vunpack.c.h.b16 %v4765
    %v5130 = vunpack.c.l.b16 %v4766
    %v5131 = vunpack.c.l.b16 %v4767
    %v5132 = vunpack.c.l.b16 %v4768
    %v5133 = vunpack.c.l.b16 %v4769
    %v5134 = vunpack.c.h.b16 %v4766
    %v5135 = vunpack.c.h.b16 %v4767
    %v5136 = vunpack.c.h.b16 %v4768
    %v5137 = vunpack.c.h.b16 %v4769
    %v5138 = vunpack.c.l.b16 %v4770
    %v5139 = vunpack.c.l.b16 %v4771
    %v5140 = vunpack.c.l.b16 %v4772
    %v5141 = vunpack.c.l.b16 %v4773
    %v5142 = vunpack.c.h.b16 %v4770
    %v5143 = vunpack.c.h.b16 %v4771
    %v5144 = vunpack.c.h.b16 %v4772
    %v5145 = vunpack.c.h.b16 %v4773
    %v5146 = vunpack.c.l.b16 %v4774
    %v5147 = vunpack.c.l.b16 %v4775
    %v5148 = vunpack.c.l.b16 %v4776
    %v5149 = vunpack.c.l.b16 %v4777
    %v5150 = vunpack.c.h.b16 %v4774
    %v5151 = vunpack.c.h.b16 %v4775
    %v5152 = vunpack.c.h.b16 %v4776
    %v5153 = vunpack.c.h.b16 %v4777
    %v5154 = vunpack.c.l.b16 %v4778
    %v5155 = vunpack.c.l.b16 %v4779
    %v5156 = vunpack.c.l.b16 %v4780
    %v5157 = vunpack.c.l.b16 %v4781
    %v5158 = vunpack.c.h.b16 %v4778
    %v5159 = vunpack.c.h.b16 %v4779
    %v5160 = vunpack.c.h.b16 %v4780
    %v5161 = vunpack.c.h.b16 %v4781
    %v5162 = vunpack.c.l.b16 %v4782
    %v5163 = vunpack.c.l.b16 %v4783
    %v5164 = vunpack.c.l.b16 %v4784
    %v5165 = vunpack.c.l.b16 %v4785
    %v5166 = vunpack.c.h.b16 %v4782
    %v5167 = vunpack.c.h.b16 %v4783
    %v5168 = vunpack.c.h.b16 %v4784
    %v5169 = vunpack.c.h.b16 %v4785
    %v5170 = vpack.c.b16 %v4915, %v4914
    %v5171 = vpack.c.b16 %v4917, %v4916
    %v5172 = vpack.c.b16 %v4919, %v4918
    %v5173 = vpack.c.b16 %v4921, %v4920
    %v5174 = vpack.c.b16 %v4923, %v4922
    %v5175 = vpack.c.b16 %v4925, %v4924
    %v5176 = vpack.c.b16 %v4927, %v4926
    %v5177 = vpack.c.b16 %v4929, %v4928
    %v5178 = vpack.c.b16 %v4931, %v4930
    %v5179 = vpack.c.b16 %v4933, %v4932
    %v5180 = vpack.c.b16 %v4935, %v4934
    %v5181 = vpack.c.b16 %v4937, %v4936
    %v5182 = vpack.c.b16 %v4939, %v4938
    %v5183 = vpack.c.b16 %v4941, %v4940
    %v5184 = vpack.c.b16 %v4943, %v4942
    %v5185 = vpack.c.b16 %v4945, %v4944
    %v5186 = vpack.c.b16 %v4947, %v4946
    %v5187 = vpack.c.b16 %v4949, %v4948
    %v5188 = vpack.c.b16 %v4951, %v4950
    %v5189 = vpack.c.b16 %v4953, %v4952
    %v5190 = vpack.c.b16 %v4955, %v4954
    %v5191 = vpack.c.b16 %v4957, %v4956
    %v5192 = vpack.c.b16 %v4959, %v4958
    %v5193 = vpack.c.b16 %v4961, %v4960
    %v5194 = vpack.c.b16 %v4963, %v4962
    %v5195 = vpack.c.b16 %v4965, %v4964
    %v5196 = vpack.c.b16 %v4967, %v4966
    %v5197 = vpack.c.b16 %v4969, %v4968
    %v5198 = vpack.c.b16 %v4971, %v4970
    %v5199 = vpack.c.b16 %v4973, %v4972
    %v5200 = vpack.c.b16 %v4975, %v4974
    %v5201 = vpack.c.b16 %v4977, %v4976
    %v5202 = vpack.c.b16 %v4979, %v4978
    %v5203 = vpack.c.b16 %v4981, %v4980
    %v5204 = vpack.c.b16 %v4983, %v4982
    %v5205 = vpack.c.b16 %v4985, %v4984
    %v5206 = vpack.c.b16 %v4987, %v4986
    %v5207 = vpack.c.b16 %v4989, %v4988
    %v5208 = vpack.c.b16 %v4991, %v4990
    %v5209 = vpack.c.b16 %v4993, %v4992
    %v5210 = vpack.c.b16 %v4995, %v4994
    %v5211 = vpack.c.b16 %v4997, %v4996
    %v5212 = vpack.c.b16 %v4999, %v4998
    %v5213 = vpack.c.b16 %v5001, %v5000
    %v5214 = vpack.c.b16 %v5003, %v5002
    %v5215 = vpack.c.b16 %v5005, %v5004
    %v5216 = vpack.c.b16 %v5007, %v5006
    %v5217 = vpack.c.b16 %v5009, %v5008
    %v5218 = vpack.c.b16 %v5011, %v5010
    %v5219 = vpack.c.b16 %v5013, %v5012
    %v5220 = vpack.c.b16 %v5015, %v5014
    %v5221 = vpack.c.b16 %v5017, %v5016
    %v5222 = vpack.c.b16 %v5019, %v5018
    %v5223 = vpack.c.b16 %v5021, %v5020
    %v5224 = vpack.c.b16 %v5023, %v5022
    %v5225 = vpack.c.b16 %v5025, %v5024
    %v5226 = vpack.c.b16 %v5027, %v5026
    %v5227 = vpack.c.b16 %v5029, %v5028
    %v5228 = vpack.c.b16 %v5031, %v5030
    %v5229 = vpack.c.b16 %v5033, %v5032
    %v5230 = vpack.c.b16 %v5035, %v5034
    %v5231 = vpack.c.b16 %v5037, %v5036
    %v5232 = vpack.c.b16 %v5039, %v5038
    %v5233 = vpack.c.b16 %v5041, %v5040
    %v5234 = vpack.c.b16 %v5043, %v5042
    %v5235 = vpack.c.b16 %v5045, %v5044
    %v5236 = vpack.c.b16 %v5047, %v5046
    %v5237 = vpack.c.b16 %v5049, %v5048
    %v5238 = vpack.c.b16 %v5051, %v5050
    %v5239 = vpack.c.b16 %v5053, %v5052
    %v5240 = vpack.c.b16 %v5055, %v5054
    %v5241 = vpack.c.b16 %v5057, %v5056
    %v5242 = vpack.c.b16 %v5059, %v5058
    %v5243 = vpack.c.b16 %v5061, %v5060
    %v5244 = vpack.c.b16 %v5063, %v5062
    %v5245 = vpack.c.b16 %v5065, %v5064
    %v5246 = vpack.c.b16 %v5067, %v5066
    %v5247 = vpack.c.b16 %v5069, %v5068
    %v5248 = vpack.c.b16 %v5071, %v5070
    %v5249 = vpack.c.b16 %v5073, %v5072
    %v5250 = vpack.c.b16 %v5075, %v5074
    %v5251 = vpack.c.b16 %v5077, %v5076
    %v5252 = vpack.c.b16 %v5079, %v5078
    %v5253 = vpack.c.b16 %v5081, %v5080
    %v5254 = vpack.c.b16 %v5083, %v5082
    %v5255 = vpack.c.b16 %v5085, %v5084
    %v5256 = vpack.c.b16 %v5087, %v5086
    %v5257 = vpack.c.b16 %v5089, %v5088
    %v5258 = vpack.c.b16 %v5091, %v5090
    %v5259 = vpack.c.b16 %v5093, %v5092
    %v5260 = vpack.c.b16 %v5095, %v5094
    %v5261 = vpack.c.b16 %v5097, %v5096
    %v5262 = vpack.c.b16 %v5099, %v5098
    %v5263 = vpack.c.b16 %v5101, %v5100
    %v5264 = vpack.c.b16 %v5103, %v5102
    %v5265 = vpack.c.b16 %v5105, %v5104
    %v5266 = vpack.c.b16 %v5107, %v5106
    %v5267 = vpack.c.b16 %v5109, %v5108
    %v5268 = vpack.c.b16 %v5111, %v5110
    %v5269 = vpack.c.b16 %v5113, %v5112
    %v5270 = vpack.c.b16 %v5115, %v5114
    %v5271 = vpack.c.b16 %v5117, %v5116
    %v5272 = vpack.c.b16 %v5119, %v5118
    %v5273 = vpack.c.b16 %v5121, %v5120
    %v5274 = vpack.c.b16 %v5123, %v5122
    %v5275 = vpack.c.b16 %v5125, %v5124
    %v5276 = vpack.c.b16 %v5127, %v5126
    %v5277 = vpack.c.b16 %v5129, %v5128
    %v5278 = vpack.c.b16 %v5131, %v5130
    %v5279 = vpack.c.b16 %v5133, %v5132
    %v5280 = vpack.c.b16 %v5135, %v5134
    %v5281 = vpack.c.b16 %v5137, %v5136
    %v5282 = vpack.c.b16 %v5139, %v5138
    %v5283 = vpack.c.b16 %v5141, %v5140
    %v5284 = vpack.c.b16 %v5143, %v5142
    %v5285 = vpack.c.b16 %v5145, %v5144
    %v5286 = vpack.c.b16 %v5147, %v5146
    %v5287 = vpack.c.b16 %v5149, %v5148
    %v5288 = vpack.c.b16 %v5151, %v5150
    %v5289 = vpack.c.b16 %v5153, %v5152
    %v5290 = vpack.c.b16 %v5155, %v5154
    %v5291 = vpack.c.b16 %v5157, %v5156
    %v5292 = vpack.c.b16 %v5159, %v5158
    %v5293 = vpack.c.b16 %v5161, %v5160
    %v5294 = vpack.c.b16 %v5163, %v5162
    %v5295 = vpack.c.b16 %v5165, %v5164
    %v5296 = vpack.c.b16 %v5167, %v5166
    %v5297 = vpack.c.b16 %v5169, %v5168
    %5426 = vst [vmem:[#allocation8] sm:$0xff] %v5170
    %5427 = vst [vmem:[#allocation8 + $0x8] sm:$0xff] %v5171
    %5428 = vst [vmem:[#allocation8 + $0x10] sm:$0xff] %v5172
    %5429 = vst [vmem:[#allocation8 + $0x18] sm:$0xff] %v5173
    %5430 = vst [vmem:[#allocation8 + $0x20] sm:$0xff] %v5174
    %5431 = vst [vmem:[#allocation8 + $0x28] sm:$0xff] %v5175
    %5432 = vst [vmem:[#allocation8 + $0x30] sm:$0xff] %v5176
    %5433 = vst [vmem:[#allocation8 + $0x38] sm:$0xff] %v5177
    %5434 = vst [vmem:[#allocation8 + $0x40] sm:$0xff] %v5178
    %5435 = vst [vmem:[#allocation8 + $0x48] sm:$0xff] %v5179
    %5436 = vst [vmem:[#allocation8 + $0x50] sm:$0xff] %v5180
    %5437 = vst [vmem:[#allocation8 + $0x58] sm:$0xff] %v5181
    %5438 = vst [vmem:[#allocation8 + $0x60] sm:$0xff] %v5182
    %5439 = vst [vmem:[#allocation8 + $0x68] sm:$0xff] %v5183
    %5440 = vst [vmem:[#allocation8 + $0x70] sm:$0xff] %v5184
    %5441 = vst [vmem:[#allocation8 + $0x78] sm:$0xff] %v5185
    %5442 = vst [vmem:[#allocation8 + $0x80] sm:$0xff] %v5186
    %5443 = vst [vmem:[#allocation8 + $0x88] sm:$0xff] %v5187
    %5444 = vst [vmem:[#allocation8 + $0x90] sm:$0xff] %v5188
    %5445 = vst [vmem:[#allocation8 + $0x98] sm:$0xff] %v5189
    %5446 = vst [vmem:[#allocation8 + $0xa0] sm:$0xff] %v5190
    %5447 = vst [vmem:[#allocation8 + $0xa8] sm:$0xff] %v5191
    %5448 = vst [vmem:[#allocation8 + $0xb0] sm:$0xff] %v5192
    %5449 = vst [vmem:[#allocation8 + $0xb8] sm:$0xff] %v5193
    %5450 = vst [vmem:[#allocation8 + $0xc0] sm:$0xff] %v5194
    %5451 = vst [vmem:[#allocation8 + $0xc8] sm:$0xff] %v5195
    %5452 = vst [vmem:[#allocation8 + $0xd0] sm:$0xff] %v5196
    %5453 = vst [vmem:[#allocation8 + $0xd8] sm:$0xff] %v5197
    %5454 = vst [vmem:[#allocation8 + $0xe0] sm:$0xff] %v5198
    %5455 = vst [vmem:[#allocation8 + $0xe8] sm:$0xff] %v5199
    %5456 = vst [vmem:[#allocation8 + $0xf0] sm:$0xff] %v5200
    %5457 = vst [vmem:[#allocation8 + $0xf8] sm:$0xff] %v5201
    %5458 = vst [vmem:[#allocation8 + $0x100] sm:$0xff] %v5202
    %5459 = vst [vmem:[#allocation8 + $0x108] sm:$0xff] %v5203
    %5460 = vst [vmem:[#allocation8 + $0x110] sm:$0xff] %v5204
    %5461 = vst [vmem:[#allocation8 + $0x118] sm:$0xff] %v5205
    %5462 = vst [vmem:[#allocation8 + $0x120] sm:$0xff] %v5206
    %5463 = vst [vmem:[#allocation8 + $0x128] sm:$0xff] %v5207
    %5464 = vst [vmem:[#allocation8 + $0x130] sm:$0xff] %v5208
    %5465 = vst [vmem:[#allocation8 + $0x138] sm:$0xff] %v5209
    %5466 = vst [vmem:[#allocation8 + $0x140] sm:$0xff] %v5210
    %5467 = vst [vmem:[#allocation8 + $0x148] sm:$0xff] %v5211
    %5468 = vst [vmem:[#allocation8 + $0x150] sm:$0xff] %v5212
    %5469 = vst [vmem:[#allocation8 + $0x158] sm:$0xff] %v5213
    %5470 = vst [vmem:[#allocation8 + $0x160] sm:$0xff] %v5214
    %5471 = vst [vmem:[#allocation8 + $0x168] sm:$0xff] %v5215
    %5472 = vst [vmem:[#allocation8 + $0x170] sm:$0xff] %v5216
    %5473 = vst [vmem:[#allocation8 + $0x178] sm:$0xff] %v5217
    %5474 = vst [vmem:[#allocation8 + $0x180] sm:$0xff] %v5218
    %5475 = vst [vmem:[#allocation8 + $0x188] sm:$0xff] %v5219
    %5476 = vst [vmem:[#allocation8 + $0x190] sm:$0xff] %v5220
    %5477 = vst [vmem:[#allocation8 + $0x198] sm:$0xff] %v5221
    %5478 = vst [vmem:[#allocation8 + $0x1a0] sm:$0xff] %v5222
    %5479 = vst [vmem:[#allocation8 + $0x1a8] sm:$0xff] %v5223
    %5480 = vst [vmem:[#allocation8 + $0x1b0] sm:$0xff] %v5224
    %5481 = vst [vmem:[#allocation8 + $0x1b8] sm:$0xff] %v5225
    %5482 = vst [vmem:[#allocation8 + $0x1c0] sm:$0xff] %v5226
    %5483 = vst [vmem:[#allocation8 + $0x1c8] sm:$0xff] %v5227
    %5484 = vst [vmem:[#allocation8 + $0x1d0] sm:$0xff] %v5228
    %5485 = vst [vmem:[#allocation8 + $0x1d8] sm:$0xff] %v5229
    %5486 = vst [vmem:[#allocation8 + $0x1e0] sm:$0xff] %v5230
    %5487 = vst [vmem:[#allocation8 + $0x1e8] sm:$0xff] %v5231
    %5488 = vst [vmem:[#allocation8 + $0x1f0] sm:$0xff] %v5232
    %5489 = vst [vmem:[#allocation8 + $0x1f8] sm:$0xff] %v5233
    %5490 = vst [vmem:[#allocation8 + $0x200] sm:$0xff] %v5234
    %5491 = vst [vmem:[#allocation8 + $0x208] sm:$0xff] %v5235
    %5492 = vst [vmem:[#allocation8 + $0x210] sm:$0xff] %v5236
    %5493 = vst [vmem:[#allocation8 + $0x218] sm:$0xff] %v5237
    %5494 = vst [vmem:[#allocation8 + $0x220] sm:$0xff] %v5238
    %5495 = vst [vmem:[#allocation8 + $0x228] sm:$0xff] %v5239
    %5496 = vst [vmem:[#allocation8 + $0x230] sm:$0xff] %v5240
    %5497 = vst [vmem:[#allocation8 + $0x238] sm:$0xff] %v5241
    %5498 = vst [vmem:[#allocation8 + $0x240] sm:$0xff] %v5242
    %5499 = vst [vmem:[#allocation8 + $0x248] sm:$0xff] %v5243
    %5500 = vst [vmem:[#allocation8 + $0x250] sm:$0xff] %v5244
    %5501 = vst [vmem:[#allocation8 + $0x258] sm:$0xff] %v5245
    %5502 = vst [vmem:[#allocation8 + $0x260] sm:$0xff] %v5246
    %5503 = vst [vmem:[#allocation8 + $0x268] sm:$0xff] %v5247
    %5504 = vst [vmem:[#allocation8 + $0x270] sm:$0xff] %v5248
    %5505 = vst [vmem:[#allocation8 + $0x278] sm:$0xff] %v5249
    %5506 = vst [vmem:[#allocation8 + $0x280] sm:$0xff] %v5250
    %5507 = vst [vmem:[#allocation8 + $0x288] sm:$0xff] %v5251
    %5508 = vst [vmem:[#allocation8 + $0x290] sm:$0xff] %v5252
    %5509 = vst [vmem:[#allocation8 + $0x298] sm:$0xff] %v5253
    %5510 = vst [vmem:[#allocation8 + $0x2a0] sm:$0xff] %v5254
    %5511 = vst [vmem:[#allocation8 + $0x2a8] sm:$0xff] %v5255
    %5512 = vst [vmem:[#allocation8 + $0x2b0] sm:$0xff] %v5256
    %5513 = vst [vmem:[#allocation8 + $0x2b8] sm:$0xff] %v5257
    %5514 = vst [vmem:[#allocation8 + $0x2c0] sm:$0xff] %v5258
    %5515 = vst [vmem:[#allocation8 + $0x2c8] sm:$0xff] %v5259
    %5516 = vst [vmem:[#allocation8 + $0x2d0] sm:$0xff] %v5260
    %5517 = vst [vmem:[#allocation8 + $0x2d8] sm:$0xff] %v5261
    %5518 = vst [vmem:[#allocation8 + $0x2e0] sm:$0xff] %v5262
    %5519 = vst [vmem:[#allocation8 + $0x2e8] sm:$0xff] %v5263
    %5520 = vst [vmem:[#allocation8 + $0x2f0] sm:$0xff] %v5264
    %5521 = vst [vmem:[#allocation8 + $0x2f8] sm:$0xff] %v5265
    %5522 = vst [vmem:[#allocation8 + $0x300] sm:$0xff] %v5266
    %5523 = vst [vmem:[#allocation8 + $0x308] sm:$0xff] %v5267
    %5524 = vst [vmem:[#allocation8 + $0x310] sm:$0xff] %v5268
    %5525 = vst [vmem:[#allocation8 + $0x318] sm:$0xff] %v5269
    %5526 = vst [vmem:[#allocation8 + $0x320] sm:$0xff] %v5270
    %5527 = vst [vmem:[#allocation8 + $0x328] sm:$0xff] %v5271
    %5528 = vst [vmem:[#allocation8 + $0x330] sm:$0xff] %v5272
    %5529 = vst [vmem:[#allocation8 + $0x338] sm:$0xff] %v5273
    %5530 = vst [vmem:[#allocation8 + $0x340] sm:$0xff] %v5274
    %5531 = vst [vmem:[#allocation8 + $0x348] sm:$0xff] %v5275
    %5532 = vst [vmem:[#allocation8 + $0x350] sm:$0xff] %v5276
    %5533 = vst [vmem:[#allocation8 + $0x358] sm:$0xff] %v5277
    %5534 = vst [vmem:[#allocation8 + $0x360] sm:$0xff] %v5278
    %5535 = vst [vmem:[#allocation8 + $0x368] sm:$0xff] %v5279
    %5536 = vst [vmem:[#allocation8 + $0x370] sm:$0xff] %v5280
    %5537 = vst [vmem:[#allocation8 + $0x378] sm:$0xff] %v5281
    %5538 = vst [vmem:[#allocation8 + $0x380] sm:$0xff] %v5282
    %5539 = vst [vmem:[#allocation8 + $0x388] sm:$0xff] %v5283
    %5540 = vst [vmem:[#allocation8 + $0x390] sm:$0xff] %v5284
    %5541 = vst [vmem:[#allocation8 + $0x398] sm:$0xff] %v5285
    %5542 = vst [vmem:[#allocation8 + $0x3a0] sm:$0xff] %v5286
    %5543 = vst [vmem:[#allocation8 + $0x3a8] sm:$0xff] %v5287
    %5544 = vst [vmem:[#allocation8 + $0x3b0] sm:$0xff] %v5288
    %5545 = vst [vmem:[#allocation8 + $0x3b8] sm:$0xff] %v5289
    %5546 = vst [vmem:[#allocation8 + $0x3c0] sm:$0xff] %v5290
    %5547 = vst [vmem:[#allocation8 + $0x3c8] sm:$0xff] %v5291
    %5548 = vst [vmem:[#allocation8 + $0x3d0] sm:$0xff] %v5292
    %5549 = vst [vmem:[#allocation8 + $0x3d8] sm:$0xff] %v5293
    %5550 = vst [vmem:[#allocation8 + $0x3e0] sm:$0xff] %v5294
    %5551 = vst [vmem:[#allocation8 + $0x3e8] sm:$0xff] %v5295
    %5552 = vst [vmem:[#allocation8 + $0x3f0] sm:$0xff] %v5296
    %5553 = vst [vmem:[#allocation8 + $0x3f8] sm:$0xff] %v5297
    %v5554 = vpack.c.bf16 %v4406, %v4402
    %v5555 = vpack.c.bf16 %v4407, %v4403
    %v5556 = vpack.c.bf16 %v4408, %v4404
    %v5557 = vpack.c.bf16 %v4409, %v4405
    %v5558 = vpack.c.bf16 %v4414, %v4410
    %v5559 = vpack.c.bf16 %v4415, %v4411
    %v5560 = vpack.c.bf16 %v4416, %v4412
    %v5561 = vpack.c.bf16 %v4417, %v4413
    %v5562 = vpack.c.bf16 %v4422, %v4418
    %v5563 = vpack.c.bf16 %v4423, %v4419
    %v5564 = vpack.c.bf16 %v4424, %v4420
    %v5565 = vpack.c.bf16 %v4425, %v4421
    %v5566 = vpack.c.bf16 %v4430, %v4426
    %v5567 = vpack.c.bf16 %v4431, %v4427
    %v5568 = vpack.c.bf16 %v4432, %v4428
    %v5569 = vpack.c.bf16 %v4433, %v4429
    %v5570 = vpack.c.bf16 %v4438, %v4434
    %v5571 = vpack.c.bf16 %v4439, %v4435
    %v5572 = vpack.c.bf16 %v4440, %v4436
    %v5573 = vpack.c.bf16 %v4441, %v4437
    %v5574 = vpack.c.bf16 %v4446, %v4442
    %v5575 = vpack.c.bf16 %v4447, %v4443
    %v5576 = vpack.c.bf16 %v4448, %v4444
    %v5577 = vpack.c.bf16 %v4449, %v4445
    %v5578 = vpack.c.bf16 %v4454, %v4450
    %v5579 = vpack.c.bf16 %v4455, %v4451
    %v5580 = vpack.c.bf16 %v4456, %v4452
    %v5581 = vpack.c.bf16 %v4457, %v4453
    %v5582 = vpack.c.bf16 %v4462, %v4458
    %v5583 = vpack.c.bf16 %v4463, %v4459
    %v5584 = vpack.c.bf16 %v4464, %v4460
    %v5585 = vpack.c.bf16 %v4465, %v4461
    %v5586 = vpack.c.bf16 %v4470, %v4466
    %v5587 = vpack.c.bf16 %v4471, %v4467
    %v5588 = vpack.c.bf16 %v4472, %v4468
    %v5589 = vpack.c.bf16 %v4473, %v4469
    %v5590 = vpack.c.bf16 %v4478, %v4474
    %v5591 = vpack.c.bf16 %v4479, %v4475
    %v5592 = vpack.c.bf16 %v4480, %v4476
    %v5593 = vpack.c.bf16 %v4481, %v4477
    %v5594 = vpack.c.bf16 %v4486, %v4482
    %v5595 = vpack.c.bf16 %v4487, %v4483
    %v5596 = vpack.c.bf16 %v4488, %v4484
    %v5597 = vpack.c.bf16 %v4489, %v4485
    %v5598 = vpack.c.bf16 %v4494, %v4490
    %v5599 = vpack.c.bf16 %v4495, %v4491
    %v5600 = vpack.c.bf16 %v4496, %v4492
    %v5601 = vpack.c.bf16 %v4497, %v4493
    %v5602 = vpack.c.bf16 %v4502, %v4498
    %v5603 = vpack.c.bf16 %v4503, %v4499
    %v5604 = vpack.c.bf16 %v4504, %v4500
    %v5605 = vpack.c.bf16 %v4505, %v4501
    %v5606 = vpack.c.bf16 %v4510, %v4506
    %v5607 = vpack.c.bf16 %v4511, %v4507
    %v5608 = vpack.c.bf16 %v4512, %v4508
    %v5609 = vpack.c.bf16 %v4513, %v4509
    %v5610 = vpack.c.bf16 %v4518, %v4514
    %v5611 = vpack.c.bf16 %v4519, %v4515
    %v5612 = vpack.c.bf16 %v4520, %v4516
    %v5613 = vpack.c.bf16 %v4521, %v4517
    %v5614 = vpack.c.bf16 %v4526, %v4522
    %v5615 = vpack.c.bf16 %v4527, %v4523
    %v5616 = vpack.c.bf16 %v4528, %v4524
    %v5617 = vpack.c.bf16 %v4529, %v4525
    %v5618 = vpack.c.bf16 %v4534, %v4530
    %v5619 = vpack.c.bf16 %v4535, %v4531
    %v5620 = vpack.c.bf16 %v4536, %v4532
    %v5621 = vpack.c.bf16 %v4537, %v4533
    %v5622 = vpack.c.bf16 %v4542, %v4538
    %v5623 = vpack.c.bf16 %v4543, %v4539
    %v5624 = vpack.c.bf16 %v4544, %v4540
    %v5625 = vpack.c.bf16 %v4545, %v4541
    %v5626 = vpack.c.bf16 %v4550, %v4546
    %v5627 = vpack.c.bf16 %v4551, %v4547
    %v5628 = vpack.c.bf16 %v4552, %v4548
    %v5629 = vpack.c.bf16 %v4553, %v4549
    %v5630 = vpack.c.bf16 %v4558, %v4554
    %v5631 = vpack.c.bf16 %v4559, %v4555
    %v5632 = vpack.c.bf16 %v4560, %v4556
    %v5633 = vpack.c.bf16 %v4561, %v4557
    %v5634 = vpack.c.bf16 %v4566, %v4562
    %v5635 = vpack.c.bf16 %v4567, %v4563
    %v5636 = vpack.c.bf16 %v4568, %v4564
    %v5637 = vpack.c.bf16 %v4569, %v4565
    %v5638 = vpack.c.bf16 %v4574, %v4570
    %v5639 = vpack.c.bf16 %v4575, %v4571
    %v5640 = vpack.c.bf16 %v4576, %v4572
    %v5641 = vpack.c.bf16 %v4577, %v4573
    %v5642 = vpack.c.bf16 %v4582, %v4578
    %v5643 = vpack.c.bf16 %v4583, %v4579
    %v5644 = vpack.c.bf16 %v4584, %v4580
    %v5645 = vpack.c.bf16 %v4585, %v4581
    %v5646 = vpack.c.bf16 %v4590, %v4586
    %v5647 = vpack.c.bf16 %v4591, %v4587
    %v5648 = vpack.c.bf16 %v4592, %v4588
    %v5649 = vpack.c.bf16 %v4593, %v4589
    %v5650 = vpack.c.bf16 %v4598, %v4594
    %v5651 = vpack.c.bf16 %v4599, %v4595
    %v5652 = vpack.c.bf16 %v4600, %v4596
    %v5653 = vpack.c.bf16 %v4601, %v4597
    %v5654 = vpack.c.bf16 %v4606, %v4602
    %v5655 = vpack.c.bf16 %v4607, %v4603
    %v5656 = vpack.c.bf16 %v4608, %v4604
    %v5657 = vpack.c.bf16 %v4609, %v4605
    %v5658 = vpack.c.bf16 %v4614, %v4610
    %v5659 = vpack.c.bf16 %v4615, %v4611
    %v5660 = vpack.c.bf16 %v4616, %v4612
    %v5661 = vpack.c.bf16 %v4617, %v4613
    %v5662 = vpack.c.bf16 %v4622, %v4618
    %v5663 = vpack.c.bf16 %v4623, %v4619
    %v5664 = vpack.c.bf16 %v4624, %v4620
    %v5665 = vpack.c.bf16 %v4625, %v4621
    %v5666 = vpack.c.bf16 %v4630, %v4626
    %v5667 = vpack.c.bf16 %v4631, %v4627
    %v5668 = vpack.c.bf16 %v4632, %v4628
    %v5669 = vpack.c.bf16 %v4633, %v4629
    %v5670 = vpack.c.bf16 %v4638, %v4634
    %v5671 = vpack.c.bf16 %v4639, %v4635
    %v5672 = vpack.c.bf16 %v4640, %v4636
    %v5673 = vpack.c.bf16 %v4641, %v4637
    %v5674 = vpack.c.bf16 %v4646, %v4642
    %v5675 = vpack.c.bf16 %v4647, %v4643
    %v5676 = vpack.c.bf16 %v4648, %v4644
    %v5677 = vpack.c.bf16 %v4649, %v4645
    %v5678 = vpack.c.bf16 %v4654, %v4650
    %v5679 = vpack.c.bf16 %v4655, %v4651
    %v5680 = vpack.c.bf16 %v4656, %v4652
    %v5681 = vpack.c.bf16 %v4657, %v4653
    %v5810 = vunpack.c.l.b16 %v5554
    %v5811 = vunpack.c.l.b16 %v5555
    %v5812 = vunpack.c.l.b16 %v5556
    %v5813 = vunpack.c.l.b16 %v5557
    %v5814 = vunpack.c.h.b16 %v5554
    %v5815 = vunpack.c.h.b16 %v5555
    %v5816 = vunpack.c.h.b16 %v5556
    %v5817 = vunpack.c.h.b16 %v5557
    %v5818 = vunpack.c.l.b16 %v5558
    %v5819 = vunpack.c.l.b16 %v5559
    %v5820 = vunpack.c.l.b16 %v5560
    %v5821 = vunpack.c.l.b16 %v5561
    %v5822 = vunpack.c.h.b16 %v5558
    %v5823 = vunpack.c.h.b16 %v5559
    %v5824 = vunpack.c.h.b16 %v5560
    %v5825 = vunpack.c.h.b16 %v5561
    %v5826 = vunpack.c.l.b16 %v5562
    %v5827 = vunpack.c.l.b16 %v5563
    %v5828 = vunpack.c.l.b16 %v5564
    %v5829 = vunpack.c.l.b16 %v5565
    %v5830 = vunpack.c.h.b16 %v5562
    %v5831 = vunpack.c.h.b16 %v5563
    %v5832 = vunpack.c.h.b16 %v5564
    %v5833 = vunpack.c.h.b16 %v5565
    %v5834 = vunpack.c.l.b16 %v5566
    %v5835 = vunpack.c.l.b16 %v5567
    %v5836 = vunpack.c.l.b16 %v5568
    %v5837 = vunpack.c.l.b16 %v5569
    %v5838 = vunpack.c.h.b16 %v5566
    %v5839 = vunpack.c.h.b16 %v5567
    %v5840 = vunpack.c.h.b16 %v5568
    %v5841 = vunpack.c.h.b16 %v5569
    %v5842 = vunpack.c.l.b16 %v5570
    %v5843 = vunpack.c.l.b16 %v5571
    %v5844 = vunpack.c.l.b16 %v5572
    %v5845 = vunpack.c.l.b16 %v5573
    %v5846 = vunpack.c.h.b16 %v5570
    %v5847 = vunpack.c.h.b16 %v5571
    %v5848 = vunpack.c.h.b16 %v5572
    %v5849 = vunpack.c.h.b16 %v5573
    %v5850 = vunpack.c.l.b16 %v5574
    %v5851 = vunpack.c.l.b16 %v5575
    %v5852 = vunpack.c.l.b16 %v5576
    %v5853 = vunpack.c.l.b16 %v5577
    %v5854 = vunpack.c.h.b16 %v5574
    %v5855 = vunpack.c.h.b16 %v5575
    %v5856 = vunpack.c.h.b16 %v5576
    %v5857 = vunpack.c.h.b16 %v5577
    %v5858 = vunpack.c.l.b16 %v5578
    %v5859 = vunpack.c.l.b16 %v5579
    %v5860 = vunpack.c.l.b16 %v5580
    %v5861 = vunpack.c.l.b16 %v5581
    %v5862 = vunpack.c.h.b16 %v5578
    %v5863 = vunpack.c.h.b16 %v5579
    %v5864 = vunpack.c.h.b16 %v5580
    %v5865 = vunpack.c.h.b16 %v5581
    %v5866 = vunpack.c.l.b16 %v5582
    %v5867 = vunpack.c.l.b16 %v5583
    %v5868 = vunpack.c.l.b16 %v5584
    %v5869 = vunpack.c.l.b16 %v5585
    %v5870 = vunpack.c.h.b16 %v5582
    %v5871 = vunpack.c.h.b16 %v5583
    %v5872 = vunpack.c.h.b16 %v5584
    %v5873 = vunpack.c.h.b16 %v5585
    %v5874 = vunpack.c.l.b16 %v5586
    %v5875 = vunpack.c.l.b16 %v5587
    %v5876 = vunpack.c.l.b16 %v5588
    %v5877 = vunpack.c.l.b16 %v5589
    %v5878 = vunpack.c.h.b16 %v5586
    %v5879 = vunpack.c.h.b16 %v5587
    %v5880 = vunpack.c.h.b16 %v5588
    %v5881 = vunpack.c.h.b16 %v5589
    %v5882 = vunpack.c.l.b16 %v5590
    %v5883 = vunpack.c.l.b16 %v5591
    %v5884 = vunpack.c.l.b16 %v5592
    %v5885 = vunpack.c.l.b16 %v5593
    %v5886 = vunpack.c.h.b16 %v5590
    %v5887 = vunpack.c.h.b16 %v5591
    %v5888 = vunpack.c.h.b16 %v5592
    %v5889 = vunpack.c.h.b16 %v5593
    %v5890 = vunpack.c.l.b16 %v5594
    %v5891 = vunpack.c.l.b16 %v5595
    %v5892 = vunpack.c.l.b16 %v5596
    %v5893 = vunpack.c.l.b16 %v5597
    %v5894 = vunpack.c.h.b16 %v5594
    %v5895 = vunpack.c.h.b16 %v5595
    %v5896 = vunpack.c.h.b16 %v5596
    %v5897 = vunpack.c.h.b16 %v5597
    %v5898 = vunpack.c.l.b16 %v5598
    %v5899 = vunpack.c.l.b16 %v5599
    %v5900 = vunpack.c.l.b16 %v5600
    %v5901 = vunpack.c.l.b16 %v5601
    %v5902 = vunpack.c.h.b16 %v5598
    %v5903 = vunpack.c.h.b16 %v5599
    %v5904 = vunpack.c.h.b16 %v5600
    %v5905 = vunpack.c.h.b16 %v5601
    %v5906 = vunpack.c.l.b16 %v5602
    %v5907 = vunpack.c.l.b16 %v5603
    %v5908 = vunpack.c.l.b16 %v5604
    %v5909 = vunpack.c.l.b16 %v5605
    %v5910 = vunpack.c.h.b16 %v5602
    %v5911 = vunpack.c.h.b16 %v5603
    %v5912 = vunpack.c.h.b16 %v5604
    %v5913 = vunpack.c.h.b16 %v5605
    %v5914 = vunpack.c.l.b16 %v5606
    %v5915 = vunpack.c.l.b16 %v5607
    %v5916 = vunpack.c.l.b16 %v5608
    %v5917 = vunpack.c.l.b16 %v5609
    %v5918 = vunpack.c.h.b16 %v5606
    %v5919 = vunpack.c.h.b16 %v5607
    %v5920 = vunpack.c.h.b16 %v5608
    %v5921 = vunpack.c.h.b16 %v5609
    %v5922 = vunpack.c.l.b16 %v5610
    %v5923 = vunpack.c.l.b16 %v5611
    %v5924 = vunpack.c.l.b16 %v5612
    %v5925 = vunpack.c.l.b16 %v5613
    %v5926 = vunpack.c.h.b16 %v5610
    %v5927 = vunpack.c.h.b16 %v5611
    %v5928 = vunpack.c.h.b16 %v5612
    %v5929 = vunpack.c.h.b16 %v5613
    %v5930 = vunpack.c.l.b16 %v5614
    %v5931 = vunpack.c.l.b16 %v5615
    %v5932 = vunpack.c.l.b16 %v5616
    %v5933 = vunpack.c.l.b16 %v5617
    %v5934 = vunpack.c.h.b16 %v5614
    %v5935 = vunpack.c.h.b16 %v5615
    %v5936 = vunpack.c.h.b16 %v5616
    %v5937 = vunpack.c.h.b16 %v5617
    %v5938 = vunpack.c.l.b16 %v5618
    %v5939 = vunpack.c.l.b16 %v5619
    %v5940 = vunpack.c.l.b16 %v5620
    %v5941 = vunpack.c.l.b16 %v5621
    %v5942 = vunpack.c.h.b16 %v5618
    %v5943 = vunpack.c.h.b16 %v5619
    %v5944 = vunpack.c.h.b16 %v5620
    %v5945 = vunpack.c.h.b16 %v5621
    %v5946 = vunpack.c.l.b16 %v5622
    %v5947 = vunpack.c.l.b16 %v5623
    %v5948 = vunpack.c.l.b16 %v5624
    %v5949 = vunpack.c.l.b16 %v5625
    %v5950 = vunpack.c.h.b16 %v5622
    %v5951 = vunpack.c.h.b16 %v5623
    %v5952 = vunpack.c.h.b16 %v5624
    %v5953 = vunpack.c.h.b16 %v5625
    %v5954 = vunpack.c.l.b16 %v5626
    %v5955 = vunpack.c.l.b16 %v5627
    %v5956 = vunpack.c.l.b16 %v5628
    %v5957 = vunpack.c.l.b16 %v5629
    %v5958 = vunpack.c.h.b16 %v5626
    %v5959 = vunpack.c.h.b16 %v5627
    %v5960 = vunpack.c.h.b16 %v5628
    %v5961 = vunpack.c.h.b16 %v5629
    %v5962 = vunpack.c.l.b16 %v5630
    %v5963 = vunpack.c.l.b16 %v5631
    %v5964 = vunpack.c.l.b16 %v5632
    %v5965 = vunpack.c.l.b16 %v5633
    %v5966 = vunpack.c.h.b16 %v5630
    %v5967 = vunpack.c.h.b16 %v5631
    %v5968 = vunpack.c.h.b16 %v5632
    %v5969 = vunpack.c.h.b16 %v5633
    %v5970 = vunpack.c.l.b16 %v5634
    %v5971 = vunpack.c.l.b16 %v5635
    %v5972 = vunpack.c.l.b16 %v5636
    %v5973 = vunpack.c.l.b16 %v5637
    %v5974 = vunpack.c.h.b16 %v5634
    %v5975 = vunpack.c.h.b16 %v5635
    %v5976 = vunpack.c.h.b16 %v5636
    %v5977 = vunpack.c.h.b16 %v5637
    %v5978 = vunpack.c.l.b16 %v5638
    %v5979 = vunpack.c.l.b16 %v5639
    %v5980 = vunpack.c.l.b16 %v5640
    %v5981 = vunpack.c.l.b16 %v5641
    %v5982 = vunpack.c.h.b16 %v5638
    %v5983 = vunpack.c.h.b16 %v5639
    %v5984 = vunpack.c.h.b16 %v5640
    %v5985 = vunpack.c.h.b16 %v5641
    %v5986 = vunpack.c.l.b16 %v5642
    %v5987 = vunpack.c.l.b16 %v5643
    %v5988 = vunpack.c.l.b16 %v5644
    %v5989 = vunpack.c.l.b16 %v5645
    %v5990 = vunpack.c.h.b16 %v5642
    %v5991 = vunpack.c.h.b16 %v5643
    %v5992 = vunpack.c.h.b16 %v5644
    %v5993 = vunpack.c.h.b16 %v5645
    %v5994 = vunpack.c.l.b16 %v5646
    %v5995 = vunpack.c.l.b16 %v5647
    %v5996 = vunpack.c.l.b16 %v5648
    %v5997 = vunpack.c.l.b16 %v5649
    %v5998 = vunpack.c.h.b16 %v5646
    %v5999 = vunpack.c.h.b16 %v5647
    %v6000 = vunpack.c.h.b16 %v5648
    %v6001 = vunpack.c.h.b16 %v5649
    %v6002 = vunpack.c.l.b16 %v5650
    %v6003 = vunpack.c.l.b16 %v5651
    %v6004 = vunpack.c.l.b16 %v5652
    %v6005 = vunpack.c.l.b16 %v5653
    %v6006 = vunpack.c.h.b16 %v5650
    %v6007 = vunpack.c.h.b16 %v5651
    %v6008 = vunpack.c.h.b16 %v5652
    %v6009 = vunpack.c.h.b16 %v5653
    %v6010 = vunpack.c.l.b16 %v5654
    %v6011 = vunpack.c.l.b16 %v5655
    %v6012 = vunpack.c.l.b16 %v5656
    %v6013 = vunpack.c.l.b16 %v5657
    %v6014 = vunpack.c.h.b16 %v5654
    %v6015 = vunpack.c.h.b16 %v5655
    %v6016 = vunpack.c.h.b16 %v5656
    %v6017 = vunpack.c.h.b16 %v5657
    %v6018 = vunpack.c.l.b16 %v5658
    %v6019 = vunpack.c.l.b16 %v5659
    %v6020 = vunpack.c.l.b16 %v5660
    %v6021 = vunpack.c.l.b16 %v5661
    %v6022 = vunpack.c.h.b16 %v5658
    %v6023 = vunpack.c.h.b16 %v5659
    %v6024 = vunpack.c.h.b16 %v5660
    %v6025 = vunpack.c.h.b16 %v5661
    %v6026 = vunpack.c.l.b16 %v5662
    %v6027 = vunpack.c.l.b16 %v5663
    %v6028 = vunpack.c.l.b16 %v5664
    %v6029 = vunpack.c.l.b16 %v5665
    %v6030 = vunpack.c.h.b16 %v5662
    %v6031 = vunpack.c.h.b16 %v5663
    %v6032 = vunpack.c.h.b16 %v5664
    %v6033 = vunpack.c.h.b16 %v5665
    %v6034 = vunpack.c.l.b16 %v5666
    %v6035 = vunpack.c.l.b16 %v5667
    %v6036 = vunpack.c.l.b16 %v5668
    %v6037 = vunpack.c.l.b16 %v5669
    %v6038 = vunpack.c.h.b16 %v5666
    %v6039 = vunpack.c.h.b16 %v5667
    %v6040 = vunpack.c.h.b16 %v5668
    %v6041 = vunpack.c.h.b16 %v5669
    %v6042 = vunpack.c.l.b16 %v5670
    %v6043 = vunpack.c.l.b16 %v5671
    %v6044 = vunpack.c.l.b16 %v5672
    %v6045 = vunpack.c.l.b16 %v5673
    %v6046 = vunpack.c.h.b16 %v5670
    %v6047 = vunpack.c.h.b16 %v5671
    %v6048 = vunpack.c.h.b16 %v5672
    %v6049 = vunpack.c.h.b16 %v5673
    %v6050 = vunpack.c.l.b16 %v5674
    %v6051 = vunpack.c.l.b16 %v5675
    %v6052 = vunpack.c.l.b16 %v5676
    %v6053 = vunpack.c.l.b16 %v5677
    %v6054 = vunpack.c.h.b16 %v5674
    %v6055 = vunpack.c.h.b16 %v5675
    %v6056 = vunpack.c.h.b16 %v5676
    %v6057 = vunpack.c.h.b16 %v5677
    %v6058 = vunpack.c.l.b16 %v5678
    %v6059 = vunpack.c.l.b16 %v5679
    %v6060 = vunpack.c.l.b16 %v5680
    %v6061 = vunpack.c.l.b16 %v5681
    %v6062 = vunpack.c.h.b16 %v5678
    %v6063 = vunpack.c.h.b16 %v5679
    %v6064 = vunpack.c.h.b16 %v5680
    %v6065 = vunpack.c.h.b16 %v5681
    %v6066 = vpack.c.b16 %v5811, %v5810
    %v6067 = vpack.c.b16 %v5813, %v5812
    %v6068 = vpack.c.b16 %v5815, %v5814
    %v6069 = vpack.c.b16 %v5817, %v5816
    %v6070 = vpack.c.b16 %v5819, %v5818
    %v6071 = vpack.c.b16 %v5821, %v5820
    %v6072 = vpack.c.b16 %v5823, %v5822
    %v6073 = vpack.c.b16 %v5825, %v5824
    %v6074 = vpack.c.b16 %v5827, %v5826
    %v6075 = vpack.c.b16 %v5829, %v5828
    %v6076 = vpack.c.b16 %v5831, %v5830
    %v6077 = vpack.c.b16 %v5833, %v5832
    %v6078 = vpack.c.b16 %v5835, %v5834
    %v6079 = vpack.c.b16 %v5837, %v5836
    %v6080 = vpack.c.b16 %v5839, %v5838
    %v6081 = vpack.c.b16 %v5841, %v5840
    %v6082 = vpack.c.b16 %v5843, %v5842
    %v6083 = vpack.c.b16 %v5845, %v5844
    %v6084 = vpack.c.b16 %v5847, %v5846
    %v6085 = vpack.c.b16 %v5849, %v5848
    %v6086 = vpack.c.b16 %v5851, %v5850
    %v6087 = vpack.c.b16 %v5853, %v5852
    %v6088 = vpack.c.b16 %v5855, %v5854
    %v6089 = vpack.c.b16 %v5857, %v5856
    %v6090 = vpack.c.b16 %v5859, %v5858
    %v6091 = vpack.c.b16 %v5861, %v5860
    %v6092 = vpack.c.b16 %v5863, %v5862
    %v6093 = vpack.c.b16 %v5865, %v5864
    %v6094 = vpack.c.b16 %v5867, %v5866
    %v6095 = vpack.c.b16 %v5869, %v5868
    %v6096 = vpack.c.b16 %v5871, %v5870
    %v6097 = vpack.c.b16 %v5873, %v5872
    %v6098 = vpack.c.b16 %v5875, %v5874
    %v6099 = vpack.c.b16 %v5877, %v5876
    %v6100 = vpack.c.b16 %v5879, %v5878
    %v6101 = vpack.c.b16 %v5881, %v5880
    %v6102 = vpack.c.b16 %v5883, %v5882
    %v6103 = vpack.c.b16 %v5885, %v5884
    %v6104 = vpack.c.b16 %v5887, %v5886
    %v6105 = vpack.c.b16 %v5889, %v5888
    %v6106 = vpack.c.b16 %v5891, %v5890
    %v6107 = vpack.c.b16 %v5893, %v5892
    %v6108 = vpack.c.b16 %v5895, %v5894
    %v6109 = vpack.c.b16 %v5897, %v5896
    %v6110 = vpack.c.b16 %v5899, %v5898
    %v6111 = vpack.c.b16 %v5901, %v5900
    %v6112 = vpack.c.b16 %v5903, %v5902
    %v6113 = vpack.c.b16 %v5905, %v5904
    %v6114 = vpack.c.b16 %v5907, %v5906
    %v6115 = vpack.c.b16 %v5909, %v5908
    %v6116 = vpack.c.b16 %v5911, %v5910
    %v6117 = vpack.c.b16 %v5913, %v5912
    %v6118 = vpack.c.b16 %v5915, %v5914
    %v6119 = vpack.c.b16 %v5917, %v5916
    %v6120 = vpack.c.b16 %v5919, %v5918
    %v6121 = vpack.c.b16 %v5921, %v5920
    %v6122 = vpack.c.b16 %v5923, %v5922
    %v6123 = vpack.c.b16 %v5925, %v5924
    %v6124 = vpack.c.b16 %v5927, %v5926
    %v6125 = vpack.c.b16 %v5929, %v5928
    %v6126 = vpack.c.b16 %v5931, %v5930
    %v6127 = vpack.c.b16 %v5933, %v5932
    %v6128 = vpack.c.b16 %v5935, %v5934
    %v6129 = vpack.c.b16 %v5937, %v5936
    %v6130 = vpack.c.b16 %v5939, %v5938
    %v6131 = vpack.c.b16 %v5941, %v5940
    %v6132 = vpack.c.b16 %v5943, %v5942
    %v6133 = vpack.c.b16 %v5945, %v5944
    %v6134 = vpack.c.b16 %v5947, %v5946
    %v6135 = vpack.c.b16 %v5949, %v5948
    %v6136 = vpack.c.b16 %v5951, %v5950
    %v6137 = vpack.c.b16 %v5953, %v5952
    %v6138 = vpack.c.b16 %v5955, %v5954
    %v6139 = vpack.c.b16 %v5957, %v5956
    %v6140 = vpack.c.b16 %v5959, %v5958
    %v6141 = vpack.c.b16 %v5961, %v5960
    %v6142 = vpack.c.b16 %v5963, %v5962
    %v6143 = vpack.c.b16 %v5965, %v5964
    %v6144 = vpack.c.b16 %v5967, %v5966
    %v6145 = vpack.c.b16 %v5969, %v5968
    %v6146 = vpack.c.b16 %v5971, %v5970
    %v6147 = vpack.c.b16 %v5973, %v5972
    %v6148 = vpack.c.b16 %v5975, %v5974
    %v6149 = vpack.c.b16 %v5977, %v5976
    %v6150 = vpack.c.b16 %v5979, %v5978
    %v6151 = vpack.c.b16 %v5981, %v5980
    %v6152 = vpack.c.b16 %v5983, %v5982
    %v6153 = vpack.c.b16 %v5985, %v5984
    %v6154 = vpack.c.b16 %v5987, %v5986
    %v6155 = vpack.c.b16 %v5989, %v5988
    %v6156 = vpack.c.b16 %v5991, %v5990
    %v6157 = vpack.c.b16 %v5993, %v5992
    %v6158 = vpack.c.b16 %v5995, %v5994
    %v6159 = vpack.c.b16 %v5997, %v5996
    %v6160 = vpack.c.b16 %v5999, %v5998
    %v6161 = vpack.c.b16 %v6001, %v6000
    %v6162 = vpack.c.b16 %v6003, %v6002
    %v6163 = vpack.c.b16 %v6005, %v6004
    %v6164 = vpack.c.b16 %v6007, %v6006
    %v6165 = vpack.c.b16 %v6009, %v6008
    %v6166 = vpack.c.b16 %v6011, %v6010
    %v6167 = vpack.c.b16 %v6013, %v6012
    %v6168 = vpack.c.b16 %v6015, %v6014
    %v6169 = vpack.c.b16 %v6017, %v6016
    %v6170 = vpack.c.b16 %v6019, %v6018
    %v6171 = vpack.c.b16 %v6021, %v6020
    %v6172 = vpack.c.b16 %v6023, %v6022
    %v6173 = vpack.c.b16 %v6025, %v6024
    %v6174 = vpack.c.b16 %v6027, %v6026
    %v6175 = vpack.c.b16 %v6029, %v6028
    %v6176 = vpack.c.b16 %v6031, %v6030
    %v6177 = vpack.c.b16 %v6033, %v6032
    %v6178 = vpack.c.b16 %v6035, %v6034
    %v6179 = vpack.c.b16 %v6037, %v6036
    %v6180 = vpack.c.b16 %v6039, %v6038
    %v6181 = vpack.c.b16 %v6041, %v6040
    %v6182 = vpack.c.b16 %v6043, %v6042
    %v6183 = vpack.c.b16 %v6045, %v6044
    %v6184 = vpack.c.b16 %v6047, %v6046
    %v6185 = vpack.c.b16 %v6049, %v6048
    %v6186 = vpack.c.b16 %v6051, %v6050
    %v6187 = vpack.c.b16 %v6053, %v6052
    %v6188 = vpack.c.b16 %v6055, %v6054
    %v6189 = vpack.c.b16 %v6057, %v6056
    %v6190 = vpack.c.b16 %v6059, %v6058
    %v6191 = vpack.c.b16 %v6061, %v6060
    %v6192 = vpack.c.b16 %v6063, %v6062
    %v6193 = vpack.c.b16 %v6065, %v6064
    %6322 = vst [vmem:[#allocation9] sm:$0xff] %v6066
    %6323 = vst [vmem:[#allocation9 + $0x8] sm:$0xff] %v6067
    %6324 = vst [vmem:[#allocation9 + $0x10] sm:$0xff] %v6068
    %6325 = vst [vmem:[#allocation9 + $0x18] sm:$0xff] %v6069
    %6326 = vst [vmem:[#allocation9 + $0x20] sm:$0xff] %v6070
    %6327 = vst [vmem:[#allocation9 + $0x28] sm:$0xff] %v6071
    %6328 = vst [vmem:[#allocation9 + $0x30] sm:$0xff] %v6072
    %6329 = vst [vmem:[#allocation9 + $0x38] sm:$0xff] %v6073
    %6330 = vst [vmem:[#allocation9 + $0x40] sm:$0xff] %v6074
    %6331 = vst [vmem:[#allocation9 + $0x48] sm:$0xff] %v6075
    %6332 = vst [vmem:[#allocation9 + $0x50] sm:$0xff] %v6076
    %6333 = vst [vmem:[#allocation9 + $0x58] sm:$0xff] %v6077
    %6334 = vst [vmem:[#allocation9 + $0x60] sm:$0xff] %v6078
    %6335 = vst [vmem:[#allocation9 + $0x68] sm:$0xff] %v6079
    %6336 = vst [vmem:[#allocation9 + $0x70] sm:$0xff] %v6080
    %6337 = vst [vmem:[#allocation9 + $0x78] sm:$0xff] %v6081
    %6338 = vst [vmem:[#allocation9 + $0x80] sm:$0xff] %v6082
    %6339 = vst [vmem:[#allocation9 + $0x88] sm:$0xff] %v6083
    %6340 = vst [vmem:[#allocation9 + $0x90] sm:$0xff] %v6084
    %6341 = vst [vmem:[#allocation9 + $0x98] sm:$0xff] %v6085
    %6342 = vst [vmem:[#allocation9 + $0xa0] sm:$0xff] %v6086
    %6343 = vst [vmem:[#allocation9 + $0xa8] sm:$0xff] %v6087
    %6344 = vst [vmem:[#allocation9 + $0xb0] sm:$0xff] %v6088
    %6345 = vst [vmem:[#allocation9 + $0xb8] sm:$0xff] %v6089
    %6346 = vst [vmem:[#allocation9 + $0xc0] sm:$0xff] %v6090
    %6347 = vst [vmem:[#allocation9 + $0xc8] sm:$0xff] %v6091
    %6348 = vst [vmem:[#allocation9 + $0xd0] sm:$0xff] %v6092
    %6349 = vst [vmem:[#allocation9 + $0xd8] sm:$0xff] %v6093
    %6350 = vst [vmem:[#allocation9 + $0xe0] sm:$0xff] %v6094
    %6351 = vst [vmem:[#allocation9 + $0xe8] sm:$0xff] %v6095
    %6352 = vst [vmem:[#allocation9 + $0xf0] sm:$0xff] %v6096
    %6353 = vst [vmem:[#allocation9 + $0xf8] sm:$0xff] %v6097
    %6354 = vst [vmem:[#allocation9 + $0x100] sm:$0xff] %v6098
    %6355 = vst [vmem:[#allocation9 + $0x108] sm:$0xff] %v6099
    %6356 = vst [vmem:[#allocation9 + $0x110] sm:$0xff] %v6100
    %6357 = vst [vmem:[#allocation9 + $0x118] sm:$0xff] %v6101
    %6358 = vst [vmem:[#allocation9 + $0x120] sm:$0xff] %v6102
    %6359 = vst [vmem:[#allocation9 + $0x128] sm:$0xff] %v6103
    %6360 = vst [vmem:[#allocation9 + $0x130] sm:$0xff] %v6104
    %6361 = vst [vmem:[#allocation9 + $0x138] sm:$0xff] %v6105
    %6362 = vst [vmem:[#allocation9 + $0x140] sm:$0xff] %v6106
    %6363 = vst [vmem:[#allocation9 + $0x148] sm:$0xff] %v6107
    %6364 = vst [vmem:[#allocation9 + $0x150] sm:$0xff] %v6108
    %6365 = vst [vmem:[#allocation9 + $0x158] sm:$0xff] %v6109
    %6366 = vst [vmem:[#allocation9 + $0x160] sm:$0xff] %v6110
    %6367 = vst [vmem:[#allocation9 + $0x168] sm:$0xff] %v6111
    %6368 = vst [vmem:[#allocation9 + $0x170] sm:$0xff] %v6112
    %6369 = vst [vmem:[#allocation9 + $0x178] sm:$0xff] %v6113
    %6370 = vst [vmem:[#allocation9 + $0x180] sm:$0xff] %v6114
    %6371 = vst [vmem:[#allocation9 + $0x188] sm:$0xff] %v6115
    %6372 = vst [vmem:[#allocation9 + $0x190] sm:$0xff] %v6116
    %6373 = vst [vmem:[#allocation9 + $0x198] sm:$0xff] %v6117
    %6374 = vst [vmem:[#allocation9 + $0x1a0] sm:$0xff] %v6118
    %6375 = vst [vmem:[#allocation9 + $0x1a8] sm:$0xff] %v6119
    %6376 = vst [vmem:[#allocation9 + $0x1b0] sm:$0xff] %v6120
    %6377 = vst [vmem:[#allocation9 + $0x1b8] sm:$0xff] %v6121
    %6378 = vst [vmem:[#allocation9 + $0x1c0] sm:$0xff] %v6122
    %6379 = vst [vmem:[#allocation9 + $0x1c8] sm:$0xff] %v6123
    %6380 = vst [vmem:[#allocation9 + $0x1d0] sm:$0xff] %v6124
    %6381 = vst [vmem:[#allocation9 + $0x1d8] sm:$0xff] %v6125
    %6382 = vst [vmem:[#allocation9 + $0x1e0] sm:$0xff] %v6126
    %6383 = vst [vmem:[#allocation9 + $0x1e8] sm:$0xff] %v6127
    %6384 = vst [vmem:[#allocation9 + $0x1f0] sm:$0xff] %v6128
    %6385 = vst [vmem:[#allocation9 + $0x1f8] sm:$0xff] %v6129
    %6386 = vst [vmem:[#allocation9 + $0x200] sm:$0xff] %v6130
    %6387 = vst [vmem:[#allocation9 + $0x208] sm:$0xff] %v6131
    %6388 = vst [vmem:[#allocation9 + $0x210] sm:$0xff] %v6132
    %6389 = vst [vmem:[#allocation9 + $0x218] sm:$0xff] %v6133
    %6390 = vst [vmem:[#allocation9 + $0x220] sm:$0xff] %v6134
    %6391 = vst [vmem:[#allocation9 + $0x228] sm:$0xff] %v6135
    %6392 = vst [vmem:[#allocation9 + $0x230] sm:$0xff] %v6136
    %6393 = vst [vmem:[#allocation9 + $0x238] sm:$0xff] %v6137
    %6394 = vst [vmem:[#allocation9 + $0x240] sm:$0xff] %v6138
    %6395 = vst [vmem:[#allocation9 + $0x248] sm:$0xff] %v6139
    %6396 = vst [vmem:[#allocation9 + $0x250] sm:$0xff] %v6140
    %6397 = vst [vmem:[#allocation9 + $0x258] sm:$0xff] %v6141
    %6398 = vst [vmem:[#allocation9 + $0x260] sm:$0xff] %v6142
    %6399 = vst [vmem:[#allocation9 + $0x268] sm:$0xff] %v6143
    %6400 = vst [vmem:[#allocation9 + $0x270] sm:$0xff] %v6144
    %6401 = vst [vmem:[#allocation9 + $0x278] sm:$0xff] %v6145
    %6402 = vst [vmem:[#allocation9 + $0x280] sm:$0xff] %v6146
    %6403 = vst [vmem:[#allocation9 + $0x288] sm:$0xff] %v6147
    %6404 = vst [vmem:[#allocation9 + $0x290] sm:$0xff] %v6148
    %6405 = vst [vmem:[#allocation9 + $0x298] sm:$0xff] %v6149
    %6406 = vst [vmem:[#allocation9 + $0x2a0] sm:$0xff] %v6150
    %6407 = vst [vmem:[#allocation9 + $0x2a8] sm:$0xff] %v6151
    %6408 = vst [vmem:[#allocation9 + $0x2b0] sm:$0xff] %v6152
    %6409 = vst [vmem:[#allocation9 + $0x2b8] sm:$0xff] %v6153
    %6410 = vst [vmem:[#allocation9 + $0x2c0] sm:$0xff] %v6154
    %6411 = vst [vmem:[#allocation9 + $0x2c8] sm:$0xff] %v6155
    %6412 = vst [vmem:[#allocation9 + $0x2d0] sm:$0xff] %v6156
    %6413 = vst [vmem:[#allocation9 + $0x2d8] sm:$0xff] %v6157
    %6414 = vst [vmem:[#allocation9 + $0x2e0] sm:$0xff] %v6158
    %6415 = vst [vmem:[#allocation9 + $0x2e8] sm:$0xff] %v6159
    %6416 = vst [vmem:[#allocation9 + $0x2f0] sm:$0xff] %v6160
    %6417 = vst [vmem:[#allocation9 + $0x2f8] sm:$0xff] %v6161
    %6418 = vst [vmem:[#allocation9 + $0x300] sm:$0xff] %v6162
    %6419 = vst [vmem:[#allocation9 + $0x308] sm:$0xff] %v6163
    %6420 = vst [vmem:[#allocation9 + $0x310] sm:$0xff] %v6164
    %6421 = vst [vmem:[#allocation9 + $0x318] sm:$0xff] %v6165
    %6422 = vst [vmem:[#allocation9 + $0x320] sm:$0xff] %v6166
    %6423 = vst [vmem:[#allocation9 + $0x328] sm:$0xff] %v6167
    %6424 = vst [vmem:[#allocation9 + $0x330] sm:$0xff] %v6168
    %6425 = vst [vmem:[#allocation9 + $0x338] sm:$0xff] %v6169
    %6426 = vst [vmem:[#allocation9 + $0x340] sm:$0xff] %v6170
    %6427 = vst [vmem:[#allocation9 + $0x348] sm:$0xff] %v6171
    %6428 = vst [vmem:[#allocation9 + $0x350] sm:$0xff] %v6172
    %6429 = vst [vmem:[#allocation9 + $0x358] sm:$0xff] %v6173
    %6430 = vst [vmem:[#allocation9 + $0x360] sm:$0xff] %v6174
    %6431 = vst [vmem:[#allocation9 + $0x368] sm:$0xff] %v6175
    %6432 = vst [vmem:[#allocation9 + $0x370] sm:$0xff] %v6176
    %6433 = vst [vmem:[#allocation9 + $0x378] sm:$0xff] %v6177
    %6434 = vst [vmem:[#allocation9 + $0x380] sm:$0xff] %v6178
    %6435 = vst [vmem:[#allocation9 + $0x388] sm:$0xff] %v6179
    %6436 = vst [vmem:[#allocation9 + $0x390] sm:$0xff] %v6180
    %6437 = vst [vmem:[#allocation9 + $0x398] sm:$0xff] %v6181
    %6438 = vst [vmem:[#allocation9 + $0x3a0] sm:$0xff] %v6182
    %6439 = vst [vmem:[#allocation9 + $0x3a8] sm:$0xff] %v6183
    %6440 = vst [vmem:[#allocation9 + $0x3b0] sm:$0xff] %v6184
    %6441 = vst [vmem:[#allocation9 + $0x3b8] sm:$0xff] %v6185
    %6442 = vst [vmem:[#allocation9 + $0x3c0] sm:$0xff] %v6186
    %6443 = vst [vmem:[#allocation9 + $0x3c8] sm:$0xff] %v6187
    %6444 = vst [vmem:[#allocation9 + $0x3d0] sm:$0xff] %v6188
    %6445 = vst [vmem:[#allocation9 + $0x3d8] sm:$0xff] %v6189
    %6446 = vst [vmem:[#allocation9 + $0x3e0] sm:$0xff] %v6190
    %6447 = vst [vmem:[#allocation9 + $0x3e8] sm:$0xff] %v6191
    %6448 = vst [vmem:[#allocation9 + $0x3f0] sm:$0xff] %v6192
    %6449 = vst [vmem:[#allocation9 + $0x3f8] sm:$0xff] %v6193
    %s6450 = sld [smem:[#allocation3 + $0x80]]
    %v6451 = vstv %s6450
    %v6452 = vmul.f32 %v6451, %v34
    %v6453 = vmul.f32 %v6451, %v35
    %v6454 = vmul.f32 %v6451, %v36
    %v6455 = vmul.f32 %v6451, %v37
    %v6456 = vmul.f32 %v6451, %v38
    %v6457 = vmul.f32 %v6451, %v39
    %v6458 = vmul.f32 %v6451, %v40
    %v6459 = vmul.f32 %v6451, %v41
    %v6460 = vmul.f32 %v6451, %v42
    %v6461 = vmul.f32 %v6451, %v43
    %v6462 = vmul.f32 %v6451, %v44
    %v6463 = vmul.f32 %v6451, %v45
    %v6464 = vmul.f32 %v6451, %v46
    %v6465 = vmul.f32 %v6451, %v47
    %v6466 = vmul.f32 %v6451, %v48
    %v6467 = vmul.f32 %v6451, %v49
    %v6468 = vmul.f32 %v6451, %v50
    %v6469 = vmul.f32 %v6451, %v51
    %v6470 = vmul.f32 %v6451, %v52
    %v6471 = vmul.f32 %v6451, %v53
    %v6472 = vmul.f32 %v6451, %v54
    %v6473 = vmul.f32 %v6451, %v55
    %v6474 = vmul.f32 %v6451, %v56
    %v6475 = vmul.f32 %v6451, %v57
    %v6476 = vmul.f32 %v6451, %v58
    %v6477 = vmul.f32 %v6451, %v59
    %v6478 = vmul.f32 %v6451, %v60
    %v6479 = vmul.f32 %v6451, %v61
    %v6480 = vmul.f32 %v6451, %v62
    %v6481 = vmul.f32 %v6451, %v63
    %v6482 = vmul.f32 %v6451, %v64
    %v6483 = vmul.f32 %v6451, %v65
    %v6484 = vmul.f32 %v6451, %v66
    %v6485 = vmul.f32 %v6451, %v67
    %v6486 = vmul.f32 %v6451, %v68
    %v6487 = vmul.f32 %v6451, %v69
    %v6488 = vmul.f32 %v6451, %v70
    %v6489 = vmul.f32 %v6451, %v71
    %v6490 = vmul.f32 %v6451, %v72
    %v6491 = vmul.f32 %v6451, %v73
    %v6492 = vmul.f32 %v6451, %v74
    %v6493 = vmul.f32 %v6451, %v75
    %v6494 = vmul.f32 %v6451, %v76
    %v6495 = vmul.f32 %v6451, %v77
    %v6496 = vmul.f32 %v6451, %v78
    %v6497 = vmul.f32 %v6451, %v79
    %v6498 = vmul.f32 %v6451, %v80
    %v6499 = vmul.f32 %v6451, %v81
    %v6500 = vmul.f32 %v6451, %v82
    %v6501 = vmul.f32 %v6451, %v83
    %v6502 = vmul.f32 %v6451, %v84
    %v6503 = vmul.f32 %v6451, %v85
    %v6504 = vmul.f32 %v6451, %v86
    %v6505 = vmul.f32 %v6451, %v87
    %v6506 = vmul.f32 %v6451, %v88
    %v6507 = vmul.f32 %v6451, %v89
    %v6508 = vmul.f32 %v6451, %v90
    %v6509 = vmul.f32 %v6451, %v91
    %v6510 = vmul.f32 %v6451, %v92
    %v6511 = vmul.f32 %v6451, %v93
    %v6512 = vmul.f32 %v6451, %v94
    %v6513 = vmul.f32 %v6451, %v95
    %v6514 = vmul.f32 %v6451, %v96
    %v6515 = vmul.f32 %v6451, %v97
    %v6516 = vmul.f32 %v6451, %v98
    %v6517 = vmul.f32 %v6451, %v99
    %v6518 = vmul.f32 %v6451, %v100
    %v6519 = vmul.f32 %v6451, %v101
    %v6520 = vmul.f32 %v6451, %v102
    %v6521 = vmul.f32 %v6451, %v103
    %v6522 = vmul.f32 %v6451, %v104
    %v6523 = vmul.f32 %v6451, %v105
    %v6524 = vmul.f32 %v6451, %v106
    %v6525 = vmul.f32 %v6451, %v107
    %v6526 = vmul.f32 %v6451, %v108
    %v6527 = vmul.f32 %v6451, %v109
    %v6528 = vmul.f32 %v6451, %v110
    %v6529 = vmul.f32 %v6451, %v111
    %v6530 = vmul.f32 %v6451, %v112
    %v6531 = vmul.f32 %v6451, %v113
    %v6532 = vmul.f32 %v6451, %v114
    %v6533 = vmul.f32 %v6451, %v115
    %v6534 = vmul.f32 %v6451, %v116
    %v6535 = vmul.f32 %v6451, %v117
    %v6536 = vmul.f32 %v6451, %v118
    %v6537 = vmul.f32 %v6451, %v119
    %v6538 = vmul.f32 %v6451, %v120
    %v6539 = vmul.f32 %v6451, %v121
    %v6540 = vmul.f32 %v6451, %v122
    %v6541 = vmul.f32 %v6451, %v123
    %v6542 = vmul.f32 %v6451, %v124
    %v6543 = vmul.f32 %v6451, %v125
    %v6544 = vmul.f32 %v6451, %v126
    %v6545 = vmul.f32 %v6451, %v127
    %v6546 = vmul.f32 %v6451, %v128
    %v6547 = vmul.f32 %v6451, %v129
    %v6548 = vmul.f32 %v6451, %v130
    %v6549 = vmul.f32 %v6451, %v131
    %v6550 = vmul.f32 %v6451, %v132
    %v6551 = vmul.f32 %v6451, %v133
    %v6552 = vmul.f32 %v6451, %v134
    %v6553 = vmul.f32 %v6451, %v135
    %v6554 = vmul.f32 %v6451, %v136
    %v6555 = vmul.f32 %v6451, %v137
    %v6556 = vmul.f32 %v6451, %v138
    %v6557 = vmul.f32 %v6451, %v139
    %v6558 = vmul.f32 %v6451, %v140
    %v6559 = vmul.f32 %v6451, %v141
    %v6560 = vmul.f32 %v6451, %v142
    %v6561 = vmul.f32 %v6451, %v143
    %v6562 = vmul.f32 %v6451, %v144
    %v6563 = vmul.f32 %v6451, %v145
    %v6564 = vmul.f32 %v6451, %v146
    %v6565 = vmul.f32 %v6451, %v147
    %v6566 = vmul.f32 %v6451, %v148
    %v6567 = vmul.f32 %v6451, %v149
    %v6568 = vmul.f32 %v6451, %v150
    %v6569 = vmul.f32 %v6451, %v151
    %v6570 = vmul.f32 %v6451, %v152
    %v6571 = vmul.f32 %v6451, %v153
    %v6572 = vmul.f32 %v6451, %v154
    %v6573 = vmul.f32 %v6451, %v155
    %v6574 = vmul.f32 %v6451, %v156
    %v6575 = vmul.f32 %v6451, %v157
    %v6576 = vmul.f32 %v6451, %v158
    %v6577 = vmul.f32 %v6451, %v159
    %v6578 = vmul.f32 %v6451, %v160
    %v6579 = vmul.f32 %v6451, %v161
    %v6580 = vmul.f32 %v6451, %v162
    %v6581 = vmul.f32 %v6451, %v163
    %v6582 = vmul.f32 %v6451, %v164
    %v6583 = vmul.f32 %v6451, %v165
    %v6584 = vmul.f32 %v6451, %v166
    %v6585 = vmul.f32 %v6451, %v167
    %v6586 = vmul.f32 %v6451, %v168
    %v6587 = vmul.f32 %v6451, %v169
    %v6588 = vmul.f32 %v6451, %v170
    %v6589 = vmul.f32 %v6451, %v171
    %v6590 = vmul.f32 %v6451, %v172
    %v6591 = vmul.f32 %v6451, %v173
    %v6592 = vmul.f32 %v6451, %v174
    %v6593 = vmul.f32 %v6451, %v175
    %v6594 = vmul.f32 %v6451, %v176
    %v6595 = vmul.f32 %v6451, %v177
    %v6596 = vmul.f32 %v6451, %v178
    %v6597 = vmul.f32 %v6451, %v179
    %v6598 = vmul.f32 %v6451, %v180
    %v6599 = vmul.f32 %v6451, %v181
    %v6600 = vmul.f32 %v6451, %v182
    %v6601 = vmul.f32 %v6451, %v183
    %v6602 = vmul.f32 %v6451, %v184
    %v6603 = vmul.f32 %v6451, %v185
    %v6604 = vmul.f32 %v6451, %v186
    %v6605 = vmul.f32 %v6451, %v187
    %v6606 = vmul.f32 %v6451, %v188
    %v6607 = vmul.f32 %v6451, %v189
    %v6608 = vmul.f32 %v6451, %v190
    %v6609 = vmul.f32 %v6451, %v191
    %v6610 = vmul.f32 %v6451, %v192
    %v6611 = vmul.f32 %v6451, %v193
    %v6612 = vmul.f32 %v6451, %v194
    %v6613 = vmul.f32 %v6451, %v195
    %v6614 = vmul.f32 %v6451, %v196
    %v6615 = vmul.f32 %v6451, %v197
    %v6616 = vmul.f32 %v6451, %v198
    %v6617 = vmul.f32 %v6451, %v199
    %v6618 = vmul.f32 %v6451, %v200
    %v6619 = vmul.f32 %v6451, %v201
    %v6620 = vmul.f32 %v6451, %v202
    %v6621 = vmul.f32 %v6451, %v203
    %v6622 = vmul.f32 %v6451, %v204
    %v6623 = vmul.f32 %v6451, %v205
    %v6624 = vmul.f32 %v6451, %v206
    %v6625 = vmul.f32 %v6451, %v207
    %v6626 = vmul.f32 %v6451, %v208
    %v6627 = vmul.f32 %v6451, %v209
    %v6628 = vmul.f32 %v6451, %v210
    %v6629 = vmul.f32 %v6451, %v211
    %v6630 = vmul.f32 %v6451, %v212
    %v6631 = vmul.f32 %v6451, %v213
    %v6632 = vmul.f32 %v6451, %v214
    %v6633 = vmul.f32 %v6451, %v215
    %v6634 = vmul.f32 %v6451, %v216
    %v6635 = vmul.f32 %v6451, %v217
    %v6636 = vmul.f32 %v6451, %v218
    %v6637 = vmul.f32 %v6451, %v219
    %v6638 = vmul.f32 %v6451, %v220
    %v6639 = vmul.f32 %v6451, %v221
    %v6640 = vmul.f32 %v6451, %v222
    %v6641 = vmul.f32 %v6451, %v223
    %v6642 = vmul.f32 %v6451, %v224
    %v6643 = vmul.f32 %v6451, %v225
    %v6644 = vmul.f32 %v6451, %v226
    %v6645 = vmul.f32 %v6451, %v227
    %v6646 = vmul.f32 %v6451, %v228
    %v6647 = vmul.f32 %v6451, %v229
    %v6648 = vmul.f32 %v6451, %v230
    %v6649 = vmul.f32 %v6451, %v231
    %v6650 = vmul.f32 %v6451, %v232
    %v6651 = vmul.f32 %v6451, %v233
    %v6652 = vmul.f32 %v6451, %v234
    %v6653 = vmul.f32 %v6451, %v235
    %v6654 = vmul.f32 %v6451, %v236
    %v6655 = vmul.f32 %v6451, %v237
    %v6656 = vmul.f32 %v6451, %v238
    %v6657 = vmul.f32 %v6451, %v239
    %v6658 = vmul.f32 %v6451, %v240
    %v6659 = vmul.f32 %v6451, %v241
    %v6660 = vmul.f32 %v6451, %v242
    %v6661 = vmul.f32 %v6451, %v243
    %v6662 = vmul.f32 %v6451, %v244
    %v6663 = vmul.f32 %v6451, %v245
    %v6664 = vmul.f32 %v6451, %v246
    %v6665 = vmul.f32 %v6451, %v247
    %v6666 = vmul.f32 %v6451, %v248
    %v6667 = vmul.f32 %v6451, %v249
    %v6668 = vmul.f32 %v6451, %v250
    %v6669 = vmul.f32 %v6451, %v251
    %v6670 = vmul.f32 %v6451, %v252
    %v6671 = vmul.f32 %v6451, %v253
    %v6672 = vmul.f32 %v6451, %v254
    %v6673 = vmul.f32 %v6451, %v255
    %v6674 = vmul.f32 %v6451, %v256
    %v6675 = vmul.f32 %v6451, %v257
    %v6676 = vmul.f32 %v6451, %v258
    %v6677 = vmul.f32 %v6451, %v259
    %v6678 = vmul.f32 %v6451, %v260
    %v6679 = vmul.f32 %v6451, %v261
    %v6680 = vmul.f32 %v6451, %v262
    %v6681 = vmul.f32 %v6451, %v263
    %v6682 = vmul.f32 %v6451, %v264
    %v6683 = vmul.f32 %v6451, %v265
    %v6684 = vmul.f32 %v6451, %v266
    %v6685 = vmul.f32 %v6451, %v267
    %v6686 = vmul.f32 %v6451, %v268
    %v6687 = vmul.f32 %v6451, %v269
    %v6688 = vmul.f32 %v6451, %v270
    %v6689 = vmul.f32 %v6451, %v271
    %v6690 = vmul.f32 %v6451, %v272
    %v6691 = vmul.f32 %v6451, %v273
    %v6692 = vmul.f32 %v6451, %v274
    %v6693 = vmul.f32 %v6451, %v275
    %v6694 = vmul.f32 %v6451, %v276
    %v6695 = vmul.f32 %v6451, %v277
    %v6696 = vmul.f32 %v6451, %v278
    %v6697 = vmul.f32 %v6451, %v279
    %v6698 = vmul.f32 %v6451, %v280
    %v6699 = vmul.f32 %v6451, %v281
    %v6700 = vmul.f32 %v6451, %v282
    %v6701 = vmul.f32 %v6451, %v283
    %v6702 = vmul.f32 %v6451, %v284
    %v6703 = vmul.f32 %v6451, %v285
    %v6704 = vmul.f32 %v6451, %v286
    %v6705 = vmul.f32 %v6451, %v287
    %v6706 = vmul.f32 %v6451, %v288
    %v6707 = vmul.f32 %v6451, %v289
    %s6708 = sld [smem:[#allocation4 + $0x80]]
    %v6709 = vstv %s6708
    %v6710 = vmul.f32 %v6709, %v34
    %v6711 = vmul.f32 %v6709, %v35
    %v6712 = vmul.f32 %v6709, %v36
    %v6713 = vmul.f32 %v6709, %v37
    %v6714 = vmul.f32 %v6709, %v38
    %v6715 = vmul.f32 %v6709, %v39
    %v6716 = vmul.f32 %v6709, %v40
    %v6717 = vmul.f32 %v6709, %v41
    %v6718 = vmul.f32 %v6709, %v42
    %v6719 = vmul.f32 %v6709, %v43
    %v6720 = vmul.f32 %v6709, %v44
    %v6721 = vmul.f32 %v6709, %v45
    %v6722 = vmul.f32 %v6709, %v46
    %v6723 = vmul.f32 %v6709, %v47
    %v6724 = vmul.f32 %v6709, %v48
    %v6725 = vmul.f32 %v6709, %v49
    %v6726 = vmul.f32 %v6709, %v50
    %v6727 = vmul.f32 %v6709, %v51
    %v6728 = vmul.f32 %v6709, %v52
    %v6729 = vmul.f32 %v6709, %v53
    %v6730 = vmul.f32 %v6709, %v54
    %v6731 = vmul.f32 %v6709, %v55
    %v6732 = vmul.f32 %v6709, %v56
    %v6733 = vmul.f32 %v6709, %v57
    %v6734 = vmul.f32 %v6709, %v58
    %v6735 = vmul.f32 %v6709, %v59
    %v6736 = vmul.f32 %v6709, %v60
    %v6737 = vmul.f32 %v6709, %v61
    %v6738 = vmul.f32 %v6709, %v62
    %v6739 = vmul.f32 %v6709, %v63
    %v6740 = vmul.f32 %v6709, %v64
    %v6741 = vmul.f32 %v6709, %v65
    %v6742 = vmul.f32 %v6709, %v66
    %v6743 = vmul.f32 %v6709, %v67
    %v6744 = vmul.f32 %v6709, %v68
    %v6745 = vmul.f32 %v6709, %v69
    %v6746 = vmul.f32 %v6709, %v70
    %v6747 = vmul.f32 %v6709, %v71
    %v6748 = vmul.f32 %v6709, %v72
    %v6749 = vmul.f32 %v6709, %v73
    %v6750 = vmul.f32 %v6709, %v74
    %v6751 = vmul.f32 %v6709, %v75
    %v6752 = vmul.f32 %v6709, %v76
    %v6753 = vmul.f32 %v6709, %v77
    %v6754 = vmul.f32 %v6709, %v78
    %v6755 = vmul.f32 %v6709, %v79
    %v6756 = vmul.f32 %v6709, %v80
    %v6757 = vmul.f32 %v6709, %v81
    %v6758 = vmul.f32 %v6709, %v82
    %v6759 = vmul.f32 %v6709, %v83
    %v6760 = vmul.f32 %v6709, %v84
    %v6761 = vmul.f32 %v6709, %v85
    %v6762 = vmul.f32 %v6709, %v86
    %v6763 = vmul.f32 %v6709, %v87
    %v6764 = vmul.f32 %v6709, %v88
    %v6765 = vmul.f32 %v6709, %v89
    %v6766 = vmul.f32 %v6709, %v90
    %v6767 = vmul.f32 %v6709, %v91
    %v6768 = vmul.f32 %v6709, %v92
    %v6769 = vmul.f32 %v6709, %v93
    %v6770 = vmul.f32 %v6709, %v94
    %v6771 = vmul.f32 %v6709, %v95
    %v6772 = vmul.f32 %v6709, %v96
    %v6773 = vmul.f32 %v6709, %v97
    %v6774 = vmul.f32 %v6709, %v98
    %v6775 = vmul.f32 %v6709, %v99
    %v6776 = vmul.f32 %v6709, %v100
    %v6777 = vmul.f32 %v6709, %v101
    %v6778 = vmul.f32 %v6709, %v102
    %v6779 = vmul.f32 %v6709, %v103
    %v6780 = vmul.f32 %v6709, %v104
    %v6781 = vmul.f32 %v6709, %v105
    %v6782 = vmul.f32 %v6709, %v106
    %v6783 = vmul.f32 %v6709, %v107
    %v6784 = vmul.f32 %v6709, %v108
    %v6785 = vmul.f32 %v6709, %v109
    %v6786 = vmul.f32 %v6709, %v110
    %v6787 = vmul.f32 %v6709, %v111
    %v6788 = vmul.f32 %v6709, %v112
    %v6789 = vmul.f32 %v6709, %v113
    %v6790 = vmul.f32 %v6709, %v114
    %v6791 = vmul.f32 %v6709, %v115
    %v6792 = vmul.f32 %v6709, %v116
    %v6793 = vmul.f32 %v6709, %v117
    %v6794 = vmul.f32 %v6709, %v118
    %v6795 = vmul.f32 %v6709, %v119
    %v6796 = vmul.f32 %v6709, %v120
    %v6797 = vmul.f32 %v6709, %v121
    %v6798 = vmul.f32 %v6709, %v122
    %v6799 = vmul.f32 %v6709, %v123
    %v6800 = vmul.f32 %v6709, %v124
    %v6801 = vmul.f32 %v6709, %v125
    %v6802 = vmul.f32 %v6709, %v126
    %v6803 = vmul.f32 %v6709, %v127
    %v6804 = vmul.f32 %v6709, %v128
    %v6805 = vmul.f32 %v6709, %v129
    %v6806 = vmul.f32 %v6709, %v130
    %v6807 = vmul.f32 %v6709, %v131
    %v6808 = vmul.f32 %v6709, %v132
    %v6809 = vmul.f32 %v6709, %v133
    %v6810 = vmul.f32 %v6709, %v134
    %v6811 = vmul.f32 %v6709, %v135
    %v6812 = vmul.f32 %v6709, %v136
    %v6813 = vmul.f32 %v6709, %v137
    %v6814 = vmul.f32 %v6709, %v138
    %v6815 = vmul.f32 %v6709, %v139
    %v6816 = vmul.f32 %v6709, %v140
    %v6817 = vmul.f32 %v6709, %v141
    %v6818 = vmul.f32 %v6709, %v142
    %v6819 = vmul.f32 %v6709, %v143
    %v6820 = vmul.f32 %v6709, %v144
    %v6821 = vmul.f32 %v6709, %v145
    %v6822 = vmul.f32 %v6709, %v146
    %v6823 = vmul.f32 %v6709, %v147
    %v6824 = vmul.f32 %v6709, %v148
    %v6825 = vmul.f32 %v6709, %v149
    %v6826 = vmul.f32 %v6709, %v150
    %v6827 = vmul.f32 %v6709, %v151
    %v6828 = vmul.f32 %v6709, %v152
    %v6829 = vmul.f32 %v6709, %v153
    %v6830 = vmul.f32 %v6709, %v154
    %v6831 = vmul.f32 %v6709, %v155
    %v6832 = vmul.f32 %v6709, %v156
    %v6833 = vmul.f32 %v6709, %v157
    %v6834 = vmul.f32 %v6709, %v158
    %v6835 = vmul.f32 %v6709, %v159
    %v6836 = vmul.f32 %v6709, %v160
    %v6837 = vmul.f32 %v6709, %v161
    %v6838 = vmul.f32 %v6709, %v162
    %v6839 = vmul.f32 %v6709, %v163
    %v6840 = vmul.f32 %v6709, %v164
    %v6841 = vmul.f32 %v6709, %v165
    %v6842 = vmul.f32 %v6709, %v166
    %v6843 = vmul.f32 %v6709, %v167
    %v6844 = vmul.f32 %v6709, %v168
    %v6845 = vmul.f32 %v6709, %v169
    %v6846 = vmul.f32 %v6709, %v170
    %v6847 = vmul.f32 %v6709, %v171
    %v6848 = vmul.f32 %v6709, %v172
    %v6849 = vmul.f32 %v6709, %v173
    %v6850 = vmul.f32 %v6709, %v174
    %v6851 = vmul.f32 %v6709, %v175
    %v6852 = vmul.f32 %v6709, %v176
    %v6853 = vmul.f32 %v6709, %v177
    %v6854 = vmul.f32 %v6709, %v178
    %v6855 = vmul.f32 %v6709, %v179
    %v6856 = vmul.f32 %v6709, %v180
    %v6857 = vmul.f32 %v6709, %v181
    %v6858 = vmul.f32 %v6709, %v182
    %v6859 = vmul.f32 %v6709, %v183
    %v6860 = vmul.f32 %v6709, %v184
    %v6861 = vmul.f32 %v6709, %v185
    %v6862 = vmul.f32 %v6709, %v186
    %v6863 = vmul.f32 %v6709, %v187
    %v6864 = vmul.f32 %v6709, %v188
    %v6865 = vmul.f32 %v6709, %v189
    %v6866 = vmul.f32 %v6709, %v190
    %v6867 = vmul.f32 %v6709, %v191
    %v6868 = vmul.f32 %v6709, %v192
    %v6869 = vmul.f32 %v6709, %v193
    %v6870 = vmul.f32 %v6709, %v194
    %v6871 = vmul.f32 %v6709, %v195
    %v6872 = vmul.f32 %v6709, %v196
    %v6873 = vmul.f32 %v6709, %v197
    %v6874 = vmul.f32 %v6709, %v198
    %v6875 = vmul.f32 %v6709, %v199
    %v6876 = vmul.f32 %v6709, %v200
    %v6877 = vmul.f32 %v6709, %v201
    %v6878 = vmul.f32 %v6709, %v202
    %v6879 = vmul.f32 %v6709, %v203
    %v6880 = vmul.f32 %v6709, %v204
    %v6881 = vmul.f32 %v6709, %v205
    %v6882 = vmul.f32 %v6709, %v206
    %v6883 = vmul.f32 %v6709, %v207
    %v6884 = vmul.f32 %v6709, %v208
    %v6885 = vmul.f32 %v6709, %v209
    %v6886 = vmul.f32 %v6709, %v210
    %v6887 = vmul.f32 %v6709, %v211
    %v6888 = vmul.f32 %v6709, %v212
    %v6889 = vmul.f32 %v6709, %v213
    %v6890 = vmul.f32 %v6709, %v214
    %v6891 = vmul.f32 %v6709, %v215
    %v6892 = vmul.f32 %v6709, %v216
    %v6893 = vmul.f32 %v6709, %v217
    %v6894 = vmul.f32 %v6709, %v218
    %v6895 = vmul.f32 %v6709, %v219
    %v6896 = vmul.f32 %v6709, %v220
    %v6897 = vmul.f32 %v6709, %v221
    %v6898 = vmul.f32 %v6709, %v222
    %v6899 = vmul.f32 %v6709, %v223
    %v6900 = vmul.f32 %v6709, %v224
    %v6901 = vmul.f32 %v6709, %v225
    %v6902 = vmul.f32 %v6709, %v226
    %v6903 = vmul.f32 %v6709, %v227
    %v6904 = vmul.f32 %v6709, %v228
    %v6905 = vmul.f32 %v6709, %v229
    %v6906 = vmul.f32 %v6709, %v230
    %v6907 = vmul.f32 %v6709, %v231
    %v6908 = vmul.f32 %v6709, %v232
    %v6909 = vmul.f32 %v6709, %v233
    %v6910 = vmul.f32 %v6709, %v234
    %v6911 = vmul.f32 %v6709, %v235
    %v6912 = vmul.f32 %v6709, %v236
    %v6913 = vmul.f32 %v6709, %v237
    %v6914 = vmul.f32 %v6709, %v238
    %v6915 = vmul.f32 %v6709, %v239
    %v6916 = vmul.f32 %v6709, %v240
    %v6917 = vmul.f32 %v6709, %v241
    %v6918 = vmul.f32 %v6709, %v242
    %v6919 = vmul.f32 %v6709, %v243
    %v6920 = vmul.f32 %v6709, %v244
    %v6921 = vmul.f32 %v6709, %v245
    %v6922 = vmul.f32 %v6709, %v246
    %v6923 = vmul.f32 %v6709, %v247
    %v6924 = vmul.f32 %v6709, %v248
    %v6925 = vmul.f32 %v6709, %v249
    %v6926 = vmul.f32 %v6709, %v250
    %v6927 = vmul.f32 %v6709, %v251
    %v6928 = vmul.f32 %v6709, %v252
    %v6929 = vmul.f32 %v6709, %v253
    %v6930 = vmul.f32 %v6709, %v254
    %v6931 = vmul.f32 %v6709, %v255
    %v6932 = vmul.f32 %v6709, %v256
    %v6933 = vmul.f32 %v6709, %v257
    %v6934 = vmul.f32 %v6709, %v258
    %v6935 = vmul.f32 %v6709, %v259
    %v6936 = vmul.f32 %v6709, %v260
    %v6937 = vmul.f32 %v6709, %v261
    %v6938 = vmul.f32 %v6709, %v262
    %v6939 = vmul.f32 %v6709, %v263
    %v6940 = vmul.f32 %v6709, %v264
    %v6941 = vmul.f32 %v6709, %v265
    %v6942 = vmul.f32 %v6709, %v266
    %v6943 = vmul.f32 %v6709, %v267
    %v6944 = vmul.f32 %v6709, %v268
    %v6945 = vmul.f32 %v6709, %v269
    %v6946 = vmul.f32 %v6709, %v270
    %v6947 = vmul.f32 %v6709, %v271
    %v6948 = vmul.f32 %v6709, %v272
    %v6949 = vmul.f32 %v6709, %v273
    %v6950 = vmul.f32 %v6709, %v274
    %v6951 = vmul.f32 %v6709, %v275
    %v6952 = vmul.f32 %v6709, %v276
    %v6953 = vmul.f32 %v6709, %v277
    %v6954 = vmul.f32 %v6709, %v278
    %v6955 = vmul.f32 %v6709, %v279
    %v6956 = vmul.f32 %v6709, %v280
    %v6957 = vmul.f32 %v6709, %v281
    %v6958 = vmul.f32 %v6709, %v282
    %v6959 = vmul.f32 %v6709, %v283
    %v6960 = vmul.f32 %v6709, %v284
    %v6961 = vmul.f32 %v6709, %v285
    %v6962 = vmul.f32 %v6709, %v286
    %v6963 = vmul.f32 %v6709, %v287
    %v6964 = vmul.f32 %v6709, %v288
    %v6965 = vmul.f32 %v6709, %v289
    %s6966 = sld [smem:[#allocation3 + $0x81]]
    %v6967 = vstv %s6966
    %v6968 = vmul.f32 %v6967, %v290
    %v6969 = vmul.f32 %v6967, %v291
    %v6970 = vmul.f32 %v6967, %v292
    %v6971 = vmul.f32 %v6967, %v293
    %v6972 = vmul.f32 %v6967, %v294
    %v6973 = vmul.f32 %v6967, %v295
    %v6974 = vmul.f32 %v6967, %v296
    %v6975 = vmul.f32 %v6967, %v297
    %v6976 = vmul.f32 %v6967, %v298
    %v6977 = vmul.f32 %v6967, %v299
    %v6978 = vmul.f32 %v6967, %v300
    %v6979 = vmul.f32 %v6967, %v301
    %v6980 = vmul.f32 %v6967, %v302
    %v6981 = vmul.f32 %v6967, %v303
    %v6982 = vmul.f32 %v6967, %v304
    %v6983 = vmul.f32 %v6967, %v305
    %v6984 = vmul.f32 %v6967, %v306
    %v6985 = vmul.f32 %v6967, %v307
    %v6986 = vmul.f32 %v6967, %v308
    %v6987 = vmul.f32 %v6967, %v309
    %v6988 = vmul.f32 %v6967, %v310
    %v6989 = vmul.f32 %v6967, %v311
    %v6990 = vmul.f32 %v6967, %v312
    %v6991 = vmul.f32 %v6967, %v313
    %v6992 = vmul.f32 %v6967, %v314
    %v6993 = vmul.f32 %v6967, %v315
    %v6994 = vmul.f32 %v6967, %v316
    %v6995 = vmul.f32 %v6967, %v317
    %v6996 = vmul.f32 %v6967, %v318
    %v6997 = vmul.f32 %v6967, %v319
    %v6998 = vmul.f32 %v6967, %v320
    %v6999 = vmul.f32 %v6967, %v321
    %v7000 = vmul.f32 %v6967, %v322
    %v7001 = vmul.f32 %v6967, %v323
    %v7002 = vmul.f32 %v6967, %v324
    %v7003 = vmul.f32 %v6967, %v325
    %v7004 = vmul.f32 %v6967, %v326
    %v7005 = vmul.f32 %v6967, %v327
    %v7006 = vmul.f32 %v6967, %v328
    %v7007 = vmul.f32 %v6967, %v329
    %v7008 = vmul.f32 %v6967, %v330
    %v7009 = vmul.f32 %v6967, %v331
    %v7010 = vmul.f32 %v6967, %v332
    %v7011 = vmul.f32 %v6967, %v333
    %v7012 = vmul.f32 %v6967, %v334
    %v7013 = vmul.f32 %v6967, %v335
    %v7014 = vmul.f32 %v6967, %v336
    %v7015 = vmul.f32 %v6967, %v337
    %v7016 = vmul.f32 %v6967, %v338
    %v7017 = vmul.f32 %v6967, %v339
    %v7018 = vmul.f32 %v6967, %v340
    %v7019 = vmul.f32 %v6967, %v341
    %v7020 = vmul.f32 %v6967, %v342
    %v7021 = vmul.f32 %v6967, %v343
    %v7022 = vmul.f32 %v6967, %v344
    %v7023 = vmul.f32 %v6967, %v345
    %v7024 = vmul.f32 %v6967, %v346
    %v7025 = vmul.f32 %v6967, %v347
    %v7026 = vmul.f32 %v6967, %v348
    %v7027 = vmul.f32 %v6967, %v349
    %v7028 = vmul.f32 %v6967, %v350
    %v7029 = vmul.f32 %v6967, %v351
    %v7030 = vmul.f32 %v6967, %v352
    %v7031 = vmul.f32 %v6967, %v353
    %v7032 = vmul.f32 %v6967, %v354
    %v7033 = vmul.f32 %v6967, %v355
    %v7034 = vmul.f32 %v6967, %v356
    %v7035 = vmul.f32 %v6967, %v357
    %v7036 = vmul.f32 %v6967, %v358
    %v7037 = vmul.f32 %v6967, %v359
    %v7038 = vmul.f32 %v6967, %v360
    %v7039 = vmul.f32 %v6967, %v361
    %v7040 = vmul.f32 %v6967, %v362
    %v7041 = vmul.f32 %v6967, %v363
    %v7042 = vmul.f32 %v6967, %v364
    %v7043 = vmul.f32 %v6967, %v365
    %v7044 = vmul.f32 %v6967, %v366
    %v7045 = vmul.f32 %v6967, %v367
    %v7046 = vmul.f32 %v6967, %v368
    %v7047 = vmul.f32 %v6967, %v369
    %v7048 = vmul.f32 %v6967, %v370
    %v7049 = vmul.f32 %v6967, %v371
    %v7050 = vmul.f32 %v6967, %v372
    %v7051 = vmul.f32 %v6967, %v373
    %v7052 = vmul.f32 %v6967, %v374
    %v7053 = vmul.f32 %v6967, %v375
    %v7054 = vmul.f32 %v6967, %v376
    %v7055 = vmul.f32 %v6967, %v377
    %v7056 = vmul.f32 %v6967, %v378
    %v7057 = vmul.f32 %v6967, %v379
    %v7058 = vmul.f32 %v6967, %v380
    %v7059 = vmul.f32 %v6967, %v381
    %v7060 = vmul.f32 %v6967, %v382
    %v7061 = vmul.f32 %v6967, %v383
    %v7062 = vmul.f32 %v6967, %v384
    %v7063 = vmul.f32 %v6967, %v385
    %v7064 = vmul.f32 %v6967, %v386
    %v7065 = vmul.f32 %v6967, %v387
    %v7066 = vmul.f32 %v6967, %v388
    %v7067 = vmul.f32 %v6967, %v389
    %v7068 = vmul.f32 %v6967, %v390
    %v7069 = vmul.f32 %v6967, %v391
    %v7070 = vmul.f32 %v6967, %v392
    %v7071 = vmul.f32 %v6967, %v393
    %v7072 = vmul.f32 %v6967, %v394
    %v7073 = vmul.f32 %v6967, %v395
    %v7074 = vmul.f32 %v6967, %v396
    %v7075 = vmul.f32 %v6967, %v397
    %v7076 = vmul.f32 %v6967, %v398
    %v7077 = vmul.f32 %v6967, %v399
    %v7078 = vmul.f32 %v6967, %v400
    %v7079 = vmul.f32 %v6967, %v401
    %v7080 = vmul.f32 %v6967, %v402
    %v7081 = vmul.f32 %v6967, %v403
    %v7082 = vmul.f32 %v6967, %v404
    %v7083 = vmul.f32 %v6967, %v405
    %v7084 = vmul.f32 %v6967, %v406
    %v7085 = vmul.f32 %v6967, %v407
    %v7086 = vmul.f32 %v6967, %v408
    %v7087 = vmul.f32 %v6967, %v409
    %v7088 = vmul.f32 %v6967, %v410
    %v7089 = vmul.f32 %v6967, %v411
    %v7090 = vmul.f32 %v6967, %v412
    %v7091 = vmul.f32 %v6967, %v413
    %v7092 = vmul.f32 %v6967, %v414
    %v7093 = vmul.f32 %v6967, %v415
    %v7094 = vmul.f32 %v6967, %v416
    %v7095 = vmul.f32 %v6967, %v417
    %v7096 = vmul.f32 %v6967, %v418
    %v7097 = vmul.f32 %v6967, %v419
    %v7098 = vmul.f32 %v6967, %v420
    %v7099 = vmul.f32 %v6967, %v421
    %v7100 = vmul.f32 %v6967, %v422
    %v7101 = vmul.f32 %v6967, %v423
    %v7102 = vmul.f32 %v6967, %v424
    %v7103 = vmul.f32 %v6967, %v425
    %v7104 = vmul.f32 %v6967, %v426
    %v7105 = vmul.f32 %v6967, %v427
    %v7106 = vmul.f32 %v6967, %v428
    %v7107 = vmul.f32 %v6967, %v429
    %v7108 = vmul.f32 %v6967, %v430
    %v7109 = vmul.f32 %v6967, %v431
    %v7110 = vmul.f32 %v6967, %v432
    %v7111 = vmul.f32 %v6967, %v433
    %v7112 = vmul.f32 %v6967, %v434
    %v7113 = vmul.f32 %v6967, %v435
    %v7114 = vmul.f32 %v6967, %v436
    %v7115 = vmul.f32 %v6967, %v437
    %v7116 = vmul.f32 %v6967, %v438
    %v7117 = vmul.f32 %v6967, %v439
    %v7118 = vmul.f32 %v6967, %v440
    %v7119 = vmul.f32 %v6967, %v441
    %v7120 = vmul.f32 %v6967, %v442
    %v7121 = vmul.f32 %v6967, %v443
    %v7122 = vmul.f32 %v6967, %v444
    %v7123 = vmul.f32 %v6967, %v445
    %v7124 = vmul.f32 %v6967, %v446
    %v7125 = vmul.f32 %v6967, %v447
    %v7126 = vmul.f32 %v6967, %v448
    %v7127 = vmul.f32 %v6967, %v449
    %v7128 = vmul.f32 %v6967, %v450
    %v7129 = vmul.f32 %v6967, %v451
    %v7130 = vmul.f32 %v6967, %v452
    %v7131 = vmul.f32 %v6967, %v453
    %v7132 = vmul.f32 %v6967, %v454
    %v7133 = vmul.f32 %v6967, %v455
    %v7134 = vmul.f32 %v6967, %v456
    %v7135 = vmul.f32 %v6967, %v457
    %v7136 = vmul.f32 %v6967, %v458
    %v7137 = vmul.f32 %v6967, %v459
    %v7138 = vmul.f32 %v6967, %v460
    %v7139 = vmul.f32 %v6967, %v461
    %v7140 = vmul.f32 %v6967, %v462
    %v7141 = vmul.f32 %v6967, %v463
    %v7142 = vmul.f32 %v6967, %v464
    %v7143 = vmul.f32 %v6967, %v465
    %v7144 = vmul.f32 %v6967, %v466
    %v7145 = vmul.f32 %v6967, %v467
    %v7146 = vmul.f32 %v6967, %v468
    %v7147 = vmul.f32 %v6967, %v469
    %v7148 = vmul.f32 %v6967, %v470
    %v7149 = vmul.f32 %v6967, %v471
    %v7150 = vmul.f32 %v6967, %v472
    %v7151 = vmul.f32 %v6967, %v473
    %v7152 = vmul.f32 %v6967, %v474
    %v7153 = vmul.f32 %v6967, %v475
    %v7154 = vmul.f32 %v6967, %v476
    %v7155 = vmul.f32 %v6967, %v477
    %v7156 = vmul.f32 %v6967, %v478
    %v7157 = vmul.f32 %v6967, %v479
    %v7158 = vmul.f32 %v6967, %v480
    %v7159 = vmul.f32 %v6967, %v481
    %v7160 = vmul.f32 %v6967, %v482
    %v7161 = vmul.f32 %v6967, %v483
    %v7162 = vmul.f32 %v6967, %v484
    %v7163 = vmul.f32 %v6967, %v485
    %v7164 = vmul.f32 %v6967, %v486
    %v7165 = vmul.f32 %v6967, %v487
    %v7166 = vmul.f32 %v6967, %v488
    %v7167 = vmul.f32 %v6967, %v489
    %v7168 = vmul.f32 %v6967, %v490
    %v7169 = vmul.f32 %v6967, %v491
    %v7170 = vmul.f32 %v6967, %v492
    %v7171 = vmul.f32 %v6967, %v493
    %v7172 = vmul.f32 %v6967, %v494
    %v7173 = vmul.f32 %v6967, %v495
    %v7174 = vmul.f32 %v6967, %v496
    %v7175 = vmul.f32 %v6967, %v497
    %v7176 = vmul.f32 %v6967, %v498
    %v7177 = vmul.f32 %v6967, %v499
    %v7178 = vmul.f32 %v6967, %v500
    %v7179 = vmul.f32 %v6967, %v501
    %v7180 = vmul.f32 %v6967, %v502
    %v7181 = vmul.f32 %v6967, %v503
    %v7182 = vmul.f32 %v6967, %v504
    %v7183 = vmul.f32 %v6967, %v505
    %v7184 = vmul.f32 %v6967, %v506
    %v7185 = vmul.f32 %v6967, %v507
    %v7186 = vmul.f32 %v6967, %v508
    %v7187 = vmul.f32 %v6967, %v509
    %v7188 = vmul.f32 %v6967, %v510
    %v7189 = vmul.f32 %v6967, %v511
    %v7190 = vmul.f32 %v6967, %v512
    %v7191 = vmul.f32 %v6967, %v513
    %v7192 = vmul.f32 %v6967, %v514
    %v7193 = vmul.f32 %v6967, %v515
    %v7194 = vmul.f32 %v6967, %v516
    %v7195 = vmul.f32 %v6967, %v517
    %v7196 = vmul.f32 %v6967, %v518
    %v7197 = vmul.f32 %v6967, %v519
    %v7198 = vmul.f32 %v6967, %v520
    %v7199 = vmul.f32 %v6967, %v521
    %v7200 = vmul.f32 %v6967, %v522
    %v7201 = vmul.f32 %v6967, %v523
    %v7202 = vmul.f32 %v6967, %v524
    %v7203 = vmul.f32 %v6967, %v525
    %v7204 = vmul.f32 %v6967, %v526
    %v7205 = vmul.f32 %v6967, %v527
    %v7206 = vmul.f32 %v6967, %v528
    %v7207 = vmul.f32 %v6967, %v529
    %v7208 = vmul.f32 %v6967, %v530
    %v7209 = vmul.f32 %v6967, %v531
    %v7210 = vmul.f32 %v6967, %v532
    %v7211 = vmul.f32 %v6967, %v533
    %v7212 = vmul.f32 %v6967, %v534
    %v7213 = vmul.f32 %v6967, %v535
    %v7214 = vmul.f32 %v6967, %v536
    %v7215 = vmul.f32 %v6967, %v537
    %v7216 = vmul.f32 %v6967, %v538
    %v7217 = vmul.f32 %v6967, %v539
    %v7218 = vmul.f32 %v6967, %v540
    %v7219 = vmul.f32 %v6967, %v541
    %v7220 = vmul.f32 %v6967, %v542
    %v7221 = vmul.f32 %v6967, %v543
    %v7222 = vmul.f32 %v6967, %v544
    %v7223 = vmul.f32 %v6967, %v545
    %v7224 = vadd.f32 %v6452, %v6968
    %v7225 = vadd.f32 %v6453, %v6969
    %v7226 = vadd.f32 %v6454, %v6970
    %v7227 = vadd.f32 %v6455, %v6971
    %v7228 = vadd.f32 %v6456, %v6972
    %v7229 = vadd.f32 %v6457, %v6973
    %v7230 = vadd.f32 %v6458, %v6974
    %v7231 = vadd.f32 %v6459, %v6975
    %v7232 = vadd.f32 %v6460, %v6976
    %v7233 = vadd.f32 %v6461, %v6977
    %v7234 = vadd.f32 %v6462, %v6978
    %v7235 = vadd.f32 %v6463, %v6979
    %v7236 = vadd.f32 %v6464, %v6980
    %v7237 = vadd.f32 %v6465, %v6981
    %v7238 = vadd.f32 %v6466, %v6982
    %v7239 = vadd.f32 %v6467, %v6983
    %v7240 = vadd.f32 %v6468, %v6984
    %v7241 = vadd.f32 %v6469, %v6985
    %v7242 = vadd.f32 %v6470, %v6986
    %v7243 = vadd.f32 %v6471, %v6987
    %v7244 = vadd.f32 %v6472, %v6988
    %v7245 = vadd.f32 %v6473, %v6989
    %v7246 = vadd.f32 %v6474, %v6990
    %v7247 = vadd.f32 %v6475, %v6991
    %v7248 = vadd.f32 %v6476, %v6992
    %v7249 = vadd.f32 %v6477, %v6993
    %v7250 = vadd.f32 %v6478, %v6994
    %v7251 = vadd.f32 %v6479, %v6995
    %v7252 = vadd.f32 %v6480, %v6996
    %v7253 = vadd.f32 %v6481, %v6997
    %v7254 = vadd.f32 %v6482, %v6998
    %v7255 = vadd.f32 %v6483, %v6999
    %v7256 = vadd.f32 %v6484, %v7000
    %v7257 = vadd.f32 %v6485, %v7001
    %v7258 = vadd.f32 %v6486, %v7002
    %v7259 = vadd.f32 %v6487, %v7003
    %v7260 = vadd.f32 %v6488, %v7004
    %v7261 = vadd.f32 %v6489, %v7005
    %v7262 = vadd.f32 %v6490, %v7006
    %v7263 = vadd.f32 %v6491, %v7007
    %v7264 = vadd.f32 %v6492, %v7008
    %v7265 = vadd.f32 %v6493, %v7009
    %v7266 = vadd.f32 %v6494, %v7010
    %v7267 = vadd.f32 %v6495, %v7011
    %v7268 = vadd.f32 %v6496, %v7012
    %v7269 = vadd.f32 %v6497, %v7013
    %v7270 = vadd.f32 %v6498, %v7014
    %v7271 = vadd.f32 %v6499, %v7015
    %v7272 = vadd.f32 %v6500, %v7016
    %v7273 = vadd.f32 %v6501, %v7017
    %v7274 = vadd.f32 %v6502, %v7018
    %v7275 = vadd.f32 %v6503, %v7019
    %v7276 = vadd.f32 %v6504, %v7020
    %v7277 = vadd.f32 %v6505, %v7021
    %v7278 = vadd.f32 %v6506, %v7022
    %v7279 = vadd.f32 %v6507, %v7023
    %v7280 = vadd.f32 %v6508, %v7024
    %v7281 = vadd.f32 %v6509, %v7025
    %v7282 = vadd.f32 %v6510, %v7026
    %v7283 = vadd.f32 %v6511, %v7027
    %v7284 = vadd.f32 %v6512, %v7028
    %v7285 = vadd.f32 %v6513, %v7029
    %v7286 = vadd.f32 %v6514, %v7030
    %v7287 = vadd.f32 %v6515, %v7031
    %v7288 = vadd.f32 %v6516, %v7032
    %v7289 = vadd.f32 %v6517, %v7033
    %v7290 = vadd.f32 %v6518, %v7034
    %v7291 = vadd.f32 %v6519, %v7035
    %v7292 = vadd.f32 %v6520, %v7036
    %v7293 = vadd.f32 %v6521, %v7037
    %v7294 = vadd.f32 %v6522, %v7038
    %v7295 = vadd.f32 %v6523, %v7039
    %v7296 = vadd.f32 %v6524, %v7040
    %v7297 = vadd.f32 %v6525, %v7041
    %v7298 = vadd.f32 %v6526, %v7042
    %v7299 = vadd.f32 %v6527, %v7043
    %v7300 = vadd.f32 %v6528, %v7044
    %v7301 = vadd.f32 %v6529, %v7045
    %v7302 = vadd.f32 %v6530, %v7046
    %v7303 = vadd.f32 %v6531, %v7047
    %v7304 = vadd.f32 %v6532, %v7048
    %v7305 = vadd.f32 %v6533, %v7049
    %v7306 = vadd.f32 %v6534, %v7050
    %v7307 = vadd.f32 %v6535, %v7051
    %v7308 = vadd.f32 %v6536, %v7052
    %v7309 = vadd.f32 %v6537, %v7053
    %v7310 = vadd.f32 %v6538, %v7054
    %v7311 = vadd.f32 %v6539, %v7055
    %v7312 = vadd.f32 %v6540, %v7056
    %v7313 = vadd.f32 %v6541, %v7057
    %v7314 = vadd.f32 %v6542, %v7058
    %v7315 = vadd.f32 %v6543, %v7059
    %v7316 = vadd.f32 %v6544, %v7060
    %v7317 = vadd.f32 %v6545, %v7061
    %v7318 = vadd.f32 %v6546, %v7062
    %v7319 = vadd.f32 %v6547, %v7063
    %v7320 = vadd.f32 %v6548, %v7064
    %v7321 = vadd.f32 %v6549, %v7065
    %v7322 = vadd.f32 %v6550, %v7066
    %v7323 = vadd.f32 %v6551, %v7067
    %v7324 = vadd.f32 %v6552, %v7068
    %v7325 = vadd.f32 %v6553, %v7069
    %v7326 = vadd.f32 %v6554, %v7070
    %v7327 = vadd.f32 %v6555, %v7071
    %v7328 = vadd.f32 %v6556, %v7072
    %v7329 = vadd.f32 %v6557, %v7073
    %v7330 = vadd.f32 %v6558, %v7074
    %v7331 = vadd.f32 %v6559, %v7075
    %v7332 = vadd.f32 %v6560, %v7076
    %v7333 = vadd.f32 %v6561, %v7077
    %v7334 = vadd.f32 %v6562, %v7078
    %v7335 = vadd.f32 %v6563, %v7079
    %v7336 = vadd.f32 %v6564, %v7080
    %v7337 = vadd.f32 %v6565, %v7081
    %v7338 = vadd.f32 %v6566, %v7082
    %v7339 = vadd.f32 %v6567, %v7083
    %v7340 = vadd.f32 %v6568, %v7084
    %v7341 = vadd.f32 %v6569, %v7085
    %v7342 = vadd.f32 %v6570, %v7086
    %v7343 = vadd.f32 %v6571, %v7087
    %v7344 = vadd.f32 %v6572, %v7088
    %v7345 = vadd.f32 %v6573, %v7089
    %v7346 = vadd.f32 %v6574, %v7090
    %v7347 = vadd.f32 %v6575, %v7091
    %v7348 = vadd.f32 %v6576, %v7092
    %v7349 = vadd.f32 %v6577, %v7093
    %v7350 = vadd.f32 %v6578, %v7094
    %v7351 = vadd.f32 %v6579, %v7095
    %v7352 = vadd.f32 %v6580, %v7096
    %v7353 = vadd.f32 %v6581, %v7097
    %v7354 = vadd.f32 %v6582, %v7098
    %v7355 = vadd.f32 %v6583, %v7099
    %v7356 = vadd.f32 %v6584, %v7100
    %v7357 = vadd.f32 %v6585, %v7101
    %v7358 = vadd.f32 %v6586, %v7102
    %v7359 = vadd.f32 %v6587, %v7103
    %v7360 = vadd.f32 %v6588, %v7104
    %v7361 = vadd.f32 %v6589, %v7105
    %v7362 = vadd.f32 %v6590, %v7106
    %v7363 = vadd.f32 %v6591, %v7107
    %v7364 = vadd.f32 %v6592, %v7108
    %v7365 = vadd.f32 %v6593, %v7109
    %v7366 = vadd.f32 %v6594, %v7110
    %v7367 = vadd.f32 %v6595, %v7111
    %v7368 = vadd.f32 %v6596, %v7112
    %v7369 = vadd.f32 %v6597, %v7113
    %v7370 = vadd.f32 %v6598, %v7114
    %v7371 = vadd.f32 %v6599, %v7115
    %v7372 = vadd.f32 %v6600, %v7116
    %v7373 = vadd.f32 %v6601, %v7117
    %v7374 = vadd.f32 %v6602, %v7118
    %v7375 = vadd.f32 %v6603, %v7119
    %v7376 = vadd.f32 %v6604, %v7120
    %v7377 = vadd.f32 %v6605, %v7121
    %v7378 = vadd.f32 %v6606, %v7122
    %v7379 = vadd.f32 %v6607, %v7123
    %v7380 = vadd.f32 %v6608, %v7124
    %v7381 = vadd.f32 %v6609, %v7125
    %v7382 = vadd.f32 %v6610, %v7126
    %v7383 = vadd.f32 %v6611, %v7127
    %v7384 = vadd.f32 %v6612, %v7128
    %v7385 = vadd.f32 %v6613, %v7129
    %v7386 = vadd.f32 %v6614, %v7130
    %v7387 = vadd.f32 %v6615, %v7131
    %v7388 = vadd.f32 %v6616, %v7132
    %v7389 = vadd.f32 %v6617, %v7133
    %v7390 = vadd.f32 %v6618, %v7134
    %v7391 = vadd.f32 %v6619, %v7135
    %v7392 = vadd.f32 %v6620, %v7136
    %v7393 = vadd.f32 %v6621, %v7137
    %v7394 = vadd.f32 %v6622, %v7138
    %v7395 = vadd.f32 %v6623, %v7139
    %v7396 = vadd.f32 %v6624, %v7140
    %v7397 = vadd.f32 %v6625, %v7141
    %v7398 = vadd.f32 %v6626, %v7142
    %v7399 = vadd.f32 %v6627, %v7143
    %v7400 = vadd.f32 %v6628, %v7144
    %v7401 = vadd.f32 %v6629, %v7145
    %v7402 = vadd.f32 %v6630, %v7146
    %v7403 = vadd.f32 %v6631, %v7147
    %v7404 = vadd.f32 %v6632, %v7148
    %v7405 = vadd.f32 %v6633, %v7149
    %v7406 = vadd.f32 %v6634, %v7150
    %v7407 = vadd.f32 %v6635, %v7151
    %v7408 = vadd.f32 %v6636, %v7152
    %v7409 = vadd.f32 %v6637, %v7153
    %v7410 = vadd.f32 %v6638, %v7154
    %v7411 = vadd.f32 %v6639, %v7155
    %v7412 = vadd.f32 %v6640, %v7156
    %v7413 = vadd.f32 %v6641, %v7157
    %v7414 = vadd.f32 %v6642, %v7158
    %v7415 = vadd.f32 %v6643, %v7159
    %v7416 = vadd.f32 %v6644, %v7160
    %v7417 = vadd.f32 %v6645, %v7161
    %v7418 = vadd.f32 %v6646, %v7162
    %v7419 = vadd.f32 %v6647, %v7163
    %v7420 = vadd.f32 %v6648, %v7164
    %v7421 = vadd.f32 %v6649, %v7165
    %v7422 = vadd.f32 %v6650, %v7166
    %v7423 = vadd.f32 %v6651, %v7167
    %v7424 = vadd.f32 %v6652, %v7168
    %v7425 = vadd.f32 %v6653, %v7169
    %v7426 = vadd.f32 %v6654, %v7170
    %v7427 = vadd.f32 %v6655, %v7171
    %v7428 = vadd.f32 %v6656, %v7172
    %v7429 = vadd.f32 %v6657, %v7173
    %v7430 = vadd.f32 %v6658, %v7174
    %v7431 = vadd.f32 %v6659, %v7175
    %v7432 = vadd.f32 %v6660, %v7176
    %v7433 = vadd.f32 %v6661, %v7177
    %v7434 = vadd.f32 %v6662, %v7178
    %v7435 = vadd.f32 %v6663, %v7179
    %v7436 = vadd.f32 %v6664, %v7180
    %v7437 = vadd.f32 %v6665, %v7181
    %v7438 = vadd.f32 %v6666, %v7182
    %v7439 = vadd.f32 %v6667, %v7183
    %v7440 = vadd.f32 %v6668, %v7184
    %v7441 = vadd.f32 %v6669, %v7185
    %v7442 = vadd.f32 %v6670, %v7186
    %v7443 = vadd.f32 %v6671, %v7187
    %v7444 = vadd.f32 %v6672, %v7188
    %v7445 = vadd.f32 %v6673, %v7189
    %v7446 = vadd.f32 %v6674, %v7190
    %v7447 = vadd.f32 %v6675, %v7191
    %v7448 = vadd.f32 %v6676, %v7192
    %v7449 = vadd.f32 %v6677, %v7193
    %v7450 = vadd.f32 %v6678, %v7194
    %v7451 = vadd.f32 %v6679, %v7195
    %v7452 = vadd.f32 %v6680, %v7196
    %v7453 = vadd.f32 %v6681, %v7197
    %v7454 = vadd.f32 %v6682, %v7198
    %v7455 = vadd.f32 %v6683, %v7199
    %v7456 = vadd.f32 %v6684, %v7200
    %v7457 = vadd.f32 %v6685, %v7201
    %v7458 = vadd.f32 %v6686, %v7202
    %v7459 = vadd.f32 %v6687, %v7203
    %v7460 = vadd.f32 %v6688, %v7204
    %v7461 = vadd.f32 %v6689, %v7205
    %v7462 = vadd.f32 %v6690, %v7206
    %v7463 = vadd.f32 %v6691, %v7207
    %v7464 = vadd.f32 %v6692, %v7208
    %v7465 = vadd.f32 %v6693, %v7209
    %v7466 = vadd.f32 %v6694, %v7210
    %v7467 = vadd.f32 %v6695, %v7211
    %v7468 = vadd.f32 %v6696, %v7212
    %v7469 = vadd.f32 %v6697, %v7213
    %v7470 = vadd.f32 %v6698, %v7214
    %v7471 = vadd.f32 %v6699, %v7215
    %v7472 = vadd.f32 %v6700, %v7216
    %v7473 = vadd.f32 %v6701, %v7217
    %v7474 = vadd.f32 %v6702, %v7218
    %v7475 = vadd.f32 %v6703, %v7219
    %v7476 = vadd.f32 %v6704, %v7220
    %v7477 = vadd.f32 %v6705, %v7221
    %v7478 = vadd.f32 %v6706, %v7222
    %v7479 = vadd.f32 %v6707, %v7223
    %s7480 = sld [smem:[#allocation4 + $0x81]]
    %v7481 = vstv %s7480
    %v7482 = vmul.f32 %v7481, %v290
    %v7483 = vmul.f32 %v7481, %v291
    %v7484 = vmul.f32 %v7481, %v292
    %v7485 = vmul.f32 %v7481, %v293
    %v7486 = vmul.f32 %v7481, %v294
    %v7487 = vmul.f32 %v7481, %v295
    %v7488 = vmul.f32 %v7481, %v296
    %v7489 = vmul.f32 %v7481, %v297
    %v7490 = vmul.f32 %v7481, %v298
    %v7491 = vmul.f32 %v7481, %v299
    %v7492 = vmul.f32 %v7481, %v300
    %v7493 = vmul.f32 %v7481, %v301
    %v7494 = vmul.f32 %v7481, %v302
    %v7495 = vmul.f32 %v7481, %v303
    %v7496 = vmul.f32 %v7481, %v304
    %v7497 = vmul.f32 %v7481, %v305
    %v7498 = vmul.f32 %v7481, %v306
    %v7499 = vmul.f32 %v7481, %v307
    %v7500 = vmul.f32 %v7481, %v308
    %v7501 = vmul.f32 %v7481, %v309
    %v7502 = vmul.f32 %v7481, %v310
    %v7503 = vmul.f32 %v7481, %v311
    %v7504 = vmul.f32 %v7481, %v312
    %v7505 = vmul.f32 %v7481, %v313
    %v7506 = vmul.f32 %v7481, %v314
    %v7507 = vmul.f32 %v7481, %v315
    %v7508 = vmul.f32 %v7481, %v316
    %v7509 = vmul.f32 %v7481, %v317
    %v7510 = vmul.f32 %v7481, %v318
    %v7511 = vmul.f32 %v7481, %v319
    %v7512 = vmul.f32 %v7481, %v320
    %v7513 = vmul.f32 %v7481, %v321
    %v7514 = vmul.f32 %v7481, %v322
    %v7515 = vmul.f32 %v7481, %v323
    %v7516 = vmul.f32 %v7481, %v324
    %v7517 = vmul.f32 %v7481, %v325
    %v7518 = vmul.f32 %v7481, %v326
    %v7519 = vmul.f32 %v7481, %v327
    %v7520 = vmul.f32 %v7481, %v328
    %v7521 = vmul.f32 %v7481, %v329
    %v7522 = vmul.f32 %v7481, %v330
    %v7523 = vmul.f32 %v7481, %v331
    %v7524 = vmul.f32 %v7481, %v332
    %v7525 = vmul.f32 %v7481, %v333
    %v7526 = vmul.f32 %v7481, %v334
    %v7527 = vmul.f32 %v7481, %v335
    %v7528 = vmul.f32 %v7481, %v336
    %v7529 = vmul.f32 %v7481, %v337
    %v7530 = vmul.f32 %v7481, %v338
    %v7531 = vmul.f32 %v7481, %v339
    %v7532 = vmul.f32 %v7481, %v340
    %v7533 = vmul.f32 %v7481, %v341
    %v7534 = vmul.f32 %v7481, %v342
    %v7535 = vmul.f32 %v7481, %v343
    %v7536 = vmul.f32 %v7481, %v344
    %v7537 = vmul.f32 %v7481, %v345
    %v7538 = vmul.f32 %v7481, %v346
    %v7539 = vmul.f32 %v7481, %v347
    %v7540 = vmul.f32 %v7481, %v348
    %v7541 = vmul.f32 %v7481, %v349
    %v7542 = vmul.f32 %v7481, %v350
    %v7543 = vmul.f32 %v7481, %v351
    %v7544 = vmul.f32 %v7481, %v352
    %v7545 = vmul.f32 %v7481, %v353
    %v7546 = vmul.f32 %v7481, %v354
    %v7547 = vmul.f32 %v7481, %v355
    %v7548 = vmul.f32 %v7481, %v356
    %v7549 = vmul.f32 %v7481, %v357
    %v7550 = vmul.f32 %v7481, %v358
    %v7551 = vmul.f32 %v7481, %v359
    %v7552 = vmul.f32 %v7481, %v360
    %v7553 = vmul.f32 %v7481, %v361
    %v7554 = vmul.f32 %v7481, %v362
    %v7555 = vmul.f32 %v7481, %v363
    %v7556 = vmul.f32 %v7481, %v364
    %v7557 = vmul.f32 %v7481, %v365
    %v7558 = vmul.f32 %v7481, %v366
    %v7559 = vmul.f32 %v7481, %v367
    %v7560 = vmul.f32 %v7481, %v368
    %v7561 = vmul.f32 %v7481, %v369
    %v7562 = vmul.f32 %v7481, %v370
    %v7563 = vmul.f32 %v7481, %v371
    %v7564 = vmul.f32 %v7481, %v372
    %v7565 = vmul.f32 %v7481, %v373
    %v7566 = vmul.f32 %v7481, %v374
    %v7567 = vmul.f32 %v7481, %v375
    %v7568 = vmul.f32 %v7481, %v376
    %v7569 = vmul.f32 %v7481, %v377
    %v7570 = vmul.f32 %v7481, %v378
    %v7571 = vmul.f32 %v7481, %v379
    %v7572 = vmul.f32 %v7481, %v380
    %v7573 = vmul.f32 %v7481, %v381
    %v7574 = vmul.f32 %v7481, %v382
    %v7575 = vmul.f32 %v7481, %v383
    %v7576 = vmul.f32 %v7481, %v384
    %v7577 = vmul.f32 %v7481, %v385
    %v7578 = vmul.f32 %v7481, %v386
    %v7579 = vmul.f32 %v7481, %v387
    %v7580 = vmul.f32 %v7481, %v388
    %v7581 = vmul.f32 %v7481, %v389
    %v7582 = vmul.f32 %v7481, %v390
    %v7583 = vmul.f32 %v7481, %v391
    %v7584 = vmul.f32 %v7481, %v392
    %v7585 = vmul.f32 %v7481, %v393
    %v7586 = vmul.f32 %v7481, %v394
    %v7587 = vmul.f32 %v7481, %v395
    %v7588 = vmul.f32 %v7481, %v396
    %v7589 = vmul.f32 %v7481, %v397
    %v7590 = vmul.f32 %v7481, %v398
    %v7591 = vmul.f32 %v7481, %v399
    %v7592 = vmul.f32 %v7481, %v400
    %v7593 = vmul.f32 %v7481, %v401
    %v7594 = vmul.f32 %v7481, %v402
    %v7595 = vmul.f32 %v7481, %v403
    %v7596 = vmul.f32 %v7481, %v404
    %v7597 = vmul.f32 %v7481, %v405
    %v7598 = vmul.f32 %v7481, %v406
    %v7599 = vmul.f32 %v7481, %v407
    %v7600 = vmul.f32 %v7481, %v408
    %v7601 = vmul.f32 %v7481, %v409
    %v7602 = vmul.f32 %v7481, %v410
    %v7603 = vmul.f32 %v7481, %v411
    %v7604 = vmul.f32 %v7481, %v412
    %v7605 = vmul.f32 %v7481, %v413
    %v7606 = vmul.f32 %v7481, %v414
    %v7607 = vmul.f32 %v7481, %v415
    %v7608 = vmul.f32 %v7481, %v416
    %v7609 = vmul.f32 %v7481, %v417
    %v7610 = vmul.f32 %v7481, %v418
    %v7611 = vmul.f32 %v7481, %v419
    %v7612 = vmul.f32 %v7481, %v420
    %v7613 = vmul.f32 %v7481, %v421
    %v7614 = vmul.f32 %v7481, %v422
    %v7615 = vmul.f32 %v7481, %v423
    %v7616 = vmul.f32 %v7481, %v424
    %v7617 = vmul.f32 %v7481, %v425
    %v7618 = vmul.f32 %v7481, %v426
    %v7619 = vmul.f32 %v7481, %v427
    %v7620 = vmul.f32 %v7481, %v428
    %v7621 = vmul.f32 %v7481, %v429
    %v7622 = vmul.f32 %v7481, %v430
    %v7623 = vmul.f32 %v7481, %v431
    %v7624 = vmul.f32 %v7481, %v432
    %v7625 = vmul.f32 %v7481, %v433
    %v7626 = vmul.f32 %v7481, %v434
    %v7627 = vmul.f32 %v7481, %v435
    %v7628 = vmul.f32 %v7481, %v436
    %v7629 = vmul.f32 %v7481, %v437
    %v7630 = vmul.f32 %v7481, %v438
    %v7631 = vmul.f32 %v7481, %v439
    %v7632 = vmul.f32 %v7481, %v440
    %v7633 = vmul.f32 %v7481, %v441
    %v7634 = vmul.f32 %v7481, %v442
    %v7635 = vmul.f32 %v7481, %v443
    %v7636 = vmul.f32 %v7481, %v444
    %v7637 = vmul.f32 %v7481, %v445
    %v7638 = vmul.f32 %v7481, %v446
    %v7639 = vmul.f32 %v7481, %v447
    %v7640 = vmul.f32 %v7481, %v448
    %v7641 = vmul.f32 %v7481, %v449
    %v7642 = vmul.f32 %v7481, %v450
    %v7643 = vmul.f32 %v7481, %v451
    %v7644 = vmul.f32 %v7481, %v452
    %v7645 = vmul.f32 %v7481, %v453
    %v7646 = vmul.f32 %v7481, %v454
    %v7647 = vmul.f32 %v7481, %v455
    %v7648 = vmul.f32 %v7481, %v456
    %v7649 = vmul.f32 %v7481, %v457
    %v7650 = vmul.f32 %v7481, %v458
    %v7651 = vmul.f32 %v7481, %v459
    %v7652 = vmul.f32 %v7481, %v460
    %v7653 = vmul.f32 %v7481, %v461
    %v7654 = vmul.f32 %v7481, %v462
    %v7655 = vmul.f32 %v7481, %v463
    %v7656 = vmul.f32 %v7481, %v464
    %v7657 = vmul.f32 %v7481, %v465
    %v7658 = vmul.f32 %v7481, %v466
    %v7659 = vmul.f32 %v7481, %v467
    %v7660 = vmul.f32 %v7481, %v468
    %v7661 = vmul.f32 %v7481, %v469
    %v7662 = vmul.f32 %v7481, %v470
    %v7663 = vmul.f32 %v7481, %v471
    %v7664 = vmul.f32 %v7481, %v472
    %v7665 = vmul.f32 %v7481, %v473
    %v7666 = vmul.f32 %v7481, %v474
    %v7667 = vmul.f32 %v7481, %v475
    %v7668 = vmul.f32 %v7481, %v476
    %v7669 = vmul.f32 %v7481, %v477
    %v7670 = vmul.f32 %v7481, %v478
    %v7671 = vmul.f32 %v7481, %v479
    %v7672 = vmul.f32 %v7481, %v480
    %v7673 = vmul.f32 %v7481, %v481
    %v7674 = vmul.f32 %v7481, %v482
    %v7675 = vmul.f32 %v7481, %v483
    %v7676 = vmul.f32 %v7481, %v484
    %v7677 = vmul.f32 %v7481, %v485
    %v7678 = vmul.f32 %v7481, %v486
    %v7679 = vmul.f32 %v7481, %v487
    %v7680 = vmul.f32 %v7481, %v488
    %v7681 = vmul.f32 %v7481, %v489
    %v7682 = vmul.f32 %v7481, %v490
    %v7683 = vmul.f32 %v7481, %v491
    %v7684 = vmul.f32 %v7481, %v492
    %v7685 = vmul.f32 %v7481, %v493
    %v7686 = vmul.f32 %v7481, %v494
    %v7687 = vmul.f32 %v7481, %v495
    %v7688 = vmul.f32 %v7481, %v496
    %v7689 = vmul.f32 %v7481, %v497
    %v7690 = vmul.f32 %v7481, %v498
    %v7691 = vmul.f32 %v7481, %v499
    %v7692 = vmul.f32 %v7481, %v500
    %v7693 = vmul.f32 %v7481, %v501
    %v7694 = vmul.f32 %v7481, %v502
    %v7695 = vmul.f32 %v7481, %v503
    %v7696 = vmul.f32 %v7481, %v504
    %v7697 = vmul.f32 %v7481, %v505
    %v7698 = vmul.f32 %v7481, %v506
    %v7699 = vmul.f32 %v7481, %v507
    %v7700 = vmul.f32 %v7481, %v508
    %v7701 = vmul.f32 %v7481, %v509
    %v7702 = vmul.f32 %v7481, %v510
    %v7703 = vmul.f32 %v7481, %v511
    %v7704 = vmul.f32 %v7481, %v512
    %v7705 = vmul.f32 %v7481, %v513
    %v7706 = vmul.f32 %v7481, %v514
    %v7707 = vmul.f32 %v7481, %v515
    %v7708 = vmul.f32 %v7481, %v516
    %v7709 = vmul.f32 %v7481, %v517
    %v7710 = vmul.f32 %v7481, %v518
    %v7711 = vmul.f32 %v7481, %v519
    %v7712 = vmul.f32 %v7481, %v520
    %v7713 = vmul.f32 %v7481, %v521
    %v7714 = vmul.f32 %v7481, %v522
    %v7715 = vmul.f32 %v7481, %v523
    %v7716 = vmul.f32 %v7481, %v524
    %v7717 = vmul.f32 %v7481, %v525
    %v7718 = vmul.f32 %v7481, %v526
    %v7719 = vmul.f32 %v7481, %v527
    %v7720 = vmul.f32 %v7481, %v528
    %v7721 = vmul.f32 %v7481, %v529
    %v7722 = vmul.f32 %v7481, %v530
    %v7723 = vmul.f32 %v7481, %v531
    %v7724 = vmul.f32 %v7481, %v532
    %v7725 = vmul.f32 %v7481, %v533
    %v7726 = vmul.f32 %v7481, %v534
    %v7727 = vmul.f32 %v7481, %v535
    %v7728 = vmul.f32 %v7481, %v536
    %v7729 = vmul.f32 %v7481, %v537
    %v7730 = vmul.f32 %v7481, %v538
    %v7731 = vmul.f32 %v7481, %v539
    %v7732 = vmul.f32 %v7481, %v540
    %v7733 = vmul.f32 %v7481, %v541
    %v7734 = vmul.f32 %v7481, %v542
    %v7735 = vmul.f32 %v7481, %v543
    %v7736 = vmul.f32 %v7481, %v544
    %v7737 = vmul.f32 %v7481, %v545
    %v7738 = vadd.f32 %v6710, %v7482
    %v7739 = vadd.f32 %v6711, %v7483
    %v7740 = vadd.f32 %v6712, %v7484
    %v7741 = vadd.f32 %v6713, %v7485
    %v7742 = vadd.f32 %v6714, %v7486
    %v7743 = vadd.f32 %v6715, %v7487
    %v7744 = vadd.f32 %v6716, %v7488
    %v7745 = vadd.f32 %v6717, %v7489
    %v7746 = vadd.f32 %v6718, %v7490
    %v7747 = vadd.f32 %v6719, %v7491
    %v7748 = vadd.f32 %v6720, %v7492
    %v7749 = vadd.f32 %v6721, %v7493
    %v7750 = vadd.f32 %v6722, %v7494
    %v7751 = vadd.f32 %v6723, %v7495
    %v7752 = vadd.f32 %v6724, %v7496
    %v7753 = vadd.f32 %v6725, %v7497
    %v7754 = vadd.f32 %v6726, %v7498
    %v7755 = vadd.f32 %v6727, %v7499
    %v7756 = vadd.f32 %v6728, %v7500
    %v7757 = vadd.f32 %v6729, %v7501
    %v7758 = vadd.f32 %v6730, %v7502
    %v7759 = vadd.f32 %v6731, %v7503
    %v7760 = vadd.f32 %v6732, %v7504
    %v7761 = vadd.f32 %v6733, %v7505
    %v7762 = vadd.f32 %v6734, %v7506
    %v7763 = vadd.f32 %v6735, %v7507
    %v7764 = vadd.f32 %v6736, %v7508
    %v7765 = vadd.f32 %v6737, %v7509
    %v7766 = vadd.f32 %v6738, %v7510
    %v7767 = vadd.f32 %v6739, %v7511
    %v7768 = vadd.f32 %v6740, %v7512
    %v7769 = vadd.f32 %v6741, %v7513
    %v7770 = vadd.f32 %v6742, %v7514
    %v7771 = vadd.f32 %v6743, %v7515
    %v7772 = vadd.f32 %v6744, %v7516
    %v7773 = vadd.f32 %v6745, %v7517
    %v7774 = vadd.f32 %v6746, %v7518
    %v7775 = vadd.f32 %v6747, %v7519
    %v7776 = vadd.f32 %v6748, %v7520
    %v7777 = vadd.f32 %v6749, %v7521
    %v7778 = vadd.f32 %v6750, %v7522
    %v7779 = vadd.f32 %v6751, %v7523
    %v7780 = vadd.f32 %v6752, %v7524
    %v7781 = vadd.f32 %v6753, %v7525
    %v7782 = vadd.f32 %v6754, %v7526
    %v7783 = vadd.f32 %v6755, %v7527
    %v7784 = vadd.f32 %v6756, %v7528
    %v7785 = vadd.f32 %v6757, %v7529
    %v7786 = vadd.f32 %v6758, %v7530
    %v7787 = vadd.f32 %v6759, %v7531
    %v7788 = vadd.f32 %v6760, %v7532
    %v7789 = vadd.f32 %v6761, %v7533
    %v7790 = vadd.f32 %v6762, %v7534
    %v7791 = vadd.f32 %v6763, %v7535
    %v7792 = vadd.f32 %v6764, %v7536
    %v7793 = vadd.f32 %v6765, %v7537
    %v7794 = vadd.f32 %v6766, %v7538
    %v7795 = vadd.f32 %v6767, %v7539
    %v7796 = vadd.f32 %v6768, %v7540
    %v7797 = vadd.f32 %v6769, %v7541
    %v7798 = vadd.f32 %v6770, %v7542
    %v7799 = vadd.f32 %v6771, %v7543
    %v7800 = vadd.f32 %v6772, %v7544
    %v7801 = vadd.f32 %v6773, %v7545
    %v7802 = vadd.f32 %v6774, %v7546
    %v7803 = vadd.f32 %v6775, %v7547
    %v7804 = vadd.f32 %v6776, %v7548
    %v7805 = vadd.f32 %v6777, %v7549
    %v7806 = vadd.f32 %v6778, %v7550
    %v7807 = vadd.f32 %v6779, %v7551
    %v7808 = vadd.f32 %v6780, %v7552
    %v7809 = vadd.f32 %v6781, %v7553
    %v7810 = vadd.f32 %v6782, %v7554
    %v7811 = vadd.f32 %v6783, %v7555
    %v7812 = vadd.f32 %v6784, %v7556
    %v7813 = vadd.f32 %v6785, %v7557
    %v7814 = vadd.f32 %v6786, %v7558
    %v7815 = vadd.f32 %v6787, %v7559
    %v7816 = vadd.f32 %v6788, %v7560
    %v7817 = vadd.f32 %v6789, %v7561
    %v7818 = vadd.f32 %v6790, %v7562
    %v7819 = vadd.f32 %v6791, %v7563
    %v7820 = vadd.f32 %v6792, %v7564
    %v7821 = vadd.f32 %v6793, %v7565
    %v7822 = vadd.f32 %v6794, %v7566
    %v7823 = vadd.f32 %v6795, %v7567
    %v7824 = vadd.f32 %v6796, %v7568
    %v7825 = vadd.f32 %v6797, %v7569
    %v7826 = vadd.f32 %v6798, %v7570
    %v7827 = vadd.f32 %v6799, %v7571
    %v7828 = vadd.f32 %v6800, %v7572
    %v7829 = vadd.f32 %v6801, %v7573
    %v7830 = vadd.f32 %v6802, %v7574
    %v7831 = vadd.f32 %v6803, %v7575
    %v7832 = vadd.f32 %v6804, %v7576
    %v7833 = vadd.f32 %v6805, %v7577
    %v7834 = vadd.f32 %v6806, %v7578
    %v7835 = vadd.f32 %v6807, %v7579
    %v7836 = vadd.f32 %v6808, %v7580
    %v7837 = vadd.f32 %v6809, %v7581
    %v7838 = vadd.f32 %v6810, %v7582
    %v7839 = vadd.f32 %v6811, %v7583
    %v7840 = vadd.f32 %v6812, %v7584
    %v7841 = vadd.f32 %v6813, %v7585
    %v7842 = vadd.f32 %v6814, %v7586
    %v7843 = vadd.f32 %v6815, %v7587
    %v7844 = vadd.f32 %v6816, %v7588
    %v7845 = vadd.f32 %v6817, %v7589
    %v7846 = vadd.f32 %v6818, %v7590
    %v7847 = vadd.f32 %v6819, %v7591
    %v7848 = vadd.f32 %v6820, %v7592
    %v7849 = vadd.f32 %v6821, %v7593
    %v7850 = vadd.f32 %v6822, %v7594
    %v7851 = vadd.f32 %v6823, %v7595
    %v7852 = vadd.f32 %v6824, %v7596
    %v7853 = vadd.f32 %v6825, %v7597
    %v7854 = vadd.f32 %v6826, %v7598
    %v7855 = vadd.f32 %v6827, %v7599
    %v7856 = vadd.f32 %v6828, %v7600
    %v7857 = vadd.f32 %v6829, %v7601
    %v7858 = vadd.f32 %v6830, %v7602
    %v7859 = vadd.f32 %v6831, %v7603
    %v7860 = vadd.f32 %v6832, %v7604
    %v7861 = vadd.f32 %v6833, %v7605
    %v7862 = vadd.f32 %v6834, %v7606
    %v7863 = vadd.f32 %v6835, %v7607
    %v7864 = vadd.f32 %v6836, %v7608
    %v7865 = vadd.f32 %v6837, %v7609
    %v7866 = vadd.f32 %v6838, %v7610
    %v7867 = vadd.f32 %v6839, %v7611
    %v7868 = vadd.f32 %v6840, %v7612
    %v7869 = vadd.f32 %v6841, %v7613
    %v7870 = vadd.f32 %v6842, %v7614
    %v7871 = vadd.f32 %v6843, %v7615
    %v7872 = vadd.f32 %v6844, %v7616
    %v7873 = vadd.f32 %v6845, %v7617
    %v7874 = vadd.f32 %v6846, %v7618
    %v7875 = vadd.f32 %v6847, %v7619
    %v7876 = vadd.f32 %v6848, %v7620
    %v7877 = vadd.f32 %v6849, %v7621
    %v7878 = vadd.f32 %v6850, %v7622
    %v7879 = vadd.f32 %v6851, %v7623
    %v7880 = vadd.f32 %v6852, %v7624
    %v7881 = vadd.f32 %v6853, %v7625
    %v7882 = vadd.f32 %v6854, %v7626
    %v7883 = vadd.f32 %v6855, %v7627
    %v7884 = vadd.f32 %v6856, %v7628
    %v7885 = vadd.f32 %v6857, %v7629
    %v7886 = vadd.f32 %v6858, %v7630
    %v7887 = vadd.f32 %v6859, %v7631
    %v7888 = vadd.f32 %v6860, %v7632
    %v7889 = vadd.f32 %v6861, %v7633
    %v7890 = vadd.f32 %v6862, %v7634
    %v7891 = vadd.f32 %v6863, %v7635
    %v7892 = vadd.f32 %v6864, %v7636
    %v7893 = vadd.f32 %v6865, %v7637
    %v7894 = vadd.f32 %v6866, %v7638
    %v7895 = vadd.f32 %v6867, %v7639
    %v7896 = vadd.f32 %v6868, %v7640
    %v7897 = vadd.f32 %v6869, %v7641
    %v7898 = vadd.f32 %v6870, %v7642
    %v7899 = vadd.f32 %v6871, %v7643
    %v7900 = vadd.f32 %v6872, %v7644
    %v7901 = vadd.f32 %v6873, %v7645
    %v7902 = vadd.f32 %v6874, %v7646
    %v7903 = vadd.f32 %v6875, %v7647
    %v7904 = vadd.f32 %v6876, %v7648
    %v7905 = vadd.f32 %v6877, %v7649
    %v7906 = vadd.f32 %v6878, %v7650
    %v7907 = vadd.f32 %v6879, %v7651
    %v7908 = vadd.f32 %v6880, %v7652
    %v7909 = vadd.f32 %v6881, %v7653
    %v7910 = vadd.f32 %v6882, %v7654
    %v7911 = vadd.f32 %v6883, %v7655
    %v7912 = vadd.f32 %v6884, %v7656
    %v7913 = vadd.f32 %v6885, %v7657
    %v7914 = vadd.f32 %v6886, %v7658
    %v7915 = vadd.f32 %v6887, %v7659
    %v7916 = vadd.f32 %v6888, %v7660
    %v7917 = vadd.f32 %v6889, %v7661
    %v7918 = vadd.f32 %v6890, %v7662
    %v7919 = vadd.f32 %v6891, %v7663
    %v7920 = vadd.f32 %v6892, %v7664
    %v7921 = vadd.f32 %v6893, %v7665
    %v7922 = vadd.f32 %v6894, %v7666
    %v7923 = vadd.f32 %v6895, %v7667
    %v7924 = vadd.f32 %v6896, %v7668
    %v7925 = vadd.f32 %v6897, %v7669
    %v7926 = vadd.f32 %v6898, %v7670
    %v7927 = vadd.f32 %v6899, %v7671
    %v7928 = vadd.f32 %v6900, %v7672
    %v7929 = vadd.f32 %v6901, %v7673
    %v7930 = vadd.f32 %v6902, %v7674
    %v7931 = vadd.f32 %v6903, %v7675
    %v7932 = vadd.f32 %v6904, %v7676
    %v7933 = vadd.f32 %v6905, %v7677
    %v7934 = vadd.f32 %v6906, %v7678
    %v7935 = vadd.f32 %v6907, %v7679
    %v7936 = vadd.f32 %v6908, %v7680
    %v7937 = vadd.f32 %v6909, %v7681
    %v7938 = vadd.f32 %v6910, %v7682
    %v7939 = vadd.f32 %v6911, %v7683
    %v7940 = vadd.f32 %v6912, %v7684
    %v7941 = vadd.f32 %v6913, %v7685
    %v7942 = vadd.f32 %v6914, %v7686
    %v7943 = vadd.f32 %v6915, %v7687
    %v7944 = vadd.f32 %v6916, %v7688
    %v7945 = vadd.f32 %v6917, %v7689
    %v7946 = vadd.f32 %v6918, %v7690
    %v7947 = vadd.f32 %v6919, %v7691
    %v7948 = vadd.f32 %v6920, %v7692
    %v7949 = vadd.f32 %v6921, %v7693
    %v7950 = vadd.f32 %v6922, %v7694
    %v7951 = vadd.f32 %v6923, %v7695
    %v7952 = vadd.f32 %v6924, %v7696
    %v7953 = vadd.f32 %v6925, %v7697
    %v7954 = vadd.f32 %v6926, %v7698
    %v7955 = vadd.f32 %v6927, %v7699
    %v7956 = vadd.f32 %v6928, %v7700
    %v7957 = vadd.f32 %v6929, %v7701
    %v7958 = vadd.f32 %v6930, %v7702
    %v7959 = vadd.f32 %v6931, %v7703
    %v7960 = vadd.f32 %v6932, %v7704
    %v7961 = vadd.f32 %v6933, %v7705
    %v7962 = vadd.f32 %v6934, %v7706
    %v7963 = vadd.f32 %v6935, %v7707
    %v7964 = vadd.f32 %v6936, %v7708
    %v7965 = vadd.f32 %v6937, %v7709
    %v7966 = vadd.f32 %v6938, %v7710
    %v7967 = vadd.f32 %v6939, %v7711
    %v7968 = vadd.f32 %v6940, %v7712
    %v7969 = vadd.f32 %v6941, %v7713
    %v7970 = vadd.f32 %v6942, %v7714
    %v7971 = vadd.f32 %v6943, %v7715
    %v7972 = vadd.f32 %v6944, %v7716
    %v7973 = vadd.f32 %v6945, %v7717
    %v7974 = vadd.f32 %v6946, %v7718
    %v7975 = vadd.f32 %v6947, %v7719
    %v7976 = vadd.f32 %v6948, %v7720
    %v7977 = vadd.f32 %v6949, %v7721
    %v7978 = vadd.f32 %v6950, %v7722
    %v7979 = vadd.f32 %v6951, %v7723
    %v7980 = vadd.f32 %v6952, %v7724
    %v7981 = vadd.f32 %v6953, %v7725
    %v7982 = vadd.f32 %v6954, %v7726
    %v7983 = vadd.f32 %v6955, %v7727
    %v7984 = vadd.f32 %v6956, %v7728
    %v7985 = vadd.f32 %v6957, %v7729
    %v7986 = vadd.f32 %v6958, %v7730
    %v7987 = vadd.f32 %v6959, %v7731
    %v7988 = vadd.f32 %v6960, %v7732
    %v7989 = vadd.f32 %v6961, %v7733
    %v7990 = vadd.f32 %v6962, %v7734
    %v7991 = vadd.f32 %v6963, %v7735
    %v7992 = vadd.f32 %v6964, %v7736
    %v7993 = vadd.f32 %v6965, %v7737
    %s7994 = sld [smem:[#allocation3 + $0x82]]
    %v7995 = vstv %s7994
    %v7996 = vmul.f32 %v7995, %v546
    %v7997 = vmul.f32 %v7995, %v547
    %v7998 = vmul.f32 %v7995, %v548
    %v7999 = vmul.f32 %v7995, %v549
    %v8000 = vmul.f32 %v7995, %v550
    %v8001 = vmul.f32 %v7995, %v551
    %v8002 = vmul.f32 %v7995, %v552
    %v8003 = vmul.f32 %v7995, %v553
    %v8004 = vmul.f32 %v7995, %v554
    %v8005 = vmul.f32 %v7995, %v555
    %v8006 = vmul.f32 %v7995, %v556
    %v8007 = vmul.f32 %v7995, %v557
    %v8008 = vmul.f32 %v7995, %v558
    %v8009 = vmul.f32 %v7995, %v559
    %v8010 = vmul.f32 %v7995, %v560
    %v8011 = vmul.f32 %v7995, %v561
    %v8012 = vmul.f32 %v7995, %v562
    %v8013 = vmul.f32 %v7995, %v563
    %v8014 = vmul.f32 %v7995, %v564
    %v8015 = vmul.f32 %v7995, %v565
    %v8016 = vmul.f32 %v7995, %v566
    %v8017 = vmul.f32 %v7995, %v567
    %v8018 = vmul.f32 %v7995, %v568
    %v8019 = vmul.f32 %v7995, %v569
    %v8020 = vmul.f32 %v7995, %v570
    %v8021 = vmul.f32 %v7995, %v571
    %v8022 = vmul.f32 %v7995, %v572
    %v8023 = vmul.f32 %v7995, %v573
    %v8024 = vmul.f32 %v7995, %v574
    %v8025 = vmul.f32 %v7995, %v575
    %v8026 = vmul.f32 %v7995, %v576
    %v8027 = vmul.f32 %v7995, %v577
    %v8028 = vmul.f32 %v7995, %v578
    %v8029 = vmul.f32 %v7995, %v579
    %v8030 = vmul.f32 %v7995, %v580
    %v8031 = vmul.f32 %v7995, %v581
    %v8032 = vmul.f32 %v7995, %v582
    %v8033 = vmul.f32 %v7995, %v583
    %v8034 = vmul.f32 %v7995, %v584
    %v8035 = vmul.f32 %v7995, %v585
    %v8036 = vmul.f32 %v7995, %v586
    %v8037 = vmul.f32 %v7995, %v587
    %v8038 = vmul.f32 %v7995, %v588
    %v8039 = vmul.f32 %v7995, %v589
    %v8040 = vmul.f32 %v7995, %v590
    %v8041 = vmul.f32 %v7995, %v591
    %v8042 = vmul.f32 %v7995, %v592
    %v8043 = vmul.f32 %v7995, %v593
    %v8044 = vmul.f32 %v7995, %v594
    %v8045 = vmul.f32 %v7995, %v595
    %v8046 = vmul.f32 %v7995, %v596
    %v8047 = vmul.f32 %v7995, %v597
    %v8048 = vmul.f32 %v7995, %v598
    %v8049 = vmul.f32 %v7995, %v599
    %v8050 = vmul.f32 %v7995, %v600
    %v8051 = vmul.f32 %v7995, %v601
    %v8052 = vmul.f32 %v7995, %v602
    %v8053 = vmul.f32 %v7995, %v603
    %v8054 = vmul.f32 %v7995, %v604
    %v8055 = vmul.f32 %v7995, %v605
    %v8056 = vmul.f32 %v7995, %v606
    %v8057 = vmul.f32 %v7995, %v607
    %v8058 = vmul.f32 %v7995, %v608
    %v8059 = vmul.f32 %v7995, %v609
    %v8060 = vmul.f32 %v7995, %v610
    %v8061 = vmul.f32 %v7995, %v611
    %v8062 = vmul.f32 %v7995, %v612
    %v8063 = vmul.f32 %v7995, %v613
    %v8064 = vmul.f32 %v7995, %v614
    %v8065 = vmul.f32 %v7995, %v615
    %v8066 = vmul.f32 %v7995, %v616
    %v8067 = vmul.f32 %v7995, %v617
    %v8068 = vmul.f32 %v7995, %v618
    %v8069 = vmul.f32 %v7995, %v619
    %v8070 = vmul.f32 %v7995, %v620
    %v8071 = vmul.f32 %v7995, %v621
    %v8072 = vmul.f32 %v7995, %v622
    %v8073 = vmul.f32 %v7995, %v623
    %v8074 = vmul.f32 %v7995, %v624
    %v8075 = vmul.f32 %v7995, %v625
    %v8076 = vmul.f32 %v7995, %v626
    %v8077 = vmul.f32 %v7995, %v627
    %v8078 = vmul.f32 %v7995, %v628
    %v8079 = vmul.f32 %v7995, %v629
    %v8080 = vmul.f32 %v7995, %v630
    %v8081 = vmul.f32 %v7995, %v631
    %v8082 = vmul.f32 %v7995, %v632
    %v8083 = vmul.f32 %v7995, %v633
    %v8084 = vmul.f32 %v7995, %v634
    %v8085 = vmul.f32 %v7995, %v635
    %v8086 = vmul.f32 %v7995, %v636
    %v8087 = vmul.f32 %v7995, %v637
    %v8088 = vmul.f32 %v7995, %v638
    %v8089 = vmul.f32 %v7995, %v639
    %v8090 = vmul.f32 %v7995, %v640
    %v8091 = vmul.f32 %v7995, %v641
    %v8092 = vmul.f32 %v7995, %v642
    %v8093 = vmul.f32 %v7995, %v643
    %v8094 = vmul.f32 %v7995, %v644
    %v8095 = vmul.f32 %v7995, %v645
    %v8096 = vmul.f32 %v7995, %v646
    %v8097 = vmul.f32 %v7995, %v647
    %v8098 = vmul.f32 %v7995, %v648
    %v8099 = vmul.f32 %v7995, %v649
    %v8100 = vmul.f32 %v7995, %v650
    %v8101 = vmul.f32 %v7995, %v651
    %v8102 = vmul.f32 %v7995, %v652
    %v8103 = vmul.f32 %v7995, %v653
    %v8104 = vmul.f32 %v7995, %v654
    %v8105 = vmul.f32 %v7995, %v655
    %v8106 = vmul.f32 %v7995, %v656
    %v8107 = vmul.f32 %v7995, %v657
    %v8108 = vmul.f32 %v7995, %v658
    %v8109 = vmul.f32 %v7995, %v659
    %v8110 = vmul.f32 %v7995, %v660
    %v8111 = vmul.f32 %v7995, %v661
    %v8112 = vmul.f32 %v7995, %v662
    %v8113 = vmul.f32 %v7995, %v663
    %v8114 = vmul.f32 %v7995, %v664
    %v8115 = vmul.f32 %v7995, %v665
    %v8116 = vmul.f32 %v7995, %v666
    %v8117 = vmul.f32 %v7995, %v667
    %v8118 = vmul.f32 %v7995, %v668
    %v8119 = vmul.f32 %v7995, %v669
    %v8120 = vmul.f32 %v7995, %v670
    %v8121 = vmul.f32 %v7995, %v671
    %v8122 = vmul.f32 %v7995, %v672
    %v8123 = vmul.f32 %v7995, %v673
    %v8124 = vmul.f32 %v7995, %v674
    %v8125 = vmul.f32 %v7995, %v675
    %v8126 = vmul.f32 %v7995, %v676
    %v8127 = vmul.f32 %v7995, %v677
    %v8128 = vmul.f32 %v7995, %v678
    %v8129 = vmul.f32 %v7995, %v679
    %v8130 = vmul.f32 %v7995, %v680
    %v8131 = vmul.f32 %v7995, %v681
    %v8132 = vmul.f32 %v7995, %v682
    %v8133 = vmul.f32 %v7995, %v683
    %v8134 = vmul.f32 %v7995, %v684
    %v8135 = vmul.f32 %v7995, %v685
    %v8136 = vmul.f32 %v7995, %v686
    %v8137 = vmul.f32 %v7995, %v687
    %v8138 = vmul.f32 %v7995, %v688
    %v8139 = vmul.f32 %v7995, %v689
    %v8140 = vmul.f32 %v7995, %v690
    %v8141 = vmul.f32 %v7995, %v691
    %v8142 = vmul.f32 %v7995, %v692
    %v8143 = vmul.f32 %v7995, %v693
    %v8144 = vmul.f32 %v7995, %v694
    %v8145 = vmul.f32 %v7995, %v695
    %v8146 = vmul.f32 %v7995, %v696
    %v8147 = vmul.f32 %v7995, %v697
    %v8148 = vmul.f32 %v7995, %v698
    %v8149 = vmul.f32 %v7995, %v699
    %v8150 = vmul.f32 %v7995, %v700
    %v8151 = vmul.f32 %v7995, %v701
    %v8152 = vmul.f32 %v7995, %v702
    %v8153 = vmul.f32 %v7995, %v703
    %v8154 = vmul.f32 %v7995, %v704
    %v8155 = vmul.f32 %v7995, %v705
    %v8156 = vmul.f32 %v7995, %v706
    %v8157 = vmul.f32 %v7995, %v707
    %v8158 = vmul.f32 %v7995, %v708
    %v8159 = vmul.f32 %v7995, %v709
    %v8160 = vmul.f32 %v7995, %v710
    %v8161 = vmul.f32 %v7995, %v711
    %v8162 = vmul.f32 %v7995, %v712
    %v8163 = vmul.f32 %v7995, %v713
    %v8164 = vmul.f32 %v7995, %v714
    %v8165 = vmul.f32 %v7995, %v715
    %v8166 = vmul.f32 %v7995, %v716
    %v8167 = vmul.f32 %v7995, %v717
    %v8168 = vmul.f32 %v7995, %v718
    %v8169 = vmul.f32 %v7995, %v719
    %v8170 = vmul.f32 %v7995, %v720
    %v8171 = vmul.f32 %v7995, %v721
    %v8172 = vmul.f32 %v7995, %v722
    %v8173 = vmul.f32 %v7995, %v723
    %v8174 = vmul.f32 %v7995, %v724
    %v8175 = vmul.f32 %v7995, %v725
    %v8176 = vmul.f32 %v7995, %v726
    %v8177 = vmul.f32 %v7995, %v727
    %v8178 = vmul.f32 %v7995, %v728
    %v8179 = vmul.f32 %v7995, %v729
    %v8180 = vmul.f32 %v7995, %v730
    %v8181 = vmul.f32 %v7995, %v731
    %v8182 = vmul.f32 %v7995, %v732
    %v8183 = vmul.f32 %v7995, %v733
    %v8184 = vmul.f32 %v7995, %v734
    %v8185 = vmul.f32 %v7995, %v735
    %v8186 = vmul.f32 %v7995, %v736
    %v8187 = vmul.f32 %v7995, %v737
    %v8188 = vmul.f32 %v7995, %v738
    %v8189 = vmul.f32 %v7995, %v739
    %v8190 = vmul.f32 %v7995, %v740
    %v8191 = vmul.f32 %v7995, %v741
    %v8192 = vmul.f32 %v7995, %v742
    %v8193 = vmul.f32 %v7995, %v743
    %v8194 = vmul.f32 %v7995, %v744
    %v8195 = vmul.f32 %v7995, %v745
    %v8196 = vmul.f32 %v7995, %v746
    %v8197 = vmul.f32 %v7995, %v747
    %v8198 = vmul.f32 %v7995, %v748
    %v8199 = vmul.f32 %v7995, %v749
    %v8200 = vmul.f32 %v7995, %v750
    %v8201 = vmul.f32 %v7995, %v751
    %v8202 = vmul.f32 %v7995, %v752
    %v8203 = vmul.f32 %v7995, %v753
    %v8204 = vmul.f32 %v7995, %v754
    %v8205 = vmul.f32 %v7995, %v755
    %v8206 = vmul.f32 %v7995, %v756
    %v8207 = vmul.f32 %v7995, %v757
    %v8208 = vmul.f32 %v7995, %v758
    %v8209 = vmul.f32 %v7995, %v759
    %v8210 = vmul.f32 %v7995, %v760
    %v8211 = vmul.f32 %v7995, %v761
    %v8212 = vmul.f32 %v7995, %v762
    %v8213 = vmul.f32 %v7995, %v763
    %v8214 = vmul.f32 %v7995, %v764
    %v8215 = vmul.f32 %v7995, %v765
    %v8216 = vmul.f32 %v7995, %v766
    %v8217 = vmul.f32 %v7995, %v767
    %v8218 = vmul.f32 %v7995, %v768
    %v8219 = vmul.f32 %v7995, %v769
    %v8220 = vmul.f32 %v7995, %v770
    %v8221 = vmul.f32 %v7995, %v771
    %v8222 = vmul.f32 %v7995, %v772
    %v8223 = vmul.f32 %v7995, %v773
    %v8224 = vmul.f32 %v7995, %v774
    %v8225 = vmul.f32 %v7995, %v775
    %v8226 = vmul.f32 %v7995, %v776
    %v8227 = vmul.f32 %v7995, %v777
    %v8228 = vmul.f32 %v7995, %v778
    %v8229 = vmul.f32 %v7995, %v779
    %v8230 = vmul.f32 %v7995, %v780
    %v8231 = vmul.f32 %v7995, %v781
    %v8232 = vmul.f32 %v7995, %v782
    %v8233 = vmul.f32 %v7995, %v783
    %v8234 = vmul.f32 %v7995, %v784
    %v8235 = vmul.f32 %v7995, %v785
    %v8236 = vmul.f32 %v7995, %v786
    %v8237 = vmul.f32 %v7995, %v787
    %v8238 = vmul.f32 %v7995, %v788
    %v8239 = vmul.f32 %v7995, %v789
    %v8240 = vmul.f32 %v7995, %v790
    %v8241 = vmul.f32 %v7995, %v791
    %v8242 = vmul.f32 %v7995, %v792
    %v8243 = vmul.f32 %v7995, %v793
    %v8244 = vmul.f32 %v7995, %v794
    %v8245 = vmul.f32 %v7995, %v795
    %v8246 = vmul.f32 %v7995, %v796
    %v8247 = vmul.f32 %v7995, %v797
    %v8248 = vmul.f32 %v7995, %v798
    %v8249 = vmul.f32 %v7995, %v799
    %v8250 = vmul.f32 %v7995, %v800
    %v8251 = vmul.f32 %v7995, %v801
    %v8252 = vadd.f32 %v7224, %v7996
    %v8253 = vadd.f32 %v7225, %v7997
    %v8254 = vadd.f32 %v7226, %v7998
    %v8255 = vadd.f32 %v7227, %v7999
    %v8256 = vadd.f32 %v7228, %v8000
    %v8257 = vadd.f32 %v7229, %v8001
    %v8258 = vadd.f32 %v7230, %v8002
    %v8259 = vadd.f32 %v7231, %v8003
    %v8260 = vadd.f32 %v7232, %v8004
    %v8261 = vadd.f32 %v7233, %v8005
    %v8262 = vadd.f32 %v7234, %v8006
    %v8263 = vadd.f32 %v7235, %v8007
    %v8264 = vadd.f32 %v7236, %v8008
    %v8265 = vadd.f32 %v7237, %v8009
    %v8266 = vadd.f32 %v7238, %v8010
    %v8267 = vadd.f32 %v7239, %v8011
    %v8268 = vadd.f32 %v7240, %v8012
    %v8269 = vadd.f32 %v7241, %v8013
    %v8270 = vadd.f32 %v7242, %v8014
    %v8271 = vadd.f32 %v7243, %v8015
    %v8272 = vadd.f32 %v7244, %v8016
    %v8273 = vadd.f32 %v7245, %v8017
    %v8274 = vadd.f32 %v7246, %v8018
    %v8275 = vadd.f32 %v7247, %v8019
    %v8276 = vadd.f32 %v7248, %v8020
    %v8277 = vadd.f32 %v7249, %v8021
    %v8278 = vadd.f32 %v7250, %v8022
    %v8279 = vadd.f32 %v7251, %v8023
    %v8280 = vadd.f32 %v7252, %v8024
    %v8281 = vadd.f32 %v7253, %v8025
    %v8282 = vadd.f32 %v7254, %v8026
    %v8283 = vadd.f32 %v7255, %v8027
    %v8284 = vadd.f32 %v7256, %v8028
    %v8285 = vadd.f32 %v7257, %v8029
    %v8286 = vadd.f32 %v7258, %v8030
    %v8287 = vadd.f32 %v7259, %v8031
    %v8288 = vadd.f32 %v7260, %v8032
    %v8289 = vadd.f32 %v7261, %v8033
    %v8290 = vadd.f32 %v7262, %v8034
    %v8291 = vadd.f32 %v7263, %v8035
    %v8292 = vadd.f32 %v7264, %v8036
    %v8293 = vadd.f32 %v7265, %v8037
    %v8294 = vadd.f32 %v7266, %v8038
    %v8295 = vadd.f32 %v7267, %v8039
    %v8296 = vadd.f32 %v7268, %v8040
    %v8297 = vadd.f32 %v7269, %v8041
    %v8298 = vadd.f32 %v7270, %v8042
    %v8299 = vadd.f32 %v7271, %v8043
    %v8300 = vadd.f32 %v7272, %v8044
    %v8301 = vadd.f32 %v7273, %v8045
    %v8302 = vadd.f32 %v7274, %v8046
    %v8303 = vadd.f32 %v7275, %v8047
    %v8304 = vadd.f32 %v7276, %v8048
    %v8305 = vadd.f32 %v7277, %v8049
    %v8306 = vadd.f32 %v7278, %v8050
    %v8307 = vadd.f32 %v7279, %v8051
    %v8308 = vadd.f32 %v7280, %v8052
    %v8309 = vadd.f32 %v7281, %v8053
    %v8310 = vadd.f32 %v7282, %v8054
    %v8311 = vadd.f32 %v7283, %v8055
    %v8312 = vadd.f32 %v7284, %v8056
    %v8313 = vadd.f32 %v7285, %v8057
    %v8314 = vadd.f32 %v7286, %v8058
    %v8315 = vadd.f32 %v7287, %v8059
    %v8316 = vadd.f32 %v7288, %v8060
    %v8317 = vadd.f32 %v7289, %v8061
    %v8318 = vadd.f32 %v7290, %v8062
    %v8319 = vadd.f32 %v7291, %v8063
    %v8320 = vadd.f32 %v7292, %v8064
    %v8321 = vadd.f32 %v7293, %v8065
    %v8322 = vadd.f32 %v7294, %v8066
    %v8323 = vadd.f32 %v7295, %v8067
    %v8324 = vadd.f32 %v7296, %v8068
    %v8325 = vadd.f32 %v7297, %v8069
    %v8326 = vadd.f32 %v7298, %v8070
    %v8327 = vadd.f32 %v7299, %v8071
    %v8328 = vadd.f32 %v7300, %v8072
    %v8329 = vadd.f32 %v7301, %v8073
    %v8330 = vadd.f32 %v7302, %v8074
    %v8331 = vadd.f32 %v7303, %v8075
    %v8332 = vadd.f32 %v7304, %v8076
    %v8333 = vadd.f32 %v7305, %v8077
    %v8334 = vadd.f32 %v7306, %v8078
    %v8335 = vadd.f32 %v7307, %v8079
    %v8336 = vadd.f32 %v7308, %v8080
    %v8337 = vadd.f32 %v7309, %v8081
    %v8338 = vadd.f32 %v7310, %v8082
    %v8339 = vadd.f32 %v7311, %v8083
    %v8340 = vadd.f32 %v7312, %v8084
    %v8341 = vadd.f32 %v7313, %v8085
    %v8342 = vadd.f32 %v7314, %v8086
    %v8343 = vadd.f32 %v7315, %v8087
    %v8344 = vadd.f32 %v7316, %v8088
    %v8345 = vadd.f32 %v7317, %v8089
    %v8346 = vadd.f32 %v7318, %v8090
    %v8347 = vadd.f32 %v7319, %v8091
    %v8348 = vadd.f32 %v7320, %v8092
    %v8349 = vadd.f32 %v7321, %v8093
    %v8350 = vadd.f32 %v7322, %v8094
    %v8351 = vadd.f32 %v7323, %v8095
    %v8352 = vadd.f32 %v7324, %v8096
    %v8353 = vadd.f32 %v7325, %v8097
    %v8354 = vadd.f32 %v7326, %v8098
    %v8355 = vadd.f32 %v7327, %v8099
    %v8356 = vadd.f32 %v7328, %v8100
    %v8357 = vadd.f32 %v7329, %v8101
    %v8358 = vadd.f32 %v7330, %v8102
    %v8359 = vadd.f32 %v7331, %v8103
    %v8360 = vadd.f32 %v7332, %v8104
    %v8361 = vadd.f32 %v7333, %v8105
    %v8362 = vadd.f32 %v7334, %v8106
    %v8363 = vadd.f32 %v7335, %v8107
    %v8364 = vadd.f32 %v7336, %v8108
    %v8365 = vadd.f32 %v7337, %v8109
    %v8366 = vadd.f32 %v7338, %v8110
    %v8367 = vadd.f32 %v7339, %v8111
    %v8368 = vadd.f32 %v7340, %v8112
    %v8369 = vadd.f32 %v7341, %v8113
    %v8370 = vadd.f32 %v7342, %v8114
    %v8371 = vadd.f32 %v7343, %v8115
    %v8372 = vadd.f32 %v7344, %v8116
    %v8373 = vadd.f32 %v7345, %v8117
    %v8374 = vadd.f32 %v7346, %v8118
    %v8375 = vadd.f32 %v7347, %v8119
    %v8376 = vadd.f32 %v7348, %v8120
    %v8377 = vadd.f32 %v7349, %v8121
    %v8378 = vadd.f32 %v7350, %v8122
    %v8379 = vadd.f32 %v7351, %v8123
    %v8380 = vadd.f32 %v7352, %v8124
    %v8381 = vadd.f32 %v7353, %v8125
    %v8382 = vadd.f32 %v7354, %v8126
    %v8383 = vadd.f32 %v7355, %v8127
    %v8384 = vadd.f32 %v7356, %v8128
    %v8385 = vadd.f32 %v7357, %v8129
    %v8386 = vadd.f32 %v7358, %v8130
    %v8387 = vadd.f32 %v7359, %v8131
    %v8388 = vadd.f32 %v7360, %v8132
    %v8389 = vadd.f32 %v7361, %v8133
    %v8390 = vadd.f32 %v7362, %v8134
    %v8391 = vadd.f32 %v7363, %v8135
    %v8392 = vadd.f32 %v7364, %v8136
    %v8393 = vadd.f32 %v7365, %v8137
    %v8394 = vadd.f32 %v7366, %v8138
    %v8395 = vadd.f32 %v7367, %v8139
    %v8396 = vadd.f32 %v7368, %v8140
    %v8397 = vadd.f32 %v7369, %v8141
    %v8398 = vadd.f32 %v7370, %v8142
    %v8399 = vadd.f32 %v7371, %v8143
    %v8400 = vadd.f32 %v7372, %v8144
    %v8401 = vadd.f32 %v7373, %v8145
    %v8402 = vadd.f32 %v7374, %v8146
    %v8403 = vadd.f32 %v7375, %v8147
    %v8404 = vadd.f32 %v7376, %v8148
    %v8405 = vadd.f32 %v7377, %v8149
    %v8406 = vadd.f32 %v7378, %v8150
    %v8407 = vadd.f32 %v7379, %v8151
    %v8408 = vadd.f32 %v7380, %v8152
    %v8409 = vadd.f32 %v7381, %v8153
    %v8410 = vadd.f32 %v7382, %v8154
    %v8411 = vadd.f32 %v7383, %v8155
    %v8412 = vadd.f32 %v7384, %v8156
    %v8413 = vadd.f32 %v7385, %v8157
    %v8414 = vadd.f32 %v7386, %v8158
    %v8415 = vadd.f32 %v7387, %v8159
    %v8416 = vadd.f32 %v7388, %v8160
    %v8417 = vadd.f32 %v7389, %v8161
    %v8418 = vadd.f32 %v7390, %v8162
    %v8419 = vadd.f32 %v7391, %v8163
    %v8420 = vadd.f32 %v7392, %v8164
    %v8421 = vadd.f32 %v7393, %v8165
    %v8422 = vadd.f32 %v7394, %v8166
    %v8423 = vadd.f32 %v7395, %v8167
    %v8424 = vadd.f32 %v7396, %v8168
    %v8425 = vadd.f32 %v7397, %v8169
    %v8426 = vadd.f32 %v7398, %v8170
    %v8427 = vadd.f32 %v7399, %v8171
    %v8428 = vadd.f32 %v7400, %v8172
    %v8429 = vadd.f32 %v7401, %v8173
    %v8430 = vadd.f32 %v7402, %v8174
    %v8431 = vadd.f32 %v7403, %v8175
    %v8432 = vadd.f32 %v7404, %v8176
    %v8433 = vadd.f32 %v7405, %v8177
    %v8434 = vadd.f32 %v7406, %v8178
    %v8435 = vadd.f32 %v7407, %v8179
    %v8436 = vadd.f32 %v7408, %v8180
    %v8437 = vadd.f32 %v7409, %v8181
    %v8438 = vadd.f32 %v7410, %v8182
    %v8439 = vadd.f32 %v7411, %v8183
    %v8440 = vadd.f32 %v7412, %v8184
    %v8441 = vadd.f32 %v7413, %v8185
    %v8442 = vadd.f32 %v7414, %v8186
    %v8443 = vadd.f32 %v7415, %v8187
    %v8444 = vadd.f32 %v7416, %v8188
    %v8445 = vadd.f32 %v7417, %v8189
    %v8446 = vadd.f32 %v7418, %v8190
    %v8447 = vadd.f32 %v7419, %v8191
    %v8448 = vadd.f32 %v7420, %v8192
    %v8449 = vadd.f32 %v7421, %v8193
    %v8450 = vadd.f32 %v7422, %v8194
    %v8451 = vadd.f32 %v7423, %v8195
    %v8452 = vadd.f32 %v7424, %v8196
    %v8453 = vadd.f32 %v7425, %v8197
    %v8454 = vadd.f32 %v7426, %v8198
    %v8455 = vadd.f32 %v7427, %v8199
    %v8456 = vadd.f32 %v7428, %v8200
    %v8457 = vadd.f32 %v7429, %v8201
    %v8458 = vadd.f32 %v7430, %v8202
    %v8459 = vadd.f32 %v7431, %v8203
    %v8460 = vadd.f32 %v7432, %v8204
    %v8461 = vadd.f32 %v7433, %v8205
    %v8462 = vadd.f32 %v7434, %v8206
    %v8463 = vadd.f32 %v7435, %v8207
    %v8464 = vadd.f32 %v7436, %v8208
    %v8465 = vadd.f32 %v7437, %v8209
    %v8466 = vadd.f32 %v7438, %v8210
    %v8467 = vadd.f32 %v7439, %v8211
    %v8468 = vadd.f32 %v7440, %v8212
    %v8469 = vadd.f32 %v7441, %v8213
    %v8470 = vadd.f32 %v7442, %v8214
    %v8471 = vadd.f32 %v7443, %v8215
    %v8472 = vadd.f32 %v7444, %v8216
    %v8473 = vadd.f32 %v7445, %v8217
    %v8474 = vadd.f32 %v7446, %v8218
    %v8475 = vadd.f32 %v7447, %v8219
    %v8476 = vadd.f32 %v7448, %v8220
    %v8477 = vadd.f32 %v7449, %v8221
    %v8478 = vadd.f32 %v7450, %v8222
    %v8479 = vadd.f32 %v7451, %v8223
    %v8480 = vadd.f32 %v7452, %v8224
    %v8481 = vadd.f32 %v7453, %v8225
    %v8482 = vadd.f32 %v7454, %v8226
    %v8483 = vadd.f32 %v7455, %v8227
    %v8484 = vadd.f32 %v7456, %v8228
    %v8485 = vadd.f32 %v7457, %v8229
    %v8486 = vadd.f32 %v7458, %v8230
    %v8487 = vadd.f32 %v7459, %v8231
    %v8488 = vadd.f32 %v7460, %v8232
    %v8489 = vadd.f32 %v7461, %v8233
    %v8490 = vadd.f32 %v7462, %v8234
    %v8491 = vadd.f32 %v7463, %v8235
    %v8492 = vadd.f32 %v7464, %v8236
    %v8493 = vadd.f32 %v7465, %v8237
    %v8494 = vadd.f32 %v7466, %v8238
    %v8495 = vadd.f32 %v7467, %v8239
    %v8496 = vadd.f32 %v7468, %v8240
    %v8497 = vadd.f32 %v7469, %v8241
    %v8498 = vadd.f32 %v7470, %v8242
    %v8499 = vadd.f32 %v7471, %v8243
    %v8500 = vadd.f32 %v7472, %v8244
    %v8501 = vadd.f32 %v7473, %v8245
    %v8502 = vadd.f32 %v7474, %v8246
    %v8503 = vadd.f32 %v7475, %v8247
    %v8504 = vadd.f32 %v7476, %v8248
    %v8505 = vadd.f32 %v7477, %v8249
    %v8506 = vadd.f32 %v7478, %v8250
    %v8507 = vadd.f32 %v7479, %v8251
    %s8508 = sld [smem:[#allocation4 + $0x82]]
    %v8509 = vstv %s8508
    %v8510 = vmul.f32 %v8509, %v546
    %v8511 = vmul.f32 %v8509, %v547
    %v8512 = vmul.f32 %v8509, %v548
    %v8513 = vmul.f32 %v8509, %v549
    %v8514 = vmul.f32 %v8509, %v550
    %v8515 = vmul.f32 %v8509, %v551
    %v8516 = vmul.f32 %v8509, %v552
    %v8517 = vmul.f32 %v8509, %v553
    %v8518 = vmul.f32 %v8509, %v554
    %v8519 = vmul.f32 %v8509, %v555
    %v8520 = vmul.f32 %v8509, %v556
    %v8521 = vmul.f32 %v8509, %v557
    %v8522 = vmul.f32 %v8509, %v558
    %v8523 = vmul.f32 %v8509, %v559
    %v8524 = vmul.f32 %v8509, %v560
    %v8525 = vmul.f32 %v8509, %v561
    %v8526 = vmul.f32 %v8509, %v562
    %v8527 = vmul.f32 %v8509, %v563
    %v8528 = vmul.f32 %v8509, %v564
    %v8529 = vmul.f32 %v8509, %v565
    %v8530 = vmul.f32 %v8509, %v566
    %v8531 = vmul.f32 %v8509, %v567
    %v8532 = vmul.f32 %v8509, %v568
    %v8533 = vmul.f32 %v8509, %v569
    %v8534 = vmul.f32 %v8509, %v570
    %v8535 = vmul.f32 %v8509, %v571
    %v8536 = vmul.f32 %v8509, %v572
    %v8537 = vmul.f32 %v8509, %v573
    %v8538 = vmul.f32 %v8509, %v574
    %v8539 = vmul.f32 %v8509, %v575
    %v8540 = vmul.f32 %v8509, %v576
    %v8541 = vmul.f32 %v8509, %v577
    %v8542 = vmul.f32 %v8509, %v578
    %v8543 = vmul.f32 %v8509, %v579
    %v8544 = vmul.f32 %v8509, %v580
    %v8545 = vmul.f32 %v8509, %v581
    %v8546 = vmul.f32 %v8509, %v582
    %v8547 = vmul.f32 %v8509, %v583
    %v8548 = vmul.f32 %v8509, %v584
    %v8549 = vmul.f32 %v8509, %v585
    %v8550 = vmul.f32 %v8509, %v586
    %v8551 = vmul.f32 %v8509, %v587
    %v8552 = vmul.f32 %v8509, %v588
    %v8553 = vmul.f32 %v8509, %v589
    %v8554 = vmul.f32 %v8509, %v590
    %v8555 = vmul.f32 %v8509, %v591
    %v8556 = vmul.f32 %v8509, %v592
    %v8557 = vmul.f32 %v8509, %v593
    %v8558 = vmul.f32 %v8509, %v594
    %v8559 = vmul.f32 %v8509, %v595
    %v8560 = vmul.f32 %v8509, %v596
    %v8561 = vmul.f32 %v8509, %v597
    %v8562 = vmul.f32 %v8509, %v598
    %v8563 = vmul.f32 %v8509, %v599
    %v8564 = vmul.f32 %v8509, %v600
    %v8565 = vmul.f32 %v8509, %v601
    %v8566 = vmul.f32 %v8509, %v602
    %v8567 = vmul.f32 %v8509, %v603
    %v8568 = vmul.f32 %v8509, %v604
    %v8569 = vmul.f32 %v8509, %v605
    %v8570 = vmul.f32 %v8509, %v606
    %v8571 = vmul.f32 %v8509, %v607
    %v8572 = vmul.f32 %v8509, %v608
    %v8573 = vmul.f32 %v8509, %v609
    %v8574 = vmul.f32 %v8509, %v610
    %v8575 = vmul.f32 %v8509, %v611
    %v8576 = vmul.f32 %v8509, %v612
    %v8577 = vmul.f32 %v8509, %v613
    %v8578 = vmul.f32 %v8509, %v614
    %v8579 = vmul.f32 %v8509, %v615
    %v8580 = vmul.f32 %v8509, %v616
    %v8581 = vmul.f32 %v8509, %v617
    %v8582 = vmul.f32 %v8509, %v618
    %v8583 = vmul.f32 %v8509, %v619
    %v8584 = vmul.f32 %v8509, %v620
    %v8585 = vmul.f32 %v8509, %v621
    %v8586 = vmul.f32 %v8509, %v622
    %v8587 = vmul.f32 %v8509, %v623
    %v8588 = vmul.f32 %v8509, %v624
    %v8589 = vmul.f32 %v8509, %v625
    %v8590 = vmul.f32 %v8509, %v626
    %v8591 = vmul.f32 %v8509, %v627
    %v8592 = vmul.f32 %v8509, %v628
    %v8593 = vmul.f32 %v8509, %v629
    %v8594 = vmul.f32 %v8509, %v630
    %v8595 = vmul.f32 %v8509, %v631
    %v8596 = vmul.f32 %v8509, %v632
    %v8597 = vmul.f32 %v8509, %v633
    %v8598 = vmul.f32 %v8509, %v634
    %v8599 = vmul.f32 %v8509, %v635
    %v8600 = vmul.f32 %v8509, %v636
    %v8601 = vmul.f32 %v8509, %v637
    %v8602 = vmul.f32 %v8509, %v638
    %v8603 = vmul.f32 %v8509, %v639
    %v8604 = vmul.f32 %v8509, %v640
    %v8605 = vmul.f32 %v8509, %v641
    %v8606 = vmul.f32 %v8509, %v642
    %v8607 = vmul.f32 %v8509, %v643
    %v8608 = vmul.f32 %v8509, %v644
    %v8609 = vmul.f32 %v8509, %v645
    %v8610 = vmul.f32 %v8509, %v646
    %v8611 = vmul.f32 %v8509, %v647
    %v8612 = vmul.f32 %v8509, %v648
    %v8613 = vmul.f32 %v8509, %v649
    %v8614 = vmul.f32 %v8509, %v650
    %v8615 = vmul.f32 %v8509, %v651
    %v8616 = vmul.f32 %v8509, %v652
    %v8617 = vmul.f32 %v8509, %v653
    %v8618 = vmul.f32 %v8509, %v654
    %v8619 = vmul.f32 %v8509, %v655
    %v8620 = vmul.f32 %v8509, %v656
    %v8621 = vmul.f32 %v8509, %v657
    %v8622 = vmul.f32 %v8509, %v658
    %v8623 = vmul.f32 %v8509, %v659
    %v8624 = vmul.f32 %v8509, %v660
    %v8625 = vmul.f32 %v8509, %v661
    %v8626 = vmul.f32 %v8509, %v662
    %v8627 = vmul.f32 %v8509, %v663
    %v8628 = vmul.f32 %v8509, %v664
    %v8629 = vmul.f32 %v8509, %v665
    %v8630 = vmul.f32 %v8509, %v666
    %v8631 = vmul.f32 %v8509, %v667
    %v8632 = vmul.f32 %v8509, %v668
    %v8633 = vmul.f32 %v8509, %v669
    %v8634 = vmul.f32 %v8509, %v670
    %v8635 = vmul.f32 %v8509, %v671
    %v8636 = vmul.f32 %v8509, %v672
    %v8637 = vmul.f32 %v8509, %v673
    %v8638 = vmul.f32 %v8509, %v674
    %v8639 = vmul.f32 %v8509, %v675
    %v8640 = vmul.f32 %v8509, %v676
    %v8641 = vmul.f32 %v8509, %v677
    %v8642 = vmul.f32 %v8509, %v678
    %v8643 = vmul.f32 %v8509, %v679
    %v8644 = vmul.f32 %v8509, %v680
    %v8645 = vmul.f32 %v8509, %v681
    %v8646 = vmul.f32 %v8509, %v682
    %v8647 = vmul.f32 %v8509, %v683
    %v8648 = vmul.f32 %v8509, %v684
    %v8649 = vmul.f32 %v8509, %v685
    %v8650 = vmul.f32 %v8509, %v686
    %v8651 = vmul.f32 %v8509, %v687
    %v8652 = vmul.f32 %v8509, %v688
    %v8653 = vmul.f32 %v8509, %v689
    %v8654 = vmul.f32 %v8509, %v690
    %v8655 = vmul.f32 %v8509, %v691
    %v8656 = vmul.f32 %v8509, %v692
    %v8657 = vmul.f32 %v8509, %v693
    %v8658 = vmul.f32 %v8509, %v694
    %v8659 = vmul.f32 %v8509, %v695
    %v8660 = vmul.f32 %v8509, %v696
    %v8661 = vmul.f32 %v8509, %v697
    %v8662 = vmul.f32 %v8509, %v698
    %v8663 = vmul.f32 %v8509, %v699
    %v8664 = vmul.f32 %v8509, %v700
    %v8665 = vmul.f32 %v8509, %v701
    %v8666 = vmul.f32 %v8509, %v702
    %v8667 = vmul.f32 %v8509, %v703
    %v8668 = vmul.f32 %v8509, %v704
    %v8669 = vmul.f32 %v8509, %v705
    %v8670 = vmul.f32 %v8509, %v706
    %v8671 = vmul.f32 %v8509, %v707
    %v8672 = vmul.f32 %v8509, %v708
    %v8673 = vmul.f32 %v8509, %v709
    %v8674 = vmul.f32 %v8509, %v710
    %v8675 = vmul.f32 %v8509, %v711
    %v8676 = vmul.f32 %v8509, %v712
    %v8677 = vmul.f32 %v8509, %v713
    %v8678 = vmul.f32 %v8509, %v714
    %v8679 = vmul.f32 %v8509, %v715
    %v8680 = vmul.f32 %v8509, %v716
    %v8681 = vmul.f32 %v8509, %v717
    %v8682 = vmul.f32 %v8509, %v718
    %v8683 = vmul.f32 %v8509, %v719
    %v8684 = vmul.f32 %v8509, %v720
    %v8685 = vmul.f32 %v8509, %v721
    %v8686 = vmul.f32 %v8509, %v722
    %v8687 = vmul.f32 %v8509, %v723
    %v8688 = vmul.f32 %v8509, %v724
    %v8689 = vmul.f32 %v8509, %v725
    %v8690 = vmul.f32 %v8509, %v726
    %v8691 = vmul.f32 %v8509, %v727
    %v8692 = vmul.f32 %v8509, %v728
    %v8693 = vmul.f32 %v8509, %v729
    %v8694 = vmul.f32 %v8509, %v730
    %v8695 = vmul.f32 %v8509, %v731
    %v8696 = vmul.f32 %v8509, %v732
    %v8697 = vmul.f32 %v8509, %v733
    %v8698 = vmul.f32 %v8509, %v734
    %v8699 = vmul.f32 %v8509, %v735
    %v8700 = vmul.f32 %v8509, %v736
    %v8701 = vmul.f32 %v8509, %v737
    %v8702 = vmul.f32 %v8509, %v738
    %v8703 = vmul.f32 %v8509, %v739
    %v8704 = vmul.f32 %v8509, %v740
    %v8705 = vmul.f32 %v8509, %v741
    %v8706 = vmul.f32 %v8509, %v742
    %v8707 = vmul.f32 %v8509, %v743
    %v8708 = vmul.f32 %v8509, %v744
    %v8709 = vmul.f32 %v8509, %v745
    %v8710 = vmul.f32 %v8509, %v746
    %v8711 = vmul.f32 %v8509, %v747
    %v8712 = vmul.f32 %v8509, %v748
    %v8713 = vmul.f32 %v8509, %v749
    %v8714 = vmul.f32 %v8509, %v750
    %v8715 = vmul.f32 %v8509, %v751
    %v8716 = vmul.f32 %v8509, %v752
    %v8717 = vmul.f32 %v8509, %v753
    %v8718 = vmul.f32 %v8509, %v754
    %v8719 = vmul.f32 %v8509, %v755
    %v8720 = vmul.f32 %v8509, %v756
    %v8721 = vmul.f32 %v8509, %v757
    %v8722 = vmul.f32 %v8509, %v758
    %v8723 = vmul.f32 %v8509, %v759
    %v8724 = vmul.f32 %v8509, %v760
    %v8725 = vmul.f32 %v8509, %v761
    %v8726 = vmul.f32 %v8509, %v762
    %v8727 = vmul.f32 %v8509, %v763
    %v8728 = vmul.f32 %v8509, %v764
    %v8729 = vmul.f32 %v8509, %v765
    %v8730 = vmul.f32 %v8509, %v766
    %v8731 = vmul.f32 %v8509, %v767
    %v8732 = vmul.f32 %v8509, %v768
    %v8733 = vmul.f32 %v8509, %v769
    %v8734 = vmul.f32 %v8509, %v770
    %v8735 = vmul.f32 %v8509, %v771
    %v8736 = vmul.f32 %v8509, %v772
    %v8737 = vmul.f32 %v8509, %v773
    %v8738 = vmul.f32 %v8509, %v774
    %v8739 = vmul.f32 %v8509, %v775
    %v8740 = vmul.f32 %v8509, %v776
    %v8741 = vmul.f32 %v8509, %v777
    %v8742 = vmul.f32 %v8509, %v778
    %v8743 = vmul.f32 %v8509, %v779
    %v8744 = vmul.f32 %v8509, %v780
    %v8745 = vmul.f32 %v8509, %v781
    %v8746 = vmul.f32 %v8509, %v782
    %v8747 = vmul.f32 %v8509, %v783
    %v8748 = vmul.f32 %v8509, %v784
    %v8749 = vmul.f32 %v8509, %v785
    %v8750 = vmul.f32 %v8509, %v786
    %v8751 = vmul.f32 %v8509, %v787
    %v8752 = vmul.f32 %v8509, %v788
    %v8753 = vmul.f32 %v8509, %v789
    %v8754 = vmul.f32 %v8509, %v790
    %v8755 = vmul.f32 %v8509, %v791
    %v8756 = vmul.f32 %v8509, %v792
    %v8757 = vmul.f32 %v8509, %v793
    %v8758 = vmul.f32 %v8509, %v794
    %v8759 = vmul.f32 %v8509, %v795
    %v8760 = vmul.f32 %v8509, %v796
    %v8761 = vmul.f32 %v8509, %v797
    %v8762 = vmul.f32 %v8509, %v798
    %v8763 = vmul.f32 %v8509, %v799
    %v8764 = vmul.f32 %v8509, %v800
    %v8765 = vmul.f32 %v8509, %v801
    %v8766 = vadd.f32 %v7738, %v8510
    %v8767 = vadd.f32 %v7739, %v8511
    %v8768 = vadd.f32 %v7740, %v8512
    %v8769 = vadd.f32 %v7741, %v8513
    %v8770 = vadd.f32 %v7742, %v8514
    %v8771 = vadd.f32 %v7743, %v8515
    %v8772 = vadd.f32 %v7744, %v8516
    %v8773 = vadd.f32 %v7745, %v8517
    %v8774 = vadd.f32 %v7746, %v8518
    %v8775 = vadd.f32 %v7747, %v8519
    %v8776 = vadd.f32 %v7748, %v8520
    %v8777 = vadd.f32 %v7749, %v8521
    %v8778 = vadd.f32 %v7750, %v8522
    %v8779 = vadd.f32 %v7751, %v8523
    %v8780 = vadd.f32 %v7752, %v8524
    %v8781 = vadd.f32 %v7753, %v8525
    %v8782 = vadd.f32 %v7754, %v8526
    %v8783 = vadd.f32 %v7755, %v8527
    %v8784 = vadd.f32 %v7756, %v8528
    %v8785 = vadd.f32 %v7757, %v8529
    %v8786 = vadd.f32 %v7758, %v8530
    %v8787 = vadd.f32 %v7759, %v8531
    %v8788 = vadd.f32 %v7760, %v8532
    %v8789 = vadd.f32 %v7761, %v8533
    %v8790 = vadd.f32 %v7762, %v8534
    %v8791 = vadd.f32 %v7763, %v8535
    %v8792 = vadd.f32 %v7764, %v8536
    %v8793 = vadd.f32 %v7765, %v8537
    %v8794 = vadd.f32 %v7766, %v8538
    %v8795 = vadd.f32 %v7767, %v8539
    %v8796 = vadd.f32 %v7768, %v8540
    %v8797 = vadd.f32 %v7769, %v8541
    %v8798 = vadd.f32 %v7770, %v8542
    %v8799 = vadd.f32 %v7771, %v8543
    %v8800 = vadd.f32 %v7772, %v8544
    %v8801 = vadd.f32 %v7773, %v8545
    %v8802 = vadd.f32 %v7774, %v8546
    %v8803 = vadd.f32 %v7775, %v8547
    %v8804 = vadd.f32 %v7776, %v8548
    %v8805 = vadd.f32 %v7777, %v8549
    %v8806 = vadd.f32 %v7778, %v8550
    %v8807 = vadd.f32 %v7779, %v8551
    %v8808 = vadd.f32 %v7780, %v8552
    %v8809 = vadd.f32 %v7781, %v8553
    %v8810 = vadd.f32 %v7782, %v8554
    %v8811 = vadd.f32 %v7783, %v8555
    %v8812 = vadd.f32 %v7784, %v8556
    %v8813 = vadd.f32 %v7785, %v8557
    %v8814 = vadd.f32 %v7786, %v8558
    %v8815 = vadd.f32 %v7787, %v8559
    %v8816 = vadd.f32 %v7788, %v8560
    %v8817 = vadd.f32 %v7789, %v8561
    %v8818 = vadd.f32 %v7790, %v8562
    %v8819 = vadd.f32 %v7791, %v8563
    %v8820 = vadd.f32 %v7792, %v8564
    %v8821 = vadd.f32 %v7793, %v8565
    %v8822 = vadd.f32 %v7794, %v8566
    %v8823 = vadd.f32 %v7795, %v8567
    %v8824 = vadd.f32 %v7796, %v8568
    %v8825 = vadd.f32 %v7797, %v8569
    %v8826 = vadd.f32 %v7798, %v8570
    %v8827 = vadd.f32 %v7799, %v8571
    %v8828 = vadd.f32 %v7800, %v8572
    %v8829 = vadd.f32 %v7801, %v8573
    %v8830 = vadd.f32 %v7802, %v8574
    %v8831 = vadd.f32 %v7803, %v8575
    %v8832 = vadd.f32 %v7804, %v8576
    %v8833 = vadd.f32 %v7805, %v8577
    %v8834 = vadd.f32 %v7806, %v8578
    %v8835 = vadd.f32 %v7807, %v8579
    %v8836 = vadd.f32 %v7808, %v8580
    %v8837 = vadd.f32 %v7809, %v8581
    %v8838 = vadd.f32 %v7810, %v8582
    %v8839 = vadd.f32 %v7811, %v8583
    %v8840 = vadd.f32 %v7812, %v8584
    %v8841 = vadd.f32 %v7813, %v8585
    %v8842 = vadd.f32 %v7814, %v8586
    %v8843 = vadd.f32 %v7815, %v8587
    %v8844 = vadd.f32 %v7816, %v8588
    %v8845 = vadd.f32 %v7817, %v8589
    %v8846 = vadd.f32 %v7818, %v8590
    %v8847 = vadd.f32 %v7819, %v8591
    %v8848 = vadd.f32 %v7820, %v8592
    %v8849 = vadd.f32 %v7821, %v8593
    %v8850 = vadd.f32 %v7822, %v8594
    %v8851 = vadd.f32 %v7823, %v8595
    %v8852 = vadd.f32 %v7824, %v8596
    %v8853 = vadd.f32 %v7825, %v8597
    %v8854 = vadd.f32 %v7826, %v8598
    %v8855 = vadd.f32 %v7827, %v8599
    %v8856 = vadd.f32 %v7828, %v8600
    %v8857 = vadd.f32 %v7829, %v8601
    %v8858 = vadd.f32 %v7830, %v8602
    %v8859 = vadd.f32 %v7831, %v8603
    %v8860 = vadd.f32 %v7832, %v8604
    %v8861 = vadd.f32 %v7833, %v8605
    %v8862 = vadd.f32 %v7834, %v8606
    %v8863 = vadd.f32 %v7835, %v8607
    %v8864 = vadd.f32 %v7836, %v8608
    %v8865 = vadd.f32 %v7837, %v8609
    %v8866 = vadd.f32 %v7838, %v8610
    %v8867 = vadd.f32 %v7839, %v8611
    %v8868 = vadd.f32 %v7840, %v8612
    %v8869 = vadd.f32 %v7841, %v8613
    %v8870 = vadd.f32 %v7842, %v8614
    %v8871 = vadd.f32 %v7843, %v8615
    %v8872 = vadd.f32 %v7844, %v8616
    %v8873 = vadd.f32 %v7845, %v8617
    %v8874 = vadd.f32 %v7846, %v8618
    %v8875 = vadd.f32 %v7847, %v8619
    %v8876 = vadd.f32 %v7848, %v8620
    %v8877 = vadd.f32 %v7849, %v8621
    %v8878 = vadd.f32 %v7850, %v8622
    %v8879 = vadd.f32 %v7851, %v8623
    %v8880 = vadd.f32 %v7852, %v8624
    %v8881 = vadd.f32 %v7853, %v8625
    %v8882 = vadd.f32 %v7854, %v8626
    %v8883 = vadd.f32 %v7855, %v8627
    %v8884 = vadd.f32 %v7856, %v8628
    %v8885 = vadd.f32 %v7857, %v8629
    %v8886 = vadd.f32 %v7858, %v8630
    %v8887 = vadd.f32 %v7859, %v8631
    %v8888 = vadd.f32 %v7860, %v8632
    %v8889 = vadd.f32 %v7861, %v8633
    %v8890 = vadd.f32 %v7862, %v8634
    %v8891 = vadd.f32 %v7863, %v8635
    %v8892 = vadd.f32 %v7864, %v8636
    %v8893 = vadd.f32 %v7865, %v8637
    %v8894 = vadd.f32 %v7866, %v8638
    %v8895 = vadd.f32 %v7867, %v8639
    %v8896 = vadd.f32 %v7868, %v8640
    %v8897 = vadd.f32 %v7869, %v8641
    %v8898 = vadd.f32 %v7870, %v8642
    %v8899 = vadd.f32 %v7871, %v8643
    %v8900 = vadd.f32 %v7872, %v8644
    %v8901 = vadd.f32 %v7873, %v8645
    %v8902 = vadd.f32 %v7874, %v8646
    %v8903 = vadd.f32 %v7875, %v8647
    %v8904 = vadd.f32 %v7876, %v8648
    %v8905 = vadd.f32 %v7877, %v8649
    %v8906 = vadd.f32 %v7878, %v8650
    %v8907 = vadd.f32 %v7879, %v8651
    %v8908 = vadd.f32 %v7880, %v8652
    %v8909 = vadd.f32 %v7881, %v8653
    %v8910 = vadd.f32 %v7882, %v8654
    %v8911 = vadd.f32 %v7883, %v8655
    %v8912 = vadd.f32 %v7884, %v8656
    %v8913 = vadd.f32 %v7885, %v8657
    %v8914 = vadd.f32 %v7886, %v8658
    %v8915 = vadd.f32 %v7887, %v8659
    %v8916 = vadd.f32 %v7888, %v8660
    %v8917 = vadd.f32 %v7889, %v8661
    %v8918 = vadd.f32 %v7890, %v8662
    %v8919 = vadd.f32 %v7891, %v8663
    %v8920 = vadd.f32 %v7892, %v8664
    %v8921 = vadd.f32 %v7893, %v8665
    %v8922 = vadd.f32 %v7894, %v8666
    %v8923 = vadd.f32 %v7895, %v8667
    %v8924 = vadd.f32 %v7896, %v8668
    %v8925 = vadd.f32 %v7897, %v8669
    %v8926 = vadd.f32 %v7898, %v8670
    %v8927 = vadd.f32 %v7899, %v8671
    %v8928 = vadd.f32 %v7900, %v8672
    %v8929 = vadd.f32 %v7901, %v8673
    %v8930 = vadd.f32 %v7902, %v8674
    %v8931 = vadd.f32 %v7903, %v8675
    %v8932 = vadd.f32 %v7904, %v8676
    %v8933 = vadd.f32 %v7905, %v8677
    %v8934 = vadd.f32 %v7906, %v8678
    %v8935 = vadd.f32 %v7907, %v8679
    %v8936 = vadd.f32 %v7908, %v8680
    %v8937 = vadd.f32 %v7909, %v8681
    %v8938 = vadd.f32 %v7910, %v8682
    %v8939 = vadd.f32 %v7911, %v8683
    %v8940 = vadd.f32 %v7912, %v8684
    %v8941 = vadd.f32 %v7913, %v8685
    %v8942 = vadd.f32 %v7914, %v8686
    %v8943 = vadd.f32 %v7915, %v8687
    %v8944 = vadd.f32 %v7916, %v8688
    %v8945 = vadd.f32 %v7917, %v8689
    %v8946 = vadd.f32 %v7918, %v8690
    %v8947 = vadd.f32 %v7919, %v8691
    %v8948 = vadd.f32 %v7920, %v8692
    %v8949 = vadd.f32 %v7921, %v8693
    %v8950 = vadd.f32 %v7922, %v8694
    %v8951 = vadd.f32 %v7923, %v8695
    %v8952 = vadd.f32 %v7924, %v8696
    %v8953 = vadd.f32 %v7925, %v8697
    %v8954 = vadd.f32 %v7926, %v8698
    %v8955 = vadd.f32 %v7927, %v8699
    %v8956 = vadd.f32 %v7928, %v8700
    %v8957 = vadd.f32 %v7929, %v8701
    %v8958 = vadd.f32 %v7930, %v8702
    %v8959 = vadd.f32 %v7931, %v8703
    %v8960 = vadd.f32 %v7932, %v8704
    %v8961 = vadd.f32 %v7933, %v8705
    %v8962 = vadd.f32 %v7934, %v8706
    %v8963 = vadd.f32 %v7935, %v8707
    %v8964 = vadd.f32 %v7936, %v8708
    %v8965 = vadd.f32 %v7937, %v8709
    %v8966 = vadd.f32 %v7938, %v8710
    %v8967 = vadd.f32 %v7939, %v8711
    %v8968 = vadd.f32 %v7940, %v8712
    %v8969 = vadd.f32 %v7941, %v8713
    %v8970 = vadd.f32 %v7942, %v8714
    %v8971 = vadd.f32 %v7943, %v8715
    %v8972 = vadd.f32 %v7944, %v8716
    %v8973 = vadd.f32 %v7945, %v8717
    %v8974 = vadd.f32 %v7946, %v8718
    %v8975 = vadd.f32 %v7947, %v8719
    %v8976 = vadd.f32 %v7948, %v8720
    %v8977 = vadd.f32 %v7949, %v8721
    %v8978 = vadd.f32 %v7950, %v8722
    %v8979 = vadd.f32 %v7951, %v8723
    %v8980 = vadd.f32 %v7952, %v8724
    %v8981 = vadd.f32 %v7953, %v8725
    %v8982 = vadd.f32 %v7954, %v8726
    %v8983 = vadd.f32 %v7955, %v8727
    %v8984 = vadd.f32 %v7956, %v8728
    %v8985 = vadd.f32 %v7957, %v8729
    %v8986 = vadd.f32 %v7958, %v8730
    %v8987 = vadd.f32 %v7959, %v8731
    %v8988 = vadd.f32 %v7960, %v8732
    %v8989 = vadd.f32 %v7961, %v8733
    %v8990 = vadd.f32 %v7962, %v8734
    %v8991 = vadd.f32 %v7963, %v8735
    %v8992 = vadd.f32 %v7964, %v8736
    %v8993 = vadd.f32 %v7965, %v8737
    %v8994 = vadd.f32 %v7966, %v8738
    %v8995 = vadd.f32 %v7967, %v8739
    %v8996 = vadd.f32 %v7968, %v8740
    %v8997 = vadd.f32 %v7969, %v8741
    %v8998 = vadd.f32 %v7970, %v8742
    %v8999 = vadd.f32 %v7971, %v8743
    %v9000 = vadd.f32 %v7972, %v8744
    %v9001 = vadd.f32 %v7973, %v8745
    %v9002 = vadd.f32 %v7974, %v8746
    %v9003 = vadd.f32 %v7975, %v8747
    %v9004 = vadd.f32 %v7976, %v8748
    %v9005 = vadd.f32 %v7977, %v8749
    %v9006 = vadd.f32 %v7978, %v8750
    %v9007 = vadd.f32 %v7979, %v8751
    %v9008 = vadd.f32 %v7980, %v8752
    %v9009 = vadd.f32 %v7981, %v8753
    %v9010 = vadd.f32 %v7982, %v8754
    %v9011 = vadd.f32 %v7983, %v8755
    %v9012 = vadd.f32 %v7984, %v8756
    %v9013 = vadd.f32 %v7985, %v8757
    %v9014 = vadd.f32 %v7986, %v8758
    %v9015 = vadd.f32 %v7987, %v8759
    %v9016 = vadd.f32 %v7988, %v8760
    %v9017 = vadd.f32 %v7989, %v8761
    %v9018 = vadd.f32 %v7990, %v8762
    %v9019 = vadd.f32 %v7991, %v8763
    %v9020 = vadd.f32 %v7992, %v8764
    %v9021 = vadd.f32 %v7993, %v8765
    %s9022 = sld [smem:[#allocation3 + $0x83]]
    %v9023 = vstv %s9022
    %v9024 = vmul.f32 %v9023, %v802
    %v9025 = vmul.f32 %v9023, %v803
    %v9026 = vmul.f32 %v9023, %v804
    %v9027 = vmul.f32 %v9023, %v805
    %v9028 = vmul.f32 %v9023, %v806
    %v9029 = vmul.f32 %v9023, %v807
    %v9030 = vmul.f32 %v9023, %v808
    %v9031 = vmul.f32 %v9023, %v809
    %v9032 = vmul.f32 %v9023, %v810
    %v9033 = vmul.f32 %v9023, %v811
    %v9034 = vmul.f32 %v9023, %v812
    %v9035 = vmul.f32 %v9023, %v813
    %v9036 = vmul.f32 %v9023, %v814
    %v9037 = vmul.f32 %v9023, %v815
    %v9038 = vmul.f32 %v9023, %v816
    %v9039 = vmul.f32 %v9023, %v817
    %v9040 = vmul.f32 %v9023, %v818
    %v9041 = vmul.f32 %v9023, %v819
    %v9042 = vmul.f32 %v9023, %v820
    %v9043 = vmul.f32 %v9023, %v821
    %v9044 = vmul.f32 %v9023, %v822
    %v9045 = vmul.f32 %v9023, %v823
    %v9046 = vmul.f32 %v9023, %v824
    %v9047 = vmul.f32 %v9023, %v825
    %v9048 = vmul.f32 %v9023, %v826
    %v9049 = vmul.f32 %v9023, %v827
    %v9050 = vmul.f32 %v9023, %v828
    %v9051 = vmul.f32 %v9023, %v829
    %v9052 = vmul.f32 %v9023, %v830
    %v9053 = vmul.f32 %v9023, %v831
    %v9054 = vmul.f32 %v9023, %v832
    %v9055 = vmul.f32 %v9023, %v833
    %v9056 = vmul.f32 %v9023, %v834
    %v9057 = vmul.f32 %v9023, %v835
    %v9058 = vmul.f32 %v9023, %v836
    %v9059 = vmul.f32 %v9023, %v837
    %v9060 = vmul.f32 %v9023, %v838
    %v9061 = vmul.f32 %v9023, %v839
    %v9062 = vmul.f32 %v9023, %v840
    %v9063 = vmul.f32 %v9023, %v841
    %v9064 = vmul.f32 %v9023, %v842
    %v9065 = vmul.f32 %v9023, %v843
    %v9066 = vmul.f32 %v9023, %v844
    %v9067 = vmul.f32 %v9023, %v845
    %v9068 = vmul.f32 %v9023, %v846
    %v9069 = vmul.f32 %v9023, %v847
    %v9070 = vmul.f32 %v9023, %v848
    %v9071 = vmul.f32 %v9023, %v849
    %v9072 = vmul.f32 %v9023, %v850
    %v9073 = vmul.f32 %v9023, %v851
    %v9074 = vmul.f32 %v9023, %v852
    %v9075 = vmul.f32 %v9023, %v853
    %v9076 = vmul.f32 %v9023, %v854
    %v9077 = vmul.f32 %v9023, %v855
    %v9078 = vmul.f32 %v9023, %v856
    %v9079 = vmul.f32 %v9023, %v857
    %v9080 = vmul.f32 %v9023, %v858
    %v9081 = vmul.f32 %v9023, %v859
    %v9082 = vmul.f32 %v9023, %v860
    %v9083 = vmul.f32 %v9023, %v861
    %v9084 = vmul.f32 %v9023, %v862
    %v9085 = vmul.f32 %v9023, %v863
    %v9086 = vmul.f32 %v9023, %v864
    %v9087 = vmul.f32 %v9023, %v865
    %v9088 = vmul.f32 %v9023, %v866
    %v9089 = vmul.f32 %v9023, %v867
    %v9090 = vmul.f32 %v9023, %v868
    %v9091 = vmul.f32 %v9023, %v869
    %v9092 = vmul.f32 %v9023, %v870
    %v9093 = vmul.f32 %v9023, %v871
    %v9094 = vmul.f32 %v9023, %v872
    %v9095 = vmul.f32 %v9023, %v873
    %v9096 = vmul.f32 %v9023, %v874
    %v9097 = vmul.f32 %v9023, %v875
    %v9098 = vmul.f32 %v9023, %v876
    %v9099 = vmul.f32 %v9023, %v877
    %v9100 = vmul.f32 %v9023, %v878
    %v9101 = vmul.f32 %v9023, %v879
    %v9102 = vmul.f32 %v9023, %v880
    %v9103 = vmul.f32 %v9023, %v881
    %v9104 = vmul.f32 %v9023, %v882
    %v9105 = vmul.f32 %v9023, %v883
    %v9106 = vmul.f32 %v9023, %v884
    %v9107 = vmul.f32 %v9023, %v885
    %v9108 = vmul.f32 %v9023, %v886
    %v9109 = vmul.f32 %v9023, %v887
    %v9110 = vmul.f32 %v9023, %v888
    %v9111 = vmul.f32 %v9023, %v889
    %v9112 = vmul.f32 %v9023, %v890
    %v9113 = vmul.f32 %v9023, %v891
    %v9114 = vmul.f32 %v9023, %v892
    %v9115 = vmul.f32 %v9023, %v893
    %v9116 = vmul.f32 %v9023, %v894
    %v9117 = vmul.f32 %v9023, %v895
    %v9118 = vmul.f32 %v9023, %v896
    %v9119 = vmul.f32 %v9023, %v897
    %v9120 = vmul.f32 %v9023, %v898
    %v9121 = vmul.f32 %v9023, %v899
    %v9122 = vmul.f32 %v9023, %v900
    %v9123 = vmul.f32 %v9023, %v901
    %v9124 = vmul.f32 %v9023, %v902
    %v9125 = vmul.f32 %v9023, %v903
    %v9126 = vmul.f32 %v9023, %v904
    %v9127 = vmul.f32 %v9023, %v905
    %v9128 = vmul.f32 %v9023, %v906
    %v9129 = vmul.f32 %v9023, %v907
    %v9130 = vmul.f32 %v9023, %v908
    %v9131 = vmul.f32 %v9023, %v909
    %v9132 = vmul.f32 %v9023, %v910
    %v9133 = vmul.f32 %v9023, %v911
    %v9134 = vmul.f32 %v9023, %v912
    %v9135 = vmul.f32 %v9023, %v913
    %v9136 = vmul.f32 %v9023, %v914
    %v9137 = vmul.f32 %v9023, %v915
    %v9138 = vmul.f32 %v9023, %v916
    %v9139 = vmul.f32 %v9023, %v917
    %v9140 = vmul.f32 %v9023, %v918
    %v9141 = vmul.f32 %v9023, %v919
    %v9142 = vmul.f32 %v9023, %v920
    %v9143 = vmul.f32 %v9023, %v921
    %v9144 = vmul.f32 %v9023, %v922
    %v9145 = vmul.f32 %v9023, %v923
    %v9146 = vmul.f32 %v9023, %v924
    %v9147 = vmul.f32 %v9023, %v925
    %v9148 = vmul.f32 %v9023, %v926
    %v9149 = vmul.f32 %v9023, %v927
    %v9150 = vmul.f32 %v9023, %v928
    %v9151 = vmul.f32 %v9023, %v929
    %v9152 = vmul.f32 %v9023, %v930
    %v9153 = vmul.f32 %v9023, %v931
    %v9154 = vmul.f32 %v9023, %v932
    %v9155 = vmul.f32 %v9023, %v933
    %v9156 = vmul.f32 %v9023, %v934
    %v9157 = vmul.f32 %v9023, %v935
    %v9158 = vmul.f32 %v9023, %v936
    %v9159 = vmul.f32 %v9023, %v937
    %v9160 = vmul.f32 %v9023, %v938
    %v9161 = vmul.f32 %v9023, %v939
    %v9162 = vmul.f32 %v9023, %v940
    %v9163 = vmul.f32 %v9023, %v941
    %v9164 = vmul.f32 %v9023, %v942
    %v9165 = vmul.f32 %v9023, %v943
    %v9166 = vmul.f32 %v9023, %v944
    %v9167 = vmul.f32 %v9023, %v945
    %v9168 = vmul.f32 %v9023, %v946
    %v9169 = vmul.f32 %v9023, %v947
    %v9170 = vmul.f32 %v9023, %v948
    %v9171 = vmul.f32 %v9023, %v949
    %v9172 = vmul.f32 %v9023, %v950
    %v9173 = vmul.f32 %v9023, %v951
    %v9174 = vmul.f32 %v9023, %v952
    %v9175 = vmul.f32 %v9023, %v953
    %v9176 = vmul.f32 %v9023, %v954
    %v9177 = vmul.f32 %v9023, %v955
    %v9178 = vmul.f32 %v9023, %v956
    %v9179 = vmul.f32 %v9023, %v957
    %v9180 = vmul.f32 %v9023, %v958
    %v9181 = vmul.f32 %v9023, %v959
    %v9182 = vmul.f32 %v9023, %v960
    %v9183 = vmul.f32 %v9023, %v961
    %v9184 = vmul.f32 %v9023, %v962
    %v9185 = vmul.f32 %v9023, %v963
    %v9186 = vmul.f32 %v9023, %v964
    %v9187 = vmul.f32 %v9023, %v965
    %v9188 = vmul.f32 %v9023, %v966
    %v9189 = vmul.f32 %v9023, %v967
    %v9190 = vmul.f32 %v9023, %v968
    %v9191 = vmul.f32 %v9023, %v969
    %v9192 = vmul.f32 %v9023, %v970
    %v9193 = vmul.f32 %v9023, %v971
    %v9194 = vmul.f32 %v9023, %v972
    %v9195 = vmul.f32 %v9023, %v973
    %v9196 = vmul.f32 %v9023, %v974
    %v9197 = vmul.f32 %v9023, %v975
    %v9198 = vmul.f32 %v9023, %v976
    %v9199 = vmul.f32 %v9023, %v977
    %v9200 = vmul.f32 %v9023, %v978
    %v9201 = vmul.f32 %v9023, %v979
    %v9202 = vmul.f32 %v9023, %v980
    %v9203 = vmul.f32 %v9023, %v981
    %v9204 = vmul.f32 %v9023, %v982
    %v9205 = vmul.f32 %v9023, %v983
    %v9206 = vmul.f32 %v9023, %v984
    %v9207 = vmul.f32 %v9023, %v985
    %v9208 = vmul.f32 %v9023, %v986
    %v9209 = vmul.f32 %v9023, %v987
    %v9210 = vmul.f32 %v9023, %v988
    %v9211 = vmul.f32 %v9023, %v989
    %v9212 = vmul.f32 %v9023, %v990
    %v9213 = vmul.f32 %v9023, %v991
    %v9214 = vmul.f32 %v9023, %v992
    %v9215 = vmul.f32 %v9023, %v993
    %v9216 = vmul.f32 %v9023, %v994
    %v9217 = vmul.f32 %v9023, %v995
    %v9218 = vmul.f32 %v9023, %v996
    %v9219 = vmul.f32 %v9023, %v997
    %v9220 = vmul.f32 %v9023, %v998
    %v9221 = vmul.f32 %v9023, %v999
    %v9222 = vmul.f32 %v9023, %v1000
    %v9223 = vmul.f32 %v9023, %v1001
    %v9224 = vmul.f32 %v9023, %v1002
    %v9225 = vmul.f32 %v9023, %v1003
    %v9226 = vmul.f32 %v9023, %v1004
    %v9227 = vmul.f32 %v9023, %v1005
    %v9228 = vmul.f32 %v9023, %v1006
    %v9229 = vmul.f32 %v9023, %v1007
    %v9230 = vmul.f32 %v9023, %v1008
    %v9231 = vmul.f32 %v9023, %v1009
    %v9232 = vmul.f32 %v9023, %v1010
    %v9233 = vmul.f32 %v9023, %v1011
    %v9234 = vmul.f32 %v9023, %v1012
    %v9235 = vmul.f32 %v9023, %v1013
    %v9236 = vmul.f32 %v9023, %v1014
    %v9237 = vmul.f32 %v9023, %v1015
    %v9238 = vmul.f32 %v9023, %v1016
    %v9239 = vmul.f32 %v9023, %v1017
    %v9240 = vmul.f32 %v9023, %v1018
    %v9241 = vmul.f32 %v9023, %v1019
    %v9242 = vmul.f32 %v9023, %v1020
    %v9243 = vmul.f32 %v9023, %v1021
    %v9244 = vmul.f32 %v9023, %v1022
    %v9245 = vmul.f32 %v9023, %v1023
    %v9246 = vmul.f32 %v9023, %v1024
    %v9247 = vmul.f32 %v9023, %v1025
    %v9248 = vmul.f32 %v9023, %v1026
    %v9249 = vmul.f32 %v9023, %v1027
    %v9250 = vmul.f32 %v9023, %v1028
    %v9251 = vmul.f32 %v9023, %v1029
    %v9252 = vmul.f32 %v9023, %v1030
    %v9253 = vmul.f32 %v9023, %v1031
    %v9254 = vmul.f32 %v9023, %v1032
    %v9255 = vmul.f32 %v9023, %v1033
    %v9256 = vmul.f32 %v9023, %v1034
    %v9257 = vmul.f32 %v9023, %v1035
    %v9258 = vmul.f32 %v9023, %v1036
    %v9259 = vmul.f32 %v9023, %v1037
    %v9260 = vmul.f32 %v9023, %v1038
    %v9261 = vmul.f32 %v9023, %v1039
    %v9262 = vmul.f32 %v9023, %v1040
    %v9263 = vmul.f32 %v9023, %v1041
    %v9264 = vmul.f32 %v9023, %v1042
    %v9265 = vmul.f32 %v9023, %v1043
    %v9266 = vmul.f32 %v9023, %v1044
    %v9267 = vmul.f32 %v9023, %v1045
    %v9268 = vmul.f32 %v9023, %v1046
    %v9269 = vmul.f32 %v9023, %v1047
    %v9270 = vmul.f32 %v9023, %v1048
    %v9271 = vmul.f32 %v9023, %v1049
    %v9272 = vmul.f32 %v9023, %v1050
    %v9273 = vmul.f32 %v9023, %v1051
    %v9274 = vmul.f32 %v9023, %v1052
    %v9275 = vmul.f32 %v9023, %v1053
    %v9276 = vmul.f32 %v9023, %v1054
    %v9277 = vmul.f32 %v9023, %v1055
    %v9278 = vmul.f32 %v9023, %v1056
    %v9279 = vmul.f32 %v9023, %v1057
    %v9280 = vadd.f32 %v8252, %v9024
    %v9281 = vadd.f32 %v8253, %v9025
    %v9282 = vadd.f32 %v8254, %v9026
    %v9283 = vadd.f32 %v8255, %v9027
    %v9284 = vadd.f32 %v8256, %v9028
    %v9285 = vadd.f32 %v8257, %v9029
    %v9286 = vadd.f32 %v8258, %v9030
    %v9287 = vadd.f32 %v8259, %v9031
    %v9288 = vadd.f32 %v8260, %v9032
    %v9289 = vadd.f32 %v8261, %v9033
    %v9290 = vadd.f32 %v8262, %v9034
    %v9291 = vadd.f32 %v8263, %v9035
    %v9292 = vadd.f32 %v8264, %v9036
    %v9293 = vadd.f32 %v8265, %v9037
    %v9294 = vadd.f32 %v8266, %v9038
    %v9295 = vadd.f32 %v8267, %v9039
    %v9296 = vadd.f32 %v8268, %v9040
    %v9297 = vadd.f32 %v8269, %v9041
    %v9298 = vadd.f32 %v8270, %v9042
    %v9299 = vadd.f32 %v8271, %v9043
    %v9300 = vadd.f32 %v8272, %v9044
    %v9301 = vadd.f32 %v8273, %v9045
    %v9302 = vadd.f32 %v8274, %v9046
    %v9303 = vadd.f32 %v8275, %v9047
    %v9304 = vadd.f32 %v8276, %v9048
    %v9305 = vadd.f32 %v8277, %v9049
    %v9306 = vadd.f32 %v8278, %v9050
    %v9307 = vadd.f32 %v8279, %v9051
    %v9308 = vadd.f32 %v8280, %v9052
    %v9309 = vadd.f32 %v8281, %v9053
    %v9310 = vadd.f32 %v8282, %v9054
    %v9311 = vadd.f32 %v8283, %v9055
    %v9312 = vadd.f32 %v8284, %v9056
    %v9313 = vadd.f32 %v8285, %v9057
    %v9314 = vadd.f32 %v8286, %v9058
    %v9315 = vadd.f32 %v8287, %v9059
    %v9316 = vadd.f32 %v8288, %v9060
    %v9317 = vadd.f32 %v8289, %v9061
    %v9318 = vadd.f32 %v8290, %v9062
    %v9319 = vadd.f32 %v8291, %v9063
    %v9320 = vadd.f32 %v8292, %v9064
    %v9321 = vadd.f32 %v8293, %v9065
    %v9322 = vadd.f32 %v8294, %v9066
    %v9323 = vadd.f32 %v8295, %v9067
    %v9324 = vadd.f32 %v8296, %v9068
    %v9325 = vadd.f32 %v8297, %v9069
    %v9326 = vadd.f32 %v8298, %v9070
    %v9327 = vadd.f32 %v8299, %v9071
    %v9328 = vadd.f32 %v8300, %v9072
    %v9329 = vadd.f32 %v8301, %v9073
    %v9330 = vadd.f32 %v8302, %v9074
    %v9331 = vadd.f32 %v8303, %v9075
    %v9332 = vadd.f32 %v8304, %v9076
    %v9333 = vadd.f32 %v8305, %v9077
    %v9334 = vadd.f32 %v8306, %v9078
    %v9335 = vadd.f32 %v8307, %v9079
    %v9336 = vadd.f32 %v8308, %v9080
    %v9337 = vadd.f32 %v8309, %v9081
    %v9338 = vadd.f32 %v8310, %v9082
    %v9339 = vadd.f32 %v8311, %v9083
    %v9340 = vadd.f32 %v8312, %v9084
    %v9341 = vadd.f32 %v8313, %v9085
    %v9342 = vadd.f32 %v8314, %v9086
    %v9343 = vadd.f32 %v8315, %v9087
    %v9344 = vadd.f32 %v8316, %v9088
    %v9345 = vadd.f32 %v8317, %v9089
    %v9346 = vadd.f32 %v8318, %v9090
    %v9347 = vadd.f32 %v8319, %v9091
    %v9348 = vadd.f32 %v8320, %v9092
    %v9349 = vadd.f32 %v8321, %v9093
    %v9350 = vadd.f32 %v8322, %v9094
    %v9351 = vadd.f32 %v8323, %v9095
    %v9352 = vadd.f32 %v8324, %v9096
    %v9353 = vadd.f32 %v8325, %v9097
    %v9354 = vadd.f32 %v8326, %v9098
    %v9355 = vadd.f32 %v8327, %v9099
    %v9356 = vadd.f32 %v8328, %v9100
    %v9357 = vadd.f32 %v8329, %v9101
    %v9358 = vadd.f32 %v8330, %v9102
    %v9359 = vadd.f32 %v8331, %v9103
    %v9360 = vadd.f32 %v8332, %v9104
    %v9361 = vadd.f32 %v8333, %v9105
    %v9362 = vadd.f32 %v8334, %v9106
    %v9363 = vadd.f32 %v8335, %v9107
    %v9364 = vadd.f32 %v8336, %v9108
    %v9365 = vadd.f32 %v8337, %v9109
    %v9366 = vadd.f32 %v8338, %v9110
    %v9367 = vadd.f32 %v8339, %v9111
    %v9368 = vadd.f32 %v8340, %v9112
    %v9369 = vadd.f32 %v8341, %v9113
    %v9370 = vadd.f32 %v8342, %v9114
    %v9371 = vadd.f32 %v8343, %v9115
    %v9372 = vadd.f32 %v8344, %v9116
    %v9373 = vadd.f32 %v8345, %v9117
    %v9374 = vadd.f32 %v8346, %v9118
    %v9375 = vadd.f32 %v8347, %v9119
    %v9376 = vadd.f32 %v8348, %v9120
    %v9377 = vadd.f32 %v8349, %v9121
    %v9378 = vadd.f32 %v8350, %v9122
    %v9379 = vadd.f32 %v8351, %v9123
    %v9380 = vadd.f32 %v8352, %v9124
    %v9381 = vadd.f32 %v8353, %v9125
    %v9382 = vadd.f32 %v8354, %v9126
    %v9383 = vadd.f32 %v8355, %v9127
    %v9384 = vadd.f32 %v8356, %v9128
    %v9385 = vadd.f32 %v8357, %v9129
    %v9386 = vadd.f32 %v8358, %v9130
    %v9387 = vadd.f32 %v8359, %v9131
    %v9388 = vadd.f32 %v8360, %v9132
    %v9389 = vadd.f32 %v8361, %v9133
    %v9390 = vadd.f32 %v8362, %v9134
    %v9391 = vadd.f32 %v8363, %v9135
    %v9392 = vadd.f32 %v8364, %v9136
    %v9393 = vadd.f32 %v8365, %v9137
    %v9394 = vadd.f32 %v8366, %v9138
    %v9395 = vadd.f32 %v8367, %v9139
    %v9396 = vadd.f32 %v8368, %v9140
    %v9397 = vadd.f32 %v8369, %v9141
    %v9398 = vadd.f32 %v8370, %v9142
    %v9399 = vadd.f32 %v8371, %v9143
    %v9400 = vadd.f32 %v8372, %v9144
    %v9401 = vadd.f32 %v8373, %v9145
    %v9402 = vadd.f32 %v8374, %v9146
    %v9403 = vadd.f32 %v8375, %v9147
    %v9404 = vadd.f32 %v8376, %v9148
    %v9405 = vadd.f32 %v8377, %v9149
    %v9406 = vadd.f32 %v8378, %v9150
    %v9407 = vadd.f32 %v8379, %v9151
    %v9408 = vadd.f32 %v8380, %v9152
    %v9409 = vadd.f32 %v8381, %v9153
    %v9410 = vadd.f32 %v8382, %v9154
    %v9411 = vadd.f32 %v8383, %v9155
    %v9412 = vadd.f32 %v8384, %v9156
    %v9413 = vadd.f32 %v8385, %v9157
    %v9414 = vadd.f32 %v8386, %v9158
    %v9415 = vadd.f32 %v8387, %v9159
    %v9416 = vadd.f32 %v8388, %v9160
    %v9417 = vadd.f32 %v8389, %v9161
    %v9418 = vadd.f32 %v8390, %v9162
    %v9419 = vadd.f32 %v8391, %v9163
    %v9420 = vadd.f32 %v8392, %v9164
    %v9421 = vadd.f32 %v8393, %v9165
    %v9422 = vadd.f32 %v8394, %v9166
    %v9423 = vadd.f32 %v8395, %v9167
    %v9424 = vadd.f32 %v8396, %v9168
    %v9425 = vadd.f32 %v8397, %v9169
    %v9426 = vadd.f32 %v8398, %v9170
    %v9427 = vadd.f32 %v8399, %v9171
    %v9428 = vadd.f32 %v8400, %v9172
    %v9429 = vadd.f32 %v8401, %v9173
    %v9430 = vadd.f32 %v8402, %v9174
    %v9431 = vadd.f32 %v8403, %v9175
    %v9432 = vadd.f32 %v8404, %v9176
    %v9433 = vadd.f32 %v8405, %v9177
    %v9434 = vadd.f32 %v8406, %v9178
    %v9435 = vadd.f32 %v8407, %v9179
    %v9436 = vadd.f32 %v8408, %v9180
    %v9437 = vadd.f32 %v8409, %v9181
    %v9438 = vadd.f32 %v8410, %v9182
    %v9439 = vadd.f32 %v8411, %v9183
    %v9440 = vadd.f32 %v8412, %v9184
    %v9441 = vadd.f32 %v8413, %v9185
    %v9442 = vadd.f32 %v8414, %v9186
    %v9443 = vadd.f32 %v8415, %v9187
    %v9444 = vadd.f32 %v8416, %v9188
    %v9445 = vadd.f32 %v8417, %v9189
    %v9446 = vadd.f32 %v8418, %v9190
    %v9447 = vadd.f32 %v8419, %v9191
    %v9448 = vadd.f32 %v8420, %v9192
    %v9449 = vadd.f32 %v8421, %v9193
    %v9450 = vadd.f32 %v8422, %v9194
    %v9451 = vadd.f32 %v8423, %v9195
    %v9452 = vadd.f32 %v8424, %v9196
    %v9453 = vadd.f32 %v8425, %v9197
    %v9454 = vadd.f32 %v8426, %v9198
    %v9455 = vadd.f32 %v8427, %v9199
    %v9456 = vadd.f32 %v8428, %v9200
    %v9457 = vadd.f32 %v8429, %v9201
    %v9458 = vadd.f32 %v8430, %v9202
    %v9459 = vadd.f32 %v8431, %v9203
    %v9460 = vadd.f32 %v8432, %v9204
    %v9461 = vadd.f32 %v8433, %v9205
    %v9462 = vadd.f32 %v8434, %v9206
    %v9463 = vadd.f32 %v8435, %v9207
    %v9464 = vadd.f32 %v8436, %v9208
    %v9465 = vadd.f32 %v8437, %v9209
    %v9466 = vadd.f32 %v8438, %v9210
    %v9467 = vadd.f32 %v8439, %v9211
    %v9468 = vadd.f32 %v8440, %v9212
    %v9469 = vadd.f32 %v8441, %v9213
    %v9470 = vadd.f32 %v8442, %v9214
    %v9471 = vadd.f32 %v8443, %v9215
    %v9472 = vadd.f32 %v8444, %v9216
    %v9473 = vadd.f32 %v8445, %v9217
    %v9474 = vadd.f32 %v8446, %v9218
    %v9475 = vadd.f32 %v8447, %v9219
    %v9476 = vadd.f32 %v8448, %v9220
    %v9477 = vadd.f32 %v8449, %v9221
    %v9478 = vadd.f32 %v8450, %v9222
    %v9479 = vadd.f32 %v8451, %v9223
    %v9480 = vadd.f32 %v8452, %v9224
    %v9481 = vadd.f32 %v8453, %v9225
    %v9482 = vadd.f32 %v8454, %v9226
    %v9483 = vadd.f32 %v8455, %v9227
    %v9484 = vadd.f32 %v8456, %v9228
    %v9485 = vadd.f32 %v8457, %v9229
    %v9486 = vadd.f32 %v8458, %v9230
    %v9487 = vadd.f32 %v8459, %v9231
    %v9488 = vadd.f32 %v8460, %v9232
    %v9489 = vadd.f32 %v8461, %v9233
    %v9490 = vadd.f32 %v8462, %v9234
    %v9491 = vadd.f32 %v8463, %v9235
    %v9492 = vadd.f32 %v8464, %v9236
    %v9493 = vadd.f32 %v8465, %v9237
    %v9494 = vadd.f32 %v8466, %v9238
    %v9495 = vadd.f32 %v8467, %v9239
    %v9496 = vadd.f32 %v8468, %v9240
    %v9497 = vadd.f32 %v8469, %v9241
    %v9498 = vadd.f32 %v8470, %v9242
    %v9499 = vadd.f32 %v8471, %v9243
    %v9500 = vadd.f32 %v8472, %v9244
    %v9501 = vadd.f32 %v8473, %v9245
    %v9502 = vadd.f32 %v8474, %v9246
    %v9503 = vadd.f32 %v8475, %v9247
    %v9504 = vadd.f32 %v8476, %v9248
    %v9505 = vadd.f32 %v8477, %v9249
    %v9506 = vadd.f32 %v8478, %v9250
    %v9507 = vadd.f32 %v8479, %v9251
    %v9508 = vadd.f32 %v8480, %v9252
    %v9509 = vadd.f32 %v8481, %v9253
    %v9510 = vadd.f32 %v8482, %v9254
    %v9511 = vadd.f32 %v8483, %v9255
    %v9512 = vadd.f32 %v8484, %v9256
    %v9513 = vadd.f32 %v8485, %v9257
    %v9514 = vadd.f32 %v8486, %v9258
    %v9515 = vadd.f32 %v8487, %v9259
    %v9516 = vadd.f32 %v8488, %v9260
    %v9517 = vadd.f32 %v8489, %v9261
    %v9518 = vadd.f32 %v8490, %v9262
    %v9519 = vadd.f32 %v8491, %v9263
    %v9520 = vadd.f32 %v8492, %v9264
    %v9521 = vadd.f32 %v8493, %v9265
    %v9522 = vadd.f32 %v8494, %v9266
    %v9523 = vadd.f32 %v8495, %v9267
    %v9524 = vadd.f32 %v8496, %v9268
    %v9525 = vadd.f32 %v8497, %v9269
    %v9526 = vadd.f32 %v8498, %v9270
    %v9527 = vadd.f32 %v8499, %v9271
    %v9528 = vadd.f32 %v8500, %v9272
    %v9529 = vadd.f32 %v8501, %v9273
    %v9530 = vadd.f32 %v8502, %v9274
    %v9531 = vadd.f32 %v8503, %v9275
    %v9532 = vadd.f32 %v8504, %v9276
    %v9533 = vadd.f32 %v8505, %v9277
    %v9534 = vadd.f32 %v8506, %v9278
    %v9535 = vadd.f32 %v8507, %v9279
    %s9536 = sld [smem:[#allocation4 + $0x83]]
    %v9537 = vstv %s9536
    %v9538 = vmul.f32 %v9537, %v802
    %v9539 = vmul.f32 %v9537, %v803
    %v9540 = vmul.f32 %v9537, %v804
    %v9541 = vmul.f32 %v9537, %v805
    %v9542 = vmul.f32 %v9537, %v806
    %v9543 = vmul.f32 %v9537, %v807
    %v9544 = vmul.f32 %v9537, %v808
    %v9545 = vmul.f32 %v9537, %v809
    %v9546 = vmul.f32 %v9537, %v810
    %v9547 = vmul.f32 %v9537, %v811
    %v9548 = vmul.f32 %v9537, %v812
    %v9549 = vmul.f32 %v9537, %v813
    %v9550 = vmul.f32 %v9537, %v814
    %v9551 = vmul.f32 %v9537, %v815
    %v9552 = vmul.f32 %v9537, %v816
    %v9553 = vmul.f32 %v9537, %v817
    %v9554 = vmul.f32 %v9537, %v818
    %v9555 = vmul.f32 %v9537, %v819
    %v9556 = vmul.f32 %v9537, %v820
    %v9557 = vmul.f32 %v9537, %v821
    %v9558 = vmul.f32 %v9537, %v822
    %v9559 = vmul.f32 %v9537, %v823
    %v9560 = vmul.f32 %v9537, %v824
    %v9561 = vmul.f32 %v9537, %v825
    %v9562 = vmul.f32 %v9537, %v826
    %v9563 = vmul.f32 %v9537, %v827
    %v9564 = vmul.f32 %v9537, %v828
    %v9565 = vmul.f32 %v9537, %v829
    %v9566 = vmul.f32 %v9537, %v830
    %v9567 = vmul.f32 %v9537, %v831
    %v9568 = vmul.f32 %v9537, %v832
    %v9569 = vmul.f32 %v9537, %v833
    %v9570 = vmul.f32 %v9537, %v834
    %v9571 = vmul.f32 %v9537, %v835
    %v9572 = vmul.f32 %v9537, %v836
    %v9573 = vmul.f32 %v9537, %v837
    %v9574 = vmul.f32 %v9537, %v838
    %v9575 = vmul.f32 %v9537, %v839
    %v9576 = vmul.f32 %v9537, %v840
    %v9577 = vmul.f32 %v9537, %v841
    %v9578 = vmul.f32 %v9537, %v842
    %v9579 = vmul.f32 %v9537, %v843
    %v9580 = vmul.f32 %v9537, %v844
    %v9581 = vmul.f32 %v9537, %v845
    %v9582 = vmul.f32 %v9537, %v846
    %v9583 = vmul.f32 %v9537, %v847
    %v9584 = vmul.f32 %v9537, %v848
    %v9585 = vmul.f32 %v9537, %v849
    %v9586 = vmul.f32 %v9537, %v850
    %v9587 = vmul.f32 %v9537, %v851
    %v9588 = vmul.f32 %v9537, %v852
    %v9589 = vmul.f32 %v9537, %v853
    %v9590 = vmul.f32 %v9537, %v854
    %v9591 = vmul.f32 %v9537, %v855
    %v9592 = vmul.f32 %v9537, %v856
    %v9593 = vmul.f32 %v9537, %v857
    %v9594 = vmul.f32 %v9537, %v858
    %v9595 = vmul.f32 %v9537, %v859
    %v9596 = vmul.f32 %v9537, %v860
    %v9597 = vmul.f32 %v9537, %v861
    %v9598 = vmul.f32 %v9537, %v862
    %v9599 = vmul.f32 %v9537, %v863
    %v9600 = vmul.f32 %v9537, %v864
    %v9601 = vmul.f32 %v9537, %v865
    %v9602 = vmul.f32 %v9537, %v866
    %v9603 = vmul.f32 %v9537, %v867
    %v9604 = vmul.f32 %v9537, %v868
    %v9605 = vmul.f32 %v9537, %v869
    %v9606 = vmul.f32 %v9537, %v870
    %v9607 = vmul.f32 %v9537, %v871
    %v9608 = vmul.f32 %v9537, %v872
    %v9609 = vmul.f32 %v9537, %v873
    %v9610 = vmul.f32 %v9537, %v874
    %v9611 = vmul.f32 %v9537, %v875
    %v9612 = vmul.f32 %v9537, %v876
    %v9613 = vmul.f32 %v9537, %v877
    %v9614 = vmul.f32 %v9537, %v878
    %v9615 = vmul.f32 %v9537, %v879
    %v9616 = vmul.f32 %v9537, %v880
    %v9617 = vmul.f32 %v9537, %v881
    %v9618 = vmul.f32 %v9537, %v882
    %v9619 = vmul.f32 %v9537, %v883
    %v9620 = vmul.f32 %v9537, %v884
    %v9621 = vmul.f32 %v9537, %v885
    %v9622 = vmul.f32 %v9537, %v886
    %v9623 = vmul.f32 %v9537, %v887
    %v9624 = vmul.f32 %v9537, %v888
    %v9625 = vmul.f32 %v9537, %v889
    %v9626 = vmul.f32 %v9537, %v890
    %v9627 = vmul.f32 %v9537, %v891
    %v9628 = vmul.f32 %v9537, %v892
    %v9629 = vmul.f32 %v9537, %v893
    %v9630 = vmul.f32 %v9537, %v894
    %v9631 = vmul.f32 %v9537, %v895
    %v9632 = vmul.f32 %v9537, %v896
    %v9633 = vmul.f32 %v9537, %v897
    %v9634 = vmul.f32 %v9537, %v898
    %v9635 = vmul.f32 %v9537, %v899
    %v9636 = vmul.f32 %v9537, %v900
    %v9637 = vmul.f32 %v9537, %v901
    %v9638 = vmul.f32 %v9537, %v902
    %v9639 = vmul.f32 %v9537, %v903
    %v9640 = vmul.f32 %v9537, %v904
    %v9641 = vmul.f32 %v9537, %v905
    %v9642 = vmul.f32 %v9537, %v906
    %v9643 = vmul.f32 %v9537, %v907
    %v9644 = vmul.f32 %v9537, %v908
    %v9645 = vmul.f32 %v9537, %v909
    %v9646 = vmul.f32 %v9537, %v910
    %v9647 = vmul.f32 %v9537, %v911
    %v9648 = vmul.f32 %v9537, %v912
    %v9649 = vmul.f32 %v9537, %v913
    %v9650 = vmul.f32 %v9537, %v914
    %v9651 = vmul.f32 %v9537, %v915
    %v9652 = vmul.f32 %v9537, %v916
    %v9653 = vmul.f32 %v9537, %v917
    %v9654 = vmul.f32 %v9537, %v918
    %v9655 = vmul.f32 %v9537, %v919
    %v9656 = vmul.f32 %v9537, %v920
    %v9657 = vmul.f32 %v9537, %v921
    %v9658 = vmul.f32 %v9537, %v922
    %v9659 = vmul.f32 %v9537, %v923
    %v9660 = vmul.f32 %v9537, %v924
    %v9661 = vmul.f32 %v9537, %v925
    %v9662 = vmul.f32 %v9537, %v926
    %v9663 = vmul.f32 %v9537, %v927
    %v9664 = vmul.f32 %v9537, %v928
    %v9665 = vmul.f32 %v9537, %v929
    %v9666 = vmul.f32 %v9537, %v930
    %v9667 = vmul.f32 %v9537, %v931
    %v9668 = vmul.f32 %v9537, %v932
    %v9669 = vmul.f32 %v9537, %v933
    %v9670 = vmul.f32 %v9537, %v934
    %v9671 = vmul.f32 %v9537, %v935
    %v9672 = vmul.f32 %v9537, %v936
    %v9673 = vmul.f32 %v9537, %v937
    %v9674 = vmul.f32 %v9537, %v938
    %v9675 = vmul.f32 %v9537, %v939
    %v9676 = vmul.f32 %v9537, %v940
    %v9677 = vmul.f32 %v9537, %v941
    %v9678 = vmul.f32 %v9537, %v942
    %v9679 = vmul.f32 %v9537, %v943
    %v9680 = vmul.f32 %v9537, %v944
    %v9681 = vmul.f32 %v9537, %v945
    %v9682 = vmul.f32 %v9537, %v946
    %v9683 = vmul.f32 %v9537, %v947
    %v9684 = vmul.f32 %v9537, %v948
    %v9685 = vmul.f32 %v9537, %v949
    %v9686 = vmul.f32 %v9537, %v950
    %v9687 = vmul.f32 %v9537, %v951
    %v9688 = vmul.f32 %v9537, %v952
    %v9689 = vmul.f32 %v9537, %v953
    %v9690 = vmul.f32 %v9537, %v954
    %v9691 = vmul.f32 %v9537, %v955
    %v9692 = vmul.f32 %v9537, %v956
    %v9693 = vmul.f32 %v9537, %v957
    %v9694 = vmul.f32 %v9537, %v958
    %v9695 = vmul.f32 %v9537, %v959
    %v9696 = vmul.f32 %v9537, %v960
    %v9697 = vmul.f32 %v9537, %v961
    %v9698 = vmul.f32 %v9537, %v962
    %v9699 = vmul.f32 %v9537, %v963
    %v9700 = vmul.f32 %v9537, %v964
    %v9701 = vmul.f32 %v9537, %v965
    %v9702 = vmul.f32 %v9537, %v966
    %v9703 = vmul.f32 %v9537, %v967
    %v9704 = vmul.f32 %v9537, %v968
    %v9705 = vmul.f32 %v9537, %v969
    %v9706 = vmul.f32 %v9537, %v970
    %v9707 = vmul.f32 %v9537, %v971
    %v9708 = vmul.f32 %v9537, %v972
    %v9709 = vmul.f32 %v9537, %v973
    %v9710 = vmul.f32 %v9537, %v974
    %v9711 = vmul.f32 %v9537, %v975
    %v9712 = vmul.f32 %v9537, %v976
    %v9713 = vmul.f32 %v9537, %v977
    %v9714 = vmul.f32 %v9537, %v978
    %v9715 = vmul.f32 %v9537, %v979
    %v9716 = vmul.f32 %v9537, %v980
    %v9717 = vmul.f32 %v9537, %v981
    %v9718 = vmul.f32 %v9537, %v982
    %v9719 = vmul.f32 %v9537, %v983
    %v9720 = vmul.f32 %v9537, %v984
    %v9721 = vmul.f32 %v9537, %v985
    %v9722 = vmul.f32 %v9537, %v986
    %v9723 = vmul.f32 %v9537, %v987
    %v9724 = vmul.f32 %v9537, %v988
    %v9725 = vmul.f32 %v9537, %v989
    %v9726 = vmul.f32 %v9537, %v990
    %v9727 = vmul.f32 %v9537, %v991
    %v9728 = vmul.f32 %v9537, %v992
    %v9729 = vmul.f32 %v9537, %v993
    %v9730 = vmul.f32 %v9537, %v994
    %v9731 = vmul.f32 %v9537, %v995
    %v9732 = vmul.f32 %v9537, %v996
    %v9733 = vmul.f32 %v9537, %v997
    %v9734 = vmul.f32 %v9537, %v998
    %v9735 = vmul.f32 %v9537, %v999
    %v9736 = vmul.f32 %v9537, %v1000
    %v9737 = vmul.f32 %v9537, %v1001
    %v9738 = vmul.f32 %v9537, %v1002
    %v9739 = vmul.f32 %v9537, %v1003
    %v9740 = vmul.f32 %v9537, %v1004
    %v9741 = vmul.f32 %v9537, %v1005
    %v9742 = vmul.f32 %v9537, %v1006
    %v9743 = vmul.f32 %v9537, %v1007
    %v9744 = vmul.f32 %v9537, %v1008
    %v9745 = vmul.f32 %v9537, %v1009
    %v9746 = vmul.f32 %v9537, %v1010
    %v9747 = vmul.f32 %v9537, %v1011
    %v9748 = vmul.f32 %v9537, %v1012
    %v9749 = vmul.f32 %v9537, %v1013
    %v9750 = vmul.f32 %v9537, %v1014
    %v9751 = vmul.f32 %v9537, %v1015
    %v9752 = vmul.f32 %v9537, %v1016
    %v9753 = vmul.f32 %v9537, %v1017
    %v9754 = vmul.f32 %v9537, %v1018
    %v9755 = vmul.f32 %v9537, %v1019
    %v9756 = vmul.f32 %v9537, %v1020
    %v9757 = vmul.f32 %v9537, %v1021
    %v9758 = vmul.f32 %v9537, %v1022
    %v9759 = vmul.f32 %v9537, %v1023
    %v9760 = vmul.f32 %v9537, %v1024
    %v9761 = vmul.f32 %v9537, %v1025
    %v9762 = vmul.f32 %v9537, %v1026
    %v9763 = vmul.f32 %v9537, %v1027
    %v9764 = vmul.f32 %v9537, %v1028
    %v9765 = vmul.f32 %v9537, %v1029
    %v9766 = vmul.f32 %v9537, %v1030
    %v9767 = vmul.f32 %v9537, %v1031
    %v9768 = vmul.f32 %v9537, %v1032
    %v9769 = vmul.f32 %v9537, %v1033
    %v9770 = vmul.f32 %v9537, %v1034
    %v9771 = vmul.f32 %v9537, %v1035
    %v9772 = vmul.f32 %v9537, %v1036
    %v9773 = vmul.f32 %v9537, %v1037
    %v9774 = vmul.f32 %v9537, %v1038
    %v9775 = vmul.f32 %v9537, %v1039
    %v9776 = vmul.f32 %v9537, %v1040
    %v9777 = vmul.f32 %v9537, %v1041
    %v9778 = vmul.f32 %v9537, %v1042
    %v9779 = vmul.f32 %v9537, %v1043
    %v9780 = vmul.f32 %v9537, %v1044
    %v9781 = vmul.f32 %v9537, %v1045
    %v9782 = vmul.f32 %v9537, %v1046
    %v9783 = vmul.f32 %v9537, %v1047
    %v9784 = vmul.f32 %v9537, %v1048
    %v9785 = vmul.f32 %v9537, %v1049
    %v9786 = vmul.f32 %v9537, %v1050
    %v9787 = vmul.f32 %v9537, %v1051
    %v9788 = vmul.f32 %v9537, %v1052
    %v9789 = vmul.f32 %v9537, %v1053
    %v9790 = vmul.f32 %v9537, %v1054
    %v9791 = vmul.f32 %v9537, %v1055
    %v9792 = vmul.f32 %v9537, %v1056
    %v9793 = vmul.f32 %v9537, %v1057
    %v9794 = vadd.f32 %v8766, %v9538
    %v9795 = vadd.f32 %v8767, %v9539
    %v9796 = vadd.f32 %v8768, %v9540
    %v9797 = vadd.f32 %v8769, %v9541
    %v9798 = vadd.f32 %v8770, %v9542
    %v9799 = vadd.f32 %v8771, %v9543
    %v9800 = vadd.f32 %v8772, %v9544
    %v9801 = vadd.f32 %v8773, %v9545
    %v9802 = vadd.f32 %v8774, %v9546
    %v9803 = vadd.f32 %v8775, %v9547
    %v9804 = vadd.f32 %v8776, %v9548
    %v9805 = vadd.f32 %v8777, %v9549
    %v9806 = vadd.f32 %v8778, %v9550
    %v9807 = vadd.f32 %v8779, %v9551
    %v9808 = vadd.f32 %v8780, %v9552
    %v9809 = vadd.f32 %v8781, %v9553
    %v9810 = vadd.f32 %v8782, %v9554
    %v9811 = vadd.f32 %v8783, %v9555
    %v9812 = vadd.f32 %v8784, %v9556
    %v9813 = vadd.f32 %v8785, %v9557
    %v9814 = vadd.f32 %v8786, %v9558
    %v9815 = vadd.f32 %v8787, %v9559
    %v9816 = vadd.f32 %v8788, %v9560
    %v9817 = vadd.f32 %v8789, %v9561
    %v9818 = vadd.f32 %v8790, %v9562
    %v9819 = vadd.f32 %v8791, %v9563
    %v9820 = vadd.f32 %v8792, %v9564
    %v9821 = vadd.f32 %v8793, %v9565
    %v9822 = vadd.f32 %v8794, %v9566
    %v9823 = vadd.f32 %v8795, %v9567
    %v9824 = vadd.f32 %v8796, %v9568
    %v9825 = vadd.f32 %v8797, %v9569
    %v9826 = vadd.f32 %v8798, %v9570
    %v9827 = vadd.f32 %v8799, %v9571
    %v9828 = vadd.f32 %v8800, %v9572
    %v9829 = vadd.f32 %v8801, %v9573
    %v9830 = vadd.f32 %v8802, %v9574
    %v9831 = vadd.f32 %v8803, %v9575
    %v9832 = vadd.f32 %v8804, %v9576
    %v9833 = vadd.f32 %v8805, %v9577
    %v9834 = vadd.f32 %v8806, %v9578
    %v9835 = vadd.f32 %v8807, %v9579
    %v9836 = vadd.f32 %v8808, %v9580
    %v9837 = vadd.f32 %v8809, %v9581
    %v9838 = vadd.f32 %v8810, %v9582
    %v9839 = vadd.f32 %v8811, %v9583
    %v9840 = vadd.f32 %v8812, %v9584
    %v9841 = vadd.f32 %v8813, %v9585
    %v9842 = vadd.f32 %v8814, %v9586
    %v9843 = vadd.f32 %v8815, %v9587
    %v9844 = vadd.f32 %v8816, %v9588
    %v9845 = vadd.f32 %v8817, %v9589
    %v9846 = vadd.f32 %v8818, %v9590
    %v9847 = vadd.f32 %v8819, %v9591
    %v9848 = vadd.f32 %v8820, %v9592
    %v9849 = vadd.f32 %v8821, %v9593
    %v9850 = vadd.f32 %v8822, %v9594
    %v9851 = vadd.f32 %v8823, %v9595
    %v9852 = vadd.f32 %v8824, %v9596
    %v9853 = vadd.f32 %v8825, %v9597
    %v9854 = vadd.f32 %v8826, %v9598
    %v9855 = vadd.f32 %v8827, %v9599
    %v9856 = vadd.f32 %v8828, %v9600
    %v9857 = vadd.f32 %v8829, %v9601
    %v9858 = vadd.f32 %v8830, %v9602
    %v9859 = vadd.f32 %v8831, %v9603
    %v9860 = vadd.f32 %v8832, %v9604
    %v9861 = vadd.f32 %v8833, %v9605
    %v9862 = vadd.f32 %v8834, %v9606
    %v9863 = vadd.f32 %v8835, %v9607
    %v9864 = vadd.f32 %v8836, %v9608
    %v9865 = vadd.f32 %v8837, %v9609
    %v9866 = vadd.f32 %v8838, %v9610
    %v9867 = vadd.f32 %v8839, %v9611
    %v9868 = vadd.f32 %v8840, %v9612
    %v9869 = vadd.f32 %v8841, %v9613
    %v9870 = vadd.f32 %v8842, %v9614
    %v9871 = vadd.f32 %v8843, %v9615
    %v9872 = vadd.f32 %v8844, %v9616
    %v9873 = vadd.f32 %v8845, %v9617
    %v9874 = vadd.f32 %v8846, %v9618
    %v9875 = vadd.f32 %v8847, %v9619
    %v9876 = vadd.f32 %v8848, %v9620
    %v9877 = vadd.f32 %v8849, %v9621
    %v9878 = vadd.f32 %v8850, %v9622
    %v9879 = vadd.f32 %v8851, %v9623
    %v9880 = vadd.f32 %v8852, %v9624
    %v9881 = vadd.f32 %v8853, %v9625
    %v9882 = vadd.f32 %v8854, %v9626
    %v9883 = vadd.f32 %v8855, %v9627
    %v9884 = vadd.f32 %v8856, %v9628
    %v9885 = vadd.f32 %v8857, %v9629
    %v9886 = vadd.f32 %v8858, %v9630
    %v9887 = vadd.f32 %v8859, %v9631
    %v9888 = vadd.f32 %v8860, %v9632
    %v9889 = vadd.f32 %v8861, %v9633
    %v9890 = vadd.f32 %v8862, %v9634
    %v9891 = vadd.f32 %v8863, %v9635
    %v9892 = vadd.f32 %v8864, %v9636
    %v9893 = vadd.f32 %v8865, %v9637
    %v9894 = vadd.f32 %v8866, %v9638
    %v9895 = vadd.f32 %v8867, %v9639
    %v9896 = vadd.f32 %v8868, %v9640
    %v9897 = vadd.f32 %v8869, %v9641
    %v9898 = vadd.f32 %v8870, %v9642
    %v9899 = vadd.f32 %v8871, %v9643
    %v9900 = vadd.f32 %v8872, %v9644
    %v9901 = vadd.f32 %v8873, %v9645
    %v9902 = vadd.f32 %v8874, %v9646
    %v9903 = vadd.f32 %v8875, %v9647
    %v9904 = vadd.f32 %v8876, %v9648
    %v9905 = vadd.f32 %v8877, %v9649
    %v9906 = vadd.f32 %v8878, %v9650
    %v9907 = vadd.f32 %v8879, %v9651
    %v9908 = vadd.f32 %v8880, %v9652
    %v9909 = vadd.f32 %v8881, %v9653
    %v9910 = vadd.f32 %v8882, %v9654
    %v9911 = vadd.f32 %v8883, %v9655
    %v9912 = vadd.f32 %v8884, %v9656
    %v9913 = vadd.f32 %v8885, %v9657
    %v9914 = vadd.f32 %v8886, %v9658
    %v9915 = vadd.f32 %v8887, %v9659
    %v9916 = vadd.f32 %v8888, %v9660
    %v9917 = vadd.f32 %v8889, %v9661
    %v9918 = vadd.f32 %v8890, %v9662
    %v9919 = vadd.f32 %v8891, %v9663
    %v9920 = vadd.f32 %v8892, %v9664
    %v9921 = vadd.f32 %v8893, %v9665
    %v9922 = vadd.f32 %v8894, %v9666
    %v9923 = vadd.f32 %v8895, %v9667
    %v9924 = vadd.f32 %v8896, %v9668
    %v9925 = vadd.f32 %v8897, %v9669
    %v9926 = vadd.f32 %v8898, %v9670
    %v9927 = vadd.f32 %v8899, %v9671
    %v9928 = vadd.f32 %v8900, %v9672
    %v9929 = vadd.f32 %v8901, %v9673
    %v9930 = vadd.f32 %v8902, %v9674
    %v9931 = vadd.f32 %v8903, %v9675
    %v9932 = vadd.f32 %v8904, %v9676
    %v9933 = vadd.f32 %v8905, %v9677
    %v9934 = vadd.f32 %v8906, %v9678
    %v9935 = vadd.f32 %v8907, %v9679
    %v9936 = vadd.f32 %v8908, %v9680
    %v9937 = vadd.f32 %v8909, %v9681
    %v9938 = vadd.f32 %v8910, %v9682
    %v9939 = vadd.f32 %v8911, %v9683
    %v9940 = vadd.f32 %v8912, %v9684
    %v9941 = vadd.f32 %v8913, %v9685
    %v9942 = vadd.f32 %v8914, %v9686
    %v9943 = vadd.f32 %v8915, %v9687
    %v9944 = vadd.f32 %v8916, %v9688
    %v9945 = vadd.f32 %v8917, %v9689
    %v9946 = vadd.f32 %v8918, %v9690
    %v9947 = vadd.f32 %v8919, %v9691
    %v9948 = vadd.f32 %v8920, %v9692
    %v9949 = vadd.f32 %v8921, %v9693
    %v9950 = vadd.f32 %v8922, %v9694
    %v9951 = vadd.f32 %v8923, %v9695
    %v9952 = vadd.f32 %v8924, %v9696
    %v9953 = vadd.f32 %v8925, %v9697
    %v9954 = vadd.f32 %v8926, %v9698
    %v9955 = vadd.f32 %v8927, %v9699
    %v9956 = vadd.f32 %v8928, %v9700
    %v9957 = vadd.f32 %v8929, %v9701
    %v9958 = vadd.f32 %v8930, %v9702
    %v9959 = vadd.f32 %v8931, %v9703
    %v9960 = vadd.f32 %v8932, %v9704
    %v9961 = vadd.f32 %v8933, %v9705
    %v9962 = vadd.f32 %v8934, %v9706
    %v9963 = vadd.f32 %v8935, %v9707
    %v9964 = vadd.f32 %v8936, %v9708
    %v9965 = vadd.f32 %v8937, %v9709
    %v9966 = vadd.f32 %v8938, %v9710
    %v9967 = vadd.f32 %v8939, %v9711
    %v9968 = vadd.f32 %v8940, %v9712
    %v9969 = vadd.f32 %v8941, %v9713
    %v9970 = vadd.f32 %v8942, %v9714
    %v9971 = vadd.f32 %v8943, %v9715
    %v9972 = vadd.f32 %v8944, %v9716
    %v9973 = vadd.f32 %v8945, %v9717
    %v9974 = vadd.f32 %v8946, %v9718
    %v9975 = vadd.f32 %v8947, %v9719
    %v9976 = vadd.f32 %v8948, %v9720
    %v9977 = vadd.f32 %v8949, %v9721
    %v9978 = vadd.f32 %v8950, %v9722
    %v9979 = vadd.f32 %v8951, %v9723
    %v9980 = vadd.f32 %v8952, %v9724
    %v9981 = vadd.f32 %v8953, %v9725
    %v9982 = vadd.f32 %v8954, %v9726
    %v9983 = vadd.f32 %v8955, %v9727
    %v9984 = vadd.f32 %v8956, %v9728
    %v9985 = vadd.f32 %v8957, %v9729
    %v9986 = vadd.f32 %v8958, %v9730
    %v9987 = vadd.f32 %v8959, %v9731
    %v9988 = vadd.f32 %v8960, %v9732
    %v9989 = vadd.f32 %v8961, %v9733
    %v9990 = vadd.f32 %v8962, %v9734
    %v9991 = vadd.f32 %v8963, %v9735
    %v9992 = vadd.f32 %v8964, %v9736
    %v9993 = vadd.f32 %v8965, %v9737
    %v9994 = vadd.f32 %v8966, %v9738
    %v9995 = vadd.f32 %v8967, %v9739
    %v9996 = vadd.f32 %v8968, %v9740
    %v9997 = vadd.f32 %v8969, %v9741
    %v9998 = vadd.f32 %v8970, %v9742
    %v9999 = vadd.f32 %v8971, %v9743
    %v10000 = vadd.f32 %v8972, %v9744
    %v10001 = vadd.f32 %v8973, %v9745
    %v10002 = vadd.f32 %v8974, %v9746
    %v10003 = vadd.f32 %v8975, %v9747
    %v10004 = vadd.f32 %v8976, %v9748
    %v10005 = vadd.f32 %v8977, %v9749
    %v10006 = vadd.f32 %v8978, %v9750
    %v10007 = vadd.f32 %v8979, %v9751
    %v10008 = vadd.f32 %v8980, %v9752
    %v10009 = vadd.f32 %v8981, %v9753
    %v10010 = vadd.f32 %v8982, %v9754
    %v10011 = vadd.f32 %v8983, %v9755
    %v10012 = vadd.f32 %v8984, %v9756
    %v10013 = vadd.f32 %v8985, %v9757
    %v10014 = vadd.f32 %v8986, %v9758
    %v10015 = vadd.f32 %v8987, %v9759
    %v10016 = vadd.f32 %v8988, %v9760
    %v10017 = vadd.f32 %v8989, %v9761
    %v10018 = vadd.f32 %v8990, %v9762
    %v10019 = vadd.f32 %v8991, %v9763
    %v10020 = vadd.f32 %v8992, %v9764
    %v10021 = vadd.f32 %v8993, %v9765
    %v10022 = vadd.f32 %v8994, %v9766
    %v10023 = vadd.f32 %v8995, %v9767
    %v10024 = vadd.f32 %v8996, %v9768
    %v10025 = vadd.f32 %v8997, %v9769
    %v10026 = vadd.f32 %v8998, %v9770
    %v10027 = vadd.f32 %v8999, %v9771
    %v10028 = vadd.f32 %v9000, %v9772
    %v10029 = vadd.f32 %v9001, %v9773
    %v10030 = vadd.f32 %v9002, %v9774
    %v10031 = vadd.f32 %v9003, %v9775
    %v10032 = vadd.f32 %v9004, %v9776
    %v10033 = vadd.f32 %v9005, %v9777
    %v10034 = vadd.f32 %v9006, %v9778
    %v10035 = vadd.f32 %v9007, %v9779
    %v10036 = vadd.f32 %v9008, %v9780
    %v10037 = vadd.f32 %v9009, %v9781
    %v10038 = vadd.f32 %v9010, %v9782
    %v10039 = vadd.f32 %v9011, %v9783
    %v10040 = vadd.f32 %v9012, %v9784
    %v10041 = vadd.f32 %v9013, %v9785
    %v10042 = vadd.f32 %v9014, %v9786
    %v10043 = vadd.f32 %v9015, %v9787
    %v10044 = vadd.f32 %v9016, %v9788
    %v10045 = vadd.f32 %v9017, %v9789
    %v10046 = vadd.f32 %v9018, %v9790
    %v10047 = vadd.f32 %v9019, %v9791
    %v10048 = vadd.f32 %v9020, %v9792
    %v10049 = vadd.f32 %v9021, %v9793
    %v10050 = vpack.c.bf16 %v9284, %v9280
    %v10051 = vpack.c.bf16 %v9285, %v9281
    %v10052 = vpack.c.bf16 %v9286, %v9282
    %v10053 = vpack.c.bf16 %v9287, %v9283
    %v10054 = vpack.c.bf16 %v9292, %v9288
    %v10055 = vpack.c.bf16 %v9293, %v9289
    %v10056 = vpack.c.bf16 %v9294, %v9290
    %v10057 = vpack.c.bf16 %v9295, %v9291
    %v10058 = vpack.c.bf16 %v9300, %v9296
    %v10059 = vpack.c.bf16 %v9301, %v9297
    %v10060 = vpack.c.bf16 %v9302, %v9298
    %v10061 = vpack.c.bf16 %v9303, %v9299
    %v10062 = vpack.c.bf16 %v9308, %v9304
    %v10063 = vpack.c.bf16 %v9309, %v9305
    %v10064 = vpack.c.bf16 %v9310, %v9306
    %v10065 = vpack.c.bf16 %v9311, %v9307
    %v10066 = vpack.c.bf16 %v9316, %v9312
    %v10067 = vpack.c.bf16 %v9317, %v9313
    %v10068 = vpack.c.bf16 %v9318, %v9314
    %v10069 = vpack.c.bf16 %v9319, %v9315
    %v10070 = vpack.c.bf16 %v9324, %v9320
    %v10071 = vpack.c.bf16 %v9325, %v9321
    %v10072 = vpack.c.bf16 %v9326, %v9322
    %v10073 = vpack.c.bf16 %v9327, %v9323
    %v10074 = vpack.c.bf16 %v9332, %v9328
    %v10075 = vpack.c.bf16 %v9333, %v9329
    %v10076 = vpack.c.bf16 %v9334, %v9330
    %v10077 = vpack.c.bf16 %v9335, %v9331
    %v10078 = vpack.c.bf16 %v9340, %v9336
    %v10079 = vpack.c.bf16 %v9341, %v9337
    %v10080 = vpack.c.bf16 %v9342, %v9338
    %v10081 = vpack.c.bf16 %v9343, %v9339
    %v10082 = vpack.c.bf16 %v9348, %v9344
    %v10083 = vpack.c.bf16 %v9349, %v9345
    %v10084 = vpack.c.bf16 %v9350, %v9346
    %v10085 = vpack.c.bf16 %v9351, %v9347
    %v10086 = vpack.c.bf16 %v9356, %v9352
    %v10087 = vpack.c.bf16 %v9357, %v9353
    %v10088 = vpack.c.bf16 %v9358, %v9354
    %v10089 = vpack.c.bf16 %v9359, %v9355
    %v10090 = vpack.c.bf16 %v9364, %v9360
    %v10091 = vpack.c.bf16 %v9365, %v9361
    %v10092 = vpack.c.bf16 %v9366, %v9362
    %v10093 = vpack.c.bf16 %v9367, %v9363
    %v10094 = vpack.c.bf16 %v9372, %v9368
    %v10095 = vpack.c.bf16 %v9373, %v9369
    %v10096 = vpack.c.bf16 %v9374, %v9370
    %v10097 = vpack.c.bf16 %v9375, %v9371
    %v10098 = vpack.c.bf16 %v9380, %v9376
    %v10099 = vpack.c.bf16 %v9381, %v9377
    %v10100 = vpack.c.bf16 %v9382, %v9378
    %v10101 = vpack.c.bf16 %v9383, %v9379
    %v10102 = vpack.c.bf16 %v9388, %v9384
    %v10103 = vpack.c.bf16 %v9389, %v9385
    %v10104 = vpack.c.bf16 %v9390, %v9386
    %v10105 = vpack.c.bf16 %v9391, %v9387
    %v10106 = vpack.c.bf16 %v9396, %v9392
    %v10107 = vpack.c.bf16 %v9397, %v9393
    %v10108 = vpack.c.bf16 %v9398, %v9394
    %v10109 = vpack.c.bf16 %v9399, %v9395
    %v10110 = vpack.c.bf16 %v9404, %v9400
    %v10111 = vpack.c.bf16 %v9405, %v9401
    %v10112 = vpack.c.bf16 %v9406, %v9402
    %v10113 = vpack.c.bf16 %v9407, %v9403
    %v10114 = vpack.c.bf16 %v9412, %v9408
    %v10115 = vpack.c.bf16 %v9413, %v9409
    %v10116 = vpack.c.bf16 %v9414, %v9410
    %v10117 = vpack.c.bf16 %v9415, %v9411
    %v10118 = vpack.c.bf16 %v9420, %v9416
    %v10119 = vpack.c.bf16 %v9421, %v9417
    %v10120 = vpack.c.bf16 %v9422, %v9418
    %v10121 = vpack.c.bf16 %v9423, %v9419
    %v10122 = vpack.c.bf16 %v9428, %v9424
    %v10123 = vpack.c.bf16 %v9429, %v9425
    %v10124 = vpack.c.bf16 %v9430, %v9426
    %v10125 = vpack.c.bf16 %v9431, %v9427
    %v10126 = vpack.c.bf16 %v9436, %v9432
    %v10127 = vpack.c.bf16 %v9437, %v9433
    %v10128 = vpack.c.bf16 %v9438, %v9434
    %v10129 = vpack.c.bf16 %v9439, %v9435
    %v10130 = vpack.c.bf16 %v9444, %v9440
    %v10131 = vpack.c.bf16 %v9445, %v9441
    %v10132 = vpack.c.bf16 %v9446, %v9442
    %v10133 = vpack.c.bf16 %v9447, %v9443
    %v10134 = vpack.c.bf16 %v9452, %v9448
    %v10135 = vpack.c.bf16 %v9453, %v9449
    %v10136 = vpack.c.bf16 %v9454, %v9450
    %v10137 = vpack.c.bf16 %v9455, %v9451
    %v10138 = vpack.c.bf16 %v9460, %v9456
    %v10139 = vpack.c.bf16 %v9461, %v9457
    %v10140 = vpack.c.bf16 %v9462, %v9458
    %v10141 = vpack.c.bf16 %v9463, %v9459
    %v10142 = vpack.c.bf16 %v9468, %v9464
    %v10143 = vpack.c.bf16 %v9469, %v9465
    %v10144 = vpack.c.bf16 %v9470, %v9466
    %v10145 = vpack.c.bf16 %v9471, %v9467
    %v10146 = vpack.c.bf16 %v9476, %v9472
    %v10147 = vpack.c.bf16 %v9477, %v9473
    %v10148 = vpack.c.bf16 %v9478, %v9474
    %v10149 = vpack.c.bf16 %v9479, %v9475
    %v10150 = vpack.c.bf16 %v9484, %v9480
    %v10151 = vpack.c.bf16 %v9485, %v9481
    %v10152 = vpack.c.bf16 %v9486, %v9482
    %v10153 = vpack.c.bf16 %v9487, %v9483
    %v10154 = vpack.c.bf16 %v9492, %v9488
    %v10155 = vpack.c.bf16 %v9493, %v9489
    %v10156 = vpack.c.bf16 %v9494, %v9490
    %v10157 = vpack.c.bf16 %v9495, %v9491
    %v10158 = vpack.c.bf16 %v9500, %v9496
    %v10159 = vpack.c.bf16 %v9501, %v9497
    %v10160 = vpack.c.bf16 %v9502, %v9498
    %v10161 = vpack.c.bf16 %v9503, %v9499
    %v10162 = vpack.c.bf16 %v9508, %v9504
    %v10163 = vpack.c.bf16 %v9509, %v9505
    %v10164 = vpack.c.bf16 %v9510, %v9506
    %v10165 = vpack.c.bf16 %v9511, %v9507
    %v10166 = vpack.c.bf16 %v9516, %v9512
    %v10167 = vpack.c.bf16 %v9517, %v9513
    %v10168 = vpack.c.bf16 %v9518, %v9514
    %v10169 = vpack.c.bf16 %v9519, %v9515
    %v10170 = vpack.c.bf16 %v9524, %v9520
    %v10171 = vpack.c.bf16 %v9525, %v9521
    %v10172 = vpack.c.bf16 %v9526, %v9522
    %v10173 = vpack.c.bf16 %v9527, %v9523
    %v10174 = vpack.c.bf16 %v9532, %v9528
    %v10175 = vpack.c.bf16 %v9533, %v9529
    %v10176 = vpack.c.bf16 %v9534, %v9530
    %v10177 = vpack.c.bf16 %v9535, %v9531
    %v10306 = vunpack.c.l.b16 %v10050
    %v10307 = vunpack.c.l.b16 %v10051
    %v10308 = vunpack.c.l.b16 %v10052
    %v10309 = vunpack.c.l.b16 %v10053
    %v10310 = vunpack.c.h.b16 %v10050
    %v10311 = vunpack.c.h.b16 %v10051
    %v10312 = vunpack.c.h.b16 %v10052
    %v10313 = vunpack.c.h.b16 %v10053
    %v10314 = vunpack.c.l.b16 %v10054
    %v10315 = vunpack.c.l.b16 %v10055
    %v10316 = vunpack.c.l.b16 %v10056
    %v10317 = vunpack.c.l.b16 %v10057
    %v10318 = vunpack.c.h.b16 %v10054
    %v10319 = vunpack.c.h.b16 %v10055
    %v10320 = vunpack.c.h.b16 %v10056
    %v10321 = vunpack.c.h.b16 %v10057
    %v10322 = vunpack.c.l.b16 %v10058
    %v10323 = vunpack.c.l.b16 %v10059
    %v10324 = vunpack.c.l.b16 %v10060
    %v10325 = vunpack.c.l.b16 %v10061
    %v10326 = vunpack.c.h.b16 %v10058
    %v10327 = vunpack.c.h.b16 %v10059
    %v10328 = vunpack.c.h.b16 %v10060
    %v10329 = vunpack.c.h.b16 %v10061
    %v10330 = vunpack.c.l.b16 %v10062
    %v10331 = vunpack.c.l.b16 %v10063
    %v10332 = vunpack.c.l.b16 %v10064
    %v10333 = vunpack.c.l.b16 %v10065
    %v10334 = vunpack.c.h.b16 %v10062
    %v10335 = vunpack.c.h.b16 %v10063
    %v10336 = vunpack.c.h.b16 %v10064
    %v10337 = vunpack.c.h.b16 %v10065
    %v10338 = vunpack.c.l.b16 %v10066
    %v10339 = vunpack.c.l.b16 %v10067
    %v10340 = vunpack.c.l.b16 %v10068
    %v10341 = vunpack.c.l.b16 %v10069
    %v10342 = vunpack.c.h.b16 %v10066
    %v10343 = vunpack.c.h.b16 %v10067
    %v10344 = vunpack.c.h.b16 %v10068
    %v10345 = vunpack.c.h.b16 %v10069
    %v10346 = vunpack.c.l.b16 %v10070
    %v10347 = vunpack.c.l.b16 %v10071
    %v10348 = vunpack.c.l.b16 %v10072
    %v10349 = vunpack.c.l.b16 %v10073
    %v10350 = vunpack.c.h.b16 %v10070
    %v10351 = vunpack.c.h.b16 %v10071
    %v10352 = vunpack.c.h.b16 %v10072
    %v10353 = vunpack.c.h.b16 %v10073
    %v10354 = vunpack.c.l.b16 %v10074
    %v10355 = vunpack.c.l.b16 %v10075
    %v10356 = vunpack.c.l.b16 %v10076
    %v10357 = vunpack.c.l.b16 %v10077
    %v10358 = vunpack.c.h.b16 %v10074
    %v10359 = vunpack.c.h.b16 %v10075
    %v10360 = vunpack.c.h.b16 %v10076
    %v10361 = vunpack.c.h.b16 %v10077
    %v10362 = vunpack.c.l.b16 %v10078
    %v10363 = vunpack.c.l.b16 %v10079
    %v10364 = vunpack.c.l.b16 %v10080
    %v10365 = vunpack.c.l.b16 %v10081
    %v10366 = vunpack.c.h.b16 %v10078
    %v10367 = vunpack.c.h.b16 %v10079
    %v10368 = vunpack.c.h.b16 %v10080
    %v10369 = vunpack.c.h.b16 %v10081
    %v10370 = vunpack.c.l.b16 %v10082
    %v10371 = vunpack.c.l.b16 %v10083
    %v10372 = vunpack.c.l.b16 %v10084
    %v10373 = vunpack.c.l.b16 %v10085
    %v10374 = vunpack.c.h.b16 %v10082
    %v10375 = vunpack.c.h.b16 %v10083
    %v10376 = vunpack.c.h.b16 %v10084
    %v10377 = vunpack.c.h.b16 %v10085
    %v10378 = vunpack.c.l.b16 %v10086
    %v10379 = vunpack.c.l.b16 %v10087
    %v10380 = vunpack.c.l.b16 %v10088
    %v10381 = vunpack.c.l.b16 %v10089
    %v10382 = vunpack.c.h.b16 %v10086
    %v10383 = vunpack.c.h.b16 %v10087
    %v10384 = vunpack.c.h.b16 %v10088
    %v10385 = vunpack.c.h.b16 %v10089
    %v10386 = vunpack.c.l.b16 %v10090
    %v10387 = vunpack.c.l.b16 %v10091
    %v10388 = vunpack.c.l.b16 %v10092
    %v10389 = vunpack.c.l.b16 %v10093
    %v10390 = vunpack.c.h.b16 %v10090
    %v10391 = vunpack.c.h.b16 %v10091
    %v10392 = vunpack.c.h.b16 %v10092
    %v10393 = vunpack.c.h.b16 %v10093
    %v10394 = vunpack.c.l.b16 %v10094
    %v10395 = vunpack.c.l.b16 %v10095
    %v10396 = vunpack.c.l.b16 %v10096
    %v10397 = vunpack.c.l.b16 %v10097
    %v10398 = vunpack.c.h.b16 %v10094
    %v10399 = vunpack.c.h.b16 %v10095
    %v10400 = vunpack.c.h.b16 %v10096
    %v10401 = vunpack.c.h.b16 %v10097
    %v10402 = vunpack.c.l.b16 %v10098
    %v10403 = vunpack.c.l.b16 %v10099
    %v10404 = vunpack.c.l.b16 %v10100
    %v10405 = vunpack.c.l.b16 %v10101
    %v10406 = vunpack.c.h.b16 %v10098
    %v10407 = vunpack.c.h.b16 %v10099
    %v10408 = vunpack.c.h.b16 %v10100
    %v10409 = vunpack.c.h.b16 %v10101
    %v10410 = vunpack.c.l.b16 %v10102
    %v10411 = vunpack.c.l.b16 %v10103
    %v10412 = vunpack.c.l.b16 %v10104
    %v10413 = vunpack.c.l.b16 %v10105
    %v10414 = vunpack.c.h.b16 %v10102
    %v10415 = vunpack.c.h.b16 %v10103
    %v10416 = vunpack.c.h.b16 %v10104
    %v10417 = vunpack.c.h.b16 %v10105
    %v10418 = vunpack.c.l.b16 %v10106
    %v10419 = vunpack.c.l.b16 %v10107
    %v10420 = vunpack.c.l.b16 %v10108
    %v10421 = vunpack.c.l.b16 %v10109
    %v10422 = vunpack.c.h.b16 %v10106
    %v10423 = vunpack.c.h.b16 %v10107
    %v10424 = vunpack.c.h.b16 %v10108
    %v10425 = vunpack.c.h.b16 %v10109
    %v10426 = vunpack.c.l.b16 %v10110
    %v10427 = vunpack.c.l.b16 %v10111
    %v10428 = vunpack.c.l.b16 %v10112
    %v10429 = vunpack.c.l.b16 %v10113
    %v10430 = vunpack.c.h.b16 %v10110
    %v10431 = vunpack.c.h.b16 %v10111
    %v10432 = vunpack.c.h.b16 %v10112
    %v10433 = vunpack.c.h.b16 %v10113
    %v10434 = vunpack.c.l.b16 %v10114
    %v10435 = vunpack.c.l.b16 %v10115
    %v10436 = vunpack.c.l.b16 %v10116
    %v10437 = vunpack.c.l.b16 %v10117
    %v10438 = vunpack.c.h.b16 %v10114
    %v10439 = vunpack.c.h.b16 %v10115
    %v10440 = vunpack.c.h.b16 %v10116
    %v10441 = vunpack.c.h.b16 %v10117
    %v10442 = vunpack.c.l.b16 %v10118
    %v10443 = vunpack.c.l.b16 %v10119
    %v10444 = vunpack.c.l.b16 %v10120
    %v10445 = vunpack.c.l.b16 %v10121
    %v10446 = vunpack.c.h.b16 %v10118
    %v10447 = vunpack.c.h.b16 %v10119
    %v10448 = vunpack.c.h.b16 %v10120
    %v10449 = vunpack.c.h.b16 %v10121
    %v10450 = vunpack.c.l.b16 %v10122
    %v10451 = vunpack.c.l.b16 %v10123
    %v10452 = vunpack.c.l.b16 %v10124
    %v10453 = vunpack.c.l.b16 %v10125
    %v10454 = vunpack.c.h.b16 %v10122
    %v10455 = vunpack.c.h.b16 %v10123
    %v10456 = vunpack.c.h.b16 %v10124
    %v10457 = vunpack.c.h.b16 %v10125
    %v10458 = vunpack.c.l.b16 %v10126
    %v10459 = vunpack.c.l.b16 %v10127
    %v10460 = vunpack.c.l.b16 %v10128
    %v10461 = vunpack.c.l.b16 %v10129
    %v10462 = vunpack.c.h.b16 %v10126
    %v10463 = vunpack.c.h.b16 %v10127
    %v10464 = vunpack.c.h.b16 %v10128
    %v10465 = vunpack.c.h.b16 %v10129
    %v10466 = vunpack.c.l.b16 %v10130
    %v10467 = vunpack.c.l.b16 %v10131
    %v10468 = vunpack.c.l.b16 %v10132
    %v10469 = vunpack.c.l.b16 %v10133
    %v10470 = vunpack.c.h.b16 %v10130
    %v10471 = vunpack.c.h.b16 %v10131
    %v10472 = vunpack.c.h.b16 %v10132
    %v10473 = vunpack.c.h.b16 %v10133
    %v10474 = vunpack.c.l.b16 %v10134
    %v10475 = vunpack.c.l.b16 %v10135
    %v10476 = vunpack.c.l.b16 %v10136
    %v10477 = vunpack.c.l.b16 %v10137
    %v10478 = vunpack.c.h.b16 %v10134
    %v10479 = vunpack.c.h.b16 %v10135
    %v10480 = vunpack.c.h.b16 %v10136
    %v10481 = vunpack.c.h.b16 %v10137
    %v10482 = vunpack.c.l.b16 %v10138
    %v10483 = vunpack.c.l.b16 %v10139
    %v10484 = vunpack.c.l.b16 %v10140
    %v10485 = vunpack.c.l.b16 %v10141
    %v10486 = vunpack.c.h.b16 %v10138
    %v10487 = vunpack.c.h.b16 %v10139
    %v10488 = vunpack.c.h.b16 %v10140
    %v10489 = vunpack.c.h.b16 %v10141
    %v10490 = vunpack.c.l.b16 %v10142
    %v10491 = vunpack.c.l.b16 %v10143
    %v10492 = vunpack.c.l.b16 %v10144
    %v10493 = vunpack.c.l.b16 %v10145
    %v10494 = vunpack.c.h.b16 %v10142
    %v10495 = vunpack.c.h.b16 %v10143
    %v10496 = vunpack.c.h.b16 %v10144
    %v10497 = vunpack.c.h.b16 %v10145
    %v10498 = vunpack.c.l.b16 %v10146
    %v10499 = vunpack.c.l.b16 %v10147
    %v10500 = vunpack.c.l.b16 %v10148
    %v10501 = vunpack.c.l.b16 %v10149
    %v10502 = vunpack.c.h.b16 %v10146
    %v10503 = vunpack.c.h.b16 %v10147
    %v10504 = vunpack.c.h.b16 %v10148
    %v10505 = vunpack.c.h.b16 %v10149
    %v10506 = vunpack.c.l.b16 %v10150
    %v10507 = vunpack.c.l.b16 %v10151
    %v10508 = vunpack.c.l.b16 %v10152
    %v10509 = vunpack.c.l.b16 %v10153
    %v10510 = vunpack.c.h.b16 %v10150
    %v10511 = vunpack.c.h.b16 %v10151
    %v10512 = vunpack.c.h.b16 %v10152
    %v10513 = vunpack.c.h.b16 %v10153
    %v10514 = vunpack.c.l.b16 %v10154
    %v10515 = vunpack.c.l.b16 %v10155
    %v10516 = vunpack.c.l.b16 %v10156
    %v10517 = vunpack.c.l.b16 %v10157
    %v10518 = vunpack.c.h.b16 %v10154
    %v10519 = vunpack.c.h.b16 %v10155
    %v10520 = vunpack.c.h.b16 %v10156
    %v10521 = vunpack.c.h.b16 %v10157
    %v10522 = vunpack.c.l.b16 %v10158
    %v10523 = vunpack.c.l.b16 %v10159
    %v10524 = vunpack.c.l.b16 %v10160
    %v10525 = vunpack.c.l.b16 %v10161
    %v10526 = vunpack.c.h.b16 %v10158
    %v10527 = vunpack.c.h.b16 %v10159
    %v10528 = vunpack.c.h.b16 %v10160
    %v10529 = vunpack.c.h.b16 %v10161
    %v10530 = vunpack.c.l.b16 %v10162
    %v10531 = vunpack.c.l.b16 %v10163
    %v10532 = vunpack.c.l.b16 %v10164
    %v10533 = vunpack.c.l.b16 %v10165
    %v10534 = vunpack.c.h.b16 %v10162
    %v10535 = vunpack.c.h.b16 %v10163
    %v10536 = vunpack.c.h.b16 %v10164
    %v10537 = vunpack.c.h.b16 %v10165
    %v10538 = vunpack.c.l.b16 %v10166
    %v10539 = vunpack.c.l.b16 %v10167
    %v10540 = vunpack.c.l.b16 %v10168
    %v10541 = vunpack.c.l.b16 %v10169
    %v10542 = vunpack.c.h.b16 %v10166
    %v10543 = vunpack.c.h.b16 %v10167
    %v10544 = vunpack.c.h.b16 %v10168
    %v10545 = vunpack.c.h.b16 %v10169
    %v10546 = vunpack.c.l.b16 %v10170
    %v10547 = vunpack.c.l.b16 %v10171
    %v10548 = vunpack.c.l.b16 %v10172
    %v10549 = vunpack.c.l.b16 %v10173
    %v10550 = vunpack.c.h.b16 %v10170
    %v10551 = vunpack.c.h.b16 %v10171
    %v10552 = vunpack.c.h.b16 %v10172
    %v10553 = vunpack.c.h.b16 %v10173
    %v10554 = vunpack.c.l.b16 %v10174
    %v10555 = vunpack.c.l.b16 %v10175
    %v10556 = vunpack.c.l.b16 %v10176
    %v10557 = vunpack.c.l.b16 %v10177
    %v10558 = vunpack.c.h.b16 %v10174
    %v10559 = vunpack.c.h.b16 %v10175
    %v10560 = vunpack.c.h.b16 %v10176
    %v10561 = vunpack.c.h.b16 %v10177
    %v10562 = vpack.c.b16 %v10307, %v10306
    %v10563 = vpack.c.b16 %v10309, %v10308
    %v10564 = vpack.c.b16 %v10311, %v10310
    %v10565 = vpack.c.b16 %v10313, %v10312
    %v10566 = vpack.c.b16 %v10315, %v10314
    %v10567 = vpack.c.b16 %v10317, %v10316
    %v10568 = vpack.c.b16 %v10319, %v10318
    %v10569 = vpack.c.b16 %v10321, %v10320
    %v10570 = vpack.c.b16 %v10323, %v10322
    %v10571 = vpack.c.b16 %v10325, %v10324
    %v10572 = vpack.c.b16 %v10327, %v10326
    %v10573 = vpack.c.b16 %v10329, %v10328
    %v10574 = vpack.c.b16 %v10331, %v10330
    %v10575 = vpack.c.b16 %v10333, %v10332
    %v10576 = vpack.c.b16 %v10335, %v10334
    %v10577 = vpack.c.b16 %v10337, %v10336
    %v10578 = vpack.c.b16 %v10339, %v10338
    %v10579 = vpack.c.b16 %v10341, %v10340
    %v10580 = vpack.c.b16 %v10343, %v10342
    %v10581 = vpack.c.b16 %v10345, %v10344
    %v10582 = vpack.c.b16 %v10347, %v10346
    %v10583 = vpack.c.b16 %v10349, %v10348
    %v10584 = vpack.c.b16 %v10351, %v10350
    %v10585 = vpack.c.b16 %v10353, %v10352
    %v10586 = vpack.c.b16 %v10355, %v10354
    %v10587 = vpack.c.b16 %v10357, %v10356
    %v10588 = vpack.c.b16 %v10359, %v10358
    %v10589 = vpack.c.b16 %v10361, %v10360
    %v10590 = vpack.c.b16 %v10363, %v10362
    %v10591 = vpack.c.b16 %v10365, %v10364
    %v10592 = vpack.c.b16 %v10367, %v10366
    %v10593 = vpack.c.b16 %v10369, %v10368
    %v10594 = vpack.c.b16 %v10371, %v10370
    %v10595 = vpack.c.b16 %v10373, %v10372
    %v10596 = vpack.c.b16 %v10375, %v10374
    %v10597 = vpack.c.b16 %v10377, %v10376
    %v10598 = vpack.c.b16 %v10379, %v10378
    %v10599 = vpack.c.b16 %v10381, %v10380
    %v10600 = vpack.c.b16 %v10383, %v10382
    %v10601 = vpack.c.b16 %v10385, %v10384
    %v10602 = vpack.c.b16 %v10387, %v10386
    %v10603 = vpack.c.b16 %v10389, %v10388
    %v10604 = vpack.c.b16 %v10391, %v10390
    %v10605 = vpack.c.b16 %v10393, %v10392
    %v10606 = vpack.c.b16 %v10395, %v10394
    %v10607 = vpack.c.b16 %v10397, %v10396
    %v10608 = vpack.c.b16 %v10399, %v10398
    %v10609 = vpack.c.b16 %v10401, %v10400
    %v10610 = vpack.c.b16 %v10403, %v10402
    %v10611 = vpack.c.b16 %v10405, %v10404
    %v10612 = vpack.c.b16 %v10407, %v10406
    %v10613 = vpack.c.b16 %v10409, %v10408
    %v10614 = vpack.c.b16 %v10411, %v10410
    %v10615 = vpack.c.b16 %v10413, %v10412
    %v10616 = vpack.c.b16 %v10415, %v10414
    %v10617 = vpack.c.b16 %v10417, %v10416
    %v10618 = vpack.c.b16 %v10419, %v10418
    %v10619 = vpack.c.b16 %v10421, %v10420
    %v10620 = vpack.c.b16 %v10423, %v10422
    %v10621 = vpack.c.b16 %v10425, %v10424
    %v10622 = vpack.c.b16 %v10427, %v10426
    %v10623 = vpack.c.b16 %v10429, %v10428
    %v10624 = vpack.c.b16 %v10431, %v10430
    %v10625 = vpack.c.b16 %v10433, %v10432
    %v10626 = vpack.c.b16 %v10435, %v10434
    %v10627 = vpack.c.b16 %v10437, %v10436
    %v10628 = vpack.c.b16 %v10439, %v10438
    %v10629 = vpack.c.b16 %v10441, %v10440
    %v10630 = vpack.c.b16 %v10443, %v10442
    %v10631 = vpack.c.b16 %v10445, %v10444
    %v10632 = vpack.c.b16 %v10447, %v10446
    %v10633 = vpack.c.b16 %v10449, %v10448
    %v10634 = vpack.c.b16 %v10451, %v10450
    %v10635 = vpack.c.b16 %v10453, %v10452
    %v10636 = vpack.c.b16 %v10455, %v10454
    %v10637 = vpack.c.b16 %v10457, %v10456
    %v10638 = vpack.c.b16 %v10459, %v10458
    %v10639 = vpack.c.b16 %v10461, %v10460
    %v10640 = vpack.c.b16 %v10463, %v10462
    %v10641 = vpack.c.b16 %v10465, %v10464
    %v10642 = vpack.c.b16 %v10467, %v10466
    %v10643 = vpack.c.b16 %v10469, %v10468
    %v10644 = vpack.c.b16 %v10471, %v10470
    %v10645 = vpack.c.b16 %v10473, %v10472
    %v10646 = vpack.c.b16 %v10475, %v10474
    %v10647 = vpack.c.b16 %v10477, %v10476
    %v10648 = vpack.c.b16 %v10479, %v10478
    %v10649 = vpack.c.b16 %v10481, %v10480
    %v10650 = vpack.c.b16 %v10483, %v10482
    %v10651 = vpack.c.b16 %v10485, %v10484
    %v10652 = vpack.c.b16 %v10487, %v10486
    %v10653 = vpack.c.b16 %v10489, %v10488
    %v10654 = vpack.c.b16 %v10491, %v10490
    %v10655 = vpack.c.b16 %v10493, %v10492
    %v10656 = vpack.c.b16 %v10495, %v10494
    %v10657 = vpack.c.b16 %v10497, %v10496
    %v10658 = vpack.c.b16 %v10499, %v10498
    %v10659 = vpack.c.b16 %v10501, %v10500
    %v10660 = vpack.c.b16 %v10503, %v10502
    %v10661 = vpack.c.b16 %v10505, %v10504
    %v10662 = vpack.c.b16 %v10507, %v10506
    %v10663 = vpack.c.b16 %v10509, %v10508
    %v10664 = vpack.c.b16 %v10511, %v10510
    %v10665 = vpack.c.b16 %v10513, %v10512
    %v10666 = vpack.c.b16 %v10515, %v10514
    %v10667 = vpack.c.b16 %v10517, %v10516
    %v10668 = vpack.c.b16 %v10519, %v10518
    %v10669 = vpack.c.b16 %v10521, %v10520
    %v10670 = vpack.c.b16 %v10523, %v10522
    %v10671 = vpack.c.b16 %v10525, %v10524
    %v10672 = vpack.c.b16 %v10527, %v10526
    %v10673 = vpack.c.b16 %v10529, %v10528
    %v10674 = vpack.c.b16 %v10531, %v10530
    %v10675 = vpack.c.b16 %v10533, %v10532
    %v10676 = vpack.c.b16 %v10535, %v10534
    %v10677 = vpack.c.b16 %v10537, %v10536
    %v10678 = vpack.c.b16 %v10539, %v10538
    %v10679 = vpack.c.b16 %v10541, %v10540
    %v10680 = vpack.c.b16 %v10543, %v10542
    %v10681 = vpack.c.b16 %v10545, %v10544
    %v10682 = vpack.c.b16 %v10547, %v10546
    %v10683 = vpack.c.b16 %v10549, %v10548
    %v10684 = vpack.c.b16 %v10551, %v10550
    %v10685 = vpack.c.b16 %v10553, %v10552
    %v10686 = vpack.c.b16 %v10555, %v10554
    %v10687 = vpack.c.b16 %v10557, %v10556
    %v10688 = vpack.c.b16 %v10559, %v10558
    %v10689 = vpack.c.b16 %v10561, %v10560
    %s10818 = scalar_lea.vmem [#allocation8], 1024
    %10819 = vst [vmem:[%s10818] sm:$0xff] %v10562
    %10820 = vst [vmem:[%s10818 + $0x8] sm:$0xff] %v10563
    %10821 = vst [vmem:[%s10818 + $0x10] sm:$0xff] %v10564
    %10822 = vst [vmem:[%s10818 + $0x18] sm:$0xff] %v10565
    %10823 = vst [vmem:[%s10818 + $0x20] sm:$0xff] %v10566
    %10824 = vst [vmem:[%s10818 + $0x28] sm:$0xff] %v10567
    %10825 = vst [vmem:[%s10818 + $0x30] sm:$0xff] %v10568
    %10826 = vst [vmem:[%s10818 + $0x38] sm:$0xff] %v10569
    %10827 = vst [vmem:[%s10818 + $0x40] sm:$0xff] %v10570
    %10828 = vst [vmem:[%s10818 + $0x48] sm:$0xff] %v10571
    %10829 = vst [vmem:[%s10818 + $0x50] sm:$0xff] %v10572
    %10830 = vst [vmem:[%s10818 + $0x58] sm:$0xff] %v10573
    %10831 = vst [vmem:[%s10818 + $0x60] sm:$0xff] %v10574
    %10832 = vst [vmem:[%s10818 + $0x68] sm:$0xff] %v10575
    %10833 = vst [vmem:[%s10818 + $0x70] sm:$0xff] %v10576
    %10834 = vst [vmem:[%s10818 + $0x78] sm:$0xff] %v10577
    %10835 = vst [vmem:[%s10818 + $0x80] sm:$0xff] %v10578
    %10836 = vst [vmem:[%s10818 + $0x88] sm:$0xff] %v10579
    %10837 = vst [vmem:[%s10818 + $0x90] sm:$0xff] %v10580
    %10838 = vst [vmem:[%s10818 + $0x98] sm:$0xff] %v10581
    %10839 = vst [vmem:[%s10818 + $0xa0] sm:$0xff] %v10582
    %10840 = vst [vmem:[%s10818 + $0xa8] sm:$0xff] %v10583
    %10841 = vst [vmem:[%s10818 + $0xb0] sm:$0xff] %v10584
    %10842 = vst [vmem:[%s10818 + $0xb8] sm:$0xff] %v10585
    %10843 = vst [vmem:[%s10818 + $0xc0] sm:$0xff] %v10586
    %10844 = vst [vmem:[%s10818 + $0xc8] sm:$0xff] %v10587
    %10845 = vst [vmem:[%s10818 + $0xd0] sm:$0xff] %v10588
    %10846 = vst [vmem:[%s10818 + $0xd8] sm:$0xff] %v10589
    %10847 = vst [vmem:[%s10818 + $0xe0] sm:$0xff] %v10590
    %10848 = vst [vmem:[%s10818 + $0xe8] sm:$0xff] %v10591
    %10849 = vst [vmem:[%s10818 + $0xf0] sm:$0xff] %v10592
    %10850 = vst [vmem:[%s10818 + $0xf8] sm:$0xff] %v10593
    %10851 = vst [vmem:[%s10818 + $0x100] sm:$0xff] %v10594
    %10852 = vst [vmem:[%s10818 + $0x108] sm:$0xff] %v10595
    %10853 = vst [vmem:[%s10818 + $0x110] sm:$0xff] %v10596
    %10854 = vst [vmem:[%s10818 + $0x118] sm:$0xff] %v10597
    %10855 = vst [vmem:[%s10818 + $0x120] sm:$0xff] %v10598
    %10856 = vst [vmem:[%s10818 + $0x128] sm:$0xff] %v10599
    %10857 = vst [vmem:[%s10818 + $0x130] sm:$0xff] %v10600
    %10858 = vst [vmem:[%s10818 + $0x138] sm:$0xff] %v10601
    %10859 = vst [vmem:[%s10818 + $0x140] sm:$0xff] %v10602
    %10860 = vst [vmem:[%s10818 + $0x148] sm:$0xff] %v10603
    %10861 = vst [vmem:[%s10818 + $0x150] sm:$0xff] %v10604
    %10862 = vst [vmem:[%s10818 + $0x158] sm:$0xff] %v10605
    %10863 = vst [vmem:[%s10818 + $0x160] sm:$0xff] %v10606
    %10864 = vst [vmem:[%s10818 + $0x168] sm:$0xff] %v10607
    %10865 = vst [vmem:[%s10818 + $0x170] sm:$0xff] %v10608
    %10866 = vst [vmem:[%s10818 + $0x178] sm:$0xff] %v10609
    %10867 = vst [vmem:[%s10818 + $0x180] sm:$0xff] %v10610
    %10868 = vst [vmem:[%s10818 + $0x188] sm:$0xff] %v10611
    %10869 = vst [vmem:[%s10818 + $0x190] sm:$0xff] %v10612
    %10870 = vst [vmem:[%s10818 + $0x198] sm:$0xff] %v10613
    %10871 = vst [vmem:[%s10818 + $0x1a0] sm:$0xff] %v10614
    %10872 = vst [vmem:[%s10818 + $0x1a8] sm:$0xff] %v10615
    %10873 = vst [vmem:[%s10818 + $0x1b0] sm:$0xff] %v10616
    %10874 = vst [vmem:[%s10818 + $0x1b8] sm:$0xff] %v10617
    %10875 = vst [vmem:[%s10818 + $0x1c0] sm:$0xff] %v10618
    %10876 = vst [vmem:[%s10818 + $0x1c8] sm:$0xff] %v10619
    %10877 = vst [vmem:[%s10818 + $0x1d0] sm:$0xff] %v10620
    %10878 = vst [vmem:[%s10818 + $0x1d8] sm:$0xff] %v10621
    %10879 = vst [vmem:[%s10818 + $0x1e0] sm:$0xff] %v10622
    %10880 = vst [vmem:[%s10818 + $0x1e8] sm:$0xff] %v10623
    %10881 = vst [vmem:[%s10818 + $0x1f0] sm:$0xff] %v10624
    %10882 = vst [vmem:[%s10818 + $0x1f8] sm:$0xff] %v10625
    %10883 = vst [vmem:[%s10818 + $0x200] sm:$0xff] %v10626
    %10884 = vst [vmem:[%s10818 + $0x208] sm:$0xff] %v10627
    %10885 = vst [vmem:[%s10818 + $0x210] sm:$0xff] %v10628
    %10886 = vst [vmem:[%s10818 + $0x218] sm:$0xff] %v10629
    %10887 = vst [vmem:[%s10818 + $0x220] sm:$0xff] %v10630
    %10888 = vst [vmem:[%s10818 + $0x228] sm:$0xff] %v10631
    %10889 = vst [vmem:[%s10818 + $0x230] sm:$0xff] %v10632
    %10890 = vst [vmem:[%s10818 + $0x238] sm:$0xff] %v10633
    %10891 = vst [vmem:[%s10818 + $0x240] sm:$0xff] %v10634
    %10892 = vst [vmem:[%s10818 + $0x248] sm:$0xff] %v10635
    %10893 = vst [vmem:[%s10818 + $0x250] sm:$0xff] %v10636
    %10894 = vst [vmem:[%s10818 + $0x258] sm:$0xff] %v10637
    %10895 = vst [vmem:[%s10818 + $0x260] sm:$0xff] %v10638
    %10896 = vst [vmem:[%s10818 + $0x268] sm:$0xff] %v10639
    %10897 = vst [vmem:[%s10818 + $0x270] sm:$0xff] %v10640
    %10898 = vst [vmem:[%s10818 + $0x278] sm:$0xff] %v10641
    %10899 = vst [vmem:[%s10818 + $0x280] sm:$0xff] %v10642
    %10900 = vst [vmem:[%s10818 + $0x288] sm:$0xff] %v10643
    %10901 = vst [vmem:[%s10818 + $0x290] sm:$0xff] %v10644
    %10902 = vst [vmem:[%s10818 + $0x298] sm:$0xff] %v10645
    %10903 = vst [vmem:[%s10818 + $0x2a0] sm:$0xff] %v10646
    %10904 = vst [vmem:[%s10818 + $0x2a8] sm:$0xff] %v10647
    %10905 = vst [vmem:[%s10818 + $0x2b0] sm:$0xff] %v10648
    %10906 = vst [vmem:[%s10818 + $0x2b8] sm:$0xff] %v10649
    %10907 = vst [vmem:[%s10818 + $0x2c0] sm:$0xff] %v10650
    %10908 = vst [vmem:[%s10818 + $0x2c8] sm:$0xff] %v10651
    %10909 = vst [vmem:[%s10818 + $0x2d0] sm:$0xff] %v10652
    %10910 = vst [vmem:[%s10818 + $0x2d8] sm:$0xff] %v10653
    %10911 = vst [vmem:[%s10818 + $0x2e0] sm:$0xff] %v10654
    %10912 = vst [vmem:[%s10818 + $0x2e8] sm:$0xff] %v10655
    %10913 = vst [vmem:[%s10818 + $0x2f0] sm:$0xff] %v10656
    %10914 = vst [vmem:[%s10818 + $0x2f8] sm:$0xff] %v10657
    %10915 = vst [vmem:[%s10818 + $0x300] sm:$0xff] %v10658
    %10916 = vst [vmem:[%s10818 + $0x308] sm:$0xff] %v10659
    %10917 = vst [vmem:[%s10818 + $0x310] sm:$0xff] %v10660
    %10918 = vst [vmem:[%s10818 + $0x318] sm:$0xff] %v10661
    %10919 = vst [vmem:[%s10818 + $0x320] sm:$0xff] %v10662
    %10920 = vst [vmem:[%s10818 + $0x328] sm:$0xff] %v10663
    %10921 = vst [vmem:[%s10818 + $0x330] sm:$0xff] %v10664
    %10922 = vst [vmem:[%s10818 + $0x338] sm:$0xff] %v10665
    %10923 = vst [vmem:[%s10818 + $0x340] sm:$0xff] %v10666
    %10924 = vst [vmem:[%s10818 + $0x348] sm:$0xff] %v10667
    %10925 = vst [vmem:[%s10818 + $0x350] sm:$0xff] %v10668
    %10926 = vst [vmem:[%s10818 + $0x358] sm:$0xff] %v10669
    %10927 = vst [vmem:[%s10818 + $0x360] sm:$0xff] %v10670
    %10928 = vst [vmem:[%s10818 + $0x368] sm:$0xff] %v10671
    %10929 = vst [vmem:[%s10818 + $0x370] sm:$0xff] %v10672
    %10930 = vst [vmem:[%s10818 + $0x378] sm:$0xff] %v10673
    %10931 = vst [vmem:[%s10818 + $0x380] sm:$0xff] %v10674
    %10932 = vst [vmem:[%s10818 + $0x388] sm:$0xff] %v10675
    %10933 = vst [vmem:[%s10818 + $0x390] sm:$0xff] %v10676
    %10934 = vst [vmem:[%s10818 + $0x398] sm:$0xff] %v10677
    %10935 = vst [vmem:[%s10818 + $0x3a0] sm:$0xff] %v10678
    %10936 = vst [vmem:[%s10818 + $0x3a8] sm:$0xff] %v10679
    %10937 = vst [vmem:[%s10818 + $0x3b0] sm:$0xff] %v10680
    %10938 = vst [vmem:[%s10818 + $0x3b8] sm:$0xff] %v10681
    %10939 = vst [vmem:[%s10818 + $0x3c0] sm:$0xff] %v10682
    %10940 = vst [vmem:[%s10818 + $0x3c8] sm:$0xff] %v10683
    %10941 = vst [vmem:[%s10818 + $0x3d0] sm:$0xff] %v10684
    %10942 = vst [vmem:[%s10818 + $0x3d8] sm:$0xff] %v10685
    %10943 = vst [vmem:[%s10818 + $0x3e0] sm:$0xff] %v10686
    %10944 = vst [vmem:[%s10818 + $0x3e8] sm:$0xff] %v10687
    %10945 = vst [vmem:[%s10818 + $0x3f0] sm:$0xff] %v10688
    %10946 = vst [vmem:[%s10818 + $0x3f8] sm:$0xff] %v10689
    %v10947 = vpack.c.bf16 %v9798, %v9794
    %v10948 = vpack.c.bf16 %v9799, %v9795
    %v10949 = vpack.c.bf16 %v9800, %v9796
    %v10950 = vpack.c.bf16 %v9801, %v9797
    %v10951 = vpack.c.bf16 %v9806, %v9802
    %v10952 = vpack.c.bf16 %v9807, %v9803
    %v10953 = vpack.c.bf16 %v9808, %v9804
    %v10954 = vpack.c.bf16 %v9809, %v9805
    %v10955 = vpack.c.bf16 %v9814, %v9810
    %v10956 = vpack.c.bf16 %v9815, %v9811
    %v10957 = vpack.c.bf16 %v9816, %v9812
    %v10958 = vpack.c.bf16 %v9817, %v9813
    %v10959 = vpack.c.bf16 %v9822, %v9818
    %v10960 = vpack.c.bf16 %v9823, %v9819
    %v10961 = vpack.c.bf16 %v9824, %v9820
    %v10962 = vpack.c.bf16 %v9825, %v9821
    %v10963 = vpack.c.bf16 %v9830, %v9826
    %v10964 = vpack.c.bf16 %v9831, %v9827
    %v10965 = vpack.c.bf16 %v9832, %v9828
    %v10966 = vpack.c.bf16 %v9833, %v9829
    %v10967 = vpack.c.bf16 %v9838, %v9834
    %v10968 = vpack.c.bf16 %v9839, %v9835
    %v10969 = vpack.c.bf16 %v9840, %v9836
    %v10970 = vpack.c.bf16 %v9841, %v9837
    %v10971 = vpack.c.bf16 %v9846, %v9842
    %v10972 = vpack.c.bf16 %v9847, %v9843
    %v10973 = vpack.c.bf16 %v9848, %v9844
    %v10974 = vpack.c.bf16 %v9849, %v9845
    %v10975 = vpack.c.bf16 %v9854, %v9850
    %v10976 = vpack.c.bf16 %v9855, %v9851
    %v10977 = vpack.c.bf16 %v9856, %v9852
    %v10978 = vpack.c.bf16 %v9857, %v9853
    %v10979 = vpack.c.bf16 %v9862, %v9858
    %v10980 = vpack.c.bf16 %v9863, %v9859
    %v10981 = vpack.c.bf16 %v9864, %v9860
    %v10982 = vpack.c.bf16 %v9865, %v9861
    %v10983 = vpack.c.bf16 %v9870, %v9866
    %v10984 = vpack.c.bf16 %v9871, %v9867
    %v10985 = vpack.c.bf16 %v9872, %v9868
    %v10986 = vpack.c.bf16 %v9873, %v9869
    %v10987 = vpack.c.bf16 %v9878, %v9874
    %v10988 = vpack.c.bf16 %v9879, %v9875
    %v10989 = vpack.c.bf16 %v9880, %v9876
    %v10990 = vpack.c.bf16 %v9881, %v9877
    %v10991 = vpack.c.bf16 %v9886, %v9882
    %v10992 = vpack.c.bf16 %v9887, %v9883
    %v10993 = vpack.c.bf16 %v9888, %v9884
    %v10994 = vpack.c.bf16 %v9889, %v9885
    %v10995 = vpack.c.bf16 %v9894, %v9890
    %v10996 = vpack.c.bf16 %v9895, %v9891
    %v10997 = vpack.c.bf16 %v9896, %v9892
    %v10998 = vpack.c.bf16 %v9897, %v9893
    %v10999 = vpack.c.bf16 %v9902, %v9898
    %v11000 = vpack.c.bf16 %v9903, %v9899
    %v11001 = vpack.c.bf16 %v9904, %v9900
    %v11002 = vpack.c.bf16 %v9905, %v9901
    %v11003 = vpack.c.bf16 %v9910, %v9906
    %v11004 = vpack.c.bf16 %v9911, %v9907
    %v11005 = vpack.c.bf16 %v9912, %v9908
    %v11006 = vpack.c.bf16 %v9913, %v9909
    %v11007 = vpack.c.bf16 %v9918, %v9914
    %v11008 = vpack.c.bf16 %v9919, %v9915
    %v11009 = vpack.c.bf16 %v9920, %v9916
    %v11010 = vpack.c.bf16 %v9921, %v9917
    %v11011 = vpack.c.bf16 %v9926, %v9922
    %v11012 = vpack.c.bf16 %v9927, %v9923
    %v11013 = vpack.c.bf16 %v9928, %v9924
    %v11014 = vpack.c.bf16 %v9929, %v9925
    %v11015 = vpack.c.bf16 %v9934, %v9930
    %v11016 = vpack.c.bf16 %v9935, %v9931
    %v11017 = vpack.c.bf16 %v9936, %v9932
    %v11018 = vpack.c.bf16 %v9937, %v9933
    %v11019 = vpack.c.bf16 %v9942, %v9938
    %v11020 = vpack.c.bf16 %v9943, %v9939
    %v11021 = vpack.c.bf16 %v9944, %v9940
    %v11022 = vpack.c.bf16 %v9945, %v9941
    %v11023 = vpack.c.bf16 %v9950, %v9946
    %v11024 = vpack.c.bf16 %v9951, %v9947
    %v11025 = vpack.c.bf16 %v9952, %v9948
    %v11026 = vpack.c.bf16 %v9953, %v9949
    %v11027 = vpack.c.bf16 %v9958, %v9954
    %v11028 = vpack.c.bf16 %v9959, %v9955
    %v11029 = vpack.c.bf16 %v9960, %v9956
    %v11030 = vpack.c.bf16 %v9961, %v9957
    %v11031 = vpack.c.bf16 %v9966, %v9962
    %v11032 = vpack.c.bf16 %v9967, %v9963
    %v11033 = vpack.c.bf16 %v9968, %v9964
    %v11034 = vpack.c.bf16 %v9969, %v9965
    %v11035 = vpack.c.bf16 %v9974, %v9970
    %v11036 = vpack.c.bf16 %v9975, %v9971
    %v11037 = vpack.c.bf16 %v9976, %v9972
    %v11038 = vpack.c.bf16 %v9977, %v9973
    %v11039 = vpack.c.bf16 %v9982, %v9978
    %v11040 = vpack.c.bf16 %v9983, %v9979
    %v11041 = vpack.c.bf16 %v9984, %v9980
    %v11042 = vpack.c.bf16 %v9985, %v9981
    %v11043 = vpack.c.bf16 %v9990, %v9986
    %v11044 = vpack.c.bf16 %v9991, %v9987
    %v11045 = vpack.c.bf16 %v9992, %v9988
    %v11046 = vpack.c.bf16 %v9993, %v9989
    %v11047 = vpack.c.bf16 %v9998, %v9994
    %v11048 = vpack.c.bf16 %v9999, %v9995
    %v11049 = vpack.c.bf16 %v10000, %v9996
    %v11050 = vpack.c.bf16 %v10001, %v9997
    %v11051 = vpack.c.bf16 %v10006, %v10002
    %v11052 = vpack.c.bf16 %v10007, %v10003
    %v11053 = vpack.c.bf16 %v10008, %v10004
    %v11054 = vpack.c.bf16 %v10009, %v10005
    %v11055 = vpack.c.bf16 %v10014, %v10010
    %v11056 = vpack.c.bf16 %v10015, %v10011
    %v11057 = vpack.c.bf16 %v10016, %v10012
    %v11058 = vpack.c.bf16 %v10017, %v10013
    %v11059 = vpack.c.bf16 %v10022, %v10018
    %v11060 = vpack.c.bf16 %v10023, %v10019
    %v11061 = vpack.c.bf16 %v10024, %v10020
    %v11062 = vpack.c.bf16 %v10025, %v10021
    %v11063 = vpack.c.bf16 %v10030, %v10026
    %v11064 = vpack.c.bf16 %v10031, %v10027
    %v11065 = vpack.c.bf16 %v10032, %v10028
    %v11066 = vpack.c.bf16 %v10033, %v10029
    %v11067 = vpack.c.bf16 %v10038, %v10034
    %v11068 = vpack.c.bf16 %v10039, %v10035
    %v11069 = vpack.c.bf16 %v10040, %v10036
    %v11070 = vpack.c.bf16 %v10041, %v10037
    %v11071 = vpack.c.bf16 %v10046, %v10042
    %v11072 = vpack.c.bf16 %v10047, %v10043
    %v11073 = vpack.c.bf16 %v10048, %v10044
    %v11074 = vpack.c.bf16 %v10049, %v10045
    %v11203 = vunpack.c.l.b16 %v10947
    %v11204 = vunpack.c.l.b16 %v10948
    %v11205 = vunpack.c.l.b16 %v10949
    %v11206 = vunpack.c.l.b16 %v10950
    %v11207 = vunpack.c.h.b16 %v10947
    %v11208 = vunpack.c.h.b16 %v10948
    %v11209 = vunpack.c.h.b16 %v10949
    %v11210 = vunpack.c.h.b16 %v10950
    %v11211 = vunpack.c.l.b16 %v10951
    %v11212 = vunpack.c.l.b16 %v10952
    %v11213 = vunpack.c.l.b16 %v10953
    %v11214 = vunpack.c.l.b16 %v10954
    %v11215 = vunpack.c.h.b16 %v10951
    %v11216 = vunpack.c.h.b16 %v10952
    %v11217 = vunpack.c.h.b16 %v10953
    %v11218 = vunpack.c.h.b16 %v10954
    %v11219 = vunpack.c.l.b16 %v10955
    %v11220 = vunpack.c.l.b16 %v10956
    %v11221 = vunpack.c.l.b16 %v10957
    %v11222 = vunpack.c.l.b16 %v10958
    %v11223 = vunpack.c.h.b16 %v10955
    %v11224 = vunpack.c.h.b16 %v10956
    %v11225 = vunpack.c.h.b16 %v10957
    %v11226 = vunpack.c.h.b16 %v10958
    %v11227 = vunpack.c.l.b16 %v10959
    %v11228 = vunpack.c.l.b16 %v10960
    %v11229 = vunpack.c.l.b16 %v10961
    %v11230 = vunpack.c.l.b16 %v10962
    %v11231 = vunpack.c.h.b16 %v10959
    %v11232 = vunpack.c.h.b16 %v10960
    %v11233 = vunpack.c.h.b16 %v10961
    %v11234 = vunpack.c.h.b16 %v10962
    %v11235 = vunpack.c.l.b16 %v10963
    %v11236 = vunpack.c.l.b16 %v10964
    %v11237 = vunpack.c.l.b16 %v10965
    %v11238 = vunpack.c.l.b16 %v10966
    %v11239 = vunpack.c.h.b16 %v10963
    %v11240 = vunpack.c.h.b16 %v10964
    %v11241 = vunpack.c.h.b16 %v10965
    %v11242 = vunpack.c.h.b16 %v10966
    %v11243 = vunpack.c.l.b16 %v10967
    %v11244 = vunpack.c.l.b16 %v10968
    %v11245 = vunpack.c.l.b16 %v10969
    %v11246 = vunpack.c.l.b16 %v10970
    %v11247 = vunpack.c.h.b16 %v10967
    %v11248 = vunpack.c.h.b16 %v10968
    %v11249 = vunpack.c.h.b16 %v10969
    %v11250 = vunpack.c.h.b16 %v10970
    %v11251 = vunpack.c.l.b16 %v10971
    %v11252 = vunpack.c.l.b16 %v10972
    %v11253 = vunpack.c.l.b16 %v10973
    %v11254 = vunpack.c.l.b16 %v10974
    %v11255 = vunpack.c.h.b16 %v10971
    %v11256 = vunpack.c.h.b16 %v10972
    %v11257 = vunpack.c.h.b16 %v10973
    %v11258 = vunpack.c.h.b16 %v10974
    %v11259 = vunpack.c.l.b16 %v10975
    %v11260 = vunpack.c.l.b16 %v10976
    %v11261 = vunpack.c.l.b16 %v10977
    %v11262 = vunpack.c.l.b16 %v10978
    %v11263 = vunpack.c.h.b16 %v10975
    %v11264 = vunpack.c.h.b16 %v10976
    %v11265 = vunpack.c.h.b16 %v10977
    %v11266 = vunpack.c.h.b16 %v10978
    %v11267 = vunpack.c.l.b16 %v10979
    %v11268 = vunpack.c.l.b16 %v10980
    %v11269 = vunpack.c.l.b16 %v10981
    %v11270 = vunpack.c.l.b16 %v10982
    %v11271 = vunpack.c.h.b16 %v10979
    %v11272 = vunpack.c.h.b16 %v10980
    %v11273 = vunpack.c.h.b16 %v10981
    %v11274 = vunpack.c.h.b16 %v10982
    %v11275 = vunpack.c.l.b16 %v10983
    %v11276 = vunpack.c.l.b16 %v10984
    %v11277 = vunpack.c.l.b16 %v10985
    %v11278 = vunpack.c.l.b16 %v10986
    %v11279 = vunpack.c.h.b16 %v10983
    %v11280 = vunpack.c.h.b16 %v10984
    %v11281 = vunpack.c.h.b16 %v10985
    %v11282 = vunpack.c.h.b16 %v10986
    %v11283 = vunpack.c.l.b16 %v10987
    %v11284 = vunpack.c.l.b16 %v10988
    %v11285 = vunpack.c.l.b16 %v10989
    %v11286 = vunpack.c.l.b16 %v10990
    %v11287 = vunpack.c.h.b16 %v10987
    %v11288 = vunpack.c.h.b16 %v10988
    %v11289 = vunpack.c.h.b16 %v10989
    %v11290 = vunpack.c.h.b16 %v10990
    %v11291 = vunpack.c.l.b16 %v10991
    %v11292 = vunpack.c.l.b16 %v10992
    %v11293 = vunpack.c.l.b16 %v10993
    %v11294 = vunpack.c.l.b16 %v10994
    %v11295 = vunpack.c.h.b16 %v10991
    %v11296 = vunpack.c.h.b16 %v10992
    %v11297 = vunpack.c.h.b16 %v10993
    %v11298 = vunpack.c.h.b16 %v10994
    %v11299 = vunpack.c.l.b16 %v10995
    %v11300 = vunpack.c.l.b16 %v10996
    %v11301 = vunpack.c.l.b16 %v10997
    %v11302 = vunpack.c.l.b16 %v10998
    %v11303 = vunpack.c.h.b16 %v10995
    %v11304 = vunpack.c.h.b16 %v10996
    %v11305 = vunpack.c.h.b16 %v10997
    %v11306 = vunpack.c.h.b16 %v10998
    %v11307 = vunpack.c.l.b16 %v10999
    %v11308 = vunpack.c.l.b16 %v11000
    %v11309 = vunpack.c.l.b16 %v11001
    %v11310 = vunpack.c.l.b16 %v11002
    %v11311 = vunpack.c.h.b16 %v10999
    %v11312 = vunpack.c.h.b16 %v11000
    %v11313 = vunpack.c.h.b16 %v11001
    %v11314 = vunpack.c.h.b16 %v11002
    %v11315 = vunpack.c.l.b16 %v11003
    %v11316 = vunpack.c.l.b16 %v11004
    %v11317 = vunpack.c.l.b16 %v11005
    %v11318 = vunpack.c.l.b16 %v11006
    %v11319 = vunpack.c.h.b16 %v11003
    %v11320 = vunpack.c.h.b16 %v11004
    %v11321 = vunpack.c.h.b16 %v11005
    %v11322 = vunpack.c.h.b16 %v11006
    %v11323 = vunpack.c.l.b16 %v11007
    %v11324 = vunpack.c.l.b16 %v11008
    %v11325 = vunpack.c.l.b16 %v11009
    %v11326 = vunpack.c.l.b16 %v11010
    %v11327 = vunpack.c.h.b16 %v11007
    %v11328 = vunpack.c.h.b16 %v11008
    %v11329 = vunpack.c.h.b16 %v11009
    %v11330 = vunpack.c.h.b16 %v11010
    %v11331 = vunpack.c.l.b16 %v11011
    %v11332 = vunpack.c.l.b16 %v11012
    %v11333 = vunpack.c.l.b16 %v11013
    %v11334 = vunpack.c.l.b16 %v11014
    %v11335 = vunpack.c.h.b16 %v11011
    %v11336 = vunpack.c.h.b16 %v11012
    %v11337 = vunpack.c.h.b16 %v11013
    %v11338 = vunpack.c.h.b16 %v11014
    %v11339 = vunpack.c.l.b16 %v11015
    %v11340 = vunpack.c.l.b16 %v11016
    %v11341 = vunpack.c.l.b16 %v11017
    %v11342 = vunpack.c.l.b16 %v11018
    %v11343 = vunpack.c.h.b16 %v11015
    %v11344 = vunpack.c.h.b16 %v11016
    %v11345 = vunpack.c.h.b16 %v11017
    %v11346 = vunpack.c.h.b16 %v11018
    %v11347 = vunpack.c.l.b16 %v11019
    %v11348 = vunpack.c.l.b16 %v11020
    %v11349 = vunpack.c.l.b16 %v11021
    %v11350 = vunpack.c.l.b16 %v11022
    %v11351 = vunpack.c.h.b16 %v11019
    %v11352 = vunpack.c.h.b16 %v11020
    %v11353 = vunpack.c.h.b16 %v11021
    %v11354 = vunpack.c.h.b16 %v11022
    %v11355 = vunpack.c.l.b16 %v11023
    %v11356 = vunpack.c.l.b16 %v11024
    %v11357 = vunpack.c.l.b16 %v11025
    %v11358 = vunpack.c.l.b16 %v11026
    %v11359 = vunpack.c.h.b16 %v11023
    %v11360 = vunpack.c.h.b16 %v11024
    %v11361 = vunpack.c.h.b16 %v11025
    %v11362 = vunpack.c.h.b16 %v11026
    %v11363 = vunpack.c.l.b16 %v11027
    %v11364 = vunpack.c.l.b16 %v11028
    %v11365 = vunpack.c.l.b16 %v11029
    %v11366 = vunpack.c.l.b16 %v11030
    %v11367 = vunpack.c.h.b16 %v11027
    %v11368 = vunpack.c.h.b16 %v11028
    %v11369 = vunpack.c.h.b16 %v11029
    %v11370 = vunpack.c.h.b16 %v11030
    %v11371 = vunpack.c.l.b16 %v11031
    %v11372 = vunpack.c.l.b16 %v11032
    %v11373 = vunpack.c.l.b16 %v11033
    %v11374 = vunpack.c.l.b16 %v11034
    %v11375 = vunpack.c.h.b16 %v11031
    %v11376 = vunpack.c.h.b16 %v11032
    %v11377 = vunpack.c.h.b16 %v11033
    %v11378 = vunpack.c.h.b16 %v11034
    %v11379 = vunpack.c.l.b16 %v11035
    %v11380 = vunpack.c.l.b16 %v11036
    %v11381 = vunpack.c.l.b16 %v11037
    %v11382 = vunpack.c.l.b16 %v11038
    %v11383 = vunpack.c.h.b16 %v11035
    %v11384 = vunpack.c.h.b16 %v11036
    %v11385 = vunpack.c.h.b16 %v11037
    %v11386 = vunpack.c.h.b16 %v11038
    %v11387 = vunpack.c.l.b16 %v11039
    %v11388 = vunpack.c.l.b16 %v11040
    %v11389 = vunpack.c.l.b16 %v11041
    %v11390 = vunpack.c.l.b16 %v11042
    %v11391 = vunpack.c.h.b16 %v11039
    %v11392 = vunpack.c.h.b16 %v11040
    %v11393 = vunpack.c.h.b16 %v11041
    %v11394 = vunpack.c.h.b16 %v11042
    %v11395 = vunpack.c.l.b16 %v11043
    %v11396 = vunpack.c.l.b16 %v11044
    %v11397 = vunpack.c.l.b16 %v11045
    %v11398 = vunpack.c.l.b16 %v11046
    %v11399 = vunpack.c.h.b16 %v11043
    %v11400 = vunpack.c.h.b16 %v11044
    %v11401 = vunpack.c.h.b16 %v11045
    %v11402 = vunpack.c.h.b16 %v11046
    %v11403 = vunpack.c.l.b16 %v11047
    %v11404 = vunpack.c.l.b16 %v11048
    %v11405 = vunpack.c.l.b16 %v11049
    %v11406 = vunpack.c.l.b16 %v11050
    %v11407 = vunpack.c.h.b16 %v11047
    %v11408 = vunpack.c.h.b16 %v11048
    %v11409 = vunpack.c.h.b16 %v11049
    %v11410 = vunpack.c.h.b16 %v11050
    %v11411 = vunpack.c.l.b16 %v11051
    %v11412 = vunpack.c.l.b16 %v11052
    %v11413 = vunpack.c.l.b16 %v11053
    %v11414 = vunpack.c.l.b16 %v11054
    %v11415 = vunpack.c.h.b16 %v11051
    %v11416 = vunpack.c.h.b16 %v11052
    %v11417 = vunpack.c.h.b16 %v11053
    %v11418 = vunpack.c.h.b16 %v11054
    %v11419 = vunpack.c.l.b16 %v11055
    %v11420 = vunpack.c.l.b16 %v11056
    %v11421 = vunpack.c.l.b16 %v11057
    %v11422 = vunpack.c.l.b16 %v11058
    %v11423 = vunpack.c.h.b16 %v11055
    %v11424 = vunpack.c.h.b16 %v11056
    %v11425 = vunpack.c.h.b16 %v11057
    %v11426 = vunpack.c.h.b16 %v11058
    %v11427 = vunpack.c.l.b16 %v11059
    %v11428 = vunpack.c.l.b16 %v11060
    %v11429 = vunpack.c.l.b16 %v11061
    %v11430 = vunpack.c.l.b16 %v11062
    %v11431 = vunpack.c.h.b16 %v11059
    %v11432 = vunpack.c.h.b16 %v11060
    %v11433 = vunpack.c.h.b16 %v11061
    %v11434 = vunpack.c.h.b16 %v11062
    %v11435 = vunpack.c.l.b16 %v11063
    %v11436 = vunpack.c.l.b16 %v11064
    %v11437 = vunpack.c.l.b16 %v11065
    %v11438 = vunpack.c.l.b16 %v11066
    %v11439 = vunpack.c.h.b16 %v11063
    %v11440 = vunpack.c.h.b16 %v11064
    %v11441 = vunpack.c.h.b16 %v11065
    %v11442 = vunpack.c.h.b16 %v11066
    %v11443 = vunpack.c.l.b16 %v11067
    %v11444 = vunpack.c.l.b16 %v11068
    %v11445 = vunpack.c.l.b16 %v11069
    %v11446 = vunpack.c.l.b16 %v11070
    %v11447 = vunpack.c.h.b16 %v11067
    %v11448 = vunpack.c.h.b16 %v11068
    %v11449 = vunpack.c.h.b16 %v11069
    %v11450 = vunpack.c.h.b16 %v11070
    %v11451 = vunpack.c.l.b16 %v11071
    %v11452 = vunpack.c.l.b16 %v11072
    %v11453 = vunpack.c.l.b16 %v11073
    %v11454 = vunpack.c.l.b16 %v11074
    %v11455 = vunpack.c.h.b16 %v11071
    %v11456 = vunpack.c.h.b16 %v11072
    %v11457 = vunpack.c.h.b16 %v11073
    %v11458 = vunpack.c.h.b16 %v11074
    %v11459 = vpack.c.b16 %v11204, %v11203
    %v11460 = vpack.c.b16 %v11206, %v11205
    %v11461 = vpack.c.b16 %v11208, %v11207
    %v11462 = vpack.c.b16 %v11210, %v11209
    %v11463 = vpack.c.b16 %v11212, %v11211
    %v11464 = vpack.c.b16 %v11214, %v11213
    %v11465 = vpack.c.b16 %v11216, %v11215
    %v11466 = vpack.c.b16 %v11218, %v11217
    %v11467 = vpack.c.b16 %v11220, %v11219
    %v11468 = vpack.c.b16 %v11222, %v11221
    %v11469 = vpack.c.b16 %v11224, %v11223
    %v11470 = vpack.c.b16 %v11226, %v11225
    %v11471 = vpack.c.b16 %v11228, %v11227
    %v11472 = vpack.c.b16 %v11230, %v11229
    %v11473 = vpack.c.b16 %v11232, %v11231
    %v11474 = vpack.c.b16 %v11234, %v11233
    %v11475 = vpack.c.b16 %v11236, %v11235
    %v11476 = vpack.c.b16 %v11238, %v11237
    %v11477 = vpack.c.b16 %v11240, %v11239
    %v11478 = vpack.c.b16 %v11242, %v11241
    %v11479 = vpack.c.b16 %v11244, %v11243
    %v11480 = vpack.c.b16 %v11246, %v11245
    %v11481 = vpack.c.b16 %v11248, %v11247
    %v11482 = vpack.c.b16 %v11250, %v11249
    %v11483 = vpack.c.b16 %v11252, %v11251
    %v11484 = vpack.c.b16 %v11254, %v11253
    %v11485 = vpack.c.b16 %v11256, %v11255
    %v11486 = vpack.c.b16 %v11258, %v11257
    %v11487 = vpack.c.b16 %v11260, %v11259
    %v11488 = vpack.c.b16 %v11262, %v11261
    %v11489 = vpack.c.b16 %v11264, %v11263
    %v11490 = vpack.c.b16 %v11266, %v11265
    %v11491 = vpack.c.b16 %v11268, %v11267
    %v11492 = vpack.c.b16 %v11270, %v11269
    %v11493 = vpack.c.b16 %v11272, %v11271
    %v11494 = vpack.c.b16 %v11274, %v11273
    %v11495 = vpack.c.b16 %v11276, %v11275
    %v11496 = vpack.c.b16 %v11278, %v11277
    %v11497 = vpack.c.b16 %v11280, %v11279
    %v11498 = vpack.c.b16 %v11282, %v11281
    %v11499 = vpack.c.b16 %v11284, %v11283
    %v11500 = vpack.c.b16 %v11286, %v11285
    %v11501 = vpack.c.b16 %v11288, %v11287
    %v11502 = vpack.c.b16 %v11290, %v11289
    %v11503 = vpack.c.b16 %v11292, %v11291
    %v11504 = vpack.c.b16 %v11294, %v11293
    %v11505 = vpack.c.b16 %v11296, %v11295
    %v11506 = vpack.c.b16 %v11298, %v11297
    %v11507 = vpack.c.b16 %v11300, %v11299
    %v11508 = vpack.c.b16 %v11302, %v11301
    %v11509 = vpack.c.b16 %v11304, %v11303
    %v11510 = vpack.c.b16 %v11306, %v11305
    %v11511 = vpack.c.b16 %v11308, %v11307
    %v11512 = vpack.c.b16 %v11310, %v11309
    %v11513 = vpack.c.b16 %v11312, %v11311
    %v11514 = vpack.c.b16 %v11314, %v11313
    %v11515 = vpack.c.b16 %v11316, %v11315
    %v11516 = vpack.c.b16 %v11318, %v11317
    %v11517 = vpack.c.b16 %v11320, %v11319
    %v11518 = vpack.c.b16 %v11322, %v11321
    %v11519 = vpack.c.b16 %v11324, %v11323
    %v11520 = vpack.c.b16 %v11326, %v11325
    %v11521 = vpack.c.b16 %v11328, %v11327
    %v11522 = vpack.c.b16 %v11330, %v11329
    %v11523 = vpack.c.b16 %v11332, %v11331
    %v11524 = vpack.c.b16 %v11334, %v11333
    %v11525 = vpack.c.b16 %v11336, %v11335
    %v11526 = vpack.c.b16 %v11338, %v11337
    %v11527 = vpack.c.b16 %v11340, %v11339
    %v11528 = vpack.c.b16 %v11342, %v11341
    %v11529 = vpack.c.b16 %v11344, %v11343
    %v11530 = vpack.c.b16 %v11346, %v11345
    %v11531 = vpack.c.b16 %v11348, %v11347
    %v11532 = vpack.c.b16 %v11350, %v11349
    %v11533 = vpack.c.b16 %v11352, %v11351
    %v11534 = vpack.c.b16 %v11354, %v11353
    %v11535 = vpack.c.b16 %v11356, %v11355
    %v11536 = vpack.c.b16 %v11358, %v11357
    %v11537 = vpack.c.b16 %v11360, %v11359
    %v11538 = vpack.c.b16 %v11362, %v11361
    %v11539 = vpack.c.b16 %v11364, %v11363
    %v11540 = vpack.c.b16 %v11366, %v11365
    %v11541 = vpack.c.b16 %v11368, %v11367
    %v11542 = vpack.c.b16 %v11370, %v11369
    %v11543 = vpack.c.b16 %v11372, %v11371
    %v11544 = vpack.c.b16 %v11374, %v11373
    %v11545 = vpack.c.b16 %v11376, %v11375
    %v11546 = vpack.c.b16 %v11378, %v11377
    %v11547 = vpack.c.b16 %v11380, %v11379
    %v11548 = vpack.c.b16 %v11382, %v11381
    %v11549 = vpack.c.b16 %v11384, %v11383
    %v11550 = vpack.c.b16 %v11386, %v11385
    %v11551 = vpack.c.b16 %v11388, %v11387
    %v11552 = vpack.c.b16 %v11390, %v11389
    %v11553 = vpack.c.b16 %v11392, %v11391
    %v11554 = vpack.c.b16 %v11394, %v11393
    %v11555 = vpack.c.b16 %v11396, %v11395
    %v11556 = vpack.c.b16 %v11398, %v11397
    %v11557 = vpack.c.b16 %v11400, %v11399
    %v11558 = vpack.c.b16 %v11402, %v11401
    %v11559 = vpack.c.b16 %v11404, %v11403
    %v11560 = vpack.c.b16 %v11406, %v11405
    %v11561 = vpack.c.b16 %v11408, %v11407
    %v11562 = vpack.c.b16 %v11410, %v11409
    %v11563 = vpack.c.b16 %v11412, %v11411
    %v11564 = vpack.c.b16 %v11414, %v11413
    %v11565 = vpack.c.b16 %v11416, %v11415
    %v11566 = vpack.c.b16 %v11418, %v11417
    %v11567 = vpack.c.b16 %v11420, %v11419
    %v11568 = vpack.c.b16 %v11422, %v11421
    %v11569 = vpack.c.b16 %v11424, %v11423
    %v11570 = vpack.c.b16 %v11426, %v11425
    %v11571 = vpack.c.b16 %v11428, %v11427
    %v11572 = vpack.c.b16 %v11430, %v11429
    %v11573 = vpack.c.b16 %v11432, %v11431
    %v11574 = vpack.c.b16 %v11434, %v11433
    %v11575 = vpack.c.b16 %v11436, %v11435
    %v11576 = vpack.c.b16 %v11438, %v11437
    %v11577 = vpack.c.b16 %v11440, %v11439
    %v11578 = vpack.c.b16 %v11442, %v11441
    %v11579 = vpack.c.b16 %v11444, %v11443
    %v11580 = vpack.c.b16 %v11446, %v11445
    %v11581 = vpack.c.b16 %v11448, %v11447
    %v11582 = vpack.c.b16 %v11450, %v11449
    %v11583 = vpack.c.b16 %v11452, %v11451
    %v11584 = vpack.c.b16 %v11454, %v11453
    %v11585 = vpack.c.b16 %v11456, %v11455
    %v11586 = vpack.c.b16 %v11458, %v11457
    %s11715 = scalar_lea.vmem [#allocation9], 1024
    %11716 = vst [vmem:[%s11715] sm:$0xff] %v11459
    %11717 = vst [vmem:[%s11715 + $0x8] sm:$0xff] %v11460
    %11718 = vst [vmem:[%s11715 + $0x10] sm:$0xff] %v11461
    %11719 = vst [vmem:[%s11715 + $0x18] sm:$0xff] %v11462
    %11720 = vst [vmem:[%s11715 + $0x20] sm:$0xff] %v11463
    %11721 = vst [vmem:[%s11715 + $0x28] sm:$0xff] %v11464
    %11722 = vst [vmem:[%s11715 + $0x30] sm:$0xff] %v11465
    %11723 = vst [vmem:[%s11715 + $0x38] sm:$0xff] %v11466
    %11724 = vst [vmem:[%s11715 + $0x40] sm:$0xff] %v11467
    %11725 = vst [vmem:[%s11715 + $0x48] sm:$0xff] %v11468
    %11726 = vst [vmem:[%s11715 + $0x50] sm:$0xff] %v11469
    %11727 = vst [vmem:[%s11715 + $0x58] sm:$0xff] %v11470
    %11728 = vst [vmem:[%s11715 + $0x60] sm:$0xff] %v11471
    %11729 = vst [vmem:[%s11715 + $0x68] sm:$0xff] %v11472
    %11730 = vst [vmem:[%s11715 + $0x70] sm:$0xff] %v11473
    %11731 = vst [vmem:[%s11715 + $0x78] sm:$0xff] %v11474
    %11732 = vst [vmem:[%s11715 + $0x80] sm:$0xff] %v11475
    %11733 = vst [vmem:[%s11715 + $0x88] sm:$0xff] %v11476
    %11734 = vst [vmem:[%s11715 + $0x90] sm:$0xff] %v11477
    %11735 = vst [vmem:[%s11715 + $0x98] sm:$0xff] %v11478
    %11736 = vst [vmem:[%s11715 + $0xa0] sm:$0xff] %v11479
    %11737 = vst [vmem:[%s11715 + $0xa8] sm:$0xff] %v11480
    %11738 = vst [vmem:[%s11715 + $0xb0] sm:$0xff] %v11481
    %11739 = vst [vmem:[%s11715 + $0xb8] sm:$0xff] %v11482
    %11740 = vst [vmem:[%s11715 + $0xc0] sm:$0xff] %v11483
    %11741 = vst [vmem:[%s11715 + $0xc8] sm:$0xff] %v11484
    %11742 = vst [vmem:[%s11715 + $0xd0] sm:$0xff] %v11485
    %11743 = vst [vmem:[%s11715 + $0xd8] sm:$0xff] %v11486
    %11744 = vst [vmem:[%s11715 + $0xe0] sm:$0xff] %v11487
    %11745 = vst [vmem:[%s11715 + $0xe8] sm:$0xff] %v11488
    %11746 = vst [vmem:[%s11715 + $0xf0] sm:$0xff] %v11489
    %11747 = vst [vmem:[%s11715 + $0xf8] sm:$0xff] %v11490
    %11748 = vst [vmem:[%s11715 + $0x100] sm:$0xff] %v11491
    %11749 = vst [vmem:[%s11715 + $0x108] sm:$0xff] %v11492
    %11750 = vst [vmem:[%s11715 + $0x110] sm:$0xff] %v11493
    %11751 = vst [vmem:[%s11715 + $0x118] sm:$0xff] %v11494
    %11752 = vst [vmem:[%s11715 + $0x120] sm:$0xff] %v11495
    %11753 = vst [vmem:[%s11715 + $0x128] sm:$0xff] %v11496
    %11754 = vst [vmem:[%s11715 + $0x130] sm:$0xff] %v11497
    %11755 = vst [vmem:[%s11715 + $0x138] sm:$0xff] %v11498
    %11756 = vst [vmem:[%s11715 + $0x140] sm:$0xff] %v11499
    %11757 = vst [vmem:[%s11715 + $0x148] sm:$0xff] %v11500
    %11758 = vst [vmem:[%s11715 + $0x150] sm:$0xff] %v11501
    %11759 = vst [vmem:[%s11715 + $0x158] sm:$0xff] %v11502
    %11760 = vst [vmem:[%s11715 + $0x160] sm:$0xff] %v11503
    %11761 = vst [vmem:[%s11715 + $0x168] sm:$0xff] %v11504
    %11762 = vst [vmem:[%s11715 + $0x170] sm:$0xff] %v11505
    %11763 = vst [vmem:[%s11715 + $0x178] sm:$0xff] %v11506
    %11764 = vst [vmem:[%s11715 + $0x180] sm:$0xff] %v11507
    %11765 = vst [vmem:[%s11715 + $0x188] sm:$0xff] %v11508
    %11766 = vst [vmem:[%s11715 + $0x190] sm:$0xff] %v11509
    %11767 = vst [vmem:[%s11715 + $0x198] sm:$0xff] %v11510
    %11768 = vst [vmem:[%s11715 + $0x1a0] sm:$0xff] %v11511
    %11769 = vst [vmem:[%s11715 + $0x1a8] sm:$0xff] %v11512
    %11770 = vst [vmem:[%s11715 + $0x1b0] sm:$0xff] %v11513
    %11771 = vst [vmem:[%s11715 + $0x1b8] sm:$0xff] %v11514
    %11772 = vst [vmem:[%s11715 + $0x1c0] sm:$0xff] %v11515
    %11773 = vst [vmem:[%s11715 + $0x1c8] sm:$0xff] %v11516
    %11774 = vst [vmem:[%s11715 + $0x1d0] sm:$0xff] %v11517
    %11775 = vst [vmem:[%s11715 + $0x1d8] sm:$0xff] %v11518
    %11776 = vst [vmem:[%s11715 + $0x1e0] sm:$0xff] %v11519
    %11777 = vst [vmem:[%s11715 + $0x1e8] sm:$0xff] %v11520
    %11778 = vst [vmem:[%s11715 + $0x1f0] sm:$0xff] %v11521
    %11779 = vst [vmem:[%s11715 + $0x1f8] sm:$0xff] %v11522
    %11780 = vst [vmem:[%s11715 + $0x200] sm:$0xff] %v11523
    %11781 = vst [vmem:[%s11715 + $0x208] sm:$0xff] %v11524
    %11782 = vst [vmem:[%s11715 + $0x210] sm:$0xff] %v11525
    %11783 = vst [vmem:[%s11715 + $0x218] sm:$0xff] %v11526
    %11784 = vst [vmem:[%s11715 + $0x220] sm:$0xff] %v11527
    %11785 = vst [vmem:[%s11715 + $0x228] sm:$0xff] %v11528
    %11786 = vst [vmem:[%s11715 + $0x230] sm:$0xff] %v11529
    %11787 = vst [vmem:[%s11715 + $0x238] sm:$0xff] %v11530
    %11788 = vst [vmem:[%s11715 + $0x240] sm:$0xff] %v11531
    %11789 = vst [vmem:[%s11715 + $0x248] sm:$0xff] %v11532
    %11790 = vst [vmem:[%s11715 + $0x250] sm:$0xff] %v11533
    %11791 = vst [vmem:[%s11715 + $0x258] sm:$0xff] %v11534
    %11792 = vst [vmem:[%s11715 + $0x260] sm:$0xff] %v11535
    %11793 = vst [vmem:[%s11715 + $0x268] sm:$0xff] %v11536
    %11794 = vst [vmem:[%s11715 + $0x270] sm:$0xff] %v11537
    %11795 = vst [vmem:[%s11715 + $0x278] sm:$0xff] %v11538
    %11796 = vst [vmem:[%s11715 + $0x280] sm:$0xff] %v11539
    %11797 = vst [vmem:[%s11715 + $0x288] sm:$0xff] %v11540
    %11798 = vst [vmem:[%s11715 + $0x290] sm:$0xff] %v11541
    %11799 = vst [vmem:[%s11715 + $0x298] sm:$0xff] %v11542
    %11800 = vst [vmem:[%s11715 + $0x2a0] sm:$0xff] %v11543
    %11801 = vst [vmem:[%s11715 + $0x2a8] sm:$0xff] %v11544
    %11802 = vst [vmem:[%s11715 + $0x2b0] sm:$0xff] %v11545
    %11803 = vst [vmem:[%s11715 + $0x2b8] sm:$0xff] %v11546
    %11804 = vst [vmem:[%s11715 + $0x2c0] sm:$0xff] %v11547
    %11805 = vst [vmem:[%s11715 + $0x2c8] sm:$0xff] %v11548
    %11806 = vst [vmem:[%s11715 + $0x2d0] sm:$0xff] %v11549
    %11807 = vst [vmem:[%s11715 + $0x2d8] sm:$0xff] %v11550
    %11808 = vst [vmem:[%s11715 + $0x2e0] sm:$0xff] %v11551
    %11809 = vst [vmem:[%s11715 + $0x2e8] sm:$0xff] %v11552
    %11810 = vst [vmem:[%s11715 + $0x2f0] sm:$0xff] %v11553
    %11811 = vst [vmem:[%s11715 + $0x2f8] sm:$0xff] %v11554
    %11812 = vst [vmem:[%s11715 + $0x300] sm:$0xff] %v11555
    %11813 = vst [vmem:[%s11715 + $0x308] sm:$0xff] %v11556
    %11814 = vst [vmem:[%s11715 + $0x310] sm:$0xff] %v11557
    %11815 = vst [vmem:[%s11715 + $0x318] sm:$0xff] %v11558
    %11816 = vst [vmem:[%s11715 + $0x320] sm:$0xff] %v11559
    %11817 = vst [vmem:[%s11715 + $0x328] sm:$0xff] %v11560
    %11818 = vst [vmem:[%s11715 + $0x330] sm:$0xff] %v11561
    %11819 = vst [vmem:[%s11715 + $0x338] sm:$0xff] %v11562
    %11820 = vst [vmem:[%s11715 + $0x340] sm:$0xff] %v11563
    %11821 = vst [vmem:[%s11715 + $0x348] sm:$0xff] %v11564
    %11822 = vst [vmem:[%s11715 + $0x350] sm:$0xff] %v11565
    %11823 = vst [vmem:[%s11715 + $0x358] sm:$0xff] %v11566
    %11824 = vst [vmem:[%s11715 + $0x360] sm:$0xff] %v11567
    %11825 = vst [vmem:[%s11715 + $0x368] sm:$0xff] %v11568
    %11826 = vst [vmem:[%s11715 + $0x370] sm:$0xff] %v11569
    %11827 = vst [vmem:[%s11715 + $0x378] sm:$0xff] %v11570
    %11828 = vst [vmem:[%s11715 + $0x380] sm:$0xff] %v11571
    %11829 = vst [vmem:[%s11715 + $0x388] sm:$0xff] %v11572
    %11830 = vst [vmem:[%s11715 + $0x390] sm:$0xff] %v11573
    %11831 = vst [vmem:[%s11715 + $0x398] sm:$0xff] %v11574
    %11832 = vst [vmem:[%s11715 + $0x3a0] sm:$0xff] %v11575
    %11833 = vst [vmem:[%s11715 + $0x3a8] sm:$0xff] %v11576
    %11834 = vst [vmem:[%s11715 + $0x3b0] sm:$0xff] %v11577
    %11835 = vst [vmem:[%s11715 + $0x3b8] sm:$0xff] %v11578
    %11836 = vst [vmem:[%s11715 + $0x3c0] sm:$0xff] %v11579
    %11837 = vst [vmem:[%s11715 + $0x3c8] sm:$0xff] %v11580
    %11838 = vst [vmem:[%s11715 + $0x3d0] sm:$0xff] %v11581
    %11839 = vst [vmem:[%s11715 + $0x3d8] sm:$0xff] %v11582
    %11840 = vst [vmem:[%s11715 + $0x3e0] sm:$0xff] %v11583
    %11841 = vst [vmem:[%s11715 + $0x3e8] sm:$0xff] %v11584
    %11842 = vst [vmem:[%s11715 + $0x3f0] sm:$0xff] %v11585
    %11843 = vst [vmem:[%s11715 + $0x3f8] sm:$0xff] %v11586
    // Predicated region
    $region10: #{tpu_custom_call.1} parent=1 // pred_check
      _
    $region11: #{tpu_custom_call.1} parent=1 // pred_check_branch
      %11845 = sbr.rel (0) target = $region13
    $region12: #{tpu_custom_call.1} parent=1 // pred_region
      %s11847 = ssub.s32 32768, 32768
      %11848 = vsyncadd [#allocation7], %s11847
      %s11849 = sshll.u32 [#allocation8], 4
      %s11850 = int_to_ptr.vmem [resolvable:$true] %s11849
      %11855 = dma.vmem_to_hbm [thread:$0]  %s11850, 32768, %s3, [#allocation7], 256, 256, 16
    $region13: #{tpu_custom_call.1} parent=1 // pred_fallthru
      _
    // Predicated region
    $region14: #{tpu_custom_call.1} parent=1 // pred_check
      _
    $region15: #{tpu_custom_call.1} parent=1 // pred_check_branch
      %11857 = sbr.rel (0) target = $region17
    $region16: #{tpu_custom_call.1} parent=1 // pred_region
      %s11859 = ssub.s32 32768, 32768
      %11860 = vsyncadd [#allocation10], %s11859
      %s11861 = sshll.u32 [#allocation9], 4
      %s11862 = int_to_ptr.vmem [resolvable:$true] %s11861
      %11867 = dma.vmem_to_hbm [thread:$0]  %s11862, 32768, %s4, [#allocation10], 256, 256, 16
    $region17: #{tpu_custom_call.1} parent=1 // pred_fallthru
      _
    // Predicated region
    $region18: #{tpu_custom_call.1} parent=1 // pred_check
      _
    $region19: #{tpu_custom_call.1} parent=1 // pred_check_branch
      %11869 = sbr.rel (0) target = $region21
    $region20: #{tpu_custom_call.1} parent=1 // pred_region
      %11870 = dma.done [#allocation7], 32768
    $region21: #{tpu_custom_call.1} parent=1 // pred_fallthru
      _
    // Predicated region
    $region22: #{tpu_custom_call.1} parent=1 // pred_check
      _
    $region23: #{tpu_custom_call.1} parent=1 // pred_check_branch
      %11872 = sbr.rel (0) target = $region25
    $region24: #{tpu_custom_call.1} parent=1 // pred_region
      %11873 = dma.done [#allocation10], 32768
    $region25: #{tpu_custom_call.1} parent=1 // pred_fallthru
      _
    %11874 = vsyncpa [#allocation6], 1
    %11875 = vsyncpa [#allocation7], 1
    %11876 = vsyncpa [#allocation10], 1

</llo_original>
